<compile_context>
chip_gen: v5e
topology: v5e:2x2
jax: 0.10.0
libtpu: 0.0.40
codegen_flags: <defaults>
</compile_context>

<pallas_src>
import functools

import jax
import jax.numpy as jnp
import numpy as np
from jax.experimental import pallas as pl
from jax.experimental.pallas import tpu as pltpu

_EPS = 1e-5


def _device_kind():
    try:
        return jax.devices()[0].device_kind.lower()
    except Exception:  # defensive: fall back to the always-correct f32 path
        return ""


def _bn_scale_shift(col_sum, col_sumsq, gamma, beta, count):
    """Fold training-mode BN into per-channel scale/shift (single-FMA apply).

    One-pass var = E[x^2] - mu^2 clamped at 0.  Assumption: activations are conv
    outputs of roughly normalized inputs accumulated in f32, so means stay O(1)
    and cancellation does not dominate at these scales.
    """
    mu = col_sum / count
    var = jnp.maximum(col_sumsq / count - mu * mu, 0.0)
    scale = gamma * jax.lax.rsqrt(var + _EPS)
    shift = beta - mu * scale
    return scale, shift


# ----------------- K1: conv1 (+ shortcut conv) + per-block BN statistics -----------------
def _conv1_proj_kernel(has_proj, x_ref, w1_ref, *rest):
    if has_proj:
        (ws_ref, wsb_ref,
         h1_ref, s1_ref, q1_ref, sc_ref, ss_ref, qs_ref) = rest
    else:
        h1_ref, s1_ref, q1_ref = rest

    x = x_ref[...]                                                    # (TM, Cin) bf16
    h = jnp.dot(x, w1_ref[...], preferred_element_type=jnp.float32)   # (TM, P) f32
    h1_ref[...] = h.astype(h1_ref.dtype)                              # bf16 handoff
    # Stats from the pre-cast f32 values (per-block partial sums, reduced on host).
    s1_ref[...] = jnp.sum(h, axis=0, keepdims=True)[None]
    q1_ref[...] = jnp.sum(h * h, axis=0, keepdims=True)[None]

    if has_proj:
        sc = jnp.dot(x, ws_ref[...], preferred_element_type=jnp.float32) + wsb_ref[...]
        sc_ref[...] = sc.astype(sc_ref.dtype)
        ss_ref[...] = jnp.sum(sc, axis=0, keepdims=True)[None]
        qs_ref[...] = jnp.sum(sc * sc, axis=0, keepdims=True)[None]


# ----------------- K2: per-sample MHSA + per-block bn2 statistics -----------------
def _mhsa_kernel(heads, planes, use_bf16_softmax,
                 h1_ref, sc1_ref, sh1_ref, wqkv_ref, bqkv_ref, rel_ref,
                 h2_ref, s2_ref, q2_ref):
    f32, bf16 = jnp.float32, jnp.bfloat16
    p = planes
    d = p // heads

    # bn1-apply (host-folded scale/shift) + relu; bn1 stats were taken from f32 in K1.
    a = jnp.maximum(h1_ref[...].astype(f32) * sc1_ref[...] + sh1_ref[...], 0.0)
    ab = a.astype(bf16)                                               # (WH, P)

    # Fused q|k|v projection: a single MXU matmul with 3P output lanes.
    qkv = jnp.dot(ab, wqkv_ref[...], preferred_element_type=f32) + bqkv_ref[...]
    q = qkv[:, :p].astype(bf16)                                       # (WH, P)
    k = qkv[:, p:2 * p].astype(bf16)                                  # (WH, P)
    # v transposed once (f32 XLU transpose) so every att@v matmul is lane-dense.
    vT = qkv[:, 2 * p:].T.astype(bf16)                                # (P, WH)
    rel = rel_ref[...]                                                # (WH, P) bf16

    head_outs = []
    for hd in range(heads):                                           # static unroll
        sl = slice(hd * d, (hd + 1) * d)
        qh, kh, rh, vhT = q[:, sl], k[:, sl], rel[:, sl], vT[sl, :]
        # Merged content-content + content-position scores (single matmul, K=2d):
        #   e[i, j] = q_i . k_j + rel_i . q_j
        e = jnp.einsum('ic,jc->ij',
                       jnp.concatenate([qh, rh], axis=-1),
                       jnp.concatenate([kh, qh], axis=-1),
                       preferred_element_type=f32)                    # (WH, WH)
        mx = jnp.max(e, axis=-1, keepdims=True)
        xs = e - mx
        if use_bf16_softmax:                                          # v6e / v7x only
            ex = jnp.exp(xs.astype(bf16))
            den = jnp.sum(ex.astype(f32), axis=-1, keepdims=True)     # f32 accumulate
        else:                                                         # v5e: f32 VPU/EUP
            ex = jnp.exp(xs)
            den = jnp.sum(ex, axis=-1, keepdims=True)
        inv = pl.reciprocal(den, approx=True)                         # EUP, off the VPU
        att = (ex * inv.astype(ex.dtype)).astype(bf16)                # (WH, WH)
        # out.T[dd, i] = sum_j v[j, dd] * att[i, j]  ->  (d, WH): N = WH lane-dense.
        head_outs.append(jnp.einsum('dj,ij->di', vhT, att,
                                    preferred_element_type=f32))
    h2t = jnp.concatenate(head_outs, axis=0)                          # (P, WH) f32
    h2 = h2t.T                                                        # (WH, P) f32 (XLU)
    h2_ref[...] = h2.astype(h2_ref.dtype)                             # bf16 handoff
    s2_ref[...] = jnp.sum(h2, axis=0, keepdims=True)[None]            # f32 stats
    q2_ref[...] = jnp.sum(h2 * h2, axis=0, keepdims=True)[None]
    # TODO(synk): for WH >= ~1024 (large resolutions) this should switch to a
    # flash-style online-softmax loop over key/value tiles instead of the full
    # (WH, WH) score matrix per head.


# ----------------- K3: bn2-apply + relu + conv3 + per-block bn3 statistics -----------------
def _conv3_kernel(h2_ref, sc2_ref, sh2_ref, w3_ref, h3_ref, s3_ref, q3_ref):
    a2 = jnp.maximum(h2_ref[...].astype(jnp.float32) * sc2_ref[...] + sh2_ref[...], 0.0)
    o = jnp.dot(a2.astype(jnp.bfloat16), w3_ref[...],
                preferred_element_type=jnp.float32)                   # (TM, 4P)
    h3_ref[...] = o
    s3_ref[...] = jnp.sum(o, axis=0, keepdims=True)[None]
    q3_ref[...] = jnp.sum(o * o, axis=0, keepdims=True)[None]


# ----------------- K4: bn3-apply + shortcut + relu -----------------
def _combine_kernel(has_proj, h3_ref, sc3_ref, sh3_ref, *rest):
    if has_proj:
        sc_ref, scs_ref, scsh_ref, out_ref = rest
    else:
        xid_ref, out_ref = rest
    o = h3_ref[...] * sc3_ref[...] + sh3_ref[...]
    if has_proj:
        shortcut = sc_ref[...].astype(jnp.float32) * scs_ref[...] + scsh_ref[...]
    else:
        shortcut = xid_ref[...]
    out_ref[...] = jnp.maximum(o + shortcut, 0.0)


def bottleneck_transformer_forward(x_nchw, params, heads, tile_m=1024):
    """Forward pass of Bottleneck_Transformer (stride=1, use_mlp=False)."""
    n, cin, hh, ww = x_nchw.shape
    wh = hh * ww
    m = n * wh
    p = params["w1"].shape[1]
    c4 = params["w3"].shape[1]
    d = p // heads
    assert p % heads == 0
    # TODO(synk): stride==2 AvgPool2d downsampling and the use_mlp branch are not
    # implemented (module defaults: stride=1, use_mlp=False).
    has_proj = cin != c4

    f32, bf16 = jnp.float32, jnp.bfloat16

    # Chip-dependent knobs: bf16 elementwise softmax only where the VPU/EUP support
    # it (v6e/v7x), and a smaller VMEM budget on v7x (64 MiB physical per TC).
    dk = _device_kind()
    is_v7 = "v7" in dk
    use_bf16_softmax = ("v6" in dk) or is_v7
    vmem_limit = (40 if is_v7 else 64) * 1024 * 1024

    def cparams(sem):
        return pltpu.CompilerParams(dimension_semantics=sem,
                                    vmem_limit_bytes=vmem_limit)

    # NCHW -> (M, C) channels-last rows.  Skip the f32 row copy when the identity
    # shortcut is unused (only the bf16 copy feeds the matmuls).
    if has_proj:
        x_bf = jnp.transpose(x_nchw, (0, 2, 3, 1)).reshape(m, cin).astype(bf16)
        x_id = None
    else:
        x_id = jnp.transpose(x_nchw, (0, 2, 3, 1)).reshape(m, cin).astype(f32)
        x_bf = x_id.astype(bf16)

    # Relative-position table (rel_h + rel_w) in a lane-friendly (WH, heads*d) layout.
    rel = (params["rel_h"] + params["rel_w"]).reshape(heads, d, wh)
    rel_t = jnp.transpose(rel, (2, 0, 1)).reshape(wh, p).astype(bf16)

    # Fused q|k|v weights and bias.
    wqkv = jnp.concatenate([params["wq"], params["wk"], params["wv"]], axis=1).astype(bf16)
    bqkv = jnp.concatenate([params["bq"], params["bk"], params["bv"]], axis=1)

    # Row-tile sizing from a VMEM budget (dominant double-buffered streams per row).
    row_bytes = max(cin * 2 + p * 2 + (c4 * 2 if has_proj else 0),     # K1
                    p * 2 + c4 * 4,                                    # K3
                    c4 * 4 + (c4 * 2 if has_proj else cin * 4) + c4 * 4)  # K4
    tm_budget = max(256, ((vmem_limit // 4) // (2 * row_bytes)) // 256 * 256)
    tm = min(tile_m, m, tm_budget)
    while m % tm != 0 and tm > 8:
        tm //= 2
    assert m % tm == 0 and tm % 8 == 0 and wh % 8 == 0
    grid_m = m // tm
    count = float(m)

    row_spec = lambda c: pl.BlockSpec((tm, c), lambda i: (i, 0))
    vec_spec = lambda c: pl.BlockSpec((1, c), lambda i: (0, 0))
    full_spec = lambda r, c: pl.BlockSpec((r, c), lambda i: (0, 0))
    # Per-grid-block BN partial stats (host-reduced) => no resident accumulator, so
    # every grid axis can be "parallel" (v7x megacore sharding; harmless elsewhere).
    stat_spec = lambda c: pl.BlockSpec((1, 1, c), lambda i: (i, 0, 0))
    stat_shape = lambda g, c: jax.ShapeDtypeStruct((g, 1, c), f32)

    # ---------------- K1: conv1 (+ shortcut conv) + BN stats ----------------
    in_specs1 = [row_spec(cin), full_spec(cin, p)]
    args1 = [x_bf, params["w1"].astype(bf16)]
    out_shape1 = [jax.ShapeDtypeStruct((m, p), bf16), stat_shape(grid_m, p), stat_shape(grid_m, p)]
    out_specs1 = [row_spec(p), stat_spec(p), stat_spec(p)]
    flops1 = 2 * m * cin * p
    bytes1 = m * cin * 2 + cin * p * 2 + m * p * 2
    if has_proj:
        in_specs1 += [full_spec(cin, c4), vec_spec(c4)]
        args1 += [params["ws"].astype(bf16), params["wsb"]]
        out_shape1 += [jax.ShapeDtypeStruct((m, c4), bf16),
                       stat_shape(grid_m, c4), stat_shape(grid_m, c4)]
        out_specs1 += [row_spec(c4), stat_spec(c4), stat_spec(c4)]
        flops1 += 2 * m * cin * c4
        bytes1 += cin * c4 * 2 + m * c4 * 2

    res1 = pl.pallas_call(
        functools.partial(_conv1_proj_kernel, has_proj),
        grid=(grid_m,),
        in_specs=in_specs1,
        out_specs=tuple(out_specs1),
        out_shape=tuple(out_shape1),
        compiler_params=cparams(("parallel",)),
        cost_estimate=pl.CostEstimate(flops=flops1, transcendentals=0,
                                      bytes_accessed=bytes1),
    )(*args1)
    if has_proj:
        h1, s1b, q1b, sc, ssb, qsb = res1
        scale_s, shift_s = _bn_scale_shift(jnp.sum(ssb, axis=0), jnp.sum(qsb, axis=0),
                                           params["gs"], params["bs"], count)
    else:
        h1, s1b, q1b = res1
    scale1, shift1 = _bn_scale_shift(jnp.sum(s1b, axis=0), jnp.sum(q1b, axis=0),
                                     params["g1"], params["b1"], count)

    # ---------------- K2: MHSA per sample + bn2 stats ----------------
    sample_spec = lambda c: pl.BlockSpec((wh, c), lambda b: (b, 0))
    flops2 = 2 * m * p * (3 * p) + 2 * n * wh * wh * (3 * p)
    trans2 = n * heads * wh * wh
    bytes2 = 2 * m * p * 2 + p * 3 * p * 2 + wh * p * 2 + 8 * p * 4
    h2, s2b, q2b = pl.pallas_call(
        functools.partial(_mhsa_kernel, heads, p, use_bf16_softmax),
        grid=(n,),
        in_specs=[
            sample_spec(p), vec_spec(p), vec_spec(p),
            full_spec(p, 3 * p), vec_spec(3 * p),
            full_spec(wh, p),
        ],
        out_specs=(sample_spec(p), stat_spec(p), stat_spec(p)),
        out_shape=(jax.ShapeDtypeStruct((m, p), bf16),
                   stat_shape(n, p), stat_shape(n, p)),
        compiler_params=cparams(("parallel",)),
        cost_estimate=pl.CostEstimate(flops=flops2, transcendentals=trans2,
                                      bytes_accessed=bytes2),
    )(h1, scale1, shift1, wqkv, bqkv, rel_t)
    scale2, shift2 = _bn_scale_shift(jnp.sum(s2b, axis=0), jnp.sum(q2b, axis=0),
                                     params["g2"], params["b2"], count)

    # ---------------- K3: bn2-apply + relu + conv3 + bn3 stats ----------------
    flops3 = 2 * m * p * c4
    bytes3 = m * p * 2 + p * c4 * 2 + m * c4 * 4
    h3, s3b, q3b = pl.pallas_call(
        _conv3_kernel,
        grid=(grid_m,),
        in_specs=[row_spec(p), vec_spec(p), vec_spec(p), full_spec(p, c4)],
        out_specs=(row_spec(c4), stat_spec(c4), stat_spec(c4)),
        out_shape=(jax.ShapeDtypeStruct((m, c4), f32),
                   stat_shape(grid_m, c4), stat_shape(grid_m, c4)),
        compiler_params=cparams(("parallel",)),
        cost_estimate=pl.CostEstimate(flops=flops3, transcendentals=0,
                                      bytes_accessed=bytes3),
    )(h2, scale2, shift2, params["w3"].astype(bf16))
    scale3, shift3 = _bn_scale_shift(jnp.sum(s3b, axis=0), jnp.sum(q3b, axis=0),
                                     params["g3"], params["b3"], count)

    # ---------------- K4: bn3-apply + shortcut + relu (lane-dense output) ----------------
    in_specs4 = [row_spec(c4), vec_spec(c4), vec_spec(c4)]
    args4 = [h3, scale3, shift3]
    bytes4 = m * c4 * 4 + m * c4 * 4
    if has_proj:
        in_specs4 += [row_spec(c4), vec_spec(c4), vec_spec(c4)]
        args4 += [sc, scale_s, shift_s]
        bytes4 += m * c4 * 2
    else:
        in_specs4 += [row_spec(cin)]
        args4 += [x_id]
        bytes4 += m * cin * 4
    out2 = pl.pallas_call(
        functools.partial(_combine_kernel, has_proj),
        grid=(grid_m,),
        in_specs=in_specs4,
        out_specs=pl.BlockSpec((tm, c4), lambda i: (i, 0)),
        out_shape=jax.ShapeDtypeStruct((m, c4), f32),
        compiler_params=cparams(("parallel",)),
        cost_estimate=pl.CostEstimate(flops=5 * m * c4, transcendentals=0,
                                      bytes_accessed=bytes4),
    )(*args4)

    # (M, 4P) -> NCHW
    return jnp.transpose(out2.reshape(n, hh, ww, c4), (0, 3, 1, 2))


def init_params(key, in_planes, planes, expansion, heads, hh, ww):
    """Deterministic synthetic parameters matching the PyTorch module shapes."""
    c4 = expansion * planes
    d = planes // heads
    ks = jax.random.split(key, 10)

    def wmat(k, fan_in, shape):
        return jax.random.normal(k, shape, jnp.float32) / jnp.sqrt(float(fan_in))

    def ramp(c, scale=0.01):
        return scale * jnp.arange(c, dtype=jnp.float32).reshape(1, c)

    def gamma(c):
        return (1.0 + 0.05 * jnp.cos(jnp.arange(c, dtype=jnp.float32))).reshape(1, c)

    return dict(
        # conv1 (1x1, bias=False) + bn1
        w1=wmat(ks[0], in_planes, (in_planes, planes)),
        g1=gamma(planes), b1=ramp(planes),
        # MHSA: q/k/v 1x1 convs (bias=True) + relative-position tables
        wq=wmat(ks[1], planes, (planes, planes)), bq=ramp(planes),
        wk=wmat(ks[2], planes, (planes, planes)), bk=ramp(planes),
        wv=wmat(ks[3], planes, (planes, planes)), bv=ramp(planes),
        rel_h=jax.random.normal(ks[4], (1, heads, d, 1, ww), jnp.float32),
        rel_w=jax.random.normal(ks[5], (1, heads, d, hh, 1), jnp.float32),
        # bn2
        g2=gamma(planes), b2=ramp(planes),
        # conv3 (1x1, bias=False) + bn3
        w3=wmat(ks[6], planes, (planes, c4)),
        g3=gamma(c4), b3=ramp(c4),
        # shortcut: 1x1 conv (bias=True) + BN (used when in_planes != expansion*planes)
        ws=wmat(ks[7], in_planes, (in_planes, c4)), wsb=ramp(c4),
        gs=gamma(c4), bs=ramp(c4),
    )


def reference_forward(x, params, heads):
    """Plain-JAX NCHW reference mirroring the PyTorch forward (training-mode BN)."""
    n, cin, hh, ww = x.shape
    p = params["w1"].shape[1]
    c4 = params["w3"].shape[1]
    d = p // heads

    def bn(h, g, b):
        mu = jnp.mean(h, axis=(0, 2, 3), keepdims=True)
        var = jnp.mean((h - mu) ** 2, axis=(0, 2, 3), keepdims=True)
        return ((h - mu) * jax.lax.rsqrt(var + _EPS) * g.reshape(1, -1, 1, 1)
                + b.reshape(1, -1, 1, 1))

    def conv1x1(h, wmat, bias=None):
        y = jnp.einsum("nchw,co->nohw", h, wmat)
        if bias is not None:
            y = y + bias.reshape(1, -1, 1, 1)
        return y

    out = jnp.maximum(bn(conv1x1(x, params["w1"]), params["g1"], params["b1"]), 0.0)

    # MHSA: content-content + content-position attention, exactly as in PyTorch code.
    q = conv1x1(out, params["wq"], params["bq"]).reshape(n, heads, d, hh * ww)
    k = conv1x1(out, params["wk"], params["bk"]).reshape(n, heads, d, hh * ww)
    v = conv1x1(out, params["wv"], params["bv"]).reshape(n, heads, d, hh * ww)
    cc = jnp.einsum("nhdi,nhdj->nhij", q, k)
    rel = (params["rel_h"] + params["rel_w"]).reshape(heads, d, hh * ww)
    cp = jnp.einsum("hdi,nhdj->nhij", rel, q)
    att = jax.nn.softmax(cc + cp, axis=-1)
    mh = jnp.einsum("nhdj,nhij->nhdi", v, att).reshape(n, p, hh, ww)

    out = jnp.maximum(bn(mh, params["g2"], params["b2"]), 0.0)
    out = bn(conv1x1(out, params["w3"]), params["g3"], params["b3"])
    if cin == c4:
        shortcut = x
    else:
        shortcut = bn(conv1x1(x, params["ws"], params["wsb"]), params["gs"], params["bs"])
    return jnp.maximum(out + shortcut, 0.0)


if __name__ == "__main__":
    # Bottleneck_Transformer(in_planes=64, planes=32, stride=1, heads=4,
    #                        resolution=(16, 16), expansion=4)
    # -> expansion*planes = 128 != in_planes, so the conv+BN shortcut is exercised;
    #    final channel dim 128 keeps the kernel output lane-dense.
    in_planes, planes, expansion, heads = 64, 32, 4, 4
    N, H, W = 2, 16, 16

    key = jax.random.PRNGKey(0)
    kx, kp = jax.random.split(key)
    x = jax.random.normal(kx, (N, in_planes, H, W), jnp.float32)
    params = init_params(kp, in_planes, planes, expansion, heads, H, W)

    fwd = jax.jit(bottleneck_transformer_forward, static_argnames=("heads", "tile_m"))
    out = jax.block_until_ready(fwd(x, params, heads=heads))
    assert out.shape == (N, expansion * planes, H, W)

    ref = np.asarray(reference_forward(x, params, heads))
    out_np = np.asarray(out)
    # Kernel uses bf16 MXU operands / bf16 inter-kernel intermediates (per perf
    # guidance) vs the f32 reference; check both a global relative-L2 error and a
    # normalized elementwise max error (catches localized/structural mistakes).
    rel_err = np.linalg.norm(out_np - ref) / (np.linalg.norm(ref) + 1e-12)
    max_err = np.max(np.abs(out_np - ref)) / (np.max(np.abs(ref)) + 1e-12)
    if not np.isfinite(out_np).all() or rel_err > 5e-2 or max_err > 1e-1:
        raise AssertionError(
            f"Pallas kernel mismatch vs reference: rel_l2={rel_err:.4f} max_abs={max_err:.4f}")
    print("KERNEL_OK")
</pallas_src>

<mosaic_0001>
module attributes {stable_mosaic.version = 11 : i64} {
  func.func @_conv1_proj_kernel(%arg0: i32, %arg1: memref<512x64xbf16, #tpu.memory_space<vmem>>, %arg2: memref<64x32xbf16, #tpu.memory_space<vmem>>, %arg3: memref<64x128xbf16, #tpu.memory_space<vmem>>, %arg4: memref<1x128xf32, #tpu.memory_space<vmem>>, %arg5: memref<512x32xbf16, #tpu.memory_space<vmem>>, %arg6: memref<1x1x32xf32, #tpu.memory_space<vmem>>, %arg7: memref<1x1x32xf32, #tpu.memory_space<vmem>>, %arg8: memref<512x128xbf16, #tpu.memory_space<vmem>>, %arg9: memref<1x1x128xf32, #tpu.memory_space<vmem>>, %arg10: memref<1x1x128xf32, #tpu.memory_space<vmem>>) attributes {dimension_semantics = [#tpu.dimension_semantics<parallel>], iteration_bounds = array<i64: 1>, scalar_prefetch = 0 : i64, scratch_operands = 0 : i64, tpu.core_type = #tpu.core_type<tc>, window_params = [{transform_indices = @transform_0, window_bounds = array<i64: 512, 64>}, {pipeline_mode = #tpu.pipeline_mode<synchronous>, transform_indices = @transform_1, window_bounds = array<i64: 64, 32>}, {pipeline_mode = #tpu.pipeline_mode<synchronous>, transform_indices = @transform_2, window_bounds = array<i64: 64, 128>}, {pipeline_mode = #tpu.pipeline_mode<synchronous>, transform_indices = @transform_3, window_bounds = array<i64: 1, 128>}, {transform_indices = @transform_4, window_bounds = array<i64: 512, 32>}, {transform_indices = @transform_5, window_bounds = array<i64: 1, 1, 32>}, {transform_indices = @transform_6, window_bounds = array<i64: 1, 1, 32>}, {transform_indices = @transform_7, window_bounds = array<i64: 512, 128>}, {transform_indices = @transform_8, window_bounds = array<i64: 1, 1, 128>}, {transform_indices = @transform_9, window_bounds = array<i64: 1, 1, 128>}]} {
    %c0 = arith.constant 0 : index
    %c0_0 = arith.constant 0 : index
    %0 = vector.load %arg1[%c0, %c0_0] : memref<512x64xbf16, #tpu.memory_space<vmem>>, vector<512x64xbf16>
    %c0_1 = arith.constant 0 : index
    %c0_2 = arith.constant 0 : index
    %1 = vector.load %arg2[%c0_1, %c0_2] : memref<64x32xbf16, #tpu.memory_space<vmem>>, vector<64x32xbf16>
    %cst = arith.constant dense<0.000000e+00> : vector<512x32xf32>
    %2 = tpu.matmul %0, %1, %cst {dimension_numbers = #tpu.dot_dimension_numbers<[1], [0], [0], [1], [0, 0, 1, 1], [], []>} : vector<512x64xbf16>, vector<64x32xbf16>, vector<512x32xf32> -> vector<512x32xf32>
    %3 = arith.truncf %2 : vector<512x32xf32> to vector<512x32xbf16>
    %c0_3 = arith.constant 0 : index
    %c0_4 = arith.constant 0 : index
    %4 = vector.load %arg5[%c0_3, %c0_4] : memref<512x32xbf16, #tpu.memory_space<vmem>>, vector<512x32xbf16>
    tpu.vector_store %arg5[%c0_3, %c0_4], %3 {strides = array<i32>} : memref<512x32xbf16, #tpu.memory_space<vmem>>, vector<512x32xbf16>,
    %cst_5 = arith.constant dense<0.000000e+00> : vector<32xf32>
    %5 = vector.multi_reduction <add>, %2, %cst_5 [0] : vector<512x32xf32> to vector<32xf32>
    %6 = vector.shape_cast %5 : vector<32xf32> to vector<1x32xf32>
    %7 = vector.shape_cast %6 : vector<1x32xf32> to vector<1x1x32xf32>
    %c0_6 = arith.constant 0 : index
    %c0_7 = arith.constant 0 : index
    %c0_8 = arith.constant 0 : index
    %8 = vector.load %arg6[%c0_6, %c0_7, %c0_8] : memref<1x1x32xf32, #tpu.memory_space<vmem>>, vector<1x1x32xf32>
    tpu.vector_store %arg6[%c0_6, %c0_7, %c0_8], %7 {strides = array<i32>} : memref<1x1x32xf32, #tpu.memory_space<vmem>>, vector<1x1x32xf32>,
    %9 = arith.mulf %2, %2 : vector<512x32xf32>
    %cst_9 = arith.constant dense<0.000000e+00> : vector<32xf32>
    %10 = vector.multi_reduction <add>, %9, %cst_9 [0] : vector<512x32xf32> to vector<32xf32>
    %11 = vector.shape_cast %10 : vector<32xf32> to vector<1x32xf32>
    %12 = vector.shape_cast %11 : vector<1x32xf32> to vector<1x1x32xf32>
    %c0_10 = arith.constant 0 : index
    %c0_11 = arith.constant 0 : index
    %c0_12 = arith.constant 0 : index
    %13 = vector.load %arg7[%c0_10, %c0_11, %c0_12] : memref<1x1x32xf32, #tpu.memory_space<vmem>>, vector<1x1x32xf32>
    tpu.vector_store %arg7[%c0_10, %c0_11, %c0_12], %12 {strides = array<i32>} : memref<1x1x32xf32, #tpu.memory_space<vmem>>, vector<1x1x32xf32>,
    %c0_13 = arith.constant 0 : index
    %c0_14 = arith.constant 0 : index
    %14 = vector.load %arg3[%c0_13, %c0_14] : memref<64x128xbf16, #tpu.memory_space<vmem>>, vector<64x128xbf16>
    %cst_15 = arith.constant dense<0.000000e+00> : vector<512x128xf32>
    %15 = tpu.matmul %0, %14, %cst_15 {dimension_numbers = #tpu.dot_dimension_numbers<[1], [0], [0], [1], [0, 0, 1, 1], [], []>} : vector<512x64xbf16>, vector<64x128xbf16>, vector<512x128xf32> -> vector<512x128xf32>
    %c0_16 = arith.constant 0 : index
    %c0_17 = arith.constant 0 : index
    %16 = vector.load %arg4[%c0_16, %c0_17] : memref<1x128xf32, #tpu.memory_space<vmem>>, vector<1x128xf32>
    %17 = vector.broadcast %16 : vector<1x128xf32> to vector<512x128xf32>
    %18 = arith.addf %15, %17 : vector<512x128xf32>
    %19 = arith.truncf %18 : vector<512x128xf32> to vector<512x128xbf16>
    %c0_18 = arith.constant 0 : index
    %c0_19 = arith.constant 0 : index
    %20 = vector.load %arg8[%c0_18, %c0_19] : memref<512x128xbf16, #tpu.memory_space<vmem>>, vector<512x128xbf16>
    tpu.vector_store %arg8[%c0_18, %c0_19], %19 {strides = array<i32>} : memref<512x128xbf16, #tpu.memory_space<vmem>>, vector<512x128xbf16>,
    %cst_20 = arith.constant dense<0.000000e+00> : vector<128xf32>
    %21 = vector.multi_reduction <add>, %18, %cst_20 [0] : vector<512x128xf32> to vector<128xf32>
    %22 = vector.shape_cast %21 : vector<128xf32> to vector<1x128xf32>
    %23 = vector.shape_cast %22 : vector<1x128xf32> to vector<1x1x128xf32>
    %c0_21 = arith.constant 0 : index
    %c0_22 = arith.constant 0 : index
    %c0_23 = arith.constant 0 : index
    %24 = vector.load %arg9[%c0_21, %c0_22, %c0_23] : memref<1x1x128xf32, #tpu.memory_space<vmem>>, vector<1x1x128xf32>
    tpu.vector_store %arg9[%c0_21, %c0_22, %c0_23], %23 {strides = array<i32>} : memref<1x1x128xf32, #tpu.memory_space<vmem>>, vector<1x1x128xf32>,
    %25 = arith.mulf %18, %18 : vector<512x128xf32>
    %cst_24 = arith.constant dense<0.000000e+00> : vector<128xf32>
    %26 = vector.multi_reduction <add>, %25, %cst_24 [0] : vector<512x128xf32> to vector<128xf32>
    %27 = vector.shape_cast %26 : vector<128xf32> to vector<1x128xf32>
    %28 = vector.shape_cast %27 : vector<1x128xf32> to vector<1x1x128xf32>
    %c0_25 = arith.constant 0 : index
    %c0_26 = arith.constant 0 : index
    %c0_27 = arith.constant 0 : index
    %29 = vector.load %arg10[%c0_25, %c0_26, %c0_27] : memref<1x1x128xf32, #tpu.memory_space<vmem>>, vector<1x1x128xf32>
    tpu.vector_store %arg10[%c0_25, %c0_26, %c0_27], %28 {strides = array<i32>} : memref<1x1x128xf32, #tpu.memory_space<vmem>>, vector<1x1x128xf32>,
    return
  }
  func.func @transform_0(%arg0: i32) -> (i32, i32) {
    %c0_i32 = arith.constant 0 : i32
    %c0_i32_0 = arith.constant 0 : i32
    return %arg0, %c0_i32 : i32, i32
  }
  func.func @transform_1(%arg0: i32) -> (i32, i32) {
    %c0_i32 = arith.constant 0 : i32
    %c0_i32_0 = arith.constant 0 : i32
    %c0_i32_1 = arith.constant 0 : i32
    return %c0_i32, %c0_i32_0 : i32, i32
  }
  func.func @transform_2(%arg0: i32) -> (i32, i32) {
    %c0_i32 = arith.constant 0 : i32
    %c0_i32_0 = arith.constant 0 : i32
    %c0_i32_1 = arith.constant 0 : i32
    return %c0_i32, %c0_i32_0 : i32, i32
  }
  func.func @transform_3(%arg0: i32) -> (i32, i32) {
    %c0_i32 = arith.constant 0 : i32
    %c0_i32_0 = arith.constant 0 : i32
    %c0_i32_1 = arith.constant 0 : i32
    return %c0_i32, %c0_i32_0 : i32, i32
  }
  func.func @transform_4(%arg0: i32) -> (i32, i32) {
    %c0_i32 = arith.constant 0 : i32
    %c0_i32_0 = arith.constant 0 : i32
    return %arg0, %c0_i32 : i32, i32
  }
  func.func @transform_5(%arg0: i32) -> (i32, i32, i32) {
    %c0_i32 = arith.constant 0 : i32
    %c0_i32_0 = arith.constant 0 : i32
    %c0_i32_1 = arith.constant 0 : i32
    return %arg0, %c0_i32, %c0_i32_0 : i32, i32, i32
  }
  func.func @transform_6(%arg0: i32) -> (i32, i32, i32) {
    %c0_i32 = arith.constant 0 : i32
    %c0_i32_0 = arith.constant 0 : i32
    %c0_i32_1 = arith.constant 0 : i32
    return %arg0, %c0_i32, %c0_i32_0 : i32, i32, i32
  }
  func.func @transform_7(%arg0: i32) -> (i32, i32) {
    %c0_i32 = arith.constant 0 : i32
    %c0_i32_0 = arith.constant 0 : i32
    return %arg0, %c0_i32 : i32, i32
  }
  func.func @transform_8(%arg0: i32) -> (i32, i32, i32) {
    %c0_i32 = arith.constant 0 : i32
    %c0_i32_0 = arith.constant 0 : i32
    %c0_i32_1 = arith.constant 0 : i32
    return %arg0, %c0_i32, %c0_i32_0 : i32, i32, i32
  }
  func.func @transform_9(%arg0: i32) -> (i32, i32, i32) {
    %c0_i32 = arith.constant 0 : i32
    %c0_i32_0 = arith.constant 0 : i32
    %c0_i32_1 = arith.constant 0 : i32
    return %arg0, %c0_i32, %c0_i32_0 : i32, i32, i32
  }
}

module attributes {stable_mosaic.version = 11 : i64} {
  func.func @_mhsa_kernel(%arg0: i32, %arg1: memref<256x32xbf16, #tpu.memory_space<vmem>>, %arg2: memref<1x32xf32, #tpu.memory_space<vmem>>, %arg3: memref<1x32xf32, #tpu.memory_space<vmem>>, %arg4: memref<32x96xbf16, #tpu.memory_space<vmem>>, %arg5: memref<1x96xf32, #tpu.memory_space<vmem>>, %arg6: memref<256x32xbf16, #tpu.memory_space<vmem>>, %arg7: memref<256x32xbf16, #tpu.memory_space<vmem>>, %arg8: memref<1x1x32xf32, #tpu.memory_space<vmem>>, %arg9: memref<1x1x32xf32, #tpu.memory_space<vmem>>) attributes {dimension_semantics = [#tpu.dimension_semantics<parallel>], iteration_bounds = array<i64: 2>, scalar_prefetch = 0 : i64, scratch_operands = 0 : i64, tpu.core_type = #tpu.core_type<tc>, window_params = [{transform_indices = @transform_0, window_bounds = array<i64: 256, 32>}, {pipeline_mode = #tpu.pipeline_mode<synchronous>, transform_indices = @transform_1, window_bounds = array<i64: 1, 32>}, {pipeline_mode = #tpu.pipeline_mode<synchronous>, transform_indices = @transform_2, window_bounds = array<i64: 1, 32>}, {pipeline_mode = #tpu.pipeline_mode<synchronous>, transform_indices = @transform_3, window_bounds = array<i64: 32, 96>}, {pipeline_mode = #tpu.pipeline_mode<synchronous>, transform_indices = @transform_4, window_bounds = array<i64: 1, 96>}, {pipeline_mode = #tpu.pipeline_mode<synchronous>, transform_indices = @transform_5, window_bounds = array<i64: 256, 32>}, {transform_indices = @transform_6, window_bounds = array<i64: 256, 32>}, {transform_indices = @transform_7, window_bounds = array<i64: 1, 1, 32>}, {transform_indices = @transform_8, window_bounds = array<i64: 1, 1, 32>}]} {
    %c0 = arith.constant 0 : index
    %c0_0 = arith.constant 0 : index
    %0 = vector.load %arg1[%c0, %c0_0] : memref<256x32xbf16, #tpu.memory_space<vmem>>, vector<256x32xbf16>
    %1 = arith.extf %0 : vector<256x32xbf16> to vector<256x32xf32>
    %c0_1 = arith.constant 0 : index
    %c0_2 = arith.constant 0 : index
    %2 = vector.load %arg2[%c0_1, %c0_2] : memref<1x32xf32, #tpu.memory_space<vmem>>, vector<1x32xf32>
    %3 = vector.broadcast %2 : vector<1x32xf32> to vector<256x32xf32>
    %4 = arith.mulf %1, %3 : vector<256x32xf32>
    %c0_3 = arith.constant 0 : index
    %c0_4 = arith.constant 0 : index
    %5 = vector.load %arg3[%c0_3, %c0_4] : memref<1x32xf32, #tpu.memory_space<vmem>>, vector<1x32xf32>
    %6 = vector.broadcast %5 : vector<1x32xf32> to vector<256x32xf32>
    %7 = arith.addf %4, %6 : vector<256x32xf32>
    %cst = arith.constant 0.000000e+00 : f32
    %8 = vector.broadcast %cst : f32 to vector<256x32xf32>
    %9 = arith.maximumf %7, %8 : vector<256x32xf32>
    %10 = arith.truncf %9 : vector<256x32xf32> to vector<256x32xbf16>
    %c0_5 = arith.constant 0 : index
    %c0_6 = arith.constant 0 : index
    %11 = vector.load %arg4[%c0_5, %c0_6] : memref<32x96xbf16, #tpu.memory_space<vmem>>, vector<32x96xbf16>
    %cst_7 = arith.constant dense<0.000000e+00> : vector<256x96xf32>
    %12 = tpu.matmul %10, %11, %cst_7 {dimension_numbers = #tpu.dot_dimension_numbers<[1], [0], [0], [1], [0, 0, 1, 1], [], []>} : vector<256x32xbf16>, vector<32x96xbf16>, vector<256x96xf32> -> vector<256x96xf32>
    %c0_8 = arith.constant 0 : index
    %c0_9 = arith.constant 0 : index
    %13 = vector.load %arg5[%c0_8, %c0_9] : memref<1x96xf32, #tpu.memory_space<vmem>>, vector<1x96xf32>
    %14 = vector.broadcast %13 : vector<1x96xf32> to vector<256x96xf32>
    %15 = arith.addf %12, %14 : vector<256x96xf32>
    %16 = vector.extract_strided_slice %15 {offsets = [0, 0], sizes = [256, 32], strides = [1, 1]} : vector<256x96xf32> to vector<256x32xf32>
    %17 = arith.truncf %16 : vector<256x32xf32> to vector<256x32xbf16>
    %18 = vector.extract_strided_slice %15 {offsets = [0, 32], sizes = [256, 32], strides = [1, 1]} : vector<256x96xf32> to vector<256x32xf32>
    %19 = arith.truncf %18 : vector<256x32xf32> to vector<256x32xbf16>
    %20 = vector.extract_strided_slice %15 {offsets = [0, 64], sizes = [256, 32], strides = [1, 1]} : vector<256x96xf32> to vector<256x32xf32>
    %21 = tpu.transpose %20, [1, 0] : vector<256x32xf32> -> vector<32x256xf32>
    %22 = arith.truncf %21 : vector<32x256xf32> to vector<32x256xbf16>
    %c0_10 = arith.constant 0 : index
    %c0_11 = arith.constant 0 : index
    %23 = vector.load %arg6[%c0_10, %c0_11] : memref<256x32xbf16, #tpu.memory_space<vmem>>, vector<256x32xbf16>
    %24 = vector.extract_strided_slice %17 {offsets = [0, 0], sizes = [256, 8], strides = [1, 1]} : vector<256x32xbf16> to vector<256x8xbf16>
    %25 = vector.extract_strided_slice %19 {offsets = [0, 0], sizes = [256, 8], strides = [1, 1]} : vector<256x32xbf16> to vector<256x8xbf16>
    %26 = vector.extract_strided_slice %23 {offsets = [0, 0], sizes = [256, 8], strides = [1, 1]} : vector<256x32xbf16> to vector<256x8xbf16>
    %27 = vector.extract_strided_slice %22 {offsets = [0, 0], sizes = [8, 256], strides = [1, 1]} : vector<32x256xbf16> to vector<8x256xbf16>
    %28 = tpu.concatenate %24, %26 in 1 : vector<256x8xbf16>, vector<256x8xbf16> -> vector<256x16xbf16>
    %29 = tpu.concatenate %25, %24 in 1 : vector<256x8xbf16>, vector<256x8xbf16> -> vector<256x16xbf16>
    "tpu.trace_start"() <{level = 10 : i32, message = "ic,jc->ij"}> : () -> ()
    %cst_12 = arith.constant dense<0.000000e+00> : vector<256x256xf32>
    %30 = tpu.matmul %28, %29, %cst_12 {dimension_numbers = #tpu.dot_dimension_numbers<[1], [1], [0], [0], [0, 0, 1, 0], [], []>} : vector<256x16xbf16>, vector<256x16xbf16>, vector<256x256xf32> -> vector<256x256xf32>
    "tpu.trace_stop"() : () -> ()
    %cst_13 = arith.constant dense<0xFF800000> : vector<256xf32>
    %31 = vector.multi_reduction <maximumf>, %30, %cst_13 [1] : vector<256x256xf32> to vector<256xf32>
    %32 = vector.shape_cast %31 : vector<256xf32> to vector<256x1xf32>
    %33 = vector.broadcast %32 : vector<256x1xf32> to vector<256x256xf32>
    %34 = arith.subf %30, %33 : vector<256x256xf32>
    %35 = math.exp %34 : vector<256x256xf32>
    %cst_14 = arith.constant dense<0.000000e+00> : vector<256xf32>
    %36 = vector.multi_reduction <add>, %35, %cst_14 [1] : vector<256x256xf32> to vector<256xf32>
    %37 = vector.shape_cast %36 : vector<256xf32> to vector<256x1xf32>
    %38 = tpu.reciprocal %37 {approx = true} : vector<256x1xf32> -> vector<256x1xf32>
    %39 = vector.broadcast %38 : vector<256x1xf32> to vector<256x256xf32>
    %40 = arith.mulf %35, %39 : vector<256x256xf32>
    %41 = arith.truncf %40 : vector<256x256xf32> to vector<256x256xbf16>
    "tpu.trace_start"() <{level = 10 : i32, message = "dj,ij->di"}> : () -> ()
    %cst_15 = arith.constant dense<0.000000e+00> : vector<8x256xf32>
    %42 = tpu.matmul %27, %41, %cst_15 {dimension_numbers = #tpu.dot_dimension_numbers<[1], [1], [0], [0], [0, 0, 1, 0], [], []>} : vector<8x256xbf16>, vector<256x256xbf16>, vector<8x256xf32> -> vector<8x256xf32>
    "tpu.trace_stop"() : () -> ()
    %43 = vector.extract_strided_slice %17 {offsets = [0, 8], sizes = [256, 8], strides = [1, 1]} : vector<256x32xbf16> to vector<256x8xbf16>
    %44 = vector.extract_strided_slice %19 {offsets = [0, 8], sizes = [256, 8], strides = [1, 1]} : vector<256x32xbf16> to vector<256x8xbf16>
    %45 = vector.extract_strided_slice %23 {offsets = [0, 8], sizes = [256, 8], strides = [1, 1]} : vector<256x32xbf16> to vector<256x8xbf16>
    %46 = vector.extract_strided_slice %22 {offsets = [8, 0], sizes = [8, 256], strides = [1, 1]} : vector<32x256xbf16> to vector<8x256xbf16>
    %47 = tpu.concatenate %43, %45 in 1 : vector<256x8xbf16>, vector<256x8xbf16> -> vector<256x16xbf16>
    %48 = tpu.concatenate %44, %43 in 1 : vector<256x8xbf16>, vector<256x8xbf16> -> vector<256x16xbf16>
    "tpu.trace_start"() <{level = 10 : i32, message = "ic,jc->ij"}> : () -> ()
    %cst_16 = arith.constant dense<0.000000e+00> : vector<256x256xf32>
    %49 = tpu.matmul %47, %48, %cst_16 {dimension_numbers = #tpu.dot_dimension_numbers<[1], [1], [0], [0], [0, 0, 1, 0], [], []>} : vector<256x16xbf16>, vector<256x16xbf16>, vector<256x256xf32> -> vector<256x256xf32>
    "tpu.trace_stop"() : () -> ()
    %cst_17 = arith.constant dense<0xFF800000> : vector<256xf32>
    %50 = vector.multi_reduction <maximumf>, %49, %cst_17 [1] : vector<256x256xf32> to vector<256xf32>
    %51 = vector.shape_cast %50 : vector<256xf32> to vector<256x1xf32>
    %52 = vector.broadcast %51 : vector<256x1xf32> to vector<256x256xf32>
    %53 = arith.subf %49, %52 : vector<256x256xf32>
    %54 = math.exp %53 : vector<256x256xf32>
    %cst_18 = arith.constant dense<0.000000e+00> : vector<256xf32>
    %55 = vector.multi_reduction <add>, %54, %cst_18 [1] : vector<256x256xf32> to vector<256xf32>
    %56 = vector.shape_cast %55 : vector<256xf32> to vector<256x1xf32>
    %57 = tpu.reciprocal %56 {approx = true} : vector<256x1xf32> -> vector<256x1xf32>
    %58 = vector.broadcast %57 : vector<256x1xf32> to vector<256x256xf32>
    %59 = arith.mulf %54, %58 : vector<256x256xf32>
    %60 = arith.truncf %59 : vector<256x256xf32> to vector<256x256xbf16>
    "tpu.trace_start"() <{level = 10 : i32, message = "dj,ij->di"}> : () -> ()
    %cst_19 = arith.constant dense<0.000000e+00> : vector<8x256xf32>
    %61 = tpu.matmul %46, %60, %cst_19 {dimension_numbers = #tpu.dot_dimension_numbers<[1], [1], [0], [0], [0, 0, 1, 0], [], []>} : vector<8x256xbf16>, vector<256x256xbf16>, vector<8x256xf32> -> vector<8x256xf32>
    "tpu.trace_stop"() : () -> ()
    %62 = vector.extract_strided_slice %17 {offsets = [0, 16], sizes = [256, 8], strides = [1, 1]} : vector<256x32xbf16> to vector<256x8xbf16>
    %63 = vector.extract_strided_slice %19 {offsets = [0, 16], sizes = [256, 8], strides = [1, 1]} : vector<256x32xbf16> to vector<256x8xbf16>
    %64 = vector.extract_strided_slice %23 {offsets = [0, 16], sizes = [256, 8], strides = [1, 1]} : vector<256x32xbf16> to vector<256x8xbf16>
    %65 = vector.extract_strided_slice %22 {offsets = [16, 0], sizes = [8, 256], strides = [1, 1]} : vector<32x256xbf16> to vector<8x256xbf16>
    %66 = tpu.concatenate %62, %64 in 1 : vector<256x8xbf16>, vector<256x8xbf16> -> vector<256x16xbf16>
    %67 = tpu.concatenate %63, %62 in 1 : vector<256x8xbf16>, vector<256x8xbf16> -> vector<256x16xbf16>
    "tpu.trace_start"() <{level = 10 : i32, message = "ic,jc->ij"}> : () -> ()
    %cst_20 = arith.constant dense<0.000000e+00> : vector<256x256xf32>
    %68 = tpu.matmul %66, %67, %cst_20 {dimension_numbers = #tpu.dot_dimension_numbers<[1], [1], [0], [0], [0, 0, 1, 0], [], []>} : vector<256x16xbf16>, vector<256x16xbf16>, vector<256x256xf32> -> vector<256x256xf32>
    "tpu.trace_stop"() : () -> ()
    %cst_21 = arith.constant dense<0xFF800000> : vector<256xf32>
    %69 = vector.multi_reduction <maximumf>, %68, %cst_21 [1] : vector<256x256xf32> to vector<256xf32>
    %70 = vector.shape_cast %69 : vector<256xf32> to vector<256x1xf32>
    %71 = vector.broadcast %70 : vector<256x1xf32> to vector<256x256xf32>
    %72 = arith.subf %68, %71 : vector<256x256xf32>
    %73 = math.exp %72 : vector<256x256xf32>
    %cst_22 = arith.constant dense<0.000000e+00> : vector<256xf32>
    %74 = vector.multi_reduction <add>, %73, %cst_22 [1] : vector<256x256xf32> to vector<256xf32>
    %75 = vector.shape_cast %74 : vector<256xf32> to vector<256x1xf32>
    %76 = tpu.reciprocal %75 {approx = true} : vector<256x1xf32> -> vector<256x1xf32>
    %77 = vector.broadcast %76 : vector<256x1xf32> to vector<256x256xf32>
    %78 = arith.mulf %73, %77 : vector<256x256xf32>
    %79 = arith.truncf %78 : vector<256x256xf32> to vector<256x256xbf16>
    "tpu.trace_start"() <{level = 10 : i32, message = "dj,ij->di"}> : () -> ()
    %cst_23 = arith.constant dense<0.000000e+00> : vector<8x256xf32>
    %80 = tpu.matmul %65, %79, %cst_23 {dimension_numbers = #tpu.dot_dimension_numbers<[1], [1], [0], [0], [0, 0, 1, 0], [], []>} : vector<8x256xbf16>, vector<256x256xbf16>, vector<8x256xf32> -> vector<8x256xf32>
    "tpu.trace_stop"() : () -> ()
    %81 = vector.extract_strided_slice %17 {offsets = [0, 24], sizes = [256, 8], strides = [1, 1]} : vector<256x32xbf16> to vector<256x8xbf16>
    %82 = vector.extract_strided_slice %19 {offsets = [0, 24], sizes = [256, 8], strides = [1, 1]} : vector<256x32xbf16> to vector<256x8xbf16>
    %83 = vector.extract_strided_slice %23 {offsets = [0, 24], sizes = [256, 8], strides = [1, 1]} : vector<256x32xbf16> to vector<256x8xbf16>
    %84 = vector.extract_strided_slice %22 {offsets = [24, 0], sizes = [8, 256], strides = [1, 1]} : vector<32x256xbf16> to vector<8x256xbf16>
    %85 = tpu.concatenate %81, %83 in 1 : vector<256x8xbf16>, vector<256x8xbf16> -> vector<256x16xbf16>
    %86 = tpu.concatenate %82, %81 in 1 : vector<256x8xbf16>, vector<256x8xbf16> -> vector<256x16xbf16>
    "tpu.trace_start"() <{level = 10 : i32, message = "ic,jc->ij"}> : () -> ()
    %cst_24 = arith.constant dense<0.000000e+00> : vector<256x256xf32>
    %87 = tpu.matmul %85, %86, %cst_24 {dimension_numbers = #tpu.dot_dimension_numbers<[1], [1], [0], [0], [0, 0, 1, 0], [], []>} : vector<256x16xbf16>, vector<256x16xbf16>, vector<256x256xf32> -> vector<256x256xf32>
    "tpu.trace_stop"() : () -> ()
    %cst_25 = arith.constant dense<0xFF800000> : vector<256xf32>
    %88 = vector.multi_reduction <maximumf>, %87, %cst_25 [1] : vector<256x256xf32> to vector<256xf32>
    %89 = vector.shape_cast %88 : vector<256xf32> to vector<256x1xf32>
    %90 = vector.broadcast %89 : vector<256x1xf32> to vector<256x256xf32>
    %91 = arith.subf %87, %90 : vector<256x256xf32>
    %92 = math.exp %91 : vector<256x256xf32>
    %cst_26 = arith.constant dense<0.000000e+00> : vector<256xf32>
    %93 = vector.multi_reduction <add>, %92, %cst_26 [1] : vector<256x256xf32> to vector<256xf32>
    %94 = vector.shape_cast %93 : vector<256xf32> to vector<256x1xf32>
    %95 = tpu.reciprocal %94 {approx = true} : vector<256x1xf32> -> vector<256x1xf32>
    %96 = vector.broadcast %95 : vector<256x1xf32> to vector<256x256xf32>
    %97 = arith.mulf %92, %96 : vector<256x256xf32>
    %98 = arith.truncf %97 : vector<256x256xf32> to vector<256x256xbf16>
    "tpu.trace_start"() <{level = 10 : i32, message = "dj,ij->di"}> : () -> ()
    %cst_27 = arith.constant dense<0.000000e+00> : vector<8x256xf32>
    %99 = tpu.matmul %84, %98, %cst_27 {dimension_numbers = #tpu.dot_dimension_numbers<[1], [1], [0], [0], [0, 0, 1, 0], [], []>} : vector<8x256xbf16>, vector<256x256xbf16>, vector<8x256xf32> -> vector<8x256xf32>
    "tpu.trace_stop"() : () -> ()
    %100 = tpu.concatenate %42, %61, %80, %99 in 0 : vector<8x256xf32>, vector<8x256xf32>, vector<8x256xf32>, vector<8x256xf32> -> vector<32x256xf32>
    %101 = tpu.transpose %100, [1, 0] : vector<32x256xf32> -> vector<256x32xf32>
    %102 = arith.truncf %101 : vector<256x32xf32> to vector<256x32xbf16>
    %c0_28 = arith.constant 0 : index
    %c0_29 = arith.constant 0 : index
    %103 = vector.load %arg7[%c0_28, %c0_29] : memref<256x32xbf16, #tpu.memory_space<vmem>>, vector<256x32xbf16>
    tpu.vector_store %arg7[%c0_28, %c0_29], %102 {strides = array<i32>} : memref<256x32xbf16, #tpu.memory_space<vmem>>, vector<256x32xbf16>,
    %cst_30 = arith.constant dense<0.000000e+00> : vector<32xf32>
    %104 = vector.multi_reduction <add>, %101, %cst_30 [0] : vector<256x32xf32> to vector<32xf32>
    %105 = vector.shape_cast %104 : vector<32xf32> to vector<1x32xf32>
    %106 = vector.shape_cast %105 : vector<1x32xf32> to vector<1x1x32xf32>
    %c0_31 = arith.constant 0 : index
    %c0_32 = arith.constant 0 : index
    %c0_33 = arith.constant 0 : index
    %107 = vector.load %arg8[%c0_31, %c0_32, %c0_33] : memref<1x1x32xf32, #tpu.memory_space<vmem>>, vector<1x1x32xf32>
    tpu.vector_store %arg8[%c0_31, %c0_32, %c0_33], %106 {strides = array<i32>} : memref<1x1x32xf32, #tpu.memory_space<vmem>>, vector<1x1x32xf32>,
    %108 = arith.mulf %101, %101 : vector<256x32xf32>
    %cst_34 = arith.constant dense<0.000000e+00> : vector<32xf32>
    %109 = vector.multi_reduction <add>, %108, %cst_34 [0] : vector<256x32xf32> to vector<32xf32>
    %110 = vector.shape_cast %109 : vector<32xf32> to vector<1x32xf32>
    %111 = vector.shape_cast %110 : vector<1x32xf32> to vector<1x1x32xf32>
    %c0_35 = arith.constant 0 : index
    %c0_36 = arith.constant 0 : index
    %c0_37 = arith.constant 0 : index
    %112 = vector.load %arg9[%c0_35, %c0_36, %c0_37] : memref<1x1x32xf32, #tpu.memory_space<vmem>>, vector<1x1x32xf32>
    tpu.vector_store %arg9[%c0_35, %c0_36, %c0_37], %111 {strides = array<i32>} : memref<1x1x32xf32, #tpu.memory_space<vmem>>, vector<1x1x32xf32>,
    return
  }
  func.func @transform_0(%arg0: i32) -> (i32, i32) {
    %c0_i32 = arith.constant 0 : i32
    %c0_i32_0 = arith.constant 0 : i32
    return %arg0, %c0_i32 : i32, i32
  }
  func.func @transform_1(%arg0: i32) -> (i32, i32) {
    %c0_i32 = arith.constant 0 : i32
    %c0_i32_0 = arith.constant 0 : i32
    %c0_i32_1 = arith.constant 0 : i32
    return %c0_i32, %c0_i32_0 : i32, i32
  }
  func.func @transform_2(%arg0: i32) -> (i32, i32) {
    %c0_i32 = arith.constant 0 : i32
    %c0_i32_0 = arith.constant 0 : i32
    %c0_i32_1 = arith.constant 0 : i32
    return %c0_i32, %c0_i32_0 : i32, i32
  }
  func.func @transform_3(%arg0: i32) -> (i32, i32) {
    %c0_i32 = arith.constant 0 : i32
    %c0_i32_0 = arith.constant 0 : i32
    %c0_i32_1 = arith.constant 0 : i32
    return %c0_i32, %c0_i32_0 : i32, i32
  }
  func.func @transform_4(%arg0: i32) -> (i32, i32) {
    %c0_i32 = arith.constant 0 : i32
    %c0_i32_0 = arith.constant 0 : i32
    %c0_i32_1 = arith.constant 0 : i32
    return %c0_i32, %c0_i32_0 : i32, i32
  }
  func.func @transform_5(%arg0: i32) -> (i32, i32) {
    %c0_i32 = arith.constant 0 : i32
    %c0_i32_0 = arith.constant 0 : i32
    %c0_i32_1 = arith.constant 0 : i32
    return %c0_i32, %c0_i32_0 : i32, i32
  }
  func.func @transform_6(%arg0: i32) -> (i32, i32) {
    %c0_i32 = arith.constant 0 : i32
    %c0_i32_0 = arith.constant 0 : i32
    return %arg0, %c0_i32 : i32, i32
  }
  func.func @transform_7(%arg0: i32) -> (i32, i32, i32) {
    %c0_i32 = arith.constant 0 : i32
    %c0_i32_0 = arith.constant 0 : i32
    %c0_i32_1 = arith.constant 0 : i32
    return %arg0, %c0_i32, %c0_i32_0 : i32, i32, i32
  }
  func.func @transform_8(%arg0: i32) -> (i32, i32, i32) {
    %c0_i32 = arith.constant 0 : i32
    %c0_i32_0 = arith.constant 0 : i32
    %c0_i32_1 = arith.constant 0 : i32
    return %arg0, %c0_i32, %c0_i32_0 : i32, i32, i32
  }
}

module attributes {stable_mosaic.version = 11 : i64} {
  func.func @_conv3_kernel(%arg0: i32, %arg1: memref<512x32xbf16, #tpu.memory_space<vmem>>, %arg2: memref<1x32xf32, #tpu.memory_space<vmem>>, %arg3: memref<1x32xf32, #tpu.memory_space<vmem>>, %arg4: memref<32x128xbf16, #tpu.memory_space<vmem>>, %arg5: memref<512x128xf32, #tpu.memory_space<vmem>>, %arg6: memref<1x1x128xf32, #tpu.memory_space<vmem>>, %arg7: memref<1x1x128xf32, #tpu.memory_space<vmem>>) attributes {dimension_semantics = [#tpu.dimension_semantics<parallel>], iteration_bounds = array<i64: 1>, scalar_prefetch = 0 : i64, scratch_operands = 0 : i64, tpu.core_type = #tpu.core_type<tc>, window_params = [{transform_indices = @transform_0, window_bounds = array<i64: 512, 32>}, {pipeline_mode = #tpu.pipeline_mode<synchronous>, transform_indices = @transform_1, window_bounds = array<i64: 1, 32>}, {pipeline_mode = #tpu.pipeline_mode<synchronous>, transform_indices = @transform_2, window_bounds = array<i64: 1, 32>}, {pipeline_mode = #tpu.pipeline_mode<synchronous>, transform_indices = @transform_3, window_bounds = array<i64: 32, 128>}, {transform_indices = @transform_4, window_bounds = array<i64: 512, 128>}, {transform_indices = @transform_5, window_bounds = array<i64: 1, 1, 128>}, {transform_indices = @transform_6, window_bounds = array<i64: 1, 1, 128>}]} {
    %c0 = arith.constant 0 : index
    %c0_0 = arith.constant 0 : index
    %0 = vector.load %arg1[%c0, %c0_0] : memref<512x32xbf16, #tpu.memory_space<vmem>>, vector<512x32xbf16>
    %1 = arith.extf %0 : vector<512x32xbf16> to vector<512x32xf32>
    %c0_1 = arith.constant 0 : index
    %c0_2 = arith.constant 0 : index
    %2 = vector.load %arg2[%c0_1, %c0_2] : memref<1x32xf32, #tpu.memory_space<vmem>>, vector<1x32xf32>
    %3 = vector.broadcast %2 : vector<1x32xf32> to vector<512x32xf32>
    %4 = arith.mulf %1, %3 : vector<512x32xf32>
    %c0_3 = arith.constant 0 : index
    %c0_4 = arith.constant 0 : index
    %5 = vector.load %arg3[%c0_3, %c0_4] : memref<1x32xf32, #tpu.memory_space<vmem>>, vector<1x32xf32>
    %6 = vector.broadcast %5 : vector<1x32xf32> to vector<512x32xf32>
    %7 = arith.addf %4, %6 : vector<512x32xf32>
    %cst = arith.constant 0.000000e+00 : f32
    %8 = vector.broadcast %cst : f32 to vector<512x32xf32>
    %9 = arith.maximumf %7, %8 : vector<512x32xf32>
    %10 = arith.truncf %9 : vector<512x32xf32> to vector<512x32xbf16>
    %c0_5 = arith.constant 0 : index
    %c0_6 = arith.constant 0 : index
    %11 = vector.load %arg4[%c0_5, %c0_6] : memref<32x128xbf16, #tpu.memory_space<vmem>>, vector<32x128xbf16>
    %cst_7 = arith.constant dense<0.000000e+00> : vector<512x128xf32>
    %12 = tpu.matmul %10, %11, %cst_7 {dimension_numbers = #tpu.dot_dimension_numbers<[1], [0], [0], [1], [0, 0, 1, 1], [], []>} : vector<512x32xbf16>, vector<32x128xbf16>, vector<512x128xf32> -> vector<512x128xf32>
    %c0_8 = arith.constant 0 : index
    %c0_9 = arith.constant 0 : index
    %13 = vector.load %arg5[%c0_8, %c0_9] : memref<512x128xf32, #tpu.memory_space<vmem>>, vector<512x128xf32>
    tpu.vector_store %arg5[%c0_8, %c0_9], %12 {strides = array<i32>} : memref<512x128xf32, #tpu.memory_space<vmem>>, vector<512x128xf32>,
    %cst_10 = arith.constant dense<0.000000e+00> : vector<128xf32>
    %14 = vector.multi_reduction <add>, %12, %cst_10 [0] : vector<512x128xf32> to vector<128xf32>
    %15 = vector.shape_cast %14 : vector<128xf32> to vector<1x128xf32>
    %16 = vector.shape_cast %15 : vector<1x128xf32> to vector<1x1x128xf32>
    %c0_11 = arith.constant 0 : index
    %c0_12 = arith.constant 0 : index
    %c0_13 = arith.constant 0 : index
    %17 = vector.load %arg6[%c0_11, %c0_12, %c0_13] : memref<1x1x128xf32, #tpu.memory_space<vmem>>, vector<1x1x128xf32>
    tpu.vector_store %arg6[%c0_11, %c0_12, %c0_13], %16 {strides = array<i32>} : memref<1x1x128xf32, #tpu.memory_space<vmem>>, vector<1x1x128xf32>,
    %18 = arith.mulf %12, %12 : vector<512x128xf32>
    %cst_14 = arith.constant dense<0.000000e+00> : vector<128xf32>
    %19 = vector.multi_reduction <add>, %18, %cst_14 [0] : vector<512x128xf32> to vector<128xf32>
    %20 = vector.shape_cast %19 : vector<128xf32> to vector<1x128xf32>
    %21 = vector.shape_cast %20 : vector<1x128xf32> to vector<1x1x128xf32>
    %c0_15 = arith.constant 0 : index
    %c0_16 = arith.constant 0 : index
    %c0_17 = arith.constant 0 : index
    %22 = vector.load %arg7[%c0_15, %c0_16, %c0_17] : memref<1x1x128xf32, #tpu.memory_space<vmem>>, vector<1x1x128xf32>
    tpu.vector_store %arg7[%c0_15, %c0_16, %c0_17], %21 {strides = array<i32>} : memref<1x1x128xf32, #tpu.memory_space<vmem>>, vector<1x1x128xf32>,
    return
  }
  func.func @transform_0(%arg0: i32) -> (i32, i32) {
    %c0_i32 = arith.constant 0 : i32
    %c0_i32_0 = arith.constant 0 : i32
    return %arg0, %c0_i32 : i32, i32
  }
  func.func @transform_1(%arg0: i32) -> (i32, i32) {
    %c0_i32 = arith.constant 0 : i32
    %c0_i32_0 = arith.constant 0 : i32
    %c0_i32_1 = arith.constant 0 : i32
    return %c0_i32, %c0_i32_0 : i32, i32
  }
  func.func @transform_2(%arg0: i32) -> (i32, i32) {
    %c0_i32 = arith.constant 0 : i32
    %c0_i32_0 = arith.constant 0 : i32
    %c0_i32_1 = arith.constant 0 : i32
    return %c0_i32, %c0_i32_0 : i32, i32
  }
  func.func @transform_3(%arg0: i32) -> (i32, i32) {
    %c0_i32 = arith.constant 0 : i32
    %c0_i32_0 = arith.constant 0 : i32
    %c0_i32_1 = arith.constant 0 : i32
    return %c0_i32, %c0_i32_0 : i32, i32
  }
  func.func @transform_4(%arg0: i32) -> (i32, i32) {
    %c0_i32 = arith.constant 0 : i32
    %c0_i32_0 = arith.constant 0 : i32
    return %arg0, %c0_i32 : i32, i32
  }
  func.func @transform_5(%arg0: i32) -> (i32, i32, i32) {
    %c0_i32 = arith.constant 0 : i32
    %c0_i32_0 = arith.constant 0 : i32
    %c0_i32_1 = arith.constant 0 : i32
    return %arg0, %c0_i32, %c0_i32_0 : i32, i32, i32
  }
  func.func @transform_6(%arg0: i32) -> (i32, i32, i32) {
    %c0_i32 = arith.constant 0 : i32
    %c0_i32_0 = arith.constant 0 : i32
    %c0_i32_1 = arith.constant 0 : i32
    return %arg0, %c0_i32, %c0_i32_0 : i32, i32, i32
  }
}

module attributes {stable_mosaic.version = 11 : i64} {
  func.func @_combine_kernel(%arg0: i32, %arg1: memref<512x128xf32, #tpu.memory_space<vmem>>, %arg2: memref<1x128xf32, #tpu.memory_space<vmem>>, %arg3: memref<1x128xf32, #tpu.memory_space<vmem>>, %arg4: memref<512x128xbf16, #tpu.memory_space<vmem>>, %arg5: memref<1x128xf32, #tpu.memory_space<vmem>>, %arg6: memref<1x128xf32, #tpu.memory_space<vmem>>, %arg7: memref<512x128xf32, #tpu.memory_space<vmem>>) attributes {dimension_semantics = [#tpu.dimension_semantics<parallel>], iteration_bounds = array<i64: 1>, scalar_prefetch = 0 : i64, scratch_operands = 0 : i64, tpu.core_type = #tpu.core_type<tc>, window_params = [{transform_indices = @transform_0, window_bounds = array<i64: 512, 128>}, {pipeline_mode = #tpu.pipeline_mode<synchronous>, transform_indices = @transform_1, window_bounds = array<i64: 1, 128>}, {pipeline_mode = #tpu.pipeline_mode<synchronous>, transform_indices = @transform_2, window_bounds = array<i64: 1, 128>}, {transform_indices = @transform_3, window_bounds = array<i64: 512, 128>}, {pipeline_mode = #tpu.pipeline_mode<synchronous>, transform_indices = @transform_4, window_bounds = array<i64: 1, 128>}, {pipeline_mode = #tpu.pipeline_mode<synchronous>, transform_indices = @transform_5, window_bounds = array<i64: 1, 128>}, {transform_indices = @transform_6, window_bounds = array<i64: 512, 128>}]} {
    %c0 = arith.constant 0 : index
    %c0_0 = arith.constant 0 : index
    %0 = vector.load %arg1[%c0, %c0_0] : memref<512x128xf32, #tpu.memory_space<vmem>>, vector<512x128xf32>
    %c0_1 = arith.constant 0 : index
    %c0_2 = arith.constant 0 : index
    %1 = vector.load %arg2[%c0_1, %c0_2] : memref<1x128xf32, #tpu.memory_space<vmem>>, vector<1x128xf32>
    %2 = vector.broadcast %1 : vector<1x128xf32> to vector<512x128xf32>
    %3 = arith.mulf %0, %2 : vector<512x128xf32>
    %c0_3 = arith.constant 0 : index
    %c0_4 = arith.constant 0 : index
    %4 = vector.load %arg3[%c0_3, %c0_4] : memref<1x128xf32, #tpu.memory_space<vmem>>, vector<1x128xf32>
    %5 = vector.broadcast %4 : vector<1x128xf32> to vector<512x128xf32>
    %6 = arith.addf %3, %5 : vector<512x128xf32>
    %c0_5 = arith.constant 0 : index
    %c0_6 = arith.constant 0 : index
    %7 = vector.load %arg4[%c0_5, %c0_6] : memref<512x128xbf16, #tpu.memory_space<vmem>>, vector<512x128xbf16>
    %8 = arith.extf %7 : vector<512x128xbf16> to vector<512x128xf32>
    %c0_7 = arith.constant 0 : index
    %c0_8 = arith.constant 0 : index
    %9 = vector.load %arg5[%c0_7, %c0_8] : memref<1x128xf32, #tpu.memory_space<vmem>>, vector<1x128xf32>
    %10 = vector.broadcast %9 : vector<1x128xf32> to vector<512x128xf32>
    %11 = arith.mulf %8, %10 : vector<512x128xf32>
    %c0_9 = arith.constant 0 : index
    %c0_10 = arith.constant 0 : index
    %12 = vector.load %arg6[%c0_9, %c0_10] : memref<1x128xf32, #tpu.memory_space<vmem>>, vector<1x128xf32>
    %13 = vector.broadcast %12 : vector<1x128xf32> to vector<512x128xf32>
    %14 = arith.addf %11, %13 : vector<512x128xf32>
    %15 = arith.addf %6, %14 : vector<512x128xf32>
    %cst = arith.constant 0.000000e+00 : f32
    %16 = vector.broadcast %cst : f32 to vector<512x128xf32>
    %17 = arith.maximumf %15, %16 : vector<512x128xf32>
    %c0_11 = arith.constant 0 : index
    %c0_12 = arith.constant 0 : index
    %18 = vector.load %arg7[%c0_11, %c0_12] : memref<512x128xf32, #tpu.memory_space<vmem>>, vector<512x128xf32>
    tpu.vector_store %arg7[%c0_11, %c0_12], %17 {strides = array<i32>} : memref<512x128xf32, #tpu.memory_space<vmem>>, vector<512x128xf32>,
    return
  }
  func.func @transform_0(%arg0: i32) -> (i32, i32) {
    %c0_i32 = arith.constant 0 : i32
    %c0_i32_0 = arith.constant 0 : i32
    return %arg0, %c0_i32 : i32, i32
  }
  func.func @transform_1(%arg0: i32) -> (i32, i32) {
    %c0_i32 = arith.constant 0 : i32
    %c0_i32_0 = arith.constant 0 : i32
    %c0_i32_1 = arith.constant 0 : i32
    return %c0_i32, %c0_i32_0 : i32, i32
  }
  func.func @transform_2(%arg0: i32) -> (i32, i32) {
    %c0_i32 = arith.constant 0 : i32
    %c0_i32_0 = arith.constant 0 : i32
    %c0_i32_1 = arith.constant 0 : i32
    return %c0_i32, %c0_i32_0 : i32, i32
  }
  func.func @transform_3(%arg0: i32) -> (i32, i32) {
    %c0_i32 = arith.constant 0 : i32
    %c0_i32_0 = arith.constant 0 : i32
    return %arg0, %c0_i32 : i32, i32
  }
  func.func @transform_4(%arg0: i32) -> (i32, i32) {
    %c0_i32 = arith.constant 0 : i32
    %c0_i32_0 = arith.constant 0 : i32
    %c0_i32_1 = arith.constant 0 : i32
    return %c0_i32, %c0_i32_0 : i32, i32
  }
  func.func @transform_5(%arg0: i32) -> (i32, i32) {
    %c0_i32 = arith.constant 0 : i32
    %c0_i32_0 = arith.constant 0 : i32
    %c0_i32_1 = arith.constant 0 : i32
    return %c0_i32, %c0_i32_0 : i32, i32
  }
  func.func @transform_6(%arg0: i32) -> (i32, i32) {
    %c0_i32 = arith.constant 0 : i32
    %c0_i32_0 = arith.constant 0 : i32
    return %arg0, %c0_i32 : i32, i32
  }
}

</mosaic_0001>

<llo_original>
// kernel: bottleneck_transformer_forward.6
$region0: #{bottleneck_transformer_forward.6}
  #allocation0 [shape = 'u32[]', space=smem, size = 0x4, offset = 0x4, fixed_abs, tag = 'smem constant byte address 0x4 - core index']
  #allocation1 [shape = 'u32[72,128]{1,0:T(1,128)}', space=vmem, size = 0x9000, scoped, tag = 'internal scratch']
  %s0 = inlined_call_operand.vmem [shape: bf16[512,32], index: 0, kind: input, shape index: {}]
  %s1 = inlined_call_operand.vmem [shape: f32[1,32], index: 1, kind: input, shape index: {}]
  %s2 = inlined_call_operand.vmem [shape: f32[1,32], index: 2, kind: input, shape index: {}]
  %s3 = inlined_call_operand.vmem [shape: bf16[32,128], index: 3, kind: input, shape index: {}]
  %s4 = inlined_call_operand.vmem [shape: f32[512,128], index: 4, kind: output, shape index: {0}]
  %s5 = inlined_call_operand.vmem [shape: f32[1,1,128], index: 5, kind: output, shape index: {1}]
  %s6 = inlined_call_operand.vmem [shape: f32[1,1,128], index: 6, kind: output, shape index: {2}]
  %7 = xla_tuple %s4, %s5, %s6
  %s8 = sld [smem:[#allocation0]]
  $region42: #{bottleneck_transformer_forward.6} parent=0
    _
  %s10 = ssub.s32 1, %s8
  %s11 = scalar_select 0, %s10, %s8
  // Predicated region
  $region2: #{bottleneck_transformer_forward.6} parent=0 // pred_check
    _
  $region3: #{bottleneck_transformer_forward.6} parent=0 // pred_check_branch
    %13 = sbr.rel (0) target = $region5
  $region4: #{bottleneck_transformer_forward.6} parent=0 // pred_region
    _
  $region5: #{bottleneck_transformer_forward.6} parent=0 // pred_fallthru
    _
  // Predicated region
  $region6: #{bottleneck_transformer_forward.6} parent=0 // pred_check
    _
  $region7: #{bottleneck_transformer_forward.6} parent=0 // pred_check_branch
    %15 = sbr.rel (0) target = $region9
  $region8: #{bottleneck_transformer_forward.6} parent=0 // pred_region
    _
  $region9: #{bottleneck_transformer_forward.6} parent=0 // pred_fallthru
    _
  // Predicated region
  $region10: #{bottleneck_transformer_forward.6} parent=0 // pred_check
    _
  $region11: #{bottleneck_transformer_forward.6} parent=0 // pred_check_branch
    %17 = sbr.rel (0) target = $region13
  $region12: #{bottleneck_transformer_forward.6} parent=0 // pred_region
    _
  $region13: #{bottleneck_transformer_forward.6} parent=0 // pred_fallthru
    _
  // Predicated region
  $region14: #{bottleneck_transformer_forward.6} parent=0 // pred_check
    _
  $region15: #{bottleneck_transformer_forward.6} parent=0 // pred_check_branch
    %19 = sbr.rel (0) target = $region17
  $region16: #{bottleneck_transformer_forward.6} parent=0 // pred_region
    _
  $region17: #{bottleneck_transformer_forward.6} parent=0 // pred_fallthru
    _
  %v21 = vld [vmem:[%s0] sm:$0xf]
  %v22 = vld [vmem:[%s0 + $0x4] sm:$0xf]
  %v23 = vld [vmem:[%s0 + $0x8] sm:$0xf]
  %v24 = vld [vmem:[%s0 + $0xc] sm:$0xf]
  %v25 = vld [vmem:[%s0 + $0x10] sm:$0xf]
  %v26 = vld [vmem:[%s0 + $0x14] sm:$0xf]
  %v27 = vld [vmem:[%s0 + $0x18] sm:$0xf]
  %v28 = vld [vmem:[%s0 + $0x1c] sm:$0xf]
  %v29 = vld [vmem:[%s0 + $0x20] sm:$0xf]
  %v30 = vld [vmem:[%s0 + $0x24] sm:$0xf]
  %v31 = vld [vmem:[%s0 + $0x28] sm:$0xf]
  %v32 = vld [vmem:[%s0 + $0x2c] sm:$0xf]
  %v33 = vld [vmem:[%s0 + $0x30] sm:$0xf]
  %v34 = vld [vmem:[%s0 + $0x34] sm:$0xf]
  %v35 = vld [vmem:[%s0 + $0x38] sm:$0xf]
  %v36 = vld [vmem:[%s0 + $0x3c] sm:$0xf]
  %v37 = vld [vmem:[%s0 + $0x40] sm:$0xf]
  %v38 = vld [vmem:[%s0 + $0x44] sm:$0xf]
  %v39 = vld [vmem:[%s0 + $0x48] sm:$0xf]
  %v40 = vld [vmem:[%s0 + $0x4c] sm:$0xf]
  %v41 = vld [vmem:[%s0 + $0x50] sm:$0xf]
  %v42 = vld [vmem:[%s0 + $0x54] sm:$0xf]
  %v43 = vld [vmem:[%s0 + $0x58] sm:$0xf]
  %v44 = vld [vmem:[%s0 + $0x5c] sm:$0xf]
  %v45 = vld [vmem:[%s0 + $0x60] sm:$0xf]
  %v46 = vld [vmem:[%s0 + $0x64] sm:$0xf]
  %v47 = vld [vmem:[%s0 + $0x68] sm:$0xf]
  %v48 = vld [vmem:[%s0 + $0x6c] sm:$0xf]
  %v49 = vld [vmem:[%s0 + $0x70] sm:$0xf]
  %v50 = vld [vmem:[%s0 + $0x74] sm:$0xf]
  %v51 = vld [vmem:[%s0 + $0x78] sm:$0xf]
  %v52 = vld [vmem:[%s0 + $0x7c] sm:$0xf]
  %v53 = vld [vmem:[%s0 + $0x80] sm:$0xf]
  %v54 = vld [vmem:[%s0 + $0x84] sm:$0xf]
  %v55 = vld [vmem:[%s0 + $0x88] sm:$0xf]
  %v56 = vld [vmem:[%s0 + $0x8c] sm:$0xf]
  %v57 = vld [vmem:[%s0 + $0x90] sm:$0xf]
  %v58 = vld [vmem:[%s0 + $0x94] sm:$0xf]
  %v59 = vld [vmem:[%s0 + $0x98] sm:$0xf]
  %v60 = vld [vmem:[%s0 + $0x9c] sm:$0xf]
  %v61 = vld [vmem:[%s0 + $0xa0] sm:$0xf]
  %v62 = vld [vmem:[%s0 + $0xa4] sm:$0xf]
  %v63 = vld [vmem:[%s0 + $0xa8] sm:$0xf]
  %v64 = vld [vmem:[%s0 + $0xac] sm:$0xf]
  %v65 = vld [vmem:[%s0 + $0xb0] sm:$0xf]
  %v66 = vld [vmem:[%s0 + $0xb4] sm:$0xf]
  %v67 = vld [vmem:[%s0 + $0xb8] sm:$0xf]
  %v68 = vld [vmem:[%s0 + $0xbc] sm:$0xf]
  %v69 = vld [vmem:[%s0 + $0xc0] sm:$0xf]
  %v70 = vld [vmem:[%s0 + $0xc4] sm:$0xf]
  %v71 = vld [vmem:[%s0 + $0xc8] sm:$0xf]
  %v72 = vld [vmem:[%s0 + $0xcc] sm:$0xf]
  %v73 = vld [vmem:[%s0 + $0xd0] sm:$0xf]
  %v74 = vld [vmem:[%s0 + $0xd4] sm:$0xf]
  %v75 = vld [vmem:[%s0 + $0xd8] sm:$0xf]
  %v76 = vld [vmem:[%s0 + $0xdc] sm:$0xf]
  %v77 = vld [vmem:[%s0 + $0xe0] sm:$0xf]
  %v78 = vld [vmem:[%s0 + $0xe4] sm:$0xf]
  %v79 = vld [vmem:[%s0 + $0xe8] sm:$0xf]
  %v80 = vld [vmem:[%s0 + $0xec] sm:$0xf]
  %v81 = vld [vmem:[%s0 + $0xf0] sm:$0xf]
  %v82 = vld [vmem:[%s0 + $0xf4] sm:$0xf]
  %v83 = vld [vmem:[%s0 + $0xf8] sm:$0xf]
  %v84 = vld [vmem:[%s0 + $0xfc] sm:$0xf]
  %v85 = vunpack.c.l.bf16 %v21
  %v86 = vunpack.c.l.bf16 %v22
  %v87 = vunpack.c.l.bf16 %v23
  %v88 = vunpack.c.l.bf16 %v24
  %v89 = vunpack.c.l.bf16 %v25
  %v90 = vunpack.c.l.bf16 %v26
  %v91 = vunpack.c.l.bf16 %v27
  %v92 = vunpack.c.l.bf16 %v28
  %v93 = vunpack.c.l.bf16 %v29
  %v94 = vunpack.c.l.bf16 %v30
  %v95 = vunpack.c.l.bf16 %v31
  %v96 = vunpack.c.l.bf16 %v32
  %v97 = vunpack.c.l.bf16 %v33
  %v98 = vunpack.c.l.bf16 %v34
  %v99 = vunpack.c.l.bf16 %v35
  %v100 = vunpack.c.l.bf16 %v36
  %v101 = vunpack.c.l.bf16 %v37
  %v102 = vunpack.c.l.bf16 %v38
  %v103 = vunpack.c.l.bf16 %v39
  %v104 = vunpack.c.l.bf16 %v40
  %v105 = vunpack.c.l.bf16 %v41
  %v106 = vunpack.c.l.bf16 %v42
  %v107 = vunpack.c.l.bf16 %v43
  %v108 = vunpack.c.l.bf16 %v44
  %v109 = vunpack.c.l.bf16 %v45
  %v110 = vunpack.c.l.bf16 %v46
  %v111 = vunpack.c.l.bf16 %v47
  %v112 = vunpack.c.l.bf16 %v48
  %v113 = vunpack.c.l.bf16 %v49
  %v114 = vunpack.c.l.bf16 %v50
  %v115 = vunpack.c.l.bf16 %v51
  %v116 = vunpack.c.l.bf16 %v52
  %v117 = vunpack.c.l.bf16 %v53
  %v118 = vunpack.c.l.bf16 %v54
  %v119 = vunpack.c.l.bf16 %v55
  %v120 = vunpack.c.l.bf16 %v56
  %v121 = vunpack.c.l.bf16 %v57
  %v122 = vunpack.c.l.bf16 %v58
  %v123 = vunpack.c.l.bf16 %v59
  %v124 = vunpack.c.l.bf16 %v60
  %v125 = vunpack.c.l.bf16 %v61
  %v126 = vunpack.c.l.bf16 %v62
  %v127 = vunpack.c.l.bf16 %v63
  %v128 = vunpack.c.l.bf16 %v64
  %v129 = vunpack.c.l.bf16 %v65
  %v130 = vunpack.c.l.bf16 %v66
  %v131 = vunpack.c.l.bf16 %v67
  %v132 = vunpack.c.l.bf16 %v68
  %v133 = vunpack.c.l.bf16 %v69
  %v134 = vunpack.c.l.bf16 %v70
  %v135 = vunpack.c.l.bf16 %v71
  %v136 = vunpack.c.l.bf16 %v72
  %v137 = vunpack.c.l.bf16 %v73
  %v138 = vunpack.c.l.bf16 %v74
  %v139 = vunpack.c.l.bf16 %v75
  %v140 = vunpack.c.l.bf16 %v76
  %v141 = vunpack.c.l.bf16 %v77
  %v142 = vunpack.c.l.bf16 %v78
  %v143 = vunpack.c.l.bf16 %v79
  %v144 = vunpack.c.l.bf16 %v80
  %v145 = vunpack.c.l.bf16 %v81
  %v146 = vunpack.c.l.bf16 %v82
  %v147 = vunpack.c.l.bf16 %v83
  %v148 = vunpack.c.l.bf16 %v84
  %v149 = vld [vmem:[%s1] sm:$0x1]
  %v151 = vperm.slane %v149, 0
  %v153 = vmul.f32 %v85, %v151
  %v154 = vmul.f32 %v86, %v151
  %v155 = vmul.f32 %v87, %v151
  %v156 = vmul.f32 %v88, %v151
  %v157 = vmul.f32 %v89, %v151
  %v158 = vmul.f32 %v90, %v151
  %v159 = vmul.f32 %v91, %v151
  %v160 = vmul.f32 %v92, %v151
  %v161 = vmul.f32 %v93, %v151
  %v162 = vmul.f32 %v94, %v151
  %v163 = vmul.f32 %v95, %v151
  %v164 = vmul.f32 %v96, %v151
  %v165 = vmul.f32 %v97, %v151
  %v166 = vmul.f32 %v98, %v151
  %v167 = vmul.f32 %v99, %v151
  %v168 = vmul.f32 %v100, %v151
  %v169 = vmul.f32 %v101, %v151
  %v170 = vmul.f32 %v102, %v151
  %v171 = vmul.f32 %v103, %v151
  %v172 = vmul.f32 %v104, %v151
  %v173 = vmul.f32 %v105, %v151
  %v174 = vmul.f32 %v106, %v151
  %v175 = vmul.f32 %v107, %v151
  %v176 = vmul.f32 %v108, %v151
  %v177 = vmul.f32 %v109, %v151
  %v178 = vmul.f32 %v110, %v151
  %v179 = vmul.f32 %v111, %v151
  %v180 = vmul.f32 %v112, %v151
  %v181 = vmul.f32 %v113, %v151
  %v182 = vmul.f32 %v114, %v151
  %v183 = vmul.f32 %v115, %v151
  %v184 = vmul.f32 %v116, %v151
  %v185 = vmul.f32 %v117, %v151
  %v186 = vmul.f32 %v118, %v151
  %v187 = vmul.f32 %v119, %v151
  %v188 = vmul.f32 %v120, %v151
  %v189 = vmul.f32 %v121, %v151
  %v190 = vmul.f32 %v122, %v151
  %v191 = vmul.f32 %v123, %v151
  %v192 = vmul.f32 %v124, %v151
  %v193 = vmul.f32 %v125, %v151
  %v194 = vmul.f32 %v126, %v151
  %v195 = vmul.f32 %v127, %v151
  %v196 = vmul.f32 %v128, %v151
  %v197 = vmul.f32 %v129, %v151
  %v198 = vmul.f32 %v130, %v151
  %v199 = vmul.f32 %v131, %v151
  %v200 = vmul.f32 %v132, %v151
  %v201 = vmul.f32 %v133, %v151
  %v202 = vmul.f32 %v134, %v151
  %v203 = vmul.f32 %v135, %v151
  %v204 = vmul.f32 %v136, %v151
  %v205 = vmul.f32 %v137, %v151
  %v206 = vmul.f32 %v138, %v151
  %v207 = vmul.f32 %v139, %v151
  %v208 = vmul.f32 %v140, %v151
  %v209 = vmul.f32 %v141, %v151
  %v210 = vmul.f32 %v142, %v151
  %v211 = vmul.f32 %v143, %v151
  %v212 = vmul.f32 %v144, %v151
  %v213 = vmul.f32 %v145, %v151
  %v214 = vmul.f32 %v146, %v151
  %v215 = vmul.f32 %v147, %v151
  %v216 = vmul.f32 %v148, %v151
  %v217 = vld [vmem:[%s2] sm:$0x1]
  %v219 = vperm.slane %v217, 0
  %v221 = vadd.f32 %v153, %v219
  %v222 = vadd.f32 %v154, %v219
  %v223 = vadd.f32 %v155, %v219
  %v224 = vadd.f32 %v156, %v219
  %v225 = vadd.f32 %v157, %v219
  %v226 = vadd.f32 %v158, %v219
  %v227 = vadd.f32 %v159, %v219
  %v228 = vadd.f32 %v160, %v219
  %v229 = vadd.f32 %v161, %v219
  %v230 = vadd.f32 %v162, %v219
  %v231 = vadd.f32 %v163, %v219
  %v232 = vadd.f32 %v164, %v219
  %v233 = vadd.f32 %v165, %v219
  %v234 = vadd.f32 %v166, %v219
  %v235 = vadd.f32 %v167, %v219
  %v236 = vadd.f32 %v168, %v219
  %v237 = vadd.f32 %v169, %v219
  %v238 = vadd.f32 %v170, %v219
  %v239 = vadd.f32 %v171, %v219
  %v240 = vadd.f32 %v172, %v219
  %v241 = vadd.f32 %v173, %v219
  %v242 = vadd.f32 %v174, %v219
  %v243 = vadd.f32 %v175, %v219
  %v244 = vadd.f32 %v176, %v219
  %v245 = vadd.f32 %v177, %v219
  %v246 = vadd.f32 %v178, %v219
  %v247 = vadd.f32 %v179, %v219
  %v248 = vadd.f32 %v180, %v219
  %v249 = vadd.f32 %v181, %v219
  %v250 = vadd.f32 %v182, %v219
  %v251 = vadd.f32 %v183, %v219
  %v252 = vadd.f32 %v184, %v219
  %v253 = vadd.f32 %v185, %v219
  %v254 = vadd.f32 %v186, %v219
  %v255 = vadd.f32 %v187, %v219
  %v256 = vadd.f32 %v188, %v219
  %v257 = vadd.f32 %v189, %v219
  %v258 = vadd.f32 %v190, %v219
  %v259 = vadd.f32 %v191, %v219
  %v260 = vadd.f32 %v192, %v219
  %v261 = vadd.f32 %v193, %v219
  %v262 = vadd.f32 %v194, %v219
  %v263 = vadd.f32 %v195, %v219
  %v264 = vadd.f32 %v196, %v219
  %v265 = vadd.f32 %v197, %v219
  %v266 = vadd.f32 %v198, %v219
  %v267 = vadd.f32 %v199, %v219
  %v268 = vadd.f32 %v200, %v219
  %v269 = vadd.f32 %v201, %v219
  %v270 = vadd.f32 %v202, %v219
  %v271 = vadd.f32 %v203, %v219
  %v272 = vadd.f32 %v204, %v219
  %v273 = vadd.f32 %v205, %v219
  %v274 = vadd.f32 %v206, %v219
  %v275 = vadd.f32 %v207, %v219
  %v276 = vadd.f32 %v208, %v219
  %v277 = vadd.f32 %v209, %v219
  %v278 = vadd.f32 %v210, %v219
  %v279 = vadd.f32 %v211, %v219
  %v280 = vadd.f32 %v212, %v219
  %v281 = vadd.f32 %v213, %v219
  %v282 = vadd.f32 %v214, %v219
  %v283 = vadd.f32 %v215, %v219
  %v284 = vadd.f32 %v216, %v219
  %v285 = vmax.f32 %v221, 0.0
  %v286 = vmax.f32 %v222, 0.0
  %v287 = vmax.f32 %v223, 0.0
  %v288 = vmax.f32 %v224, 0.0
  %v289 = vmax.f32 %v225, 0.0
  %v290 = vmax.f32 %v226, 0.0
  %v291 = vmax.f32 %v227, 0.0
  %v292 = vmax.f32 %v228, 0.0
  %v293 = vmax.f32 %v229, 0.0
  %v294 = vmax.f32 %v230, 0.0
  %v295 = vmax.f32 %v231, 0.0
  %v296 = vmax.f32 %v232, 0.0
  %v297 = vmax.f32 %v233, 0.0
  %v298 = vmax.f32 %v234, 0.0
  %v299 = vmax.f32 %v235, 0.0
  %v300 = vmax.f32 %v236, 0.0
  %v301 = vmax.f32 %v237, 0.0
  %v302 = vmax.f32 %v238, 0.0
  %v303 = vmax.f32 %v239, 0.0
  %v304 = vmax.f32 %v240, 0.0
  %v305 = vmax.f32 %v241, 0.0
  %v306 = vmax.f32 %v242, 0.0
  %v307 = vmax.f32 %v243, 0.0
  %v308 = vmax.f32 %v244, 0.0
  %v309 = vmax.f32 %v245, 0.0
  %v310 = vmax.f32 %v246, 0.0
  %v311 = vmax.f32 %v247, 0.0
  %v312 = vmax.f32 %v248, 0.0
  %v313 = vmax.f32 %v249, 0.0
  %v314 = vmax.f32 %v250, 0.0
  %v315 = vmax.f32 %v251, 0.0
  %v316 = vmax.f32 %v252, 0.0
  %v317 = vmax.f32 %v253, 0.0
  %v318 = vmax.f32 %v254, 0.0
  %v319 = vmax.f32 %v255, 0.0
  %v320 = vmax.f32 %v256, 0.0
  %v321 = vmax.f32 %v257, 0.0
  %v322 = vmax.f32 %v258, 0.0
  %v323 = vmax.f32 %v259, 0.0
  %v324 = vmax.f32 %v260, 0.0
  %v325 = vmax.f32 %v261, 0.0
  %v326 = vmax.f32 %v262, 0.0
  %v327 = vmax.f32 %v263, 0.0
  %v328 = vmax.f32 %v264, 0.0
  %v329 = vmax.f32 %v265, 0.0
  %v330 = vmax.f32 %v266, 0.0
  %v331 = vmax.f32 %v267, 0.0
  %v332 = vmax.f32 %v268, 0.0
  %v333 = vmax.f32 %v269, 0.0
  %v334 = vmax.f32 %v270, 0.0
  %v335 = vmax.f32 %v271, 0.0
  %v336 = vmax.f32 %v272, 0.0
  %v337 = vmax.f32 %v273, 0.0
  %v338 = vmax.f32 %v274, 0.0
  %v339 = vmax.f32 %v275, 0.0
  %v340 = vmax.f32 %v276, 0.0
  %v341 = vmax.f32 %v277, 0.0
  %v342 = vmax.f32 %v278, 0.0
  %v343 = vmax.f32 %v279, 0.0
  %v344 = vmax.f32 %v280, 0.0
  %v345 = vmax.f32 %v281, 0.0
  %v346 = vmax.f32 %v282, 0.0
  %v347 = vmax.f32 %v283, 0.0
  %v348 = vmax.f32 %v284, 0.0
  %v349 = vpack.c.bf16 %v286, %v285
  %v350 = vpack.c.bf16 %v288, %v287
  %v351 = vpack.c.bf16 %v290, %v289
  %v352 = vpack.c.bf16 %v292, %v291
  %v353 = vpack.c.bf16 %v294, %v293
  %v354 = vpack.c.bf16 %v296, %v295
  %v355 = vpack.c.bf16 %v298, %v297
  %v356 = vpack.c.bf16 %v300, %v299
  %v357 = vpack.c.bf16 %v302, %v301
  %v358 = vpack.c.bf16 %v304, %v303
  %v359 = vpack.c.bf16 %v306, %v305
  %v360 = vpack.c.bf16 %v308, %v307
  %v361 = vpack.c.bf16 %v310, %v309
  %v362 = vpack.c.bf16 %v312, %v311
  %v363 = vpack.c.bf16 %v314, %v313
  %v364 = vpack.c.bf16 %v316, %v315
  %v365 = vpack.c.bf16 %v318, %v317
  %v366 = vpack.c.bf16 %v320, %v319
  %v367 = vpack.c.bf16 %v322, %v321
  %v368 = vpack.c.bf16 %v324, %v323
  %v369 = vpack.c.bf16 %v326, %v325
  %v370 = vpack.c.bf16 %v328, %v327
  %v371 = vpack.c.bf16 %v330, %v329
  %v372 = vpack.c.bf16 %v332, %v331
  %v373 = vpack.c.bf16 %v334, %v333
  %v374 = vpack.c.bf16 %v336, %v335
  %v375 = vpack.c.bf16 %v338, %v337
  %v376 = vpack.c.bf16 %v340, %v339
  %v377 = vpack.c.bf16 %v342, %v341
  %v378 = vpack.c.bf16 %v344, %v343
  %v379 = vpack.c.bf16 %v346, %v345
  %v380 = vpack.c.bf16 %v348, %v347
  %v381 = vld [vmem:[%s3] sm:$0xf]
  %v382 = vld [vmem:[%s3 + $0x4] sm:$0xf]
  %v383 = vld [vmem:[%s3 + $0x8] sm:$0xf]
  %v384 = vld [vmem:[%s3 + $0xc] sm:$0xf]
  %v389 = vunpack.c.l.b16 %v381
  %v390 = vunpack.c.l.b16 %v382
  %v391 = vunpack.c.l.b16 %v383
  %v392 = vunpack.c.l.b16 %v384
  %v393 = vpack.c.b16 %v390, %v389
  %v394 = vpack.c.b16 %v392, %v391
  %vm397 = vcmask 261120
  %v399 = vsel %vm397, %v349, 0
  %v402 = vsel %vm397, %v350, 0
  %v405 = vsel %vm397, %v351, 0
  %v408 = vsel %vm397, %v352, 0
  %v411 = vsel %vm397, %v353, 0
  %v414 = vsel %vm397, %v354, 0
  %v417 = vsel %vm397, %v355, 0
  %v420 = vsel %vm397, %v356, 0
  %v423 = vsel %vm397, %v357, 0
  %v426 = vsel %vm397, %v358, 0
  %v429 = vsel %vm397, %v359, 0
  %v432 = vsel %vm397, %v360, 0
  %v435 = vsel %vm397, %v361, 0
  %v438 = vsel %vm397, %v362, 0
  %v441 = vsel %vm397, %v363, 0
  %v444 = vsel %vm397, %v364, 0
  %v447 = vsel %vm397, %v365, 0
  %v450 = vsel %vm397, %v366, 0
  %v453 = vsel %vm397, %v367, 0
  %v456 = vsel %vm397, %v368, 0
  %v459 = vsel %vm397, %v369, 0
  %v462 = vsel %vm397, %v370, 0
  %v465 = vsel %vm397, %v371, 0
  %v468 = vsel %vm397, %v372, 0
  %v471 = vsel %vm397, %v373, 0
  %v474 = vsel %vm397, %v374, 0
  %v477 = vsel %vm397, %v375, 0
  %v480 = vsel %vm397, %v376, 0
  %v483 = vsel %vm397, %v377, 0
  %v486 = vsel %vm397, %v378, 0
  %v489 = vsel %vm397, %v379, 0
  %v492 = vsel %vm397, %v380, 0
  %494 = vmatpush.bf16.msra.mxu0 0
  %495 = vmatpush.bf16.msra.mxu0 0
  %496 = vmatpush.bf16.msra.mxu0 0
  %497 = vmatpush.bf16.msra.mxu0 0
  %498 = vmatpush.bf16.msra.mxu0 0
  %499 = vmatpush.bf16.msra.mxu0 0
  %500 = vmatpush.bf16.msra.mxu0 %v394
  %501 = vmatpush.bf16.msra.mxu0 %v393
  %502 = vmatmul.bf16.gmra.mxu0 %v399
  %v503 = vpop.f32.mrf.mxu0
  %v504 = vadd.f32 0.0, %v503
  %v505 = vpop.f32.mrf.mxu0
  %v506 = vadd.f32 0.0, %v505
  %507 = vmatmul.bf16.gmra.mxu0 %v402
  %v508 = vpop.f32.mrf.mxu0
  %v509 = vadd.f32 0.0, %v508
  %v510 = vpop.f32.mrf.mxu0
  %v511 = vadd.f32 0.0, %v510
  %512 = vmatmul.bf16.gmra.mxu0 %v405
  %v513 = vpop.f32.mrf.mxu0
  %v514 = vadd.f32 0.0, %v513
  %v515 = vpop.f32.mrf.mxu0
  %v516 = vadd.f32 0.0, %v515
  %517 = vmatmul.bf16.gmra.mxu0 %v408
  %v518 = vpop.f32.mrf.mxu0
  %v519 = vadd.f32 0.0, %v518
  %v520 = vpop.f32.mrf.mxu0
  %v521 = vadd.f32 0.0, %v520
  %522 = vmatmul.bf16.gmra.mxu0 %v411
  %v523 = vpop.f32.mrf.mxu0
  %v524 = vadd.f32 0.0, %v523
  %v525 = vpop.f32.mrf.mxu0
  %v526 = vadd.f32 0.0, %v525
  %527 = vmatmul.bf16.gmra.mxu0 %v414
  %v528 = vpop.f32.mrf.mxu0
  %v529 = vadd.f32 0.0, %v528
  %v530 = vpop.f32.mrf.mxu0
  %v531 = vadd.f32 0.0, %v530
  %532 = vmatmul.bf16.gmra.mxu0 %v417
  %v533 = vpop.f32.mrf.mxu0
  %v534 = vadd.f32 0.0, %v533
  %v535 = vpop.f32.mrf.mxu0
  %v536 = vadd.f32 0.0, %v535
  %537 = vmatmul.bf16.gmra.mxu0 %v420
  %v538 = vpop.f32.mrf.mxu0
  %v539 = vadd.f32 0.0, %v538
  %v540 = vpop.f32.mrf.mxu0
  %v541 = vadd.f32 0.0, %v540
  %542 = vmatmul.bf16.gmra.mxu0 %v423
  %v543 = vpop.f32.mrf.mxu0
  %v544 = vadd.f32 0.0, %v543
  %v545 = vpop.f32.mrf.mxu0
  %v546 = vadd.f32 0.0, %v545
  %547 = vmatmul.bf16.gmra.mxu0 %v426
  %v548 = vpop.f32.mrf.mxu0
  %v549 = vadd.f32 0.0, %v548
  %v550 = vpop.f32.mrf.mxu0
  %v551 = vadd.f32 0.0, %v550
  %552 = vmatmul.bf16.gmra.mxu0 %v429
  %v553 = vpop.f32.mrf.mxu0
  %v554 = vadd.f32 0.0, %v553
  %v555 = vpop.f32.mrf.mxu0
  %v556 = vadd.f32 0.0, %v555
  %557 = vmatmul.bf16.gmra.mxu0 %v432
  %v558 = vpop.f32.mrf.mxu0
  %v559 = vadd.f32 0.0, %v558
  %v560 = vpop.f32.mrf.mxu0
  %v561 = vadd.f32 0.0, %v560
  %562 = vmatmul.bf16.gmra.mxu0 %v435
  %v563 = vpop.f32.mrf.mxu0
  %v564 = vadd.f32 0.0, %v563
  %v565 = vpop.f32.mrf.mxu0
  %v566 = vadd.f32 0.0, %v565
  %567 = vmatmul.bf16.gmra.mxu0 %v438
  %v568 = vpop.f32.mrf.mxu0
  %v569 = vadd.f32 0.0, %v568
  %v570 = vpop.f32.mrf.mxu0
  %v571 = vadd.f32 0.0, %v570
  %572 = vmatmul.bf16.gmra.mxu0 %v441
  %v573 = vpop.f32.mrf.mxu0
  %v574 = vadd.f32 0.0, %v573
  %v575 = vpop.f32.mrf.mxu0
  %v576 = vadd.f32 0.0, %v575
  %577 = vmatmul.bf16.gmra.mxu0 %v444
  %v578 = vpop.f32.mrf.mxu0
  %v579 = vadd.f32 0.0, %v578
  %v580 = vpop.f32.mrf.mxu0
  %v581 = vadd.f32 0.0, %v580
  %582 = vmatmul.bf16.gmra.mxu0 %v447
  %v583 = vpop.f32.mrf.mxu0
  %v584 = vadd.f32 0.0, %v583
  %v585 = vpop.f32.mrf.mxu0
  %v586 = vadd.f32 0.0, %v585
  %587 = vmatmul.bf16.gmra.mxu0 %v450
  %v588 = vpop.f32.mrf.mxu0
  %v589 = vadd.f32 0.0, %v588
  %v590 = vpop.f32.mrf.mxu0
  %v591 = vadd.f32 0.0, %v590
  %592 = vmatmul.bf16.gmra.mxu0 %v453
  %v593 = vpop.f32.mrf.mxu0
  %v594 = vadd.f32 0.0, %v593
  %v595 = vpop.f32.mrf.mxu0
  %v596 = vadd.f32 0.0, %v595
  %597 = vmatmul.bf16.gmra.mxu0 %v456
  %v598 = vpop.f32.mrf.mxu0
  %v599 = vadd.f32 0.0, %v598
  %v600 = vpop.f32.mrf.mxu0
  %v601 = vadd.f32 0.0, %v600
  %602 = vmatmul.bf16.gmra.mxu0 %v459
  %v603 = vpop.f32.mrf.mxu0
  %v604 = vadd.f32 0.0, %v603
  %v605 = vpop.f32.mrf.mxu0
  %v606 = vadd.f32 0.0, %v605
  %607 = vmatmul.bf16.gmra.mxu0 %v462
  %v608 = vpop.f32.mrf.mxu0
  %v609 = vadd.f32 0.0, %v608
  %v610 = vpop.f32.mrf.mxu0
  %v611 = vadd.f32 0.0, %v610
  %612 = vmatmul.bf16.gmra.mxu0 %v465
  %v613 = vpop.f32.mrf.mxu0
  %v614 = vadd.f32 0.0, %v613
  %v615 = vpop.f32.mrf.mxu0
  %v616 = vadd.f32 0.0, %v615
  %617 = vmatmul.bf16.gmra.mxu0 %v468
  %v618 = vpop.f32.mrf.mxu0
  %v619 = vadd.f32 0.0, %v618
  %v620 = vpop.f32.mrf.mxu0
  %v621 = vadd.f32 0.0, %v620
  %622 = vmatmul.bf16.gmra.mxu0 %v471
  %v623 = vpop.f32.mrf.mxu0
  %v624 = vadd.f32 0.0, %v623
  %v625 = vpop.f32.mrf.mxu0
  %v626 = vadd.f32 0.0, %v625
  %627 = vmatmul.bf16.gmra.mxu0 %v474
  %v628 = vpop.f32.mrf.mxu0
  %v629 = vadd.f32 0.0, %v628
  %v630 = vpop.f32.mrf.mxu0
  %v631 = vadd.f32 0.0, %v630
  %632 = vmatmul.bf16.gmra.mxu0 %v477
  %v633 = vpop.f32.mrf.mxu0
  %v634 = vadd.f32 0.0, %v633
  %v635 = vpop.f32.mrf.mxu0
  %v636 = vadd.f32 0.0, %v635
  %637 = vmatmul.bf16.gmra.mxu0 %v480
  %v638 = vpop.f32.mrf.mxu0
  %v639 = vadd.f32 0.0, %v638
  %v640 = vpop.f32.mrf.mxu0
  %v641 = vadd.f32 0.0, %v640
  %642 = vmatmul.bf16.gmra.mxu0 %v483
  %v643 = vpop.f32.mrf.mxu0
  %v644 = vadd.f32 0.0, %v643
  %v645 = vpop.f32.mrf.mxu0
  %v646 = vadd.f32 0.0, %v645
  %647 = vmatmul.bf16.gmra.mxu0 %v486
  %v648 = vpop.f32.mrf.mxu0
  %v649 = vadd.f32 0.0, %v648
  %v650 = vpop.f32.mrf.mxu0
  %v651 = vadd.f32 0.0, %v650
  %652 = vmatmul.bf16.gmra.mxu0 %v489
  %v653 = vpop.f32.mrf.mxu0
  %v654 = vadd.f32 0.0, %v653
  %v655 = vpop.f32.mrf.mxu0
  %v656 = vadd.f32 0.0, %v655
  %657 = vmatmul.bf16.gmra.mxu0 %v492
  %v658 = vpop.f32.mrf.mxu0
  %v659 = vadd.f32 0.0, %v658
  %v660 = vpop.f32.mrf.mxu0
  %v661 = vadd.f32 0.0, %v660
  %662 = vdwg.mxu0
  %663 = vst [vmem:[%s4] sm:$0xff] %v504
  %664 = vst [vmem:[%s4 + $0x8] sm:$0xff] %v506
  %665 = vst [vmem:[%s4 + $0x10] sm:$0xff] %v509
  %666 = vst [vmem:[%s4 + $0x18] sm:$0xff] %v511
  %667 = vst [vmem:[%s4 + $0x20] sm:$0xff] %v514
  %668 = vst [vmem:[%s4 + $0x28] sm:$0xff] %v516
  %669 = vst [vmem:[%s4 + $0x30] sm:$0xff] %v519
  %670 = vst [vmem:[%s4 + $0x38] sm:$0xff] %v521
  %671 = vst [vmem:[%s4 + $0x40] sm:$0xff] %v524
  %672 = vst [vmem:[%s4 + $0x48] sm:$0xff] %v526
  %673 = vst [vmem:[%s4 + $0x50] sm:$0xff] %v529
  %674 = vst [vmem:[%s4 + $0x58] sm:$0xff] %v531
  %675 = vst [vmem:[%s4 + $0x60] sm:$0xff] %v534
  %676 = vst [vmem:[%s4 + $0x68] sm:$0xff] %v536
  %677 = vst [vmem:[%s4 + $0x70] sm:$0xff] %v539
  %678 = vst [vmem:[%s4 + $0x78] sm:$0xff] %v541
  %679 = vst [vmem:[%s4 + $0x80] sm:$0xff] %v544
  %680 = vst [vmem:[%s4 + $0x88] sm:$0xff] %v546
  %681 = vst [vmem:[%s4 + $0x90] sm:$0xff] %v549
  %682 = vst [vmem:[%s4 + $0x98] sm:$0xff] %v551
  %683 = vst [vmem:[%s4 + $0xa0] sm:$0xff] %v554
  %684 = vst [vmem:[%s4 + $0xa8] sm:$0xff] %v556
  %685 = vst [vmem:[%s4 + $0xb0] sm:$0xff] %v559
  %686 = vst [vmem:[%s4 + $0xb8] sm:$0xff] %v561
  %687 = vst [vmem:[%s4 + $0xc0] sm:$0xff] %v564
  %688 = vst [vmem:[%s4 + $0xc8] sm:$0xff] %v566
  %689 = vst [vmem:[%s4 + $0xd0] sm:$0xff] %v569
  %690 = vst [vmem:[%s4 + $0xd8] sm:$0xff] %v571
  %691 = vst [vmem:[%s4 + $0xe0] sm:$0xff] %v574
  %692 = vst [vmem:[%s4 + $0xe8] sm:$0xff] %v576
  %693 = vst [vmem:[%s4 + $0xf0] sm:$0xff] %v579
  %694 = vst [vmem:[%s4 + $0xf8] sm:$0xff] %v581
  %695 = vst [vmem:[%s4 + $0x100] sm:$0xff] %v584
  %696 = vst [vmem:[%s4 + $0x108] sm:$0xff] %v586
  %697 = vst [vmem:[%s4 + $0x110] sm:$0xff] %v589
  %698 = vst [vmem:[%s4 + $0x118] sm:$0xff] %v591
  %699 = vst [vmem:[%s4 + $0x120] sm:$0xff] %v594
  %700 = vst [vmem:[%s4 + $0x128] sm:$0xff] %v596
  %701 = vst [vmem:[%s4 + $0x130] sm:$0xff] %v599
  %702 = vst [vmem:[%s4 + $0x138] sm:$0xff] %v601
  %703 = vst [vmem:[%s4 + $0x140] sm:$0xff] %v604
  %704 = vst [vmem:[%s4 + $0x148] sm:$0xff] %v606
  %705 = vst [vmem:[%s4 + $0x150] sm:$0xff] %v609
  %706 = vst [vmem:[%s4 + $0x158] sm:$0xff] %v611
  %707 = vst [vmem:[%s4 + $0x160] sm:$0xff] %v614
  %708 = vst [vmem:[%s4 + $0x168] sm:$0xff] %v616
  %709 = vst [vmem:[%s4 + $0x170] sm:$0xff] %v619
  %710 = vst [vmem:[%s4 + $0x178] sm:$0xff] %v621
  %711 = vst [vmem:[%s4 + $0x180] sm:$0xff] %v624
  %712 = vst [vmem:[%s4 + $0x188] sm:$0xff] %v626
  %713 = vst [vmem:[%s4 + $0x190] sm:$0xff] %v629
  %714 = vst [vmem:[%s4 + $0x198] sm:$0xff] %v631
  %715 = vst [vmem:[%s4 + $0x1a0] sm:$0xff] %v634
  %716 = vst [vmem:[%s4 + $0x1a8] sm:$0xff] %v636
  %717 = vst [vmem:[%s4 + $0x1b0] sm:$0xff] %v639
  %718 = vst [vmem:[%s4 + $0x1b8] sm:$0xff] %v641
  %719 = vst [vmem:[%s4 + $0x1c0] sm:$0xff] %v644
  %720 = vst [vmem:[%s4 + $0x1c8] sm:$0xff] %v646
  %721 = vst [vmem:[%s4 + $0x1d0] sm:$0xff] %v649
  %722 = vst [vmem:[%s4 + $0x1d8] sm:$0xff] %v651
  %723 = vst [vmem:[%s4 + $0x1e0] sm:$0xff] %v654
  %724 = vst [vmem:[%s4 + $0x1e8] sm:$0xff] %v656
  %725 = vst [vmem:[%s4 + $0x1f0] sm:$0xff] %v659
  %726 = vst [vmem:[%s4 + $0x1f8] sm:$0xff] %v661
  %v727 = vadd.f32 %v504, %v506
  %v728 = vadd.f32 %v727, %v509
  %v729 = vadd.f32 %v728, %v511
  %v730 = vadd.f32 %v729, %v514
  %v731 = vadd.f32 %v730, %v516
  %v732 = vadd.f32 %v731, %v519
  %v733 = vadd.f32 %v732, %v521
  %v734 = vadd.f32 %v733, %v524
  %v735 = vadd.f32 %v734, %v526
  %v736 = vadd.f32 %v735, %v529
  %v737 = vadd.f32 %v736, %v531
  %v738 = vadd.f32 %v737, %v534
  %v739 = vadd.f32 %v738, %v536
  %v740 = vadd.f32 %v739, %v539
  %v741 = vadd.f32 %v740, %v541
  %v742 = vadd.f32 %v741, %v544
  %v743 = vadd.f32 %v742, %v546
  %v744 = vadd.f32 %v743, %v549
  %v745 = vadd.f32 %v744, %v551
  %v746 = vadd.f32 %v745, %v554
  %v747 = vadd.f32 %v746, %v556
  %v748 = vadd.f32 %v747, %v559
  %v749 = vadd.f32 %v748, %v561
  %v750 = vadd.f32 %v749, %v564
  %v751 = vadd.f32 %v750, %v566
  %v752 = vadd.f32 %v751, %v569
  %v753 = vadd.f32 %v752, %v571
  %v754 = vadd.f32 %v753, %v574
  %v755 = vadd.f32 %v754, %v576
  %v756 = vadd.f32 %v755, %v579
  %v757 = vadd.f32 %v756, %v581
  %v758 = vadd.f32 %v757, %v584
  %v759 = vadd.f32 %v758, %v586
  %v760 = vadd.f32 %v759, %v589
  %v761 = vadd.f32 %v760, %v591
  %v762 = vadd.f32 %v761, %v594
  %v763 = vadd.f32 %v762, %v596
  %v764 = vadd.f32 %v763, %v599
  %v765 = vadd.f32 %v764, %v601
  %v766 = vadd.f32 %v765, %v604
  %v767 = vadd.f32 %v766, %v606
  %v768 = vadd.f32 %v767, %v609
  %v769 = vadd.f32 %v768, %v611
  %v770 = vadd.f32 %v769, %v614
  %v771 = vadd.f32 %v770, %v616
  %v772 = vadd.f32 %v771, %v619
  %v773 = vadd.f32 %v772, %v621
  %v774 = vadd.f32 %v773, %v624
  %v775 = vadd.f32 %v774, %v626
  %v776 = vadd.f32 %v775, %v629
  %v777 = vadd.f32 %v776, %v631
  %v778 = vadd.f32 %v777, %v634
  %v779 = vadd.f32 %v778, %v636
  %v780 = vadd.f32 %v779, %v639
  %v781 = vadd.f32 %v780, %v641
  %v782 = vadd.f32 %v781, %v644
  %v783 = vadd.f32 %v782, %v646
  %v784 = vadd.f32 %v783, %v649
  %v785 = vadd.f32 %v784, %v651
  %v786 = vadd.f32 %v785, %v654
  %v787 = vadd.f32 %v786, %v656
  %v788 = vadd.f32 %v787, %v659
  %v789 = vadd.f32 %v788, %v661
  %v790 = vrot.slane %v789, 4
  %v791 = vadd.f32 %v789, %v790
  %v792 = vrot.slane %v791, 2
  %v793 = vadd.f32 %v791, %v792
  %v794 = vrot.slane %v793, 1
  %v795 = vadd.f32 %v793, %v794
  %796 = vst [vmem:[%s5] sm:$0x1] %v795
  %v797 = vmul.f32 %v504, %v504
  %v798 = vmul.f32 %v506, %v506
  %v799 = vmul.f32 %v509, %v509
  %v800 = vmul.f32 %v511, %v511
  %v801 = vmul.f32 %v514, %v514
  %v802 = vmul.f32 %v516, %v516
  %v803 = vmul.f32 %v519, %v519
  %v804 = vmul.f32 %v521, %v521
  %v805 = vmul.f32 %v524, %v524
  %v806 = vmul.f32 %v526, %v526
  %v807 = vmul.f32 %v529, %v529
  %v808 = vmul.f32 %v531, %v531
  %v809 = vmul.f32 %v534, %v534
  %v810 = vmul.f32 %v536, %v536
  %v811 = vmul.f32 %v539, %v539
  %v812 = vmul.f32 %v541, %v541
  %v813 = vmul.f32 %v544, %v544
  %v814 = vmul.f32 %v546, %v546
  %v815 = vmul.f32 %v549, %v549
  %v816 = vmul.f32 %v551, %v551
  %v817 = vmul.f32 %v554, %v554
  %v818 = vmul.f32 %v556, %v556
  %v819 = vmul.f32 %v559, %v559
  %v820 = vmul.f32 %v561, %v561
  %v821 = vmul.f32 %v564, %v564
  %v822 = vmul.f32 %v566, %v566
  %v823 = vmul.f32 %v569, %v569
  %v824 = vmul.f32 %v571, %v571
  %v825 = vmul.f32 %v574, %v574
  %v826 = vmul.f32 %v576, %v576
  %v827 = vmul.f32 %v579, %v579
  %v828 = vmul.f32 %v581, %v581
  %v829 = vmul.f32 %v584, %v584
  %v830 = vmul.f32 %v586, %v586
  %v831 = vmul.f32 %v589, %v589
  %v832 = vmul.f32 %v591, %v591
  %v833 = vmul.f32 %v594, %v594
  %v834 = vmul.f32 %v596, %v596
  %v835 = vmul.f32 %v599, %v599
  %v836 = vmul.f32 %v601, %v601
  %v837 = vmul.f32 %v604, %v604
  %v838 = vmul.f32 %v606, %v606
  %v839 = vmul.f32 %v609, %v609
  %v840 = vmul.f32 %v611, %v611
  %v841 = vmul.f32 %v614, %v614
  %v842 = vmul.f32 %v616, %v616
  %v843 = vmul.f32 %v619, %v619
  %v844 = vmul.f32 %v621, %v621
  %v845 = vmul.f32 %v624, %v624
  %v846 = vmul.f32 %v626, %v626
  %v847 = vmul.f32 %v629, %v629
  %v848 = vmul.f32 %v631, %v631
  %v849 = vmul.f32 %v634, %v634
  %v850 = vmul.f32 %v636, %v636
  %v851 = vmul.f32 %v639, %v639
  %v852 = vmul.f32 %v641, %v641
  %v853 = vmul.f32 %v644, %v644
  %v854 = vmul.f32 %v646, %v646
  %v855 = vmul.f32 %v649, %v649
  %v856 = vmul.f32 %v651, %v651
  %v857 = vmul.f32 %v654, %v654
  %v858 = vmul.f32 %v656, %v656
  %v859 = vmul.f32 %v659, %v659
  %v860 = vmul.f32 %v661, %v661
  %v861 = vadd.f32 %v797, %v798
  %v862 = vadd.f32 %v861, %v799
  %v863 = vadd.f32 %v862, %v800
  %v864 = vadd.f32 %v863, %v801
  %v865 = vadd.f32 %v864, %v802
  %v866 = vadd.f32 %v865, %v803
  %v867 = vadd.f32 %v866, %v804
  %v868 = vadd.f32 %v867, %v805
  %v869 = vadd.f32 %v868, %v806
  %v870 = vadd.f32 %v869, %v807
  %v871 = vadd.f32 %v870, %v808
  %v872 = vadd.f32 %v871, %v809
  %v873 = vadd.f32 %v872, %v810
  %v874 = vadd.f32 %v873, %v811
  %v875 = vadd.f32 %v874, %v812
  %v876 = vadd.f32 %v875, %v813
  %v877 = vadd.f32 %v876, %v814
  %v878 = vadd.f32 %v877, %v815
  %v879 = vadd.f32 %v878, %v816
  %v880 = vadd.f32 %v879, %v817
  %v881 = vadd.f32 %v880, %v818
  %v882 = vadd.f32 %v881, %v819
  %v883 = vadd.f32 %v882, %v820
  %v884 = vadd.f32 %v883, %v821
  %v885 = vadd.f32 %v884, %v822
  %v886 = vadd.f32 %v885, %v823
  %v887 = vadd.f32 %v886, %v824
  %v888 = vadd.f32 %v887, %v825
  %v889 = vadd.f32 %v888, %v826
  %v890 = vadd.f32 %v889, %v827
  %v891 = vadd.f32 %v890, %v828
  %v892 = vadd.f32 %v891, %v829
  %v893 = vadd.f32 %v892, %v830
  %v894 = vadd.f32 %v893, %v831
  %v895 = vadd.f32 %v894, %v832
  %v896 = vadd.f32 %v895, %v833
  %v897 = vadd.f32 %v896, %v834
  %v898 = vadd.f32 %v897, %v835
  %v899 = vadd.f32 %v898, %v836
  %v900 = vadd.f32 %v899, %v837
  %v901 = vadd.f32 %v900, %v838
  %v902 = vadd.f32 %v901, %v839
  %v903 = vadd.f32 %v902, %v840
  %v904 = vadd.f32 %v903, %v841
  %v905 = vadd.f32 %v904, %v842
  %v906 = vadd.f32 %v905, %v843
  %v907 = vadd.f32 %v906, %v844
  %v908 = vadd.f32 %v907, %v845
  %v909 = vadd.f32 %v908, %v846
  %v910 = vadd.f32 %v909, %v847
  %v911 = vadd.f32 %v910, %v848
  %v912 = vadd.f32 %v911, %v849
  %v913 = vadd.f32 %v912, %v850
  %v914 = vadd.f32 %v913, %v851
  %v915 = vadd.f32 %v914, %v852
  %v916 = vadd.f32 %v915, %v853
  %v917 = vadd.f32 %v916, %v854
  %v918 = vadd.f32 %v917, %v855
  %v919 = vadd.f32 %v918, %v856
  %v920 = vadd.f32 %v919, %v857
  %v921 = vadd.f32 %v920, %v858
  %v922 = vadd.f32 %v921, %v859
  %v923 = vadd.f32 %v922, %v860
  %v924 = vrot.slane %v923, 4
  %v925 = vadd.f32 %v923, %v924
  %v926 = vrot.slane %v925, 2
  %v927 = vadd.f32 %v925, %v926
  %v928 = vrot.slane %v927, 1
  %v929 = vadd.f32 %v927, %v928
  %930 = vst [vmem:[%s6] sm:$0x1] %v929
  // Predicated region
  $region18: #{bottleneck_transformer_forward.6} parent=0 // pred_check
    _
  $region19: #{bottleneck_transformer_forward.6} parent=0 // pred_check_branch
    %932 = sbr.rel (0) target = $region21
  $region20: #{bottleneck_transformer_forward.6} parent=0 // pred_region
    _
  $region21: #{bottleneck_transformer_forward.6} parent=0 // pred_fallthru
    _
  // Predicated region
  $region22: #{bottleneck_transformer_forward.6} parent=0 // pred_check
    _
  $region23: #{bottleneck_transformer_forward.6} parent=0 // pred_check_branch
    %934 = sbr.rel (0) target = $region25
  $region24: #{bottleneck_transformer_forward.6} parent=0 // pred_region
    _
  $region25: #{bottleneck_transformer_forward.6} parent=0 // pred_fallthru
    _
  // Predicated region
  $region26: #{bottleneck_transformer_forward.6} parent=0 // pred_check
    _
  $region27: #{bottleneck_transformer_forward.6} parent=0 // pred_check_branch
    %936 = sbr.rel (0) target = $region29
  $region28: #{bottleneck_transformer_forward.6} parent=0 // pred_region
    _
  $region29: #{bottleneck_transformer_forward.6} parent=0 // pred_fallthru
    _
  // Predicated region
  $region30: #{bottleneck_transformer_forward.6} parent=0 // pred_check
    _
  $region31: #{bottleneck_transformer_forward.6} parent=0 // pred_check_branch
    %938 = sbr.rel (0) target = $region33
  $region32: #{bottleneck_transformer_forward.6} parent=0 // pred_region
    _
  $region33: #{bottleneck_transformer_forward.6} parent=0 // pred_fallthru
    _
  // Predicated region
  $region34: #{bottleneck_transformer_forward.6} parent=0 // pred_check
    _
  $region35: #{bottleneck_transformer_forward.6} parent=0 // pred_check_branch
    %940 = sbr.rel (0) target = $region37
  $region36: #{bottleneck_transformer_forward.6} parent=0 // pred_region
    _
  $region37: #{bottleneck_transformer_forward.6} parent=0 // pred_fallthru
    _
  // Predicated region
  $region38: #{bottleneck_transformer_forward.6} parent=0 // pred_check
    _
  $region39: #{bottleneck_transformer_forward.6} parent=0 // pred_check_branch
    %942 = sbr.rel (0) target = $region41
  $region40: #{bottleneck_transformer_forward.6} parent=0 // pred_region
    _
  $region41: #{bottleneck_transformer_forward.6} parent=0 // pred_fallthru
    _

// kernel: bottleneck_transformer_forward.4
$region0: #{bottleneck_transformer_forward.4}
  #allocation0 [shape = 'u32[]', space=smem, size = 0x4, offset = 0x4, fixed_abs, tag = 'smem constant byte address 0x4 - core index']
  #allocation1 [shape = 'u32[72,128]{1,0:T(1,128)}', space=vmem, size = 0x9000, scoped, tag = 'internal scratch']
  %s0 = inlined_call_operand.vmem [shape: bf16[512,64], index: 0, kind: input, shape index: {}]
  %s1 = inlined_call_operand.vmem [shape: bf16[64,32], index: 1, kind: input, shape index: {}]
  %s2 = inlined_call_operand.vmem [shape: bf16[64,128], index: 2, kind: input, shape index: {}]
  %s3 = inlined_call_operand.vmem [shape: f32[1,128], index: 3, kind: input, shape index: {}]
  %s4 = inlined_call_operand.vmem [shape: bf16[512,32], index: 4, kind: output, shape index: {0}]
  %s5 = inlined_call_operand.vmem [shape: f32[1,1,32], index: 5, kind: output, shape index: {1}]
  %s6 = inlined_call_operand.vmem [shape: f32[1,1,32], index: 6, kind: output, shape index: {2}]
  %s7 = inlined_call_operand.vmem [shape: bf16[512,128], index: 7, kind: output, shape index: {3}]
  %s8 = inlined_call_operand.vmem [shape: f32[1,1,128], index: 8, kind: output, shape index: {4}]
  %s9 = inlined_call_operand.vmem [shape: f32[1,1,128], index: 9, kind: output, shape index: {5}]
  %10 = xla_tuple %s4, %s5, %s6, %s7, %s8, %s9
  %s11 = sld [smem:[#allocation0]]
  $region66: #{bottleneck_transformer_forward.4} parent=0
    _
  %s13 = ssub.s32 1, %s11
  %s14 = scalar_select 0, %s13, %s11
  // Predicated region
  $region2: #{bottleneck_transformer_forward.4} parent=0 // pred_check
    _
  $region3: #{bottleneck_transformer_forward.4} parent=0 // pred_check_branch
    %16 = sbr.rel (0) target = $region5
  $region4: #{bottleneck_transformer_forward.4} parent=0 // pred_region
    _
  $region5: #{bottleneck_transformer_forward.4} parent=0 // pred_fallthru
    _
  // Predicated region
  $region6: #{bottleneck_transformer_forward.4} parent=0 // pred_check
    _
  $region7: #{bottleneck_transformer_forward.4} parent=0 // pred_check_branch
    %18 = sbr.rel (0) target = $region9
  $region8: #{bottleneck_transformer_forward.4} parent=0 // pred_region
    _
  $region9: #{bottleneck_transformer_forward.4} parent=0 // pred_fallthru
    _
  // Predicated region
  $region10: #{bottleneck_transformer_forward.4} parent=0 // pred_check
    _
  $region11: #{bottleneck_transformer_forward.4} parent=0 // pred_check_branch
    %20 = sbr.rel (0) target = $region13
  $region12: #{bottleneck_transformer_forward.4} parent=0 // pred_region
    _
  $region13: #{bottleneck_transformer_forward.4} parent=0 // pred_fallthru
    _
  // Predicated region
  $region14: #{bottleneck_transformer_forward.4} parent=0 // pred_check
    _
  $region15: #{bottleneck_transformer_forward.4} parent=0 // pred_check_branch
    %22 = sbr.rel (0) target = $region17
  $region16: #{bottleneck_transformer_forward.4} parent=0 // pred_region
    _
  $region17: #{bottleneck_transformer_forward.4} parent=0 // pred_fallthru
    _
  %v24 = vld [vmem:[%s0] sm:$0xf]
  %v25 = vld [vmem:[%s0 + $0x4] sm:$0xf]
  %v26 = vld [vmem:[%s0 + $0x8] sm:$0xf]
  %v27 = vld [vmem:[%s0 + $0xc] sm:$0xf]
  %v28 = vld [vmem:[%s0 + $0x10] sm:$0xf]
  %v29 = vld [vmem:[%s0 + $0x14] sm:$0xf]
  %v30 = vld [vmem:[%s0 + $0x18] sm:$0xf]
  %v31 = vld [vmem:[%s0 + $0x1c] sm:$0xf]
  %v32 = vld [vmem:[%s0 + $0x20] sm:$0xf]
  %v33 = vld [vmem:[%s0 + $0x24] sm:$0xf]
  %v34 = vld [vmem:[%s0 + $0x28] sm:$0xf]
  %v35 = vld [vmem:[%s0 + $0x2c] sm:$0xf]
  %v36 = vld [vmem:[%s0 + $0x30] sm:$0xf]
  %v37 = vld [vmem:[%s0 + $0x34] sm:$0xf]
  %v38 = vld [vmem:[%s0 + $0x38] sm:$0xf]
  %v39 = vld [vmem:[%s0 + $0x3c] sm:$0xf]
  %v40 = vld [vmem:[%s0 + $0x40] sm:$0xf]
  %v41 = vld [vmem:[%s0 + $0x44] sm:$0xf]
  %v42 = vld [vmem:[%s0 + $0x48] sm:$0xf]
  %v43 = vld [vmem:[%s0 + $0x4c] sm:$0xf]
  %v44 = vld [vmem:[%s0 + $0x50] sm:$0xf]
  %v45 = vld [vmem:[%s0 + $0x54] sm:$0xf]
  %v46 = vld [vmem:[%s0 + $0x58] sm:$0xf]
  %v47 = vld [vmem:[%s0 + $0x5c] sm:$0xf]
  %v48 = vld [vmem:[%s0 + $0x60] sm:$0xf]
  %v49 = vld [vmem:[%s0 + $0x64] sm:$0xf]
  %v50 = vld [vmem:[%s0 + $0x68] sm:$0xf]
  %v51 = vld [vmem:[%s0 + $0x6c] sm:$0xf]
  %v52 = vld [vmem:[%s0 + $0x70] sm:$0xf]
  %v53 = vld [vmem:[%s0 + $0x74] sm:$0xf]
  %v54 = vld [vmem:[%s0 + $0x78] sm:$0xf]
  %v55 = vld [vmem:[%s0 + $0x7c] sm:$0xf]
  %v56 = vld [vmem:[%s0 + $0x80] sm:$0xf]
  %v57 = vld [vmem:[%s0 + $0x84] sm:$0xf]
  %v58 = vld [vmem:[%s0 + $0x88] sm:$0xf]
  %v59 = vld [vmem:[%s0 + $0x8c] sm:$0xf]
  %v60 = vld [vmem:[%s0 + $0x90] sm:$0xf]
  %v61 = vld [vmem:[%s0 + $0x94] sm:$0xf]
  %v62 = vld [vmem:[%s0 + $0x98] sm:$0xf]
  %v63 = vld [vmem:[%s0 + $0x9c] sm:$0xf]
  %v64 = vld [vmem:[%s0 + $0xa0] sm:$0xf]
  %v65 = vld [vmem:[%s0 + $0xa4] sm:$0xf]
  %v66 = vld [vmem:[%s0 + $0xa8] sm:$0xf]
  %v67 = vld [vmem:[%s0 + $0xac] sm:$0xf]
  %v68 = vld [vmem:[%s0 + $0xb0] sm:$0xf]
  %v69 = vld [vmem:[%s0 + $0xb4] sm:$0xf]
  %v70 = vld [vmem:[%s0 + $0xb8] sm:$0xf]
  %v71 = vld [vmem:[%s0 + $0xbc] sm:$0xf]
  %v72 = vld [vmem:[%s0 + $0xc0] sm:$0xf]
  %v73 = vld [vmem:[%s0 + $0xc4] sm:$0xf]
  %v74 = vld [vmem:[%s0 + $0xc8] sm:$0xf]
  %v75 = vld [vmem:[%s0 + $0xcc] sm:$0xf]
  %v76 = vld [vmem:[%s0 + $0xd0] sm:$0xf]
  %v77 = vld [vmem:[%s0 + $0xd4] sm:$0xf]
  %v78 = vld [vmem:[%s0 + $0xd8] sm:$0xf]
  %v79 = vld [vmem:[%s0 + $0xdc] sm:$0xf]
  %v80 = vld [vmem:[%s0 + $0xe0] sm:$0xf]
  %v81 = vld [vmem:[%s0 + $0xe4] sm:$0xf]
  %v82 = vld [vmem:[%s0 + $0xe8] sm:$0xf]
  %v83 = vld [vmem:[%s0 + $0xec] sm:$0xf]
  %v84 = vld [vmem:[%s0 + $0xf0] sm:$0xf]
  %v85 = vld [vmem:[%s0 + $0xf4] sm:$0xf]
  %v86 = vld [vmem:[%s0 + $0xf8] sm:$0xf]
  %v87 = vld [vmem:[%s0 + $0xfc] sm:$0xf]
  %v88 = vld [vmem:[%s1] sm:$0xf]
  %v89 = vld [vmem:[%s1 + $0x4] sm:$0xf]
  %v90 = vld [vmem:[%s1 + $0x8] sm:$0xf]
  %v91 = vld [vmem:[%s1 + $0xc] sm:$0xf]
  %v92 = vld [vmem:[%s1 + $0x10] sm:$0xf]
  %v93 = vld [vmem:[%s1 + $0x14] sm:$0xf]
  %v94 = vld [vmem:[%s1 + $0x18] sm:$0xf]
  %v95 = vld [vmem:[%s1 + $0x1c] sm:$0xf]
  %v160 = vunpack.c.l.b16 %v24
  %v161 = vunpack.c.l.b16 %v25
  %v162 = vunpack.c.l.b16 %v26
  %v163 = vunpack.c.l.b16 %v27
  %v164 = vunpack.c.l.b16 %v28
  %v165 = vunpack.c.l.b16 %v29
  %v166 = vunpack.c.l.b16 %v30
  %v167 = vunpack.c.l.b16 %v31
  %v168 = vunpack.c.l.b16 %v32
  %v169 = vunpack.c.l.b16 %v33
  %v170 = vunpack.c.l.b16 %v34
  %v171 = vunpack.c.l.b16 %v35
  %v172 = vunpack.c.l.b16 %v36
  %v173 = vunpack.c.l.b16 %v37
  %v174 = vunpack.c.l.b16 %v38
  %v175 = vunpack.c.l.b16 %v39
  %v176 = vunpack.c.l.b16 %v40
  %v177 = vunpack.c.l.b16 %v41
  %v178 = vunpack.c.l.b16 %v42
  %v179 = vunpack.c.l.b16 %v43
  %v180 = vunpack.c.l.b16 %v44
  %v181 = vunpack.c.l.b16 %v45
  %v182 = vunpack.c.l.b16 %v46
  %v183 = vunpack.c.l.b16 %v47
  %v184 = vunpack.c.l.b16 %v48
  %v185 = vunpack.c.l.b16 %v49
  %v186 = vunpack.c.l.b16 %v50
  %v187 = vunpack.c.l.b16 %v51
  %v188 = vunpack.c.l.b16 %v52
  %v189 = vunpack.c.l.b16 %v53
  %v190 = vunpack.c.l.b16 %v54
  %v191 = vunpack.c.l.b16 %v55
  %v192 = vunpack.c.l.b16 %v56
  %v193 = vunpack.c.l.b16 %v57
  %v194 = vunpack.c.l.b16 %v58
  %v195 = vunpack.c.l.b16 %v59
  %v196 = vunpack.c.l.b16 %v60
  %v197 = vunpack.c.l.b16 %v61
  %v198 = vunpack.c.l.b16 %v62
  %v199 = vunpack.c.l.b16 %v63
  %v200 = vunpack.c.l.b16 %v64
  %v201 = vunpack.c.l.b16 %v65
  %v202 = vunpack.c.l.b16 %v66
  %v203 = vunpack.c.l.b16 %v67
  %v204 = vunpack.c.l.b16 %v68
  %v205 = vunpack.c.l.b16 %v69
  %v206 = vunpack.c.l.b16 %v70
  %v207 = vunpack.c.l.b16 %v71
  %v208 = vunpack.c.l.b16 %v72
  %v209 = vunpack.c.l.b16 %v73
  %v210 = vunpack.c.l.b16 %v74
  %v211 = vunpack.c.l.b16 %v75
  %v212 = vunpack.c.l.b16 %v76
  %v213 = vunpack.c.l.b16 %v77
  %v214 = vunpack.c.l.b16 %v78
  %v215 = vunpack.c.l.b16 %v79
  %v216 = vunpack.c.l.b16 %v80
  %v217 = vunpack.c.l.b16 %v81
  %v218 = vunpack.c.l.b16 %v82
  %v219 = vunpack.c.l.b16 %v83
  %v220 = vunpack.c.l.b16 %v84
  %v221 = vunpack.c.l.b16 %v85
  %v222 = vunpack.c.l.b16 %v86
  %v223 = vunpack.c.l.b16 %v87
  %v224 = vpack.c.b16 %v161, %v160
  %v225 = vpack.c.b16 %v163, %v162
  %v226 = vpack.c.b16 %v165, %v164
  %v227 = vpack.c.b16 %v167, %v166
  %v228 = vpack.c.b16 %v169, %v168
  %v229 = vpack.c.b16 %v171, %v170
  %v230 = vpack.c.b16 %v173, %v172
  %v231 = vpack.c.b16 %v175, %v174
  %v232 = vpack.c.b16 %v177, %v176
  %v233 = vpack.c.b16 %v179, %v178
  %v234 = vpack.c.b16 %v181, %v180
  %v235 = vpack.c.b16 %v183, %v182
  %v236 = vpack.c.b16 %v185, %v184
  %v237 = vpack.c.b16 %v187, %v186
  %v238 = vpack.c.b16 %v189, %v188
  %v239 = vpack.c.b16 %v191, %v190
  %v240 = vpack.c.b16 %v193, %v192
  %v241 = vpack.c.b16 %v195, %v194
  %v242 = vpack.c.b16 %v197, %v196
  %v243 = vpack.c.b16 %v199, %v198
  %v244 = vpack.c.b16 %v201, %v200
  %v245 = vpack.c.b16 %v203, %v202
  %v246 = vpack.c.b16 %v205, %v204
  %v247 = vpack.c.b16 %v207, %v206
  %v248 = vpack.c.b16 %v209, %v208
  %v249 = vpack.c.b16 %v211, %v210
  %v250 = vpack.c.b16 %v213, %v212
  %v251 = vpack.c.b16 %v215, %v214
  %v252 = vpack.c.b16 %v217, %v216
  %v253 = vpack.c.b16 %v219, %v218
  %v254 = vpack.c.b16 %v221, %v220
  %v255 = vpack.c.b16 %v223, %v222
  %v264 = vunpack.c.l.b16 %v88
  %v265 = vunpack.c.l.b16 %v89
  %v266 = vunpack.c.l.b16 %v90
  %v267 = vunpack.c.l.b16 %v91
  %v268 = vunpack.c.l.b16 %v92
  %v269 = vunpack.c.l.b16 %v93
  %v270 = vunpack.c.l.b16 %v94
  %v271 = vunpack.c.l.b16 %v95
  %v272 = vpack.c.b16 %v265, %v264
  %v273 = vpack.c.b16 %v267, %v266
  %v274 = vpack.c.b16 %v269, %v268
  %v275 = vpack.c.b16 %v271, %v270
  %vm280 = vcmask 523264
  %v282 = vsel %vm280, %v224, 0
  %v285 = vsel %vm280, %v225, 0
  %v288 = vsel %vm280, %v226, 0
  %v291 = vsel %vm280, %v227, 0
  %v294 = vsel %vm280, %v228, 0
  %v297 = vsel %vm280, %v229, 0
  %v300 = vsel %vm280, %v230, 0
  %v303 = vsel %vm280, %v231, 0
  %v306 = vsel %vm280, %v232, 0
  %v309 = vsel %vm280, %v233, 0
  %v312 = vsel %vm280, %v234, 0
  %v315 = vsel %vm280, %v235, 0
  %v318 = vsel %vm280, %v236, 0
  %v321 = vsel %vm280, %v237, 0
  %v324 = vsel %vm280, %v238, 0
  %v327 = vsel %vm280, %v239, 0
  %v330 = vsel %vm280, %v240, 0
  %v333 = vsel %vm280, %v241, 0
  %v336 = vsel %vm280, %v242, 0
  %v339 = vsel %vm280, %v243, 0
  %v342 = vsel %vm280, %v244, 0
  %v345 = vsel %vm280, %v245, 0
  %v348 = vsel %vm280, %v246, 0
  %v351 = vsel %vm280, %v247, 0
  %v354 = vsel %vm280, %v248, 0
  %v357 = vsel %vm280, %v249, 0
  %v360 = vsel %vm280, %v250, 0
  %v363 = vsel %vm280, %v251, 0
  %v366 = vsel %vm280, %v252, 0
  %v369 = vsel %vm280, %v253, 0
  %v372 = vsel %vm280, %v254, 0
  %v375 = vsel %vm280, %v255, 0
  %377 = vmatpush.bf16.msra.mxu0 0
  %378 = vmatpush.bf16.msra.mxu0 0
  %379 = vmatpush.bf16.msra.mxu0 0
  %380 = vmatpush.bf16.msra.mxu0 0
  %381 = vmatpush.bf16.msra.mxu0 %v275
  %382 = vmatpush.bf16.msra.mxu0 %v274
  %383 = vmatpush.bf16.msra.mxu0 %v273
  %384 = vmatpush.bf16.msra.mxu0 %v272
  %385 = vmatmul.bf16.gmra.mxu0 %v282
  %v386 = vpop.f32.mrf.mxu0
  %v387 = vadd.f32 0.0, %v386
  %v388 = vpop.f32.mrf.mxu0
  %v389 = vadd.f32 0.0, %v388
  %390 = vmatmul.bf16.gmra.mxu0 %v285
  %v391 = vpop.f32.mrf.mxu0
  %v392 = vadd.f32 0.0, %v391
  %v393 = vpop.f32.mrf.mxu0
  %v394 = vadd.f32 0.0, %v393
  %395 = vmatmul.bf16.gmra.mxu0 %v288
  %v396 = vpop.f32.mrf.mxu0
  %v397 = vadd.f32 0.0, %v396
  %v398 = vpop.f32.mrf.mxu0
  %v399 = vadd.f32 0.0, %v398
  %400 = vmatmul.bf16.gmra.mxu0 %v291
  %v401 = vpop.f32.mrf.mxu0
  %v402 = vadd.f32 0.0, %v401
  %v403 = vpop.f32.mrf.mxu0
  %v404 = vadd.f32 0.0, %v403
  %405 = vmatmul.bf16.gmra.mxu0 %v294
  %v406 = vpop.f32.mrf.mxu0
  %v407 = vadd.f32 0.0, %v406
  %v408 = vpop.f32.mrf.mxu0
  %v409 = vadd.f32 0.0, %v408
  %410 = vmatmul.bf16.gmra.mxu0 %v297
  %v411 = vpop.f32.mrf.mxu0
  %v412 = vadd.f32 0.0, %v411
  %v413 = vpop.f32.mrf.mxu0
  %v414 = vadd.f32 0.0, %v413
  %415 = vmatmul.bf16.gmra.mxu0 %v300
  %v416 = vpop.f32.mrf.mxu0
  %v417 = vadd.f32 0.0, %v416
  %v418 = vpop.f32.mrf.mxu0
  %v419 = vadd.f32 0.0, %v418
  %420 = vmatmul.bf16.gmra.mxu0 %v303
  %v421 = vpop.f32.mrf.mxu0
  %v422 = vadd.f32 0.0, %v421
  %v423 = vpop.f32.mrf.mxu0
  %v424 = vadd.f32 0.0, %v423
  %425 = vmatmul.bf16.gmra.mxu0 %v306
  %v426 = vpop.f32.mrf.mxu0
  %v427 = vadd.f32 0.0, %v426
  %v428 = vpop.f32.mrf.mxu0
  %v429 = vadd.f32 0.0, %v428
  %430 = vmatmul.bf16.gmra.mxu0 %v309
  %v431 = vpop.f32.mrf.mxu0
  %v432 = vadd.f32 0.0, %v431
  %v433 = vpop.f32.mrf.mxu0
  %v434 = vadd.f32 0.0, %v433
  %435 = vmatmul.bf16.gmra.mxu0 %v312
  %v436 = vpop.f32.mrf.mxu0
  %v437 = vadd.f32 0.0, %v436
  %v438 = vpop.f32.mrf.mxu0
  %v439 = vadd.f32 0.0, %v438
  %440 = vmatmul.bf16.gmra.mxu0 %v315
  %v441 = vpop.f32.mrf.mxu0
  %v442 = vadd.f32 0.0, %v441
  %v443 = vpop.f32.mrf.mxu0
  %v444 = vadd.f32 0.0, %v443
  %445 = vmatmul.bf16.gmra.mxu0 %v318
  %v446 = vpop.f32.mrf.mxu0
  %v447 = vadd.f32 0.0, %v446
  %v448 = vpop.f32.mrf.mxu0
  %v449 = vadd.f32 0.0, %v448
  %450 = vmatmul.bf16.gmra.mxu0 %v321
  %v451 = vpop.f32.mrf.mxu0
  %v452 = vadd.f32 0.0, %v451
  %v453 = vpop.f32.mrf.mxu0
  %v454 = vadd.f32 0.0, %v453
  %455 = vmatmul.bf16.gmra.mxu0 %v324
  %v456 = vpop.f32.mrf.mxu0
  %v457 = vadd.f32 0.0, %v456
  %v458 = vpop.f32.mrf.mxu0
  %v459 = vadd.f32 0.0, %v458
  %460 = vmatmul.bf16.gmra.mxu0 %v327
  %v461 = vpop.f32.mrf.mxu0
  %v462 = vadd.f32 0.0, %v461
  %v463 = vpop.f32.mrf.mxu0
  %v464 = vadd.f32 0.0, %v463
  %465 = vmatmul.bf16.gmra.mxu0 %v330
  %v466 = vpop.f32.mrf.mxu0
  %v467 = vadd.f32 0.0, %v466
  %v468 = vpop.f32.mrf.mxu0
  %v469 = vadd.f32 0.0, %v468
  %470 = vmatmul.bf16.gmra.mxu0 %v333
  %v471 = vpop.f32.mrf.mxu0
  %v472 = vadd.f32 0.0, %v471
  %v473 = vpop.f32.mrf.mxu0
  %v474 = vadd.f32 0.0, %v473
  %475 = vmatmul.bf16.gmra.mxu0 %v336
  %v476 = vpop.f32.mrf.mxu0
  %v477 = vadd.f32 0.0, %v476
  %v478 = vpop.f32.mrf.mxu0
  %v479 = vadd.f32 0.0, %v478
  %480 = vmatmul.bf16.gmra.mxu0 %v339
  %v481 = vpop.f32.mrf.mxu0
  %v482 = vadd.f32 0.0, %v481
  %v483 = vpop.f32.mrf.mxu0
  %v484 = vadd.f32 0.0, %v483
  %485 = vmatmul.bf16.gmra.mxu0 %v342
  %v486 = vpop.f32.mrf.mxu0
  %v487 = vadd.f32 0.0, %v486
  %v488 = vpop.f32.mrf.mxu0
  %v489 = vadd.f32 0.0, %v488
  %490 = vmatmul.bf16.gmra.mxu0 %v345
  %v491 = vpop.f32.mrf.mxu0
  %v492 = vadd.f32 0.0, %v491
  %v493 = vpop.f32.mrf.mxu0
  %v494 = vadd.f32 0.0, %v493
  %495 = vmatmul.bf16.gmra.mxu0 %v348
  %v496 = vpop.f32.mrf.mxu0
  %v497 = vadd.f32 0.0, %v496
  %v498 = vpop.f32.mrf.mxu0
  %v499 = vadd.f32 0.0, %v498
  %500 = vmatmul.bf16.gmra.mxu0 %v351
  %v501 = vpop.f32.mrf.mxu0
  %v502 = vadd.f32 0.0, %v501
  %v503 = vpop.f32.mrf.mxu0
  %v504 = vadd.f32 0.0, %v503
  %505 = vmatmul.bf16.gmra.mxu0 %v354
  %v506 = vpop.f32.mrf.mxu0
  %v507 = vadd.f32 0.0, %v506
  %v508 = vpop.f32.mrf.mxu0
  %v509 = vadd.f32 0.0, %v508
  %510 = vmatmul.bf16.gmra.mxu0 %v357
  %v511 = vpop.f32.mrf.mxu0
  %v512 = vadd.f32 0.0, %v511
  %v513 = vpop.f32.mrf.mxu0
  %v514 = vadd.f32 0.0, %v513
  %515 = vmatmul.bf16.gmra.mxu0 %v360
  %v516 = vpop.f32.mrf.mxu0
  %v517 = vadd.f32 0.0, %v516
  %v518 = vpop.f32.mrf.mxu0
  %v519 = vadd.f32 0.0, %v518
  %520 = vmatmul.bf16.gmra.mxu0 %v363
  %v521 = vpop.f32.mrf.mxu0
  %v522 = vadd.f32 0.0, %v521
  %v523 = vpop.f32.mrf.mxu0
  %v524 = vadd.f32 0.0, %v523
  %525 = vmatmul.bf16.gmra.mxu0 %v366
  %v526 = vpop.f32.mrf.mxu0
  %v527 = vadd.f32 0.0, %v526
  %v528 = vpop.f32.mrf.mxu0
  %v529 = vadd.f32 0.0, %v528
  %530 = vmatmul.bf16.gmra.mxu0 %v369
  %v531 = vpop.f32.mrf.mxu0
  %v532 = vadd.f32 0.0, %v531
  %v533 = vpop.f32.mrf.mxu0
  %v534 = vadd.f32 0.0, %v533
  %535 = vmatmul.bf16.gmra.mxu0 %v372
  %v536 = vpop.f32.mrf.mxu0
  %v537 = vadd.f32 0.0, %v536
  %v538 = vpop.f32.mrf.mxu0
  %v539 = vadd.f32 0.0, %v538
  %540 = vmatmul.bf16.gmra.mxu0 %v375
  %v541 = vpop.f32.mrf.mxu0
  %v542 = vadd.f32 0.0, %v541
  %v543 = vpop.f32.mrf.mxu0
  %v544 = vadd.f32 0.0, %v543
  %545 = vdwg.mxu0
  %v546 = vpack.c.bf16 %v387, %v387
  %v547 = vpack.c.bf16 %v389, %v389
  %v548 = vpack.c.bf16 %v392, %v392
  %v549 = vpack.c.bf16 %v394, %v394
  %v550 = vpack.c.bf16 %v397, %v397
  %v551 = vpack.c.bf16 %v399, %v399
  %v552 = vpack.c.bf16 %v402, %v402
  %v553 = vpack.c.bf16 %v404, %v404
  %v554 = vpack.c.bf16 %v407, %v407
  %v555 = vpack.c.bf16 %v409, %v409
  %v556 = vpack.c.bf16 %v412, %v412
  %v557 = vpack.c.bf16 %v414, %v414
  %v558 = vpack.c.bf16 %v417, %v417
  %v559 = vpack.c.bf16 %v419, %v419
  %v560 = vpack.c.bf16 %v422, %v422
  %v561 = vpack.c.bf16 %v424, %v424
  %v562 = vpack.c.bf16 %v427, %v427
  %v563 = vpack.c.bf16 %v429, %v429
  %v564 = vpack.c.bf16 %v432, %v432
  %v565 = vpack.c.bf16 %v434, %v434
  %v566 = vpack.c.bf16 %v437, %v437
  %v567 = vpack.c.bf16 %v439, %v439
  %v568 = vpack.c.bf16 %v442, %v442
  %v569 = vpack.c.bf16 %v444, %v444
  %v570 = vpack.c.bf16 %v447, %v447
  %v571 = vpack.c.bf16 %v449, %v449
  %v572 = vpack.c.bf16 %v452, %v452
  %v573 = vpack.c.bf16 %v454, %v454
  %v574 = vpack.c.bf16 %v457, %v457
  %v575 = vpack.c.bf16 %v459, %v459
  %v576 = vpack.c.bf16 %v462, %v462
  %v577 = vpack.c.bf16 %v464, %v464
  %v578 = vpack.c.bf16 %v467, %v467
  %v579 = vpack.c.bf16 %v469, %v469
  %v580 = vpack.c.bf16 %v472, %v472
  %v581 = vpack.c.bf16 %v474, %v474
  %v582 = vpack.c.bf16 %v477, %v477
  %v583 = vpack.c.bf16 %v479, %v479
  %v584 = vpack.c.bf16 %v482, %v482
  %v585 = vpack.c.bf16 %v484, %v484
  %v586 = vpack.c.bf16 %v487, %v487
  %v587 = vpack.c.bf16 %v489, %v489
  %v588 = vpack.c.bf16 %v492, %v492
  %v589 = vpack.c.bf16 %v494, %v494
  %v590 = vpack.c.bf16 %v497, %v497
  %v591 = vpack.c.bf16 %v499, %v499
  %v592 = vpack.c.bf16 %v502, %v502
  %v593 = vpack.c.bf16 %v504, %v504
  %v594 = vpack.c.bf16 %v507, %v507
  %v595 = vpack.c.bf16 %v509, %v509
  %v596 = vpack.c.bf16 %v512, %v512
  %v597 = vpack.c.bf16 %v514, %v514
  %v598 = vpack.c.bf16 %v517, %v517
  %v599 = vpack.c.bf16 %v519, %v519
  %v600 = vpack.c.bf16 %v522, %v522
  %v601 = vpack.c.bf16 %v524, %v524
  %v602 = vpack.c.bf16 %v527, %v527
  %v603 = vpack.c.bf16 %v529, %v529
  %v604 = vpack.c.bf16 %v532, %v532
  %v605 = vpack.c.bf16 %v534, %v534
  %v606 = vpack.c.bf16 %v537, %v537
  %v607 = vpack.c.bf16 %v539, %v539
  %v608 = vpack.c.bf16 %v542, %v542
  %v609 = vpack.c.bf16 %v544, %v544
  %vm610 = vcmask 257024
  %611 = vst.msk [vmem:[%s4] sm:$0xf] %vm610, %v546
  %612 = vst.msk [vmem:[%s4 + $0x4] sm:$0xf] %vm610, %v547
  %613 = vst.msk [vmem:[%s4 + $0x8] sm:$0xf] %vm610, %v548
  %614 = vst.msk [vmem:[%s4 + $0xc] sm:$0xf] %vm610, %v549
  %615 = vst.msk [vmem:[%s4 + $0x10] sm:$0xf] %vm610, %v550
  %616 = vst.msk [vmem:[%s4 + $0x14] sm:$0xf] %vm610, %v551
  %617 = vst.msk [vmem:[%s4 + $0x18] sm:$0xf] %vm610, %v552
  %618 = vst.msk [vmem:[%s4 + $0x1c] sm:$0xf] %vm610, %v553
  %619 = vst.msk [vmem:[%s4 + $0x20] sm:$0xf] %vm610, %v554
  %620 = vst.msk [vmem:[%s4 + $0x24] sm:$0xf] %vm610, %v555
  %621 = vst.msk [vmem:[%s4 + $0x28] sm:$0xf] %vm610, %v556
  %622 = vst.msk [vmem:[%s4 + $0x2c] sm:$0xf] %vm610, %v557
  %623 = vst.msk [vmem:[%s4 + $0x30] sm:$0xf] %vm610, %v558
  %624 = vst.msk [vmem:[%s4 + $0x34] sm:$0xf] %vm610, %v559
  %625 = vst.msk [vmem:[%s4 + $0x38] sm:$0xf] %vm610, %v560
  %626 = vst.msk [vmem:[%s4 + $0x3c] sm:$0xf] %vm610, %v561
  %627 = vst.msk [vmem:[%s4 + $0x40] sm:$0xf] %vm610, %v562
  %628 = vst.msk [vmem:[%s4 + $0x44] sm:$0xf] %vm610, %v563
  %629 = vst.msk [vmem:[%s4 + $0x48] sm:$0xf] %vm610, %v564
  %630 = vst.msk [vmem:[%s4 + $0x4c] sm:$0xf] %vm610, %v565
  %631 = vst.msk [vmem:[%s4 + $0x50] sm:$0xf] %vm610, %v566
  %632 = vst.msk [vmem:[%s4 + $0x54] sm:$0xf] %vm610, %v567
  %633 = vst.msk [vmem:[%s4 + $0x58] sm:$0xf] %vm610, %v568
  %634 = vst.msk [vmem:[%s4 + $0x5c] sm:$0xf] %vm610, %v569
  %635 = vst.msk [vmem:[%s4 + $0x60] sm:$0xf] %vm610, %v570
  %636 = vst.msk [vmem:[%s4 + $0x64] sm:$0xf] %vm610, %v571
  %637 = vst.msk [vmem:[%s4 + $0x68] sm:$0xf] %vm610, %v572
  %638 = vst.msk [vmem:[%s4 + $0x6c] sm:$0xf] %vm610, %v573
  %639 = vst.msk [vmem:[%s4 + $0x70] sm:$0xf] %vm610, %v574
  %640 = vst.msk [vmem:[%s4 + $0x74] sm:$0xf] %vm610, %v575
  %641 = vst.msk [vmem:[%s4 + $0x78] sm:$0xf] %vm610, %v576
  %642 = vst.msk [vmem:[%s4 + $0x7c] sm:$0xf] %vm610, %v577
  %643 = vst.msk [vmem:[%s4 + $0x80] sm:$0xf] %vm610, %v578
  %644 = vst.msk [vmem:[%s4 + $0x84] sm:$0xf] %vm610, %v579
  %645 = vst.msk [vmem:[%s4 + $0x88] sm:$0xf] %vm610, %v580
  %646 = vst.msk [vmem:[%s4 + $0x8c] sm:$0xf] %vm610, %v581
  %647 = vst.msk [vmem:[%s4 + $0x90] sm:$0xf] %vm610, %v582
  %648 = vst.msk [vmem:[%s4 + $0x94] sm:$0xf] %vm610, %v583
  %649 = vst.msk [vmem:[%s4 + $0x98] sm:$0xf] %vm610, %v584
  %650 = vst.msk [vmem:[%s4 + $0x9c] sm:$0xf] %vm610, %v585
  %651 = vst.msk [vmem:[%s4 + $0xa0] sm:$0xf] %vm610, %v586
  %652 = vst.msk [vmem:[%s4 + $0xa4] sm:$0xf] %vm610, %v587
  %653 = vst.msk [vmem:[%s4 + $0xa8] sm:$0xf] %vm610, %v588
  %654 = vst.msk [vmem:[%s4 + $0xac] sm:$0xf] %vm610, %v589
  %655 = vst.msk [vmem:[%s4 + $0xb0] sm:$0xf] %vm610, %v590
  %656 = vst.msk [vmem:[%s4 + $0xb4] sm:$0xf] %vm610, %v591
  %657 = vst.msk [vmem:[%s4 + $0xb8] sm:$0xf] %vm610, %v592
  %658 = vst.msk [vmem:[%s4 + $0xbc] sm:$0xf] %vm610, %v593
  %659 = vst.msk [vmem:[%s4 + $0xc0] sm:$0xf] %vm610, %v594
  %660 = vst.msk [vmem:[%s4 + $0xc4] sm:$0xf] %vm610, %v595
  %661 = vst.msk [vmem:[%s4 + $0xc8] sm:$0xf] %vm610, %v596
  %662 = vst.msk [vmem:[%s4 + $0xcc] sm:$0xf] %vm610, %v597
  %663 = vst.msk [vmem:[%s4 + $0xd0] sm:$0xf] %vm610, %v598
  %664 = vst.msk [vmem:[%s4 + $0xd4] sm:$0xf] %vm610, %v599
  %665 = vst.msk [vmem:[%s4 + $0xd8] sm:$0xf] %vm610, %v600
  %666 = vst.msk [vmem:[%s4 + $0xdc] sm:$0xf] %vm610, %v601
  %667 = vst.msk [vmem:[%s4 + $0xe0] sm:$0xf] %vm610, %v602
  %668 = vst.msk [vmem:[%s4 + $0xe4] sm:$0xf] %vm610, %v603
  %669 = vst.msk [vmem:[%s4 + $0xe8] sm:$0xf] %vm610, %v604
  %670 = vst.msk [vmem:[%s4 + $0xec] sm:$0xf] %vm610, %v605
  %671 = vst.msk [vmem:[%s4 + $0xf0] sm:$0xf] %vm610, %v606
  %672 = vst.msk [vmem:[%s4 + $0xf4] sm:$0xf] %vm610, %v607
  %673 = vst.msk [vmem:[%s4 + $0xf8] sm:$0xf] %vm610, %v608
  %674 = vst.msk [vmem:[%s4 + $0xfc] sm:$0xf] %vm610, %v609
  %vm675 = vcmask 261120
  %v676 = vsel %vm675, %v387, 0.0
  %v677 = vsel %vm675, %v389, 0.0
  %v678 = vadd.f32 %v676, %v677
  %v679 = vsel %vm675, %v392, 0.0
  %v680 = vadd.f32 %v678, %v679
  %v681 = vsel %vm675, %v394, 0.0
  %v682 = vadd.f32 %v680, %v681
  %v683 = vsel %vm675, %v397, 0.0
  %v684 = vadd.f32 %v682, %v683
  %v685 = vsel %vm675, %v399, 0.0
  %v686 = vadd.f32 %v684, %v685
  %v687 = vsel %vm675, %v402, 0.0
  %v688 = vadd.f32 %v686, %v687
  %v689 = vsel %vm675, %v404, 0.0
  %v690 = vadd.f32 %v688, %v689
  %v691 = vsel %vm675, %v407, 0.0
  %v692 = vadd.f32 %v690, %v691
  %v693 = vsel %vm675, %v409, 0.0
  %v694 = vadd.f32 %v692, %v693
  %v695 = vsel %vm675, %v412, 0.0
  %v696 = vadd.f32 %v694, %v695
  %v697 = vsel %vm675, %v414, 0.0
  %v698 = vadd.f32 %v696, %v697
  %v699 = vsel %vm675, %v417, 0.0
  %v700 = vadd.f32 %v698, %v699
  %v701 = vsel %vm675, %v419, 0.0
  %v702 = vadd.f32 %v700, %v701
  %v703 = vsel %vm675, %v422, 0.0
  %v704 = vadd.f32 %v702, %v703
  %v705 = vsel %vm675, %v424, 0.0
  %v706 = vadd.f32 %v704, %v705
  %v707 = vsel %vm675, %v427, 0.0
  %v708 = vadd.f32 %v706, %v707
  %v709 = vsel %vm675, %v429, 0.0
  %v710 = vadd.f32 %v708, %v709
  %v711 = vsel %vm675, %v432, 0.0
  %v712 = vadd.f32 %v710, %v711
  %v713 = vsel %vm675, %v434, 0.0
  %v714 = vadd.f32 %v712, %v713
  %v715 = vsel %vm675, %v437, 0.0
  %v716 = vadd.f32 %v714, %v715
  %v717 = vsel %vm675, %v439, 0.0
  %v718 = vadd.f32 %v716, %v717
  %v719 = vsel %vm675, %v442, 0.0
  %v720 = vadd.f32 %v718, %v719
  %v721 = vsel %vm675, %v444, 0.0
  %v722 = vadd.f32 %v720, %v721
  %v723 = vsel %vm675, %v447, 0.0
  %v724 = vadd.f32 %v722, %v723
  %v725 = vsel %vm675, %v449, 0.0
  %v726 = vadd.f32 %v724, %v725
  %v727 = vsel %vm675, %v452, 0.0
  %v728 = vadd.f32 %v726, %v727
  %v729 = vsel %vm675, %v454, 0.0
  %v730 = vadd.f32 %v728, %v729
  %v731 = vsel %vm675, %v457, 0.0
  %v732 = vadd.f32 %v730, %v731
  %v733 = vsel %vm675, %v459, 0.0
  %v734 = vadd.f32 %v732, %v733
  %v735 = vsel %vm675, %v462, 0.0
  %v736 = vadd.f32 %v734, %v735
  %v737 = vsel %vm675, %v464, 0.0
  %v738 = vadd.f32 %v736, %v737
  %v739 = vsel %vm675, %v467, 0.0
  %v740 = vadd.f32 %v738, %v739
  %v741 = vsel %vm675, %v469, 0.0
  %v742 = vadd.f32 %v740, %v741
  %v743 = vsel %vm675, %v472, 0.0
  %v744 = vadd.f32 %v742, %v743
  %v745 = vsel %vm675, %v474, 0.0
  %v746 = vadd.f32 %v744, %v745
  %v747 = vsel %vm675, %v477, 0.0
  %v748 = vadd.f32 %v746, %v747
  %v749 = vsel %vm675, %v479, 0.0
  %v750 = vadd.f32 %v748, %v749
  %v751 = vsel %vm675, %v482, 0.0
  %v752 = vadd.f32 %v750, %v751
  %v753 = vsel %vm675, %v484, 0.0
  %v754 = vadd.f32 %v752, %v753
  %v755 = vsel %vm675, %v487, 0.0
  %v756 = vadd.f32 %v754, %v755
  %v757 = vsel %vm675, %v489, 0.0
  %v758 = vadd.f32 %v756, %v757
  %v759 = vsel %vm675, %v492, 0.0
  %v760 = vadd.f32 %v758, %v759
  %v761 = vsel %vm675, %v494, 0.0
  %v762 = vadd.f32 %v760, %v761
  %v763 = vsel %vm675, %v497, 0.0
  %v764 = vadd.f32 %v762, %v763
  %v765 = vsel %vm675, %v499, 0.0
  %v766 = vadd.f32 %v764, %v765
  %v767 = vsel %vm675, %v502, 0.0
  %v768 = vadd.f32 %v766, %v767
  %v769 = vsel %vm675, %v504, 0.0
  %v770 = vadd.f32 %v768, %v769
  %v771 = vsel %vm675, %v507, 0.0
  %v772 = vadd.f32 %v770, %v771
  %v773 = vsel %vm675, %v509, 0.0
  %v774 = vadd.f32 %v772, %v773
  %v775 = vsel %vm675, %v512, 0.0
  %v776 = vadd.f32 %v774, %v775
  %v777 = vsel %vm675, %v514, 0.0
  %v778 = vadd.f32 %v776, %v777
  %v779 = vsel %vm675, %v517, 0.0
  %v780 = vadd.f32 %v778, %v779
  %v781 = vsel %vm675, %v519, 0.0
  %v782 = vadd.f32 %v780, %v781
  %v783 = vsel %vm675, %v522, 0.0
  %v784 = vadd.f32 %v782, %v783
  %v785 = vsel %vm675, %v524, 0.0
  %v786 = vadd.f32 %v784, %v785
  %v787 = vsel %vm675, %v527, 0.0
  %v788 = vadd.f32 %v786, %v787
  %v789 = vsel %vm675, %v529, 0.0
  %v790 = vadd.f32 %v788, %v789
  %v791 = vsel %vm675, %v532, 0.0
  %v792 = vadd.f32 %v790, %v791
  %v793 = vsel %vm675, %v534, 0.0
  %v794 = vadd.f32 %v792, %v793
  %v795 = vsel %vm675, %v537, 0.0
  %v796 = vadd.f32 %v794, %v795
  %v797 = vsel %vm675, %v539, 0.0
  %v798 = vadd.f32 %v796, %v797
  %v799 = vsel %vm675, %v542, 0.0
  %v800 = vadd.f32 %v798, %v799
  %v801 = vsel %vm675, %v544, 0.0
  %v802 = vadd.f32 %v800, %v801
  %v803 = vrot.slane %v802, 4
  %v804 = vadd.f32 %v802, %v803
  %v805 = vrot.slane %v804, 2
  %v806 = vadd.f32 %v804, %v805
  %v807 = vrot.slane %v806, 1
  %v808 = vadd.f32 %v806, %v807
  %vm809 = vcmask 253952
  %810 = vst.msk [vmem:[%s5] sm:$0x1] %vm809, %v808
  %v811 = vmul.f32 %v387, %v387
  %v812 = vmul.f32 %v389, %v389
  %v813 = vmul.f32 %v392, %v392
  %v814 = vmul.f32 %v394, %v394
  %v815 = vmul.f32 %v397, %v397
  %v816 = vmul.f32 %v399, %v399
  %v817 = vmul.f32 %v402, %v402
  %v818 = vmul.f32 %v404, %v404
  %v819 = vmul.f32 %v407, %v407
  %v820 = vmul.f32 %v409, %v409
  %v821 = vmul.f32 %v412, %v412
  %v822 = vmul.f32 %v414, %v414
  %v823 = vmul.f32 %v417, %v417
  %v824 = vmul.f32 %v419, %v419
  %v825 = vmul.f32 %v422, %v422
  %v826 = vmul.f32 %v424, %v424
  %v827 = vmul.f32 %v427, %v427
  %v828 = vmul.f32 %v429, %v429
  %v829 = vmul.f32 %v432, %v432
  %v830 = vmul.f32 %v434, %v434
  %v831 = vmul.f32 %v437, %v437
  %v832 = vmul.f32 %v439, %v439
  %v833 = vmul.f32 %v442, %v442
  %v834 = vmul.f32 %v444, %v444
  %v835 = vmul.f32 %v447, %v447
  %v836 = vmul.f32 %v449, %v449
  %v837 = vmul.f32 %v452, %v452
  %v838 = vmul.f32 %v454, %v454
  %v839 = vmul.f32 %v457, %v457
  %v840 = vmul.f32 %v459, %v459
  %v841 = vmul.f32 %v462, %v462
  %v842 = vmul.f32 %v464, %v464
  %v843 = vmul.f32 %v467, %v467
  %v844 = vmul.f32 %v469, %v469
  %v845 = vmul.f32 %v472, %v472
  %v846 = vmul.f32 %v474, %v474
  %v847 = vmul.f32 %v477, %v477
  %v848 = vmul.f32 %v479, %v479
  %v849 = vmul.f32 %v482, %v482
  %v850 = vmul.f32 %v484, %v484
  %v851 = vmul.f32 %v487, %v487
  %v852 = vmul.f32 %v489, %v489
  %v853 = vmul.f32 %v492, %v492
  %v854 = vmul.f32 %v494, %v494
  %v855 = vmul.f32 %v497, %v497
  %v856 = vmul.f32 %v499, %v499
  %v857 = vmul.f32 %v502, %v502
  %v858 = vmul.f32 %v504, %v504
  %v859 = vmul.f32 %v507, %v507
  %v860 = vmul.f32 %v509, %v509
  %v861 = vmul.f32 %v512, %v512
  %v862 = vmul.f32 %v514, %v514
  %v863 = vmul.f32 %v517, %v517
  %v864 = vmul.f32 %v519, %v519
  %v865 = vmul.f32 %v522, %v522
  %v866 = vmul.f32 %v524, %v524
  %v867 = vmul.f32 %v527, %v527
  %v868 = vmul.f32 %v529, %v529
  %v869 = vmul.f32 %v532, %v532
  %v870 = vmul.f32 %v534, %v534
  %v871 = vmul.f32 %v537, %v537
  %v872 = vmul.f32 %v539, %v539
  %v873 = vmul.f32 %v542, %v542
  %v874 = vmul.f32 %v544, %v544
  %v875 = vsel %vm675, %v811, 0.0
  %v876 = vsel %vm675, %v812, 0.0
  %v877 = vadd.f32 %v875, %v876
  %v878 = vsel %vm675, %v813, 0.0
  %v879 = vadd.f32 %v877, %v878
  %v880 = vsel %vm675, %v814, 0.0
  %v881 = vadd.f32 %v879, %v880
  %v882 = vsel %vm675, %v815, 0.0
  %v883 = vadd.f32 %v881, %v882
  %v884 = vsel %vm675, %v816, 0.0
  %v885 = vadd.f32 %v883, %v884
  %v886 = vsel %vm675, %v817, 0.0
  %v887 = vadd.f32 %v885, %v886
  %v888 = vsel %vm675, %v818, 0.0
  %v889 = vadd.f32 %v887, %v888
  %v890 = vsel %vm675, %v819, 0.0
  %v891 = vadd.f32 %v889, %v890
  %v892 = vsel %vm675, %v820, 0.0
  %v893 = vadd.f32 %v891, %v892
  %v894 = vsel %vm675, %v821, 0.0
  %v895 = vadd.f32 %v893, %v894
  %v896 = vsel %vm675, %v822, 0.0
  %v897 = vadd.f32 %v895, %v896
  %v898 = vsel %vm675, %v823, 0.0
  %v899 = vadd.f32 %v897, %v898
  %v900 = vsel %vm675, %v824, 0.0
  %v901 = vadd.f32 %v899, %v900
  %v902 = vsel %vm675, %v825, 0.0
  %v903 = vadd.f32 %v901, %v902
  %v904 = vsel %vm675, %v826, 0.0
  %v905 = vadd.f32 %v903, %v904
  %v906 = vsel %vm675, %v827, 0.0
  %v907 = vadd.f32 %v905, %v906
  %v908 = vsel %vm675, %v828, 0.0
  %v909 = vadd.f32 %v907, %v908
  %v910 = vsel %vm675, %v829, 0.0
  %v911 = vadd.f32 %v909, %v910
  %v912 = vsel %vm675, %v830, 0.0
  %v913 = vadd.f32 %v911, %v912
  %v914 = vsel %vm675, %v831, 0.0
  %v915 = vadd.f32 %v913, %v914
  %v916 = vsel %vm675, %v832, 0.0
  %v917 = vadd.f32 %v915, %v916
  %v918 = vsel %vm675, %v833, 0.0
  %v919 = vadd.f32 %v917, %v918
  %v920 = vsel %vm675, %v834, 0.0
  %v921 = vadd.f32 %v919, %v920
  %v922 = vsel %vm675, %v835, 0.0
  %v923 = vadd.f32 %v921, %v922
  %v924 = vsel %vm675, %v836, 0.0
  %v925 = vadd.f32 %v923, %v924
  %v926 = vsel %vm675, %v837, 0.0
  %v927 = vadd.f32 %v925, %v926
  %v928 = vsel %vm675, %v838, 0.0
  %v929 = vadd.f32 %v927, %v928
  %v930 = vsel %vm675, %v839, 0.0
  %v931 = vadd.f32 %v929, %v930
  %v932 = vsel %vm675, %v840, 0.0
  %v933 = vadd.f32 %v931, %v932
  %v934 = vsel %vm675, %v841, 0.0
  %v935 = vadd.f32 %v933, %v934
  %v936 = vsel %vm675, %v842, 0.0
  %v937 = vadd.f32 %v935, %v936
  %v938 = vsel %vm675, %v843, 0.0
  %v939 = vadd.f32 %v937, %v938
  %v940 = vsel %vm675, %v844, 0.0
  %v941 = vadd.f32 %v939, %v940
  %v942 = vsel %vm675, %v845, 0.0
  %v943 = vadd.f32 %v941, %v942
  %v944 = vsel %vm675, %v846, 0.0
  %v945 = vadd.f32 %v943, %v944
  %v946 = vsel %vm675, %v847, 0.0
  %v947 = vadd.f32 %v945, %v946
  %v948 = vsel %vm675, %v848, 0.0
  %v949 = vadd.f32 %v947, %v948
  %v950 = vsel %vm675, %v849, 0.0
  %v951 = vadd.f32 %v949, %v950
  %v952 = vsel %vm675, %v850, 0.0
  %v953 = vadd.f32 %v951, %v952
  %v954 = vsel %vm675, %v851, 0.0
  %v955 = vadd.f32 %v953, %v954
  %v956 = vsel %vm675, %v852, 0.0
  %v957 = vadd.f32 %v955, %v956
  %v958 = vsel %vm675, %v853, 0.0
  %v959 = vadd.f32 %v957, %v958
  %v960 = vsel %vm675, %v854, 0.0
  %v961 = vadd.f32 %v959, %v960
  %v962 = vsel %vm675, %v855, 0.0
  %v963 = vadd.f32 %v961, %v962
  %v964 = vsel %vm675, %v856, 0.0
  %v965 = vadd.f32 %v963, %v964
  %v966 = vsel %vm675, %v857, 0.0
  %v967 = vadd.f32 %v965, %v966
  %v968 = vsel %vm675, %v858, 0.0
  %v969 = vadd.f32 %v967, %v968
  %v970 = vsel %vm675, %v859, 0.0
  %v971 = vadd.f32 %v969, %v970
  %v972 = vsel %vm675, %v860, 0.0
  %v973 = vadd.f32 %v971, %v972
  %v974 = vsel %vm675, %v861, 0.0
  %v975 = vadd.f32 %v973, %v974
  %v976 = vsel %vm675, %v862, 0.0
  %v977 = vadd.f32 %v975, %v976
  %v978 = vsel %vm675, %v863, 0.0
  %v979 = vadd.f32 %v977, %v978
  %v980 = vsel %vm675, %v864, 0.0
  %v981 = vadd.f32 %v979, %v980
  %v982 = vsel %vm675, %v865, 0.0
  %v983 = vadd.f32 %v981, %v982
  %v984 = vsel %vm675, %v866, 0.0
  %v985 = vadd.f32 %v983, %v984
  %v986 = vsel %vm675, %v867, 0.0
  %v987 = vadd.f32 %v985, %v986
  %v988 = vsel %vm675, %v868, 0.0
  %v989 = vadd.f32 %v987, %v988
  %v990 = vsel %vm675, %v869, 0.0
  %v991 = vadd.f32 %v989, %v990
  %v992 = vsel %vm675, %v870, 0.0
  %v993 = vadd.f32 %v991, %v992
  %v994 = vsel %vm675, %v871, 0.0
  %v995 = vadd.f32 %v993, %v994
  %v996 = vsel %vm675, %v872, 0.0
  %v997 = vadd.f32 %v995, %v996
  %v998 = vsel %vm675, %v873, 0.0
  %v999 = vadd.f32 %v997, %v998
  %v1000 = vsel %vm675, %v874, 0.0
  %v1001 = vadd.f32 %v999, %v1000
  %v1002 = vrot.slane %v1001, 4
  %v1003 = vadd.f32 %v1001, %v1002
  %v1004 = vrot.slane %v1003, 2
  %v1005 = vadd.f32 %v1003, %v1004
  %v1006 = vrot.slane %v1005, 1
  %v1007 = vadd.f32 %v1005, %v1006
  %1008 = vst.msk [vmem:[%s6] sm:$0x1] %vm809, %v1007
  %v1009 = vld [vmem:[%s2] sm:$0xf]
  %v1010 = vld [vmem:[%s2 + $0x4] sm:$0xf]
  %v1011 = vld [vmem:[%s2 + $0x8] sm:$0xf]
  %v1012 = vld [vmem:[%s2 + $0xc] sm:$0xf]
  %v1013 = vld [vmem:[%s2 + $0x10] sm:$0xf]
  %v1014 = vld [vmem:[%s2 + $0x14] sm:$0xf]
  %v1015 = vld [vmem:[%s2 + $0x18] sm:$0xf]
  %v1016 = vld [vmem:[%s2 + $0x1c] sm:$0xf]
  %v1017 = vld [vmem:[%s3] sm:$0x1]
  %v1019 = vperm.slane %v1017, 0
  %v1029 = vunpack.c.l.b16 %v1009
  %v1030 = vunpack.c.l.b16 %v1010
  %v1031 = vunpack.c.l.b16 %v1011
  %v1032 = vunpack.c.l.b16 %v1012
  %v1033 = vunpack.c.l.b16 %v1013
  %v1034 = vunpack.c.l.b16 %v1014
  %v1035 = vunpack.c.l.b16 %v1015
  %v1036 = vunpack.c.l.b16 %v1016
  %v1037 = vpack.c.b16 %v1030, %v1029
  %v1038 = vpack.c.b16 %v1032, %v1031
  %v1039 = vpack.c.b16 %v1034, %v1033
  %v1040 = vpack.c.b16 %v1036, %v1035
  %1045 = vmatpush.bf16.msra.mxu0 0
  %1046 = vmatpush.bf16.msra.mxu0 0
  %1047 = vmatpush.bf16.msra.mxu0 0
  %1048 = vmatpush.bf16.msra.mxu0 0
  %1049 = vmatpush.bf16.msra.mxu0 %v1040
  %1050 = vmatpush.bf16.msra.mxu0 %v1039
  %1051 = vmatpush.bf16.msra.mxu0 %v1038
  %1052 = vmatpush.bf16.msra.mxu0 %v1037
  %1053 = vmatmul.bf16.gmra.mxu0 %v282
  %v1054 = vpop.f32.mrf.mxu0
  %v1055 = vadd.f32 %v1019, %v1054
  %v1056 = vpop.f32.mrf.mxu0
  %v1057 = vadd.f32 %v1019, %v1056
  %1058 = vmatmul.bf16.gmra.mxu0 %v285
  %v1059 = vpop.f32.mrf.mxu0
  %v1060 = vadd.f32 %v1019, %v1059
  %v1061 = vpop.f32.mrf.mxu0
  %v1062 = vadd.f32 %v1019, %v1061
  %1063 = vmatmul.bf16.gmra.mxu0 %v288
  %v1064 = vpop.f32.mrf.mxu0
  %v1065 = vadd.f32 %v1019, %v1064
  %v1066 = vpop.f32.mrf.mxu0
  %v1067 = vadd.f32 %v1019, %v1066
  %1068 = vmatmul.bf16.gmra.mxu0 %v291
  %v1069 = vpop.f32.mrf.mxu0
  %v1070 = vadd.f32 %v1019, %v1069
  %v1071 = vpop.f32.mrf.mxu0
  %v1072 = vadd.f32 %v1019, %v1071
  %1073 = vmatmul.bf16.gmra.mxu0 %v294
  %v1074 = vpop.f32.mrf.mxu0
  %v1075 = vadd.f32 %v1019, %v1074
  %v1076 = vpop.f32.mrf.mxu0
  %v1077 = vadd.f32 %v1019, %v1076
  %1078 = vmatmul.bf16.gmra.mxu0 %v297
  %v1079 = vpop.f32.mrf.mxu0
  %v1080 = vadd.f32 %v1019, %v1079
  %v1081 = vpop.f32.mrf.mxu0
  %v1082 = vadd.f32 %v1019, %v1081
  %1083 = vmatmul.bf16.gmra.mxu0 %v300
  %v1084 = vpop.f32.mrf.mxu0
  %v1085 = vadd.f32 %v1019, %v1084
  %v1086 = vpop.f32.mrf.mxu0
  %v1087 = vadd.f32 %v1019, %v1086
  %1088 = vmatmul.bf16.gmra.mxu0 %v303
  %v1089 = vpop.f32.mrf.mxu0
  %v1090 = vadd.f32 %v1019, %v1089
  %v1091 = vpop.f32.mrf.mxu0
  %v1092 = vadd.f32 %v1019, %v1091
  %1093 = vmatmul.bf16.gmra.mxu0 %v306
  %v1094 = vpop.f32.mrf.mxu0
  %v1095 = vadd.f32 %v1019, %v1094
  %v1096 = vpop.f32.mrf.mxu0
  %v1097 = vadd.f32 %v1019, %v1096
  %1098 = vmatmul.bf16.gmra.mxu0 %v309
  %v1099 = vpop.f32.mrf.mxu0
  %v1100 = vadd.f32 %v1019, %v1099
  %v1101 = vpop.f32.mrf.mxu0
  %v1102 = vadd.f32 %v1019, %v1101
  %1103 = vmatmul.bf16.gmra.mxu0 %v312
  %v1104 = vpop.f32.mrf.mxu0
  %v1105 = vadd.f32 %v1019, %v1104
  %v1106 = vpop.f32.mrf.mxu0
  %v1107 = vadd.f32 %v1019, %v1106
  %1108 = vmatmul.bf16.gmra.mxu0 %v315
  %v1109 = vpop.f32.mrf.mxu0
  %v1110 = vadd.f32 %v1019, %v1109
  %v1111 = vpop.f32.mrf.mxu0
  %v1112 = vadd.f32 %v1019, %v1111
  %1113 = vmatmul.bf16.gmra.mxu0 %v318
  %v1114 = vpop.f32.mrf.mxu0
  %v1115 = vadd.f32 %v1019, %v1114
  %v1116 = vpop.f32.mrf.mxu0
  %v1117 = vadd.f32 %v1019, %v1116
  %1118 = vmatmul.bf16.gmra.mxu0 %v321
  %v1119 = vpop.f32.mrf.mxu0
  %v1120 = vadd.f32 %v1019, %v1119
  %v1121 = vpop.f32.mrf.mxu0
  %v1122 = vadd.f32 %v1019, %v1121
  %1123 = vmatmul.bf16.gmra.mxu0 %v324
  %v1124 = vpop.f32.mrf.mxu0
  %v1125 = vadd.f32 %v1019, %v1124
  %v1126 = vpop.f32.mrf.mxu0
  %v1127 = vadd.f32 %v1019, %v1126
  %1128 = vmatmul.bf16.gmra.mxu0 %v327
  %v1129 = vpop.f32.mrf.mxu0
  %v1130 = vadd.f32 %v1019, %v1129
  %v1131 = vpop.f32.mrf.mxu0
  %v1132 = vadd.f32 %v1019, %v1131
  %1133 = vmatmul.bf16.gmra.mxu0 %v330
  %v1134 = vpop.f32.mrf.mxu0
  %v1135 = vadd.f32 %v1019, %v1134
  %v1136 = vpop.f32.mrf.mxu0
  %v1137 = vadd.f32 %v1019, %v1136
  %1138 = vmatmul.bf16.gmra.mxu0 %v333
  %v1139 = vpop.f32.mrf.mxu0
  %v1140 = vadd.f32 %v1019, %v1139
  %v1141 = vpop.f32.mrf.mxu0
  %v1142 = vadd.f32 %v1019, %v1141
  %1143 = vmatmul.bf16.gmra.mxu0 %v336
  %v1144 = vpop.f32.mrf.mxu0
  %v1145 = vadd.f32 %v1019, %v1144
  %v1146 = vpop.f32.mrf.mxu0
  %v1147 = vadd.f32 %v1019, %v1146
  %1148 = vmatmul.bf16.gmra.mxu0 %v339
  %v1149 = vpop.f32.mrf.mxu0
  %v1150 = vadd.f32 %v1019, %v1149
  %v1151 = vpop.f32.mrf.mxu0
  %v1152 = vadd.f32 %v1019, %v1151
  %1153 = vmatmul.bf16.gmra.mxu0 %v342
  %v1154 = vpop.f32.mrf.mxu0
  %v1155 = vadd.f32 %v1019, %v1154
  %v1156 = vpop.f32.mrf.mxu0
  %v1157 = vadd.f32 %v1019, %v1156
  %1158 = vmatmul.bf16.gmra.mxu0 %v345
  %v1159 = vpop.f32.mrf.mxu0
  %v1160 = vadd.f32 %v1019, %v1159
  %v1161 = vpop.f32.mrf.mxu0
  %v1162 = vadd.f32 %v1019, %v1161
  %1163 = vmatmul.bf16.gmra.mxu0 %v348
  %v1164 = vpop.f32.mrf.mxu0
  %v1165 = vadd.f32 %v1019, %v1164
  %v1166 = vpop.f32.mrf.mxu0
  %v1167 = vadd.f32 %v1019, %v1166
  %1168 = vmatmul.bf16.gmra.mxu0 %v351
  %v1169 = vpop.f32.mrf.mxu0
  %v1170 = vadd.f32 %v1019, %v1169
  %v1171 = vpop.f32.mrf.mxu0
  %v1172 = vadd.f32 %v1019, %v1171
  %1173 = vmatmul.bf16.gmra.mxu0 %v354
  %v1174 = vpop.f32.mrf.mxu0
  %v1175 = vadd.f32 %v1019, %v1174
  %v1176 = vpop.f32.mrf.mxu0
  %v1177 = vadd.f32 %v1019, %v1176
  %1178 = vmatmul.bf16.gmra.mxu0 %v357
  %v1179 = vpop.f32.mrf.mxu0
  %v1180 = vadd.f32 %v1019, %v1179
  %v1181 = vpop.f32.mrf.mxu0
  %v1182 = vadd.f32 %v1019, %v1181
  %1183 = vmatmul.bf16.gmra.mxu0 %v360
  %v1184 = vpop.f32.mrf.mxu0
  %v1185 = vadd.f32 %v1019, %v1184
  %v1186 = vpop.f32.mrf.mxu0
  %v1187 = vadd.f32 %v1019, %v1186
  %1188 = vmatmul.bf16.gmra.mxu0 %v363
  %v1189 = vpop.f32.mrf.mxu0
  %v1190 = vadd.f32 %v1019, %v1189
  %v1191 = vpop.f32.mrf.mxu0
  %v1192 = vadd.f32 %v1019, %v1191
  %1193 = vmatmul.bf16.gmra.mxu0 %v366
  %v1194 = vpop.f32.mrf.mxu0
  %v1195 = vadd.f32 %v1019, %v1194
  %v1196 = vpop.f32.mrf.mxu0
  %v1197 = vadd.f32 %v1019, %v1196
  %1198 = vmatmul.bf16.gmra.mxu0 %v369
  %v1199 = vpop.f32.mrf.mxu0
  %v1200 = vadd.f32 %v1019, %v1199
  %v1201 = vpop.f32.mrf.mxu0
  %v1202 = vadd.f32 %v1019, %v1201
  %1203 = vmatmul.bf16.gmra.mxu0 %v372
  %v1204 = vpop.f32.mrf.mxu0
  %v1205 = vadd.f32 %v1019, %v1204
  %v1206 = vpop.f32.mrf.mxu0
  %v1207 = vadd.f32 %v1019, %v1206
  %1208 = vmatmul.bf16.gmra.mxu0 %v375
  %v1209 = vpop.f32.mrf.mxu0
  %v1210 = vadd.f32 %v1019, %v1209
  %v1211 = vpop.f32.mrf.mxu0
  %v1212 = vadd.f32 %v1019, %v1211
  %1213 = vdwg.mxu0
  %v1214 = vpack.c.bf16 %v1055, %v1055
  %v1215 = vpack.c.bf16 %v1057, %v1057
  %v1216 = vpack.c.bf16 %v1060, %v1060
  %v1217 = vpack.c.bf16 %v1062, %v1062
  %v1218 = vpack.c.bf16 %v1065, %v1065
  %v1219 = vpack.c.bf16 %v1067, %v1067
  %v1220 = vpack.c.bf16 %v1070, %v1070
  %v1221 = vpack.c.bf16 %v1072, %v1072
  %v1222 = vpack.c.bf16 %v1075, %v1075
  %v1223 = vpack.c.bf16 %v1077, %v1077
  %v1224 = vpack.c.bf16 %v1080, %v1080
  %v1225 = vpack.c.bf16 %v1082, %v1082
  %v1226 = vpack.c.bf16 %v1085, %v1085
  %v1227 = vpack.c.bf16 %v1087, %v1087
  %v1228 = vpack.c.bf16 %v1090, %v1090
  %v1229 = vpack.c.bf16 %v1092, %v1092
  %v1230 = vpack.c.bf16 %v1095, %v1095
  %v1231 = vpack.c.bf16 %v1097, %v1097
  %v1232 = vpack.c.bf16 %v1100, %v1100
  %v1233 = vpack.c.bf16 %v1102, %v1102
  %v1234 = vpack.c.bf16 %v1105, %v1105
  %v1235 = vpack.c.bf16 %v1107, %v1107
  %v1236 = vpack.c.bf16 %v1110, %v1110
  %v1237 = vpack.c.bf16 %v1112, %v1112
  %v1238 = vpack.c.bf16 %v1115, %v1115
  %v1239 = vpack.c.bf16 %v1117, %v1117
  %v1240 = vpack.c.bf16 %v1120, %v1120
  %v1241 = vpack.c.bf16 %v1122, %v1122
  %v1242 = vpack.c.bf16 %v1125, %v1125
  %v1243 = vpack.c.bf16 %v1127, %v1127
  %v1244 = vpack.c.bf16 %v1130, %v1130
  %v1245 = vpack.c.bf16 %v1132, %v1132
  %v1246 = vpack.c.bf16 %v1135, %v1135
  %v1247 = vpack.c.bf16 %v1137, %v1137
  %v1248 = vpack.c.bf16 %v1140, %v1140
  %v1249 = vpack.c.bf16 %v1142, %v1142
  %v1250 = vpack.c.bf16 %v1145, %v1145
  %v1251 = vpack.c.bf16 %v1147, %v1147
  %v1252 = vpack.c.bf16 %v1150, %v1150
  %v1253 = vpack.c.bf16 %v1152, %v1152
  %v1254 = vpack.c.bf16 %v1155, %v1155
  %v1255 = vpack.c.bf16 %v1157, %v1157
  %v1256 = vpack.c.bf16 %v1160, %v1160
  %v1257 = vpack.c.bf16 %v1162, %v1162
  %v1258 = vpack.c.bf16 %v1165, %v1165
  %v1259 = vpack.c.bf16 %v1167, %v1167
  %v1260 = vpack.c.bf16 %v1170, %v1170
  %v1261 = vpack.c.bf16 %v1172, %v1172
  %v1262 = vpack.c.bf16 %v1175, %v1175
  %v1263 = vpack.c.bf16 %v1177, %v1177
  %v1264 = vpack.c.bf16 %v1180, %v1180
  %v1265 = vpack.c.bf16 %v1182, %v1182
  %v1266 = vpack.c.bf16 %v1185, %v1185
  %v1267 = vpack.c.bf16 %v1187, %v1187
  %v1268 = vpack.c.bf16 %v1190, %v1190
  %v1269 = vpack.c.bf16 %v1192, %v1192
  %v1270 = vpack.c.bf16 %v1195, %v1195
  %v1271 = vpack.c.bf16 %v1197, %v1197
  %v1272 = vpack.c.bf16 %v1200, %v1200
  %v1273 = vpack.c.bf16 %v1202, %v1202
  %v1274 = vpack.c.bf16 %v1205, %v1205
  %v1275 = vpack.c.bf16 %v1207, %v1207
  %v1276 = vpack.c.bf16 %v1210, %v1210
  %v1277 = vpack.c.bf16 %v1212, %v1212
  %1278 = vst [vmem:[%s7] sm:$0xf] %v1214
  %1279 = vst [vmem:[%s7 + $0x4] sm:$0xf] %v1215
  %1280 = vst [vmem:[%s7 + $0x8] sm:$0xf] %v1216
  %1281 = vst [vmem:[%s7 + $0xc] sm:$0xf] %v1217
  %1282 = vst [vmem:[%s7 + $0x10] sm:$0xf] %v1218
  %1283 = vst [vmem:[%s7 + $0x14] sm:$0xf] %v1219
  %1284 = vst [vmem:[%s7 + $0x18] sm:$0xf] %v1220
  %1285 = vst [vmem:[%s7 + $0x1c] sm:$0xf] %v1221
  %1286 = vst [vmem:[%s7 + $0x20] sm:$0xf] %v1222
  %1287 = vst [vmem:[%s7 + $0x24] sm:$0xf] %v1223
  %1288 = vst [vmem:[%s7 + $0x28] sm:$0xf] %v1224
  %1289 = vst [vmem:[%s7 + $0x2c] sm:$0xf] %v1225
  %1290 = vst [vmem:[%s7 + $0x30] sm:$0xf] %v1226
  %1291 = vst [vmem:[%s7 + $0x34] sm:$0xf] %v1227
  %1292 = vst [vmem:[%s7 + $0x38] sm:$0xf] %v1228
  %1293 = vst [vmem:[%s7 + $0x3c] sm:$0xf] %v1229
  %1294 = vst [vmem:[%s7 + $0x40] sm:$0xf] %v1230
  %1295 = vst [vmem:[%s7 + $0x44] sm:$0xf] %v1231
  %1296 = vst [vmem:[%s7 + $0x48] sm:$0xf] %v1232
  %1297 = vst [vmem:[%s7 + $0x4c] sm:$0xf] %v1233
  %1298 = vst [vmem:[%s7 + $0x50] sm:$0xf] %v1234
  %1299 = vst [vmem:[%s7 + $0x54] sm:$0xf] %v1235
  %1300 = vst [vmem:[%s7 + $0x58] sm:$0xf] %v1236
  %1301 = vst [vmem:[%s7 + $0x5c] sm:$0xf] %v1237
  %1302 = vst [vmem:[%s7 + $0x60] sm:$0xf] %v1238
  %1303 = vst [vmem:[%s7 + $0x64] sm:$0xf] %v1239
  %1304 = vst [vmem:[%s7 + $0x68] sm:$0xf] %v1240
  %1305 = vst [vmem:[%s7 + $0x6c] sm:$0xf] %v1241
  %1306 = vst [vmem:[%s7 + $0x70] sm:$0xf] %v1242
  %1307 = vst [vmem:[%s7 + $0x74] sm:$0xf] %v1243
  %1308 = vst [vmem:[%s7 + $0x78] sm:$0xf] %v1244
  %1309 = vst [vmem:[%s7 + $0x7c] sm:$0xf] %v1245
  %1310 = vst [vmem:[%s7 + $0x80] sm:$0xf] %v1246
  %1311 = vst [vmem:[%s7 + $0x84] sm:$0xf] %v1247
  %1312 = vst [vmem:[%s7 + $0x88] sm:$0xf] %v1248
  %1313 = vst [vmem:[%s7 + $0x8c] sm:$0xf] %v1249
  %1314 = vst [vmem:[%s7 + $0x90] sm:$0xf] %v1250
  %1315 = vst [vmem:[%s7 + $0x94] sm:$0xf] %v1251
  %1316 = vst [vmem:[%s7 + $0x98] sm:$0xf] %v1252
  %1317 = vst [vmem:[%s7 + $0x9c] sm:$0xf] %v1253
  %1318 = vst [vmem:[%s7 + $0xa0] sm:$0xf] %v1254
  %1319 = vst [vmem:[%s7 + $0xa4] sm:$0xf] %v1255
  %1320 = vst [vmem:[%s7 + $0xa8] sm:$0xf] %v1256
  %1321 = vst [vmem:[%s7 + $0xac] sm:$0xf] %v1257
  %1322 = vst [vmem:[%s7 + $0xb0] sm:$0xf] %v1258
  %1323 = vst [vmem:[%s7 + $0xb4] sm:$0xf] %v1259
  %1324 = vst [vmem:[%s7 + $0xb8] sm:$0xf] %v1260
  %1325 = vst [vmem:[%s7 + $0xbc] sm:$0xf] %v1261
  %1326 = vst [vmem:[%s7 + $0xc0] sm:$0xf] %v1262
  %1327 = vst [vmem:[%s7 + $0xc4] sm:$0xf] %v1263
  %1328 = vst [vmem:[%s7 + $0xc8] sm:$0xf] %v1264
  %1329 = vst [vmem:[%s7 + $0xcc] sm:$0xf] %v1265
  %1330 = vst [vmem:[%s7 + $0xd0] sm:$0xf] %v1266
  %1331 = vst [vmem:[%s7 + $0xd4] sm:$0xf] %v1267
  %1332 = vst [vmem:[%s7 + $0xd8] sm:$0xf] %v1268
  %1333 = vst [vmem:[%s7 + $0xdc] sm:$0xf] %v1269
  %1334 = vst [vmem:[%s7 + $0xe0] sm:$0xf] %v1270
  %1335 = vst [vmem:[%s7 + $0xe4] sm:$0xf] %v1271
  %1336 = vst [vmem:[%s7 + $0xe8] sm:$0xf] %v1272
  %1337 = vst [vmem:[%s7 + $0xec] sm:$0xf] %v1273
  %1338 = vst [vmem:[%s7 + $0xf0] sm:$0xf] %v1274
  %1339 = vst [vmem:[%s7 + $0xf4] sm:$0xf] %v1275
  %1340 = vst [vmem:[%s7 + $0xf8] sm:$0xf] %v1276
  %1341 = vst [vmem:[%s7 + $0xfc] sm:$0xf] %v1277
  %v1342 = vadd.f32 %v1055, %v1057
  %v1343 = vadd.f32 %v1342, %v1060
  %v1344 = vadd.f32 %v1343, %v1062
  %v1345 = vadd.f32 %v1344, %v1065
  %v1346 = vadd.f32 %v1345, %v1067
  %v1347 = vadd.f32 %v1346, %v1070
  %v1348 = vadd.f32 %v1347, %v1072
  %v1349 = vadd.f32 %v1348, %v1075
  %v1350 = vadd.f32 %v1349, %v1077
  %v1351 = vadd.f32 %v1350, %v1080
  %v1352 = vadd.f32 %v1351, %v1082
  %v1353 = vadd.f32 %v1352, %v1085
  %v1354 = vadd.f32 %v1353, %v1087
  %v1355 = vadd.f32 %v1354, %v1090
  %v1356 = vadd.f32 %v1355, %v1092
  %v1357 = vadd.f32 %v1356, %v1095
  %v1358 = vadd.f32 %v1357, %v1097
  %v1359 = vadd.f32 %v1358, %v1100
  %v1360 = vadd.f32 %v1359, %v1102
  %v1361 = vadd.f32 %v1360, %v1105
  %v1362 = vadd.f32 %v1361, %v1107
  %v1363 = vadd.f32 %v1362, %v1110
  %v1364 = vadd.f32 %v1363, %v1112
  %v1365 = vadd.f32 %v1364, %v1115
  %v1366 = vadd.f32 %v1365, %v1117
  %v1367 = vadd.f32 %v1366, %v1120
  %v1368 = vadd.f32 %v1367, %v1122
  %v1369 = vadd.f32 %v1368, %v1125
  %v1370 = vadd.f32 %v1369, %v1127
  %v1371 = vadd.f32 %v1370, %v1130
  %v1372 = vadd.f32 %v1371, %v1132
  %v1373 = vadd.f32 %v1372, %v1135
  %v1374 = vadd.f32 %v1373, %v1137
  %v1375 = vadd.f32 %v1374, %v1140
  %v1376 = vadd.f32 %v1375, %v1142
  %v1377 = vadd.f32 %v1376, %v1145
  %v1378 = vadd.f32 %v1377, %v1147
  %v1379 = vadd.f32 %v1378, %v1150
  %v1380 = vadd.f32 %v1379, %v1152
  %v1381 = vadd.f32 %v1380, %v1155
  %v1382 = vadd.f32 %v1381, %v1157
  %v1383 = vadd.f32 %v1382, %v1160
  %v1384 = vadd.f32 %v1383, %v1162
  %v1385 = vadd.f32 %v1384, %v1165
  %v1386 = vadd.f32 %v1385, %v1167
  %v1387 = vadd.f32 %v1386, %v1170
  %v1388 = vadd.f32 %v1387, %v1172
  %v1389 = vadd.f32 %v1388, %v1175
  %v1390 = vadd.f32 %v1389, %v1177
  %v1391 = vadd.f32 %v1390, %v1180
  %v1392 = vadd.f32 %v1391, %v1182
  %v1393 = vadd.f32 %v1392, %v1185
  %v1394 = vadd.f32 %v1393, %v1187
  %v1395 = vadd.f32 %v1394, %v1190
  %v1396 = vadd.f32 %v1395, %v1192
  %v1397 = vadd.f32 %v1396, %v1195
  %v1398 = vadd.f32 %v1397, %v1197
  %v1399 = vadd.f32 %v1398, %v1200
  %v1400 = vadd.f32 %v1399, %v1202
  %v1401 = vadd.f32 %v1400, %v1205
  %v1402 = vadd.f32 %v1401, %v1207
  %v1403 = vadd.f32 %v1402, %v1210
  %v1404 = vadd.f32 %v1403, %v1212
  %v1405 = vrot.slane %v1404, 4
  %v1406 = vadd.f32 %v1404, %v1405
  %v1407 = vrot.slane %v1406, 2
  %v1408 = vadd.f32 %v1406, %v1407
  %v1409 = vrot.slane %v1408, 1
  %v1410 = vadd.f32 %v1408, %v1409
  %1411 = vst [vmem:[%s8] sm:$0x1] %v1410
  %v1412 = vmul.f32 %v1055, %v1055
  %v1413 = vmul.f32 %v1057, %v1057
  %v1414 = vmul.f32 %v1060, %v1060
  %v1415 = vmul.f32 %v1062, %v1062
  %v1416 = vmul.f32 %v1065, %v1065
  %v1417 = vmul.f32 %v1067, %v1067
  %v1418 = vmul.f32 %v1070, %v1070
  %v1419 = vmul.f32 %v1072, %v1072
  %v1420 = vmul.f32 %v1075, %v1075
  %v1421 = vmul.f32 %v1077, %v1077
  %v1422 = vmul.f32 %v1080, %v1080
  %v1423 = vmul.f32 %v1082, %v1082
  %v1424 = vmul.f32 %v1085, %v1085
  %v1425 = vmul.f32 %v1087, %v1087
  %v1426 = vmul.f32 %v1090, %v1090
  %v1427 = vmul.f32 %v1092, %v1092
  %v1428 = vmul.f32 %v1095, %v1095
  %v1429 = vmul.f32 %v1097, %v1097
  %v1430 = vmul.f32 %v1100, %v1100
  %v1431 = vmul.f32 %v1102, %v1102
  %v1432 = vmul.f32 %v1105, %v1105
  %v1433 = vmul.f32 %v1107, %v1107
  %v1434 = vmul.f32 %v1110, %v1110
  %v1435 = vmul.f32 %v1112, %v1112
  %v1436 = vmul.f32 %v1115, %v1115
  %v1437 = vmul.f32 %v1117, %v1117
  %v1438 = vmul.f32 %v1120, %v1120
  %v1439 = vmul.f32 %v1122, %v1122
  %v1440 = vmul.f32 %v1125, %v1125
  %v1441 = vmul.f32 %v1127, %v1127
  %v1442 = vmul.f32 %v1130, %v1130
  %v1443 = vmul.f32 %v1132, %v1132
  %v1444 = vmul.f32 %v1135, %v1135
  %v1445 = vmul.f32 %v1137, %v1137
  %v1446 = vmul.f32 %v1140, %v1140
  %v1447 = vmul.f32 %v1142, %v1142
  %v1448 = vmul.f32 %v1145, %v1145
  %v1449 = vmul.f32 %v1147, %v1147
  %v1450 = vmul.f32 %v1150, %v1150
  %v1451 = vmul.f32 %v1152, %v1152
  %v1452 = vmul.f32 %v1155, %v1155
  %v1453 = vmul.f32 %v1157, %v1157
  %v1454 = vmul.f32 %v1160, %v1160
  %v1455 = vmul.f32 %v1162, %v1162
  %v1456 = vmul.f32 %v1165, %v1165
  %v1457 = vmul.f32 %v1167, %v1167
  %v1458 = vmul.f32 %v1170, %v1170
  %v1459 = vmul.f32 %v1172, %v1172
  %v1460 = vmul.f32 %v1175, %v1175
  %v1461 = vmul.f32 %v1177, %v1177
  %v1462 = vmul.f32 %v1180, %v1180
  %v1463 = vmul.f32 %v1182, %v1182
  %v1464 = vmul.f32 %v1185, %v1185
  %v1465 = vmul.f32 %v1187, %v1187
  %v1466 = vmul.f32 %v1190, %v1190
  %v1467 = vmul.f32 %v1192, %v1192
  %v1468 = vmul.f32 %v1195, %v1195
  %v1469 = vmul.f32 %v1197, %v1197
  %v1470 = vmul.f32 %v1200, %v1200
  %v1471 = vmul.f32 %v1202, %v1202
  %v1472 = vmul.f32 %v1205, %v1205
  %v1473 = vmul.f32 %v1207, %v1207
  %v1474 = vmul.f32 %v1210, %v1210
  %v1475 = vmul.f32 %v1212, %v1212
  %v1476 = vadd.f32 %v1412, %v1413
  %v1477 = vadd.f32 %v1476, %v1414
  %v1478 = vadd.f32 %v1477, %v1415
  %v1479 = vadd.f32 %v1478, %v1416
  %v1480 = vadd.f32 %v1479, %v1417
  %v1481 = vadd.f32 %v1480, %v1418
  %v1482 = vadd.f32 %v1481, %v1419
  %v1483 = vadd.f32 %v1482, %v1420
  %v1484 = vadd.f32 %v1483, %v1421
  %v1485 = vadd.f32 %v1484, %v1422
  %v1486 = vadd.f32 %v1485, %v1423
  %v1487 = vadd.f32 %v1486, %v1424
  %v1488 = vadd.f32 %v1487, %v1425
  %v1489 = vadd.f32 %v1488, %v1426
  %v1490 = vadd.f32 %v1489, %v1427
  %v1491 = vadd.f32 %v1490, %v1428
  %v1492 = vadd.f32 %v1491, %v1429
  %v1493 = vadd.f32 %v1492, %v1430
  %v1494 = vadd.f32 %v1493, %v1431
  %v1495 = vadd.f32 %v1494, %v1432
  %v1496 = vadd.f32 %v1495, %v1433
  %v1497 = vadd.f32 %v1496, %v1434
  %v1498 = vadd.f32 %v1497, %v1435
  %v1499 = vadd.f32 %v1498, %v1436
  %v1500 = vadd.f32 %v1499, %v1437
  %v1501 = vadd.f32 %v1500, %v1438
  %v1502 = vadd.f32 %v1501, %v1439
  %v1503 = vadd.f32 %v1502, %v1440
  %v1504 = vadd.f32 %v1503, %v1441
  %v1505 = vadd.f32 %v1504, %v1442
  %v1506 = vadd.f32 %v1505, %v1443
  %v1507 = vadd.f32 %v1506, %v1444
  %v1508 = vadd.f32 %v1507, %v1445
  %v1509 = vadd.f32 %v1508, %v1446
  %v1510 = vadd.f32 %v1509, %v1447
  %v1511 = vadd.f32 %v1510, %v1448
  %v1512 = vadd.f32 %v1511, %v1449
  %v1513 = vadd.f32 %v1512, %v1450
  %v1514 = vadd.f32 %v1513, %v1451
  %v1515 = vadd.f32 %v1514, %v1452
  %v1516 = vadd.f32 %v1515, %v1453
  %v1517 = vadd.f32 %v1516, %v1454
  %v1518 = vadd.f32 %v1517, %v1455
  %v1519 = vadd.f32 %v1518, %v1456
  %v1520 = vadd.f32 %v1519, %v1457
  %v1521 = vadd.f32 %v1520, %v1458
  %v1522 = vadd.f32 %v1521, %v1459
  %v1523 = vadd.f32 %v1522, %v1460
  %v1524 = vadd.f32 %v1523, %v1461
  %v1525 = vadd.f32 %v1524, %v1462
  %v1526 = vadd.f32 %v1525, %v1463
  %v1527 = vadd.f32 %v1526, %v1464
  %v1528 = vadd.f32 %v1527, %v1465
  %v1529 = vadd.f32 %v1528, %v1466
  %v1530 = vadd.f32 %v1529, %v1467
  %v1531 = vadd.f32 %v1530, %v1468
  %v1532 = vadd.f32 %v1531, %v1469
  %v1533 = vadd.f32 %v1532, %v1470
  %v1534 = vadd.f32 %v1533, %v1471
  %v1535 = vadd.f32 %v1534, %v1472
  %v1536 = vadd.f32 %v1535, %v1473
  %v1537 = vadd.f32 %v1536, %v1474
  %v1538 = vadd.f32 %v1537, %v1475
  %v1539 = vrot.slane %v1538, 4
  %v1540 = vadd.f32 %v1538, %v1539
  %v1541 = vrot.slane %v1540, 2
  %v1542 = vadd.f32 %v1540, %v1541
  %v1543 = vrot.slane %v1542, 1
  %v1544 = vadd.f32 %v1542, %v1543
  %1545 = vst [vmem:[%s9] sm:$0x1] %v1544
  // Predicated region
  $region18: #{bottleneck_transformer_forward.4} parent=0 // pred_check
    _
  $region19: #{bottleneck_transformer_forward.4} parent=0 // pred_check_branch
    %1547 = sbr.rel (0) target = $region21
  $region20: #{bottleneck_transformer_forward.4} parent=0 // pred_region
    _
  $region21: #{bottleneck_transformer_forward.4} parent=0 // pred_fallthru
    _
  // Predicated region
  $region22: #{bottleneck_transformer_forward.4} parent=0 // pred_check
    _
  $region23: #{bottleneck_transformer_forward.4} parent=0 // pred_check_branch
    %1549 = sbr.rel (0) target = $region25
  $region24: #{bottleneck_transformer_forward.4} parent=0 // pred_region
    _
  $region25: #{bottleneck_transformer_forward.4} parent=0 // pred_fallthru
    _
  // Predicated region
  $region26: #{bottleneck_transformer_forward.4} parent=0 // pred_check
    _
  $region27: #{bottleneck_transformer_forward.4} parent=0 // pred_check_branch
    %1551 = sbr.rel (0) target = $region29
  $region28: #{bottleneck_transformer_forward.4} parent=0 // pred_region
    _
  $region29: #{bottleneck_transformer_forward.4} parent=0 // pred_fallthru
    _
  // Predicated region
  $region30: #{bottleneck_transformer_forward.4} parent=0 // pred_check
    _
  $region31: #{bottleneck_transformer_forward.4} parent=0 // pred_check_branch
    %1553 = sbr.rel (0) target = $region33
  $region32: #{bottleneck_transformer_forward.4} parent=0 // pred_region
    _
  $region33: #{bottleneck_transformer_forward.4} parent=0 // pred_fallthru
    _
  // Predicated region
  $region34: #{bottleneck_transformer_forward.4} parent=0 // pred_check
    _
  $region35: #{bottleneck_transformer_forward.4} parent=0 // pred_check_branch
    %1555 = sbr.rel (0) target = $region37
  $region36: #{bottleneck_transformer_forward.4} parent=0 // pred_region
    _
  $region37: #{bottleneck_transformer_forward.4} parent=0 // pred_fallthru
    _
  // Predicated region
  $region38: #{bottleneck_transformer_forward.4} parent=0 // pred_check
    _
  $region39: #{bottleneck_transformer_forward.4} parent=0 // pred_check_branch
    %1557 = sbr.rel (0) target = $region41
  $region40: #{bottleneck_transformer_forward.4} parent=0 // pred_region
    _
  $region41: #{bottleneck_transformer_forward.4} parent=0 // pred_fallthru
    _
  // Predicated region
  $region42: #{bottleneck_transformer_forward.4} parent=0 // pred_check
    _
  $region43: #{bottleneck_transformer_forward.4} parent=0 // pred_check_branch
    %1559 = sbr.rel (0) target = $region45
  $region44: #{bottleneck_transformer_forward.4} parent=0 // pred_region
    _
  $region45: #{bottleneck_transformer_forward.4} parent=0 // pred_fallthru
    _
  // Predicated region
  $region46: #{bottleneck_transformer_forward.4} parent=0 // pred_check
    _
  $region47: #{bottleneck_transformer_forward.4} parent=0 // pred_check_branch
    %1561 = sbr.rel (0) target = $region49
  $region48: #{bottleneck_transformer_forward.4} parent=0 // pred_region
    _
  $region49: #{bottleneck_transformer_forward.4} parent=0 // pred_fallthru
    _
  // Predicated region
  $region50: #{bottleneck_transformer_forward.4} parent=0 // pred_check
    _
  $region51: #{bottleneck_transformer_forward.4} parent=0 // pred_check_branch
    %1563 = sbr.rel (0) target = $region53
  $region52: #{bottleneck_transformer_forward.4} parent=0 // pred_region
    _
  $region53: #{bottleneck_transformer_forward.4} parent=0 // pred_fallthru
    _
  // Predicated region
  $region54: #{bottleneck_transformer_forward.4} parent=0 // pred_check
    _
  $region55: #{bottleneck_transformer_forward.4} parent=0 // pred_check_branch
    %1565 = sbr.rel (0) target = $region57
  $region56: #{bottleneck_transformer_forward.4} parent=0 // pred_region
    _
  $region57: #{bottleneck_transformer_forward.4} parent=0 // pred_fallthru
    _
  // Predicated region
  $region58: #{bottleneck_transformer_forward.4} parent=0 // pred_check
    _
  $region59: #{bottleneck_transformer_forward.4} parent=0 // pred_check_branch
    %1567 = sbr.rel (0) target = $region61
  $region60: #{bottleneck_transformer_forward.4} parent=0 // pred_region
    _
  $region61: #{bottleneck_transformer_forward.4} parent=0 // pred_fallthru
    _
  // Predicated region
  $region62: #{bottleneck_transformer_forward.4} parent=0 // pred_check
    _
  $region63: #{bottleneck_transformer_forward.4} parent=0 // pred_check_branch
    %1569 = sbr.rel (0) target = $region65
  $region64: #{bottleneck_transformer_forward.4} parent=0 // pred_region
    _
  $region65: #{bottleneck_transformer_forward.4} parent=0 // pred_fallthru
    _

// kernel: bottleneck_transformer_forward.7
$region0: #{bottleneck_transformer_forward.7}
  #allocation0 [shape = 'u32[]', space=smem, size = 0x4, offset = 0x4, fixed_abs, tag = 'smem constant byte address 0x4 - core index']
  #allocation1 [shape = 'u32[72,128]{1,0:T(1,128)}', space=vmem, size = 0x9000, scoped, tag = 'internal scratch']
  %s0 = inlined_call_operand.vmem [shape: f32[512,128], index: 0, kind: input, shape index: {}]
  %s1 = inlined_call_operand.vmem [shape: f32[1,128], index: 1, kind: input, shape index: {}]
  %s2 = inlined_call_operand.vmem [shape: f32[1,128], index: 2, kind: input, shape index: {}]
  %s3 = inlined_call_operand.vmem [shape: bf16[512,128], index: 3, kind: input, shape index: {}]
  %s4 = inlined_call_operand.vmem [shape: f32[1,128], index: 4, kind: input, shape index: {}]
  %s5 = inlined_call_operand.vmem [shape: f32[1,128], index: 5, kind: input, shape index: {}]
  %s6 = inlined_call_operand.hbm [shape: f32[512,128], index: 6, kind: output, shape index: {}]
  %s7 = sld [smem:[#allocation0]]
  $region34: #{bottleneck_transformer_forward.7} parent=0
    _
  %s9 = ssub.s32 1, %s7
  %s10 = scalar_select 0, %s9, %s7
  $region1: #{bottleneck_transformer_forward.7} parent=0
    #allocation2 [shape = 'u8[262144]{0}', space=vmem, size = 0x40000, scoped, tag = 'output window, operand 0, single buffered']
    #allocation3 [shape = 's32[1]{0}', space=sflag, size = 0x4, scoped, tag = 'scoped memory for bottleneck_transformer_forward.7']
    %11 = vsyncpa [#allocation3], 0
    // Predicated region
    $region2: #{bottleneck_transformer_forward.7} parent=1 // pred_check
      _
    $region3: #{bottleneck_transformer_forward.7} parent=1 // pred_check_branch
      %13 = sbr.rel (0) target = $region5
    $region4: #{bottleneck_transformer_forward.7} parent=1 // pred_region
      _
    $region5: #{bottleneck_transformer_forward.7} parent=1 // pred_fallthru
      _
    // Predicated region
    $region6: #{bottleneck_transformer_forward.7} parent=1 // pred_check
      _
    $region7: #{bottleneck_transformer_forward.7} parent=1 // pred_check_branch
      %15 = sbr.rel (0) target = $region9
    $region8: #{bottleneck_transformer_forward.7} parent=1 // pred_region
      _
    $region9: #{bottleneck_transformer_forward.7} parent=1 // pred_fallthru
      _
    // Predicated region
    $region10: #{bottleneck_transformer_forward.7} parent=1 // pred_check
      _
    $region11: #{bottleneck_transformer_forward.7} parent=1 // pred_check_branch
      %17 = sbr.rel (0) target = $region13
    $region12: #{bottleneck_transformer_forward.7} parent=1 // pred_region
      _
    $region13: #{bottleneck_transformer_forward.7} parent=1 // pred_fallthru
      _
    // Predicated region
    $region14: #{bottleneck_transformer_forward.7} parent=1 // pred_check
      _
    $region15: #{bottleneck_transformer_forward.7} parent=1 // pred_check_branch
      %19 = sbr.rel (0) target = $region17
    $region16: #{bottleneck_transformer_forward.7} parent=1 // pred_region
      _
    $region17: #{bottleneck_transformer_forward.7} parent=1 // pred_fallthru
      _
    // Predicated region
    $region18: #{bottleneck_transformer_forward.7} parent=1 // pred_check
      _
    $region19: #{bottleneck_transformer_forward.7} parent=1 // pred_check_branch
      %21 = sbr.rel (0) target = $region21
    $region20: #{bottleneck_transformer_forward.7} parent=1 // pred_region
      _
    $region21: #{bottleneck_transformer_forward.7} parent=1 // pred_fallthru
      _
    // Predicated region
    $region22: #{bottleneck_transformer_forward.7} parent=1 // pred_check
      _
    $region23: #{bottleneck_transformer_forward.7} parent=1 // pred_check_branch
      %23 = sbr.rel (0) target = $region25
    $region24: #{bottleneck_transformer_forward.7} parent=1 // pred_region
      _
    $region25: #{bottleneck_transformer_forward.7} parent=1 // pred_fallthru
      _
    %v24 = vld [vmem:[%s0] sm:$0xff]
    %v25 = vld [vmem:[%s0 + $0x8] sm:$0xff]
    %v26 = vld [vmem:[%s0 + $0x10] sm:$0xff]
    %v27 = vld [vmem:[%s0 + $0x18] sm:$0xff]
    %v28 = vld [vmem:[%s0 + $0x20] sm:$0xff]
    %v29 = vld [vmem:[%s0 + $0x28] sm:$0xff]
    %v30 = vld [vmem:[%s0 + $0x30] sm:$0xff]
    %v31 = vld [vmem:[%s0 + $0x38] sm:$0xff]
    %v32 = vld [vmem:[%s0 + $0x40] sm:$0xff]
    %v33 = vld [vmem:[%s0 + $0x48] sm:$0xff]
    %v34 = vld [vmem:[%s0 + $0x50] sm:$0xff]
    %v35 = vld [vmem:[%s0 + $0x58] sm:$0xff]
    %v36 = vld [vmem:[%s0 + $0x60] sm:$0xff]
    %v37 = vld [vmem:[%s0 + $0x68] sm:$0xff]
    %v38 = vld [vmem:[%s0 + $0x70] sm:$0xff]
    %v39 = vld [vmem:[%s0 + $0x78] sm:$0xff]
    %v40 = vld [vmem:[%s0 + $0x80] sm:$0xff]
    %v41 = vld [vmem:[%s0 + $0x88] sm:$0xff]
    %v42 = vld [vmem:[%s0 + $0x90] sm:$0xff]
    %v43 = vld [vmem:[%s0 + $0x98] sm:$0xff]
    %v44 = vld [vmem:[%s0 + $0xa0] sm:$0xff]
    %v45 = vld [vmem:[%s0 + $0xa8] sm:$0xff]
    %v46 = vld [vmem:[%s0 + $0xb0] sm:$0xff]
    %v47 = vld [vmem:[%s0 + $0xb8] sm:$0xff]
    %v48 = vld [vmem:[%s0 + $0xc0] sm:$0xff]
    %v49 = vld [vmem:[%s0 + $0xc8] sm:$0xff]
    %v50 = vld [vmem:[%s0 + $0xd0] sm:$0xff]
    %v51 = vld [vmem:[%s0 + $0xd8] sm:$0xff]
    %v52 = vld [vmem:[%s0 + $0xe0] sm:$0xff]
    %v53 = vld [vmem:[%s0 + $0xe8] sm:$0xff]
    %v54 = vld [vmem:[%s0 + $0xf0] sm:$0xff]
    %v55 = vld [vmem:[%s0 + $0xf8] sm:$0xff]
    %v56 = vld [vmem:[%s0 + $0x100] sm:$0xff]
    %v57 = vld [vmem:[%s0 + $0x108] sm:$0xff]
    %v58 = vld [vmem:[%s0 + $0x110] sm:$0xff]
    %v59 = vld [vmem:[%s0 + $0x118] sm:$0xff]
    %v60 = vld [vmem:[%s0 + $0x120] sm:$0xff]
    %v61 = vld [vmem:[%s0 + $0x128] sm:$0xff]
    %v62 = vld [vmem:[%s0 + $0x130] sm:$0xff]
    %v63 = vld [vmem:[%s0 + $0x138] sm:$0xff]
    %v64 = vld [vmem:[%s0 + $0x140] sm:$0xff]
    %v65 = vld [vmem:[%s0 + $0x148] sm:$0xff]
    %v66 = vld [vmem:[%s0 + $0x150] sm:$0xff]
    %v67 = vld [vmem:[%s0 + $0x158] sm:$0xff]
    %v68 = vld [vmem:[%s0 + $0x160] sm:$0xff]
    %v69 = vld [vmem:[%s0 + $0x168] sm:$0xff]
    %v70 = vld [vmem:[%s0 + $0x170] sm:$0xff]
    %v71 = vld [vmem:[%s0 + $0x178] sm:$0xff]
    %v72 = vld [vmem:[%s0 + $0x180] sm:$0xff]
    %v73 = vld [vmem:[%s0 + $0x188] sm:$0xff]
    %v74 = vld [vmem:[%s0 + $0x190] sm:$0xff]
    %v75 = vld [vmem:[%s0 + $0x198] sm:$0xff]
    %v76 = vld [vmem:[%s0 + $0x1a0] sm:$0xff]
    %v77 = vld [vmem:[%s0 + $0x1a8] sm:$0xff]
    %v78 = vld [vmem:[%s0 + $0x1b0] sm:$0xff]
    %v79 = vld [vmem:[%s0 + $0x1b8] sm:$0xff]
    %v80 = vld [vmem:[%s0 + $0x1c0] sm:$0xff]
    %v81 = vld [vmem:[%s0 + $0x1c8] sm:$0xff]
    %v82 = vld [vmem:[%s0 + $0x1d0] sm:$0xff]
    %v83 = vld [vmem:[%s0 + $0x1d8] sm:$0xff]
    %v84 = vld [vmem:[%s0 + $0x1e0] sm:$0xff]
    %v85 = vld [vmem:[%s0 + $0x1e8] sm:$0xff]
    %v86 = vld [vmem:[%s0 + $0x1f0] sm:$0xff]
    %v87 = vld [vmem:[%s0 + $0x1f8] sm:$0xff]
    %v88 = vld [vmem:[%s1] sm:$0x1]
    %v90 = vperm.slane %v88, 0
    %v92 = vmul.f32 %v24, %v90
    %v93 = vmul.f32 %v25, %v90
    %v94 = vmul.f32 %v26, %v90
    %v95 = vmul.f32 %v27, %v90
    %v96 = vmul.f32 %v28, %v90
    %v97 = vmul.f32 %v29, %v90
    %v98 = vmul.f32 %v30, %v90
    %v99 = vmul.f32 %v31, %v90
    %v100 = vmul.f32 %v32, %v90
    %v101 = vmul.f32 %v33, %v90
    %v102 = vmul.f32 %v34, %v90
    %v103 = vmul.f32 %v35, %v90
    %v104 = vmul.f32 %v36, %v90
    %v105 = vmul.f32 %v37, %v90
    %v106 = vmul.f32 %v38, %v90
    %v107 = vmul.f32 %v39, %v90
    %v108 = vmul.f32 %v40, %v90
    %v109 = vmul.f32 %v41, %v90
    %v110 = vmul.f32 %v42, %v90
    %v111 = vmul.f32 %v43, %v90
    %v112 = vmul.f32 %v44, %v90
    %v113 = vmul.f32 %v45, %v90
    %v114 = vmul.f32 %v46, %v90
    %v115 = vmul.f32 %v47, %v90
    %v116 = vmul.f32 %v48, %v90
    %v117 = vmul.f32 %v49, %v90
    %v118 = vmul.f32 %v50, %v90
    %v119 = vmul.f32 %v51, %v90
    %v120 = vmul.f32 %v52, %v90
    %v121 = vmul.f32 %v53, %v90
    %v122 = vmul.f32 %v54, %v90
    %v123 = vmul.f32 %v55, %v90
    %v124 = vmul.f32 %v56, %v90
    %v125 = vmul.f32 %v57, %v90
    %v126 = vmul.f32 %v58, %v90
    %v127 = vmul.f32 %v59, %v90
    %v128 = vmul.f32 %v60, %v90
    %v129 = vmul.f32 %v61, %v90
    %v130 = vmul.f32 %v62, %v90
    %v131 = vmul.f32 %v63, %v90
    %v132 = vmul.f32 %v64, %v90
    %v133 = vmul.f32 %v65, %v90
    %v134 = vmul.f32 %v66, %v90
    %v135 = vmul.f32 %v67, %v90
    %v136 = vmul.f32 %v68, %v90
    %v137 = vmul.f32 %v69, %v90
    %v138 = vmul.f32 %v70, %v90
    %v139 = vmul.f32 %v71, %v90
    %v140 = vmul.f32 %v72, %v90
    %v141 = vmul.f32 %v73, %v90
    %v142 = vmul.f32 %v74, %v90
    %v143 = vmul.f32 %v75, %v90
    %v144 = vmul.f32 %v76, %v90
    %v145 = vmul.f32 %v77, %v90
    %v146 = vmul.f32 %v78, %v90
    %v147 = vmul.f32 %v79, %v90
    %v148 = vmul.f32 %v80, %v90
    %v149 = vmul.f32 %v81, %v90
    %v150 = vmul.f32 %v82, %v90
    %v151 = vmul.f32 %v83, %v90
    %v152 = vmul.f32 %v84, %v90
    %v153 = vmul.f32 %v85, %v90
    %v154 = vmul.f32 %v86, %v90
    %v155 = vmul.f32 %v87, %v90
    %v156 = vld [vmem:[%s2] sm:$0x1]
    %v158 = vperm.slane %v156, 0
    %v160 = vadd.f32 %v92, %v158
    %v161 = vadd.f32 %v93, %v158
    %v162 = vadd.f32 %v94, %v158
    %v163 = vadd.f32 %v95, %v158
    %v164 = vadd.f32 %v96, %v158
    %v165 = vadd.f32 %v97, %v158
    %v166 = vadd.f32 %v98, %v158
    %v167 = vadd.f32 %v99, %v158
    %v168 = vadd.f32 %v100, %v158
    %v169 = vadd.f32 %v101, %v158
    %v170 = vadd.f32 %v102, %v158
    %v171 = vadd.f32 %v103, %v158
    %v172 = vadd.f32 %v104, %v158
    %v173 = vadd.f32 %v105, %v158
    %v174 = vadd.f32 %v106, %v158
    %v175 = vadd.f32 %v107, %v158
    %v176 = vadd.f32 %v108, %v158
    %v177 = vadd.f32 %v109, %v158
    %v178 = vadd.f32 %v110, %v158
    %v179 = vadd.f32 %v111, %v158
    %v180 = vadd.f32 %v112, %v158
    %v181 = vadd.f32 %v113, %v158
    %v182 = vadd.f32 %v114, %v158
    %v183 = vadd.f32 %v115, %v158
    %v184 = vadd.f32 %v116, %v158
    %v185 = vadd.f32 %v117, %v158
    %v186 = vadd.f32 %v118, %v158
    %v187 = vadd.f32 %v119, %v158
    %v188 = vadd.f32 %v120, %v158
    %v189 = vadd.f32 %v121, %v158
    %v190 = vadd.f32 %v122, %v158
    %v191 = vadd.f32 %v123, %v158
    %v192 = vadd.f32 %v124, %v158
    %v193 = vadd.f32 %v125, %v158
    %v194 = vadd.f32 %v126, %v158
    %v195 = vadd.f32 %v127, %v158
    %v196 = vadd.f32 %v128, %v158
    %v197 = vadd.f32 %v129, %v158
    %v198 = vadd.f32 %v130, %v158
    %v199 = vadd.f32 %v131, %v158
    %v200 = vadd.f32 %v132, %v158
    %v201 = vadd.f32 %v133, %v158
    %v202 = vadd.f32 %v134, %v158
    %v203 = vadd.f32 %v135, %v158
    %v204 = vadd.f32 %v136, %v158
    %v205 = vadd.f32 %v137, %v158
    %v206 = vadd.f32 %v138, %v158
    %v207 = vadd.f32 %v139, %v158
    %v208 = vadd.f32 %v140, %v158
    %v209 = vadd.f32 %v141, %v158
    %v210 = vadd.f32 %v142, %v158
    %v211 = vadd.f32 %v143, %v158
    %v212 = vadd.f32 %v144, %v158
    %v213 = vadd.f32 %v145, %v158
    %v214 = vadd.f32 %v146, %v158
    %v215 = vadd.f32 %v147, %v158
    %v216 = vadd.f32 %v148, %v158
    %v217 = vadd.f32 %v149, %v158
    %v218 = vadd.f32 %v150, %v158
    %v219 = vadd.f32 %v151, %v158
    %v220 = vadd.f32 %v152, %v158
    %v221 = vadd.f32 %v153, %v158
    %v222 = vadd.f32 %v154, %v158
    %v223 = vadd.f32 %v155, %v158
    %v224 = vld [vmem:[%s3] sm:$0xf]
    %v225 = vld [vmem:[%s3 + $0x4] sm:$0xf]
    %v226 = vld [vmem:[%s3 + $0x8] sm:$0xf]
    %v227 = vld [vmem:[%s3 + $0xc] sm:$0xf]
    %v228 = vld [vmem:[%s3 + $0x10] sm:$0xf]
    %v229 = vld [vmem:[%s3 + $0x14] sm:$0xf]
    %v230 = vld [vmem:[%s3 + $0x18] sm:$0xf]
    %v231 = vld [vmem:[%s3 + $0x1c] sm:$0xf]
    %v232 = vld [vmem:[%s3 + $0x20] sm:$0xf]
    %v233 = vld [vmem:[%s3 + $0x24] sm:$0xf]
    %v234 = vld [vmem:[%s3 + $0x28] sm:$0xf]
    %v235 = vld [vmem:[%s3 + $0x2c] sm:$0xf]
    %v236 = vld [vmem:[%s3 + $0x30] sm:$0xf]
    %v237 = vld [vmem:[%s3 + $0x34] sm:$0xf]
    %v238 = vld [vmem:[%s3 + $0x38] sm:$0xf]
    %v239 = vld [vmem:[%s3 + $0x3c] sm:$0xf]
    %v240 = vld [vmem:[%s3 + $0x40] sm:$0xf]
    %v241 = vld [vmem:[%s3 + $0x44] sm:$0xf]
    %v242 = vld [vmem:[%s3 + $0x48] sm:$0xf]
    %v243 = vld [vmem:[%s3 + $0x4c] sm:$0xf]
    %v244 = vld [vmem:[%s3 + $0x50] sm:$0xf]
    %v245 = vld [vmem:[%s3 + $0x54] sm:$0xf]
    %v246 = vld [vmem:[%s3 + $0x58] sm:$0xf]
    %v247 = vld [vmem:[%s3 + $0x5c] sm:$0xf]
    %v248 = vld [vmem:[%s3 + $0x60] sm:$0xf]
    %v249 = vld [vmem:[%s3 + $0x64] sm:$0xf]
    %v250 = vld [vmem:[%s3 + $0x68] sm:$0xf]
    %v251 = vld [vmem:[%s3 + $0x6c] sm:$0xf]
    %v252 = vld [vmem:[%s3 + $0x70] sm:$0xf]
    %v253 = vld [vmem:[%s3 + $0x74] sm:$0xf]
    %v254 = vld [vmem:[%s3 + $0x78] sm:$0xf]
    %v255 = vld [vmem:[%s3 + $0x7c] sm:$0xf]
    %v256 = vld [vmem:[%s3 + $0x80] sm:$0xf]
    %v257 = vld [vmem:[%s3 + $0x84] sm:$0xf]
    %v258 = vld [vmem:[%s3 + $0x88] sm:$0xf]
    %v259 = vld [vmem:[%s3 + $0x8c] sm:$0xf]
    %v260 = vld [vmem:[%s3 + $0x90] sm:$0xf]
    %v261 = vld [vmem:[%s3 + $0x94] sm:$0xf]
    %v262 = vld [vmem:[%s3 + $0x98] sm:$0xf]
    %v263 = vld [vmem:[%s3 + $0x9c] sm:$0xf]
    %v264 = vld [vmem:[%s3 + $0xa0] sm:$0xf]
    %v265 = vld [vmem:[%s3 + $0xa4] sm:$0xf]
    %v266 = vld [vmem:[%s3 + $0xa8] sm:$0xf]
    %v267 = vld [vmem:[%s3 + $0xac] sm:$0xf]
    %v268 = vld [vmem:[%s3 + $0xb0] sm:$0xf]
    %v269 = vld [vmem:[%s3 + $0xb4] sm:$0xf]
    %v270 = vld [vmem:[%s3 + $0xb8] sm:$0xf]
    %v271 = vld [vmem:[%s3 + $0xbc] sm:$0xf]
    %v272 = vld [vmem:[%s3 + $0xc0] sm:$0xf]
    %v273 = vld [vmem:[%s3 + $0xc4] sm:$0xf]
    %v274 = vld [vmem:[%s3 + $0xc8] sm:$0xf]
    %v275 = vld [vmem:[%s3 + $0xcc] sm:$0xf]
    %v276 = vld [vmem:[%s3 + $0xd0] sm:$0xf]
    %v277 = vld [vmem:[%s3 + $0xd4] sm:$0xf]
    %v278 = vld [vmem:[%s3 + $0xd8] sm:$0xf]
    %v279 = vld [vmem:[%s3 + $0xdc] sm:$0xf]
    %v280 = vld [vmem:[%s3 + $0xe0] sm:$0xf]
    %v281 = vld [vmem:[%s3 + $0xe4] sm:$0xf]
    %v282 = vld [vmem:[%s3 + $0xe8] sm:$0xf]
    %v283 = vld [vmem:[%s3 + $0xec] sm:$0xf]
    %v284 = vld [vmem:[%s3 + $0xf0] sm:$0xf]
    %v285 = vld [vmem:[%s3 + $0xf4] sm:$0xf]
    %v286 = vld [vmem:[%s3 + $0xf8] sm:$0xf]
    %v287 = vld [vmem:[%s3 + $0xfc] sm:$0xf]
    %v288 = vunpack.c.l.bf16 %v224
    %v289 = vunpack.c.l.bf16 %v225
    %v290 = vunpack.c.l.bf16 %v226
    %v291 = vunpack.c.l.bf16 %v227
    %v292 = vunpack.c.l.bf16 %v228
    %v293 = vunpack.c.l.bf16 %v229
    %v294 = vunpack.c.l.bf16 %v230
    %v295 = vunpack.c.l.bf16 %v231
    %v296 = vunpack.c.l.bf16 %v232
    %v297 = vunpack.c.l.bf16 %v233
    %v298 = vunpack.c.l.bf16 %v234
    %v299 = vunpack.c.l.bf16 %v235
    %v300 = vunpack.c.l.bf16 %v236
    %v301 = vunpack.c.l.bf16 %v237
    %v302 = vunpack.c.l.bf16 %v238
    %v303 = vunpack.c.l.bf16 %v239
    %v304 = vunpack.c.l.bf16 %v240
    %v305 = vunpack.c.l.bf16 %v241
    %v306 = vunpack.c.l.bf16 %v242
    %v307 = vunpack.c.l.bf16 %v243
    %v308 = vunpack.c.l.bf16 %v244
    %v309 = vunpack.c.l.bf16 %v245
    %v310 = vunpack.c.l.bf16 %v246
    %v311 = vunpack.c.l.bf16 %v247
    %v312 = vunpack.c.l.bf16 %v248
    %v313 = vunpack.c.l.bf16 %v249
    %v314 = vunpack.c.l.bf16 %v250
    %v315 = vunpack.c.l.bf16 %v251
    %v316 = vunpack.c.l.bf16 %v252
    %v317 = vunpack.c.l.bf16 %v253
    %v318 = vunpack.c.l.bf16 %v254
    %v319 = vunpack.c.l.bf16 %v255
    %v320 = vunpack.c.l.bf16 %v256
    %v321 = vunpack.c.l.bf16 %v257
    %v322 = vunpack.c.l.bf16 %v258
    %v323 = vunpack.c.l.bf16 %v259
    %v324 = vunpack.c.l.bf16 %v260
    %v325 = vunpack.c.l.bf16 %v261
    %v326 = vunpack.c.l.bf16 %v262
    %v327 = vunpack.c.l.bf16 %v263
    %v328 = vunpack.c.l.bf16 %v264
    %v329 = vunpack.c.l.bf16 %v265
    %v330 = vunpack.c.l.bf16 %v266
    %v331 = vunpack.c.l.bf16 %v267
    %v332 = vunpack.c.l.bf16 %v268
    %v333 = vunpack.c.l.bf16 %v269
    %v334 = vunpack.c.l.bf16 %v270
    %v335 = vunpack.c.l.bf16 %v271
    %v336 = vunpack.c.l.bf16 %v272
    %v337 = vunpack.c.l.bf16 %v273
    %v338 = vunpack.c.l.bf16 %v274
    %v339 = vunpack.c.l.bf16 %v275
    %v340 = vunpack.c.l.bf16 %v276
    %v341 = vunpack.c.l.bf16 %v277
    %v342 = vunpack.c.l.bf16 %v278
    %v343 = vunpack.c.l.bf16 %v279
    %v344 = vunpack.c.l.bf16 %v280
    %v345 = vunpack.c.l.bf16 %v281
    %v346 = vunpack.c.l.bf16 %v282
    %v347 = vunpack.c.l.bf16 %v283
    %v348 = vunpack.c.l.bf16 %v284
    %v349 = vunpack.c.l.bf16 %v285
    %v350 = vunpack.c.l.bf16 %v286
    %v351 = vunpack.c.l.bf16 %v287
    %v352 = vld [vmem:[%s4] sm:$0x1]
    %v354 = vperm.slane %v352, 0
    %v356 = vmul.f32 %v288, %v354
    %v357 = vmul.f32 %v289, %v354
    %v358 = vmul.f32 %v290, %v354
    %v359 = vmul.f32 %v291, %v354
    %v360 = vmul.f32 %v292, %v354
    %v361 = vmul.f32 %v293, %v354
    %v362 = vmul.f32 %v294, %v354
    %v363 = vmul.f32 %v295, %v354
    %v364 = vmul.f32 %v296, %v354
    %v365 = vmul.f32 %v297, %v354
    %v366 = vmul.f32 %v298, %v354
    %v367 = vmul.f32 %v299, %v354
    %v368 = vmul.f32 %v300, %v354
    %v369 = vmul.f32 %v301, %v354
    %v370 = vmul.f32 %v302, %v354
    %v371 = vmul.f32 %v303, %v354
    %v372 = vmul.f32 %v304, %v354
    %v373 = vmul.f32 %v305, %v354
    %v374 = vmul.f32 %v306, %v354
    %v375 = vmul.f32 %v307, %v354
    %v376 = vmul.f32 %v308, %v354
    %v377 = vmul.f32 %v309, %v354
    %v378 = vmul.f32 %v310, %v354
    %v379 = vmul.f32 %v311, %v354
    %v380 = vmul.f32 %v312, %v354
    %v381 = vmul.f32 %v313, %v354
    %v382 = vmul.f32 %v314, %v354
    %v383 = vmul.f32 %v315, %v354
    %v384 = vmul.f32 %v316, %v354
    %v385 = vmul.f32 %v317, %v354
    %v386 = vmul.f32 %v318, %v354
    %v387 = vmul.f32 %v319, %v354
    %v388 = vmul.f32 %v320, %v354
    %v389 = vmul.f32 %v321, %v354
    %v390 = vmul.f32 %v322, %v354
    %v391 = vmul.f32 %v323, %v354
    %v392 = vmul.f32 %v324, %v354
    %v393 = vmul.f32 %v325, %v354
    %v394 = vmul.f32 %v326, %v354
    %v395 = vmul.f32 %v327, %v354
    %v396 = vmul.f32 %v328, %v354
    %v397 = vmul.f32 %v329, %v354
    %v398 = vmul.f32 %v330, %v354
    %v399 = vmul.f32 %v331, %v354
    %v400 = vmul.f32 %v332, %v354
    %v401 = vmul.f32 %v333, %v354
    %v402 = vmul.f32 %v334, %v354
    %v403 = vmul.f32 %v335, %v354
    %v404 = vmul.f32 %v336, %v354
    %v405 = vmul.f32 %v337, %v354
    %v406 = vmul.f32 %v338, %v354
    %v407 = vmul.f32 %v339, %v354
    %v408 = vmul.f32 %v340, %v354
    %v409 = vmul.f32 %v341, %v354
    %v410 = vmul.f32 %v342, %v354
    %v411 = vmul.f32 %v343, %v354
    %v412 = vmul.f32 %v344, %v354
    %v413 = vmul.f32 %v345, %v354
    %v414 = vmul.f32 %v346, %v354
    %v415 = vmul.f32 %v347, %v354
    %v416 = vmul.f32 %v348, %v354
    %v417 = vmul.f32 %v349, %v354
    %v418 = vmul.f32 %v350, %v354
    %v419 = vmul.f32 %v351, %v354
    %v420 = vld [vmem:[%s5] sm:$0x1]
    %v422 = vperm.slane %v420, 0
    %v424 = vadd.f32 %v356, %v422
    %v425 = vadd.f32 %v357, %v422
    %v426 = vadd.f32 %v358, %v422
    %v427 = vadd.f32 %v359, %v422
    %v428 = vadd.f32 %v360, %v422
    %v429 = vadd.f32 %v361, %v422
    %v430 = vadd.f32 %v362, %v422
    %v431 = vadd.f32 %v363, %v422
    %v432 = vadd.f32 %v364, %v422
    %v433 = vadd.f32 %v365, %v422
    %v434 = vadd.f32 %v366, %v422
    %v435 = vadd.f32 %v367, %v422
    %v436 = vadd.f32 %v368, %v422
    %v437 = vadd.f32 %v369, %v422
    %v438 = vadd.f32 %v370, %v422
    %v439 = vadd.f32 %v371, %v422
    %v440 = vadd.f32 %v372, %v422
    %v441 = vadd.f32 %v373, %v422
    %v442 = vadd.f32 %v374, %v422
    %v443 = vadd.f32 %v375, %v422
    %v444 = vadd.f32 %v376, %v422
    %v445 = vadd.f32 %v377, %v422
    %v446 = vadd.f32 %v378, %v422
    %v447 = vadd.f32 %v379, %v422
    %v448 = vadd.f32 %v380, %v422
    %v449 = vadd.f32 %v381, %v422
    %v450 = vadd.f32 %v382, %v422
    %v451 = vadd.f32 %v383, %v422
    %v452 = vadd.f32 %v384, %v422
    %v453 = vadd.f32 %v385, %v422
    %v454 = vadd.f32 %v386, %v422
    %v455 = vadd.f32 %v387, %v422
    %v456 = vadd.f32 %v388, %v422
    %v457 = vadd.f32 %v389, %v422
    %v458 = vadd.f32 %v390, %v422
    %v459 = vadd.f32 %v391, %v422
    %v460 = vadd.f32 %v392, %v422
    %v461 = vadd.f32 %v393, %v422
    %v462 = vadd.f32 %v394, %v422
    %v463 = vadd.f32 %v395, %v422
    %v464 = vadd.f32 %v396, %v422
    %v465 = vadd.f32 %v397, %v422
    %v466 = vadd.f32 %v398, %v422
    %v467 = vadd.f32 %v399, %v422
    %v468 = vadd.f32 %v400, %v422
    %v469 = vadd.f32 %v401, %v422
    %v470 = vadd.f32 %v402, %v422
    %v471 = vadd.f32 %v403, %v422
    %v472 = vadd.f32 %v404, %v422
    %v473 = vadd.f32 %v405, %v422
    %v474 = vadd.f32 %v406, %v422
    %v475 = vadd.f32 %v407, %v422
    %v476 = vadd.f32 %v408, %v422
    %v477 = vadd.f32 %v409, %v422
    %v478 = vadd.f32 %v410, %v422
    %v479 = vadd.f32 %v411, %v422
    %v480 = vadd.f32 %v412, %v422
    %v481 = vadd.f32 %v413, %v422
    %v482 = vadd.f32 %v414, %v422
    %v483 = vadd.f32 %v415, %v422
    %v484 = vadd.f32 %v416, %v422
    %v485 = vadd.f32 %v417, %v422
    %v486 = vadd.f32 %v418, %v422
    %v487 = vadd.f32 %v419, %v422
    %v488 = vadd.f32 %v160, %v424
    %v489 = vadd.f32 %v161, %v425
    %v490 = vadd.f32 %v162, %v426
    %v491 = vadd.f32 %v163, %v427
    %v492 = vadd.f32 %v164, %v428
    %v493 = vadd.f32 %v165, %v429
    %v494 = vadd.f32 %v166, %v430
    %v495 = vadd.f32 %v167, %v431
    %v496 = vadd.f32 %v168, %v432
    %v497 = vadd.f32 %v169, %v433
    %v498 = vadd.f32 %v170, %v434
    %v499 = vadd.f32 %v171, %v435
    %v500 = vadd.f32 %v172, %v436
    %v501 = vadd.f32 %v173, %v437
    %v502 = vadd.f32 %v174, %v438
    %v503 = vadd.f32 %v175, %v439
    %v504 = vadd.f32 %v176, %v440
    %v505 = vadd.f32 %v177, %v441
    %v506 = vadd.f32 %v178, %v442
    %v507 = vadd.f32 %v179, %v443
    %v508 = vadd.f32 %v180, %v444
    %v509 = vadd.f32 %v181, %v445
    %v510 = vadd.f32 %v182, %v446
    %v511 = vadd.f32 %v183, %v447
    %v512 = vadd.f32 %v184, %v448
    %v513 = vadd.f32 %v185, %v449
    %v514 = vadd.f32 %v186, %v450
    %v515 = vadd.f32 %v187, %v451
    %v516 = vadd.f32 %v188, %v452
    %v517 = vadd.f32 %v189, %v453
    %v518 = vadd.f32 %v190, %v454
    %v519 = vadd.f32 %v191, %v455
    %v520 = vadd.f32 %v192, %v456
    %v521 = vadd.f32 %v193, %v457
    %v522 = vadd.f32 %v194, %v458
    %v523 = vadd.f32 %v195, %v459
    %v524 = vadd.f32 %v196, %v460
    %v525 = vadd.f32 %v197, %v461
    %v526 = vadd.f32 %v198, %v462
    %v527 = vadd.f32 %v199, %v463
    %v528 = vadd.f32 %v200, %v464
    %v529 = vadd.f32 %v201, %v465
    %v530 = vadd.f32 %v202, %v466
    %v531 = vadd.f32 %v203, %v467
    %v532 = vadd.f32 %v204, %v468
    %v533 = vadd.f32 %v205, %v469
    %v534 = vadd.f32 %v206, %v470
    %v535 = vadd.f32 %v207, %v471
    %v536 = vadd.f32 %v208, %v472
    %v537 = vadd.f32 %v209, %v473
    %v538 = vadd.f32 %v210, %v474
    %v539 = vadd.f32 %v211, %v475
    %v540 = vadd.f32 %v212, %v476
    %v541 = vadd.f32 %v213, %v477
    %v542 = vadd.f32 %v214, %v478
    %v543 = vadd.f32 %v215, %v479
    %v544 = vadd.f32 %v216, %v480
    %v545 = vadd.f32 %v217, %v481
    %v546 = vadd.f32 %v218, %v482
    %v547 = vadd.f32 %v219, %v483
    %v548 = vadd.f32 %v220, %v484
    %v549 = vadd.f32 %v221, %v485
    %v550 = vadd.f32 %v222, %v486
    %v551 = vadd.f32 %v223, %v487
    %v552 = vmax.f32 %v488, 0.0
    %v553 = vmax.f32 %v489, 0.0
    %v554 = vmax.f32 %v490, 0.0
    %v555 = vmax.f32 %v491, 0.0
    %v556 = vmax.f32 %v492, 0.0
    %v557 = vmax.f32 %v493, 0.0
    %v558 = vmax.f32 %v494, 0.0
    %v559 = vmax.f32 %v495, 0.0
    %v560 = vmax.f32 %v496, 0.0
    %v561 = vmax.f32 %v497, 0.0
    %v562 = vmax.f32 %v498, 0.0
    %v563 = vmax.f32 %v499, 0.0
    %v564 = vmax.f32 %v500, 0.0
    %v565 = vmax.f32 %v501, 0.0
    %v566 = vmax.f32 %v502, 0.0
    %v567 = vmax.f32 %v503, 0.0
    %v568 = vmax.f32 %v504, 0.0
    %v569 = vmax.f32 %v505, 0.0
    %v570 = vmax.f32 %v506, 0.0
    %v571 = vmax.f32 %v507, 0.0
    %v572 = vmax.f32 %v508, 0.0
    %v573 = vmax.f32 %v509, 0.0
    %v574 = vmax.f32 %v510, 0.0
    %v575 = vmax.f32 %v511, 0.0
    %v576 = vmax.f32 %v512, 0.0
    %v577 = vmax.f32 %v513, 0.0
    %v578 = vmax.f32 %v514, 0.0
    %v579 = vmax.f32 %v515, 0.0
    %v580 = vmax.f32 %v516, 0.0
    %v581 = vmax.f32 %v517, 0.0
    %v582 = vmax.f32 %v518, 0.0
    %v583 = vmax.f32 %v519, 0.0
    %v584 = vmax.f32 %v520, 0.0
    %v585 = vmax.f32 %v521, 0.0
    %v586 = vmax.f32 %v522, 0.0
    %v587 = vmax.f32 %v523, 0.0
    %v588 = vmax.f32 %v524, 0.0
    %v589 = vmax.f32 %v525, 0.0
    %v590 = vmax.f32 %v526, 0.0
    %v591 = vmax.f32 %v527, 0.0
    %v592 = vmax.f32 %v528, 0.0
    %v593 = vmax.f32 %v529, 0.0
    %v594 = vmax.f32 %v530, 0.0
    %v595 = vmax.f32 %v531, 0.0
    %v596 = vmax.f32 %v532, 0.0
    %v597 = vmax.f32 %v533, 0.0
    %v598 = vmax.f32 %v534, 0.0
    %v599 = vmax.f32 %v535, 0.0
    %v600 = vmax.f32 %v536, 0.0
    %v601 = vmax.f32 %v537, 0.0
    %v602 = vmax.f32 %v538, 0.0
    %v603 = vmax.f32 %v539, 0.0
    %v604 = vmax.f32 %v540, 0.0
    %v605 = vmax.f32 %v541, 0.0
    %v606 = vmax.f32 %v542, 0.0
    %v607 = vmax.f32 %v543, 0.0
    %v608 = vmax.f32 %v544, 0.0
    %v609 = vmax.f32 %v545, 0.0
    %v610 = vmax.f32 %v546, 0.0
    %v611 = vmax.f32 %v547, 0.0
    %v612 = vmax.f32 %v548, 0.0
    %v613 = vmax.f32 %v549, 0.0
    %v614 = vmax.f32 %v550, 0.0
    %v615 = vmax.f32 %v551, 0.0
    %616 = vst [vmem:[#allocation2] sm:$0xff] %v552
    %617 = vst [vmem:[#allocation2 + $0x8] sm:$0xff] %v553
    %618 = vst [vmem:[#allocation2 + $0x10] sm:$0xff] %v554
    %619 = vst [vmem:[#allocation2 + $0x18] sm:$0xff] %v555
    %620 = vst [vmem:[#allocation2 + $0x20] sm:$0xff] %v556
    %621 = vst [vmem:[#allocation2 + $0x28] sm:$0xff] %v557
    %622 = vst [vmem:[#allocation2 + $0x30] sm:$0xff] %v558
    %623 = vst [vmem:[#allocation2 + $0x38] sm:$0xff] %v559
    %624 = vst [vmem:[#allocation2 + $0x40] sm:$0xff] %v560
    %625 = vst [vmem:[#allocation2 + $0x48] sm:$0xff] %v561
    %626 = vst [vmem:[#allocation2 + $0x50] sm:$0xff] %v562
    %627 = vst [vmem:[#allocation2 + $0x58] sm:$0xff] %v563
    %628 = vst [vmem:[#allocation2 + $0x60] sm:$0xff] %v564
    %629 = vst [vmem:[#allocation2 + $0x68] sm:$0xff] %v565
    %630 = vst [vmem:[#allocation2 + $0x70] sm:$0xff] %v566
    %631 = vst [vmem:[#allocation2 + $0x78] sm:$0xff] %v567
    %632 = vst [vmem:[#allocation2 + $0x80] sm:$0xff] %v568
    %633 = vst [vmem:[#allocation2 + $0x88] sm:$0xff] %v569
    %634 = vst [vmem:[#allocation2 + $0x90] sm:$0xff] %v570
    %635 = vst [vmem:[#allocation2 + $0x98] sm:$0xff] %v571
    %636 = vst [vmem:[#allocation2 + $0xa0] sm:$0xff] %v572
    %637 = vst [vmem:[#allocation2 + $0xa8] sm:$0xff] %v573
    %638 = vst [vmem:[#allocation2 + $0xb0] sm:$0xff] %v574
    %639 = vst [vmem:[#allocation2 + $0xb8] sm:$0xff] %v575
    %640 = vst [vmem:[#allocation2 + $0xc0] sm:$0xff] %v576
    %641 = vst [vmem:[#allocation2 + $0xc8] sm:$0xff] %v577
    %642 = vst [vmem:[#allocation2 + $0xd0] sm:$0xff] %v578
    %643 = vst [vmem:[#allocation2 + $0xd8] sm:$0xff] %v579
    %644 = vst [vmem:[#allocation2 + $0xe0] sm:$0xff] %v580
    %645 = vst [vmem:[#allocation2 + $0xe8] sm:$0xff] %v581
    %646 = vst [vmem:[#allocation2 + $0xf0] sm:$0xff] %v582
    %647 = vst [vmem:[#allocation2 + $0xf8] sm:$0xff] %v583
    %648 = vst [vmem:[#allocation2 + $0x100] sm:$0xff] %v584
    %649 = vst [vmem:[#allocation2 + $0x108] sm:$0xff] %v585
    %650 = vst [vmem:[#allocation2 + $0x110] sm:$0xff] %v586
    %651 = vst [vmem:[#allocation2 + $0x118] sm:$0xff] %v587
    %652 = vst [vmem:[#allocation2 + $0x120] sm:$0xff] %v588
    %653 = vst [vmem:[#allocation2 + $0x128] sm:$0xff] %v589
    %654 = vst [vmem:[#allocation2 + $0x130] sm:$0xff] %v590
    %655 = vst [vmem:[#allocation2 + $0x138] sm:$0xff] %v591
    %656 = vst [vmem:[#allocation2 + $0x140] sm:$0xff] %v592
    %657 = vst [vmem:[#allocation2 + $0x148] sm:$0xff] %v593
    %658 = vst [vmem:[#allocation2 + $0x150] sm:$0xff] %v594
    %659 = vst [vmem:[#allocation2 + $0x158] sm:$0xff] %v595
    %660 = vst [vmem:[#allocation2 + $0x160] sm:$0xff] %v596
    %661 = vst [vmem:[#allocation2 + $0x168] sm:$0xff] %v597
    %662 = vst [vmem:[#allocation2 + $0x170] sm:$0xff] %v598
    %663 = vst [vmem:[#allocation2 + $0x178] sm:$0xff] %v599
    %664 = vst [vmem:[#allocation2 + $0x180] sm:$0xff] %v600
    %665 = vst [vmem:[#allocation2 + $0x188] sm:$0xff] %v601
    %666 = vst [vmem:[#allocation2 + $0x190] sm:$0xff] %v602
    %667 = vst [vmem:[#allocation2 + $0x198] sm:$0xff] %v603
    %668 = vst [vmem:[#allocation2 + $0x1a0] sm:$0xff] %v604
    %669 = vst [vmem:[#allocation2 + $0x1a8] sm:$0xff] %v605
    %670 = vst [vmem:[#allocation2 + $0x1b0] sm:$0xff] %v606
    %671 = vst [vmem:[#allocation2 + $0x1b8] sm:$0xff] %v607
    %672 = vst [vmem:[#allocation2 + $0x1c0] sm:$0xff] %v608
    %673 = vst [vmem:[#allocation2 + $0x1c8] sm:$0xff] %v609
    %674 = vst [vmem:[#allocation2 + $0x1d0] sm:$0xff] %v610
    %675 = vst [vmem:[#allocation2 + $0x1d8] sm:$0xff] %v611
    %676 = vst [vmem:[#allocation2 + $0x1e0] sm:$0xff] %v612
    %677 = vst [vmem:[#allocation2 + $0x1e8] sm:$0xff] %v613
    %678 = vst [vmem:[#allocation2 + $0x1f0] sm:$0xff] %v614
    %679 = vst [vmem:[#allocation2 + $0x1f8] sm:$0xff] %v615
    // Predicated region
    $region26: #{bottleneck_transformer_forward.7} parent=1 // pred_check
      _
    $region27: #{bottleneck_transformer_forward.7} parent=1 // pred_check_branch
      %681 = sbr.rel (0) target = $region29
    $region28: #{bottleneck_transformer_forward.7} parent=1 // pred_region
      %683 = vsyncadd [#allocation3], 0
      %s684 = sshll.u32 [#allocation2], 4
      %s685 = int_to_ptr.vmem [resolvable:$true] %s684
      %s686 = sshll.u32 %s6, 4
      %s687 = int_to_ptr.hbm [resolvable:$true] %s686
      %692 = dma.vmem_to_hbm [thread:$0]  %s685, 8192, %s687, [#allocation3], 128, 128, 8
    $region29: #{bottleneck_transformer_forward.7} parent=1 // pred_fallthru
      _
    // Predicated region
    $region30: #{bottleneck_transformer_forward.7} parent=1 // pred_check
      _
    $region31: #{bottleneck_transformer_forward.7} parent=1 // pred_check_branch
      %694 = sbr.rel (0) target = $region33
    $region32: #{bottleneck_transformer_forward.7} parent=1 // pred_region
      %696 = dma.done [#allocation3], 8192
    $region33: #{bottleneck_transformer_forward.7} parent=1 // pred_fallthru
      _
    %697 = vsyncpa [#allocation3], 1

// kernel: bottleneck_transformer_forward.5
$region0: #{bottleneck_transformer_forward.5}
  #allocation0 [shape = 'u32[]', space=smem, size = 0x4, offset = 0x4, fixed_abs, tag = 'smem constant byte address 0x4 - core index']
  #allocation1 [shape = 'u32[72,128]{1,0:T(1,128)}', space=vmem, size = 0x9000, scoped, tag = 'internal scratch']
  %s0 = inlined_call_operand.vmem [shape: bf16[512,32], index: 0, kind: input, shape index: {}]
  %s1 = inlined_call_operand.vmem [shape: f32[1,32], index: 1, kind: input, shape index: {}]
  %s2 = inlined_call_operand.vmem [shape: f32[1,32], index: 2, kind: input, shape index: {}]
  %s3 = inlined_call_operand.vmem [shape: bf16[32,96], index: 3, kind: input, shape index: {}]
  %s4 = inlined_call_operand.vmem [shape: f32[1,96], index: 4, kind: input, shape index: {}]
  %s5 = inlined_call_operand.vmem [shape: bf16[256,32], index: 5, kind: input, shape index: {}]
  %s6 = inlined_call_operand.vmem [shape: bf16[512,32], index: 6, kind: output, shape index: {0}]
  %s7 = inlined_call_operand.vmem [shape: f32[2,1,32], index: 7, kind: output, shape index: {1}]
  %s8 = inlined_call_operand.vmem [shape: f32[2,1,32], index: 8, kind: output, shape index: {2}]
  %9 = xla_tuple %s6, %s7, %s8
  %s10 = sld [smem:[#allocation0]]
  $region73: #{bottleneck_transformer_forward.5} parent=0
    _
  %s12 = ssub.s32 1, %s10
  %s13 = scalar_select 0, %s12, %s10
  loop: start=0, step=1, limit=4
  $region2: #{bottleneck_transformer_forward.5} parent=0 // loop_pre_header
    _
  $region3: #{bottleneck_transformer_forward.5} parent=0 // loop_header
    %s15 = sphi 0, %s19
    %p16 = scmp.ge.s32.totalorder %s15, 4
    %s25 = sphi 0, %s27
    %s28 = sphi 0, %s25
    %s29 = sphi 0, %s28
    %s45 = sphi 0, %s29
    %s49 = sphi 0, %s49
    %s51 = sphi 0, %s49
    %s52 = sphi 0, %s51
    %s66 = sphi 0, %s52
    %s70 = sphi 0, %s70
    %s72 = sphi 0, %s70
    %s73 = sphi 0, %s72
    %s87 = sphi 0, %s73
    %s91 = sphi 0, %s91
    %s93 = sphi 0, %s91
    %s94 = sphi 0, %s93
    %s108 = sphi 0, %s94
    %s112 = sphi 0, %s112
    %s114 = sphi 0, %s112
    %s115 = sphi 0, %s114
    %s129 = sphi 0, %s115
    %s133 = sphi 0, %s133
    %s135 = sphi 0, %s133
    %s136 = sphi 0, %s135
    %s150 = sphi 0, %s136
    %s156 = sphi 0, %s158
    %s159 = sphi 0, %s156
    %s160 = sphi 0, %s159
    %s176 = sphi 0, %s160
    %s182 = sphi 0, %s184
    %s185 = sphi 0, %s182
    %s186 = sphi 0, %s185
    %s202 = sphi 0, %s186
    %s208 = sphi 0, %s210
    %s211 = sphi 0, %s208
    %s212 = sphi 0, %s211
    %s228 = sphi 0, %s212
  $region4: #{bottleneck_transformer_forward.5} parent=0 // loop_header_branch
    %18 = sbr.rel (%p16) target = $region8
  $region5: #{bottleneck_transformer_forward.5} parent=0 // loop_body
    %s20 = ssub.s32 %s15, 1
    %s21 = ssub.s32 %s15, 2
    %s22 = sadd.s32 %s15, 1
    %s23 = ssub.s32 %s15, %s22
    %p24 = scmp.eq.s32.totalorder %s23, 0
    %s26 = sadd.s32 %s25, 1
    %s27 = scalar_select %p24, %s25, %s26
    %p30 = pneg %p24
    %p31 = scmp.eq.s32.totalorder %s15, 1
    %p32 = por %p30, %p31
    %p33 = scmp.ne.s32.totalorder %s25, %s28
    %p34 = scmp.eq.s32.totalorder %s15, 0
    %p35 = por %p33, %p34
    %p36 = scmp.ne.s32.totalorder %s25, %s28
    %p37 = scmp.eq.s32.totalorder %s20, 1
    %p38 = por %p36, %p37
    %p39 = scmp.ne.s32.totalorder %s28, %s29
    %p40 = scmp.eq.s32.totalorder %s20, 0
    %p41 = por %p39, %p40
    %p42 = scmp.ne.s32.totalorder %s28, %s29
    %p43 = scmp.eq.s32.totalorder %s21, 1
    %p44 = por %p42, %p43
    %p46 = scmp.ne.s32.totalorder %s29, %s45
    %p47 = scmp.eq.s32.totalorder %s21, 0
    %p48 = por %p46, %p47
    %s50 = sadd.s32 %s49, 1
    %p53 = scmp.eq.s32.totalorder %s15, 1
    %p54 = scmp.ne.s32.totalorder %s49, %s51
    %p55 = scmp.eq.s32.totalorder %s15, 0
    %p56 = por %p54, %p55
    %p57 = scmp.ne.s32.totalorder %s49, %s51
    %p58 = scmp.eq.s32.totalorder %s20, 1
    %p59 = por %p57, %p58
    %p60 = scmp.ne.s32.totalorder %s51, %s52
    %p61 = scmp.eq.s32.totalorder %s20, 0
    %p62 = por %p60, %p61
    %p63 = scmp.ne.s32.totalorder %s51, %s52
    %p64 = scmp.eq.s32.totalorder %s21, 1
    %p65 = por %p63, %p64
    %p67 = scmp.ne.s32.totalorder %s52, %s66
    %p68 = scmp.eq.s32.totalorder %s21, 0
    %p69 = por %p67, %p68
    %s71 = sadd.s32 %s70, 1
    %p74 = scmp.eq.s32.totalorder %s15, 1
    %p75 = scmp.ne.s32.totalorder %s70, %s72
    %p76 = scmp.eq.s32.totalorder %s15, 0
    %p77 = por %p75, %p76
    %p78 = scmp.ne.s32.totalorder %s70, %s72
    %p79 = scmp.eq.s32.totalorder %s20, 1
    %p80 = por %p78, %p79
    %p81 = scmp.ne.s32.totalorder %s72, %s73
    %p82 = scmp.eq.s32.totalorder %s20, 0
    %p83 = por %p81, %p82
    %p84 = scmp.ne.s32.totalorder %s72, %s73
    %p85 = scmp.eq.s32.totalorder %s21, 1
    %p86 = por %p84, %p85
    %p88 = scmp.ne.s32.totalorder %s73, %s87
    %p89 = scmp.eq.s32.totalorder %s21, 0
    %p90 = por %p88, %p89
    %s92 = sadd.s32 %s91, 1
    %p95 = scmp.eq.s32.totalorder %s15, 1
    %p96 = scmp.ne.s32.totalorder %s91, %s93
    %p97 = scmp.eq.s32.totalorder %s15, 0
    %p98 = por %p96, %p97
    %p99 = scmp.ne.s32.totalorder %s91, %s93
    %p100 = scmp.eq.s32.totalorder %s20, 1
    %p101 = por %p99, %p100
    %p102 = scmp.ne.s32.totalorder %s93, %s94
    %p103 = scmp.eq.s32.totalorder %s20, 0
    %p104 = por %p102, %p103
    %p105 = scmp.ne.s32.totalorder %s93, %s94
    %p106 = scmp.eq.s32.totalorder %s21, 1
    %p107 = por %p105, %p106
    %p109 = scmp.ne.s32.totalorder %s94, %s108
    %p110 = scmp.eq.s32.totalorder %s21, 0
    %p111 = por %p109, %p110
    %s113 = sadd.s32 %s112, 1
    %p116 = scmp.eq.s32.totalorder %s15, 1
    %p117 = scmp.ne.s32.totalorder %s112, %s114
    %p118 = scmp.eq.s32.totalorder %s15, 0
    %p119 = por %p117, %p118
    %p120 = scmp.ne.s32.totalorder %s112, %s114
    %p121 = scmp.eq.s32.totalorder %s20, 1
    %p122 = por %p120, %p121
    %p123 = scmp.ne.s32.totalorder %s114, %s115
    %p124 = scmp.eq.s32.totalorder %s20, 0
    %p125 = por %p123, %p124
    %p126 = scmp.ne.s32.totalorder %s114, %s115
    %p127 = scmp.eq.s32.totalorder %s21, 1
    %p128 = por %p126, %p127
    %p130 = scmp.ne.s32.totalorder %s115, %s129
    %p131 = scmp.eq.s32.totalorder %s21, 0
    %p132 = por %p130, %p131
    %s134 = sadd.s32 %s133, 1
    %p137 = scmp.eq.s32.totalorder %s15, 1
    %p138 = scmp.ne.s32.totalorder %s133, %s135
    %p139 = scmp.eq.s32.totalorder %s15, 0
    %p140 = por %p138, %p139
    %p141 = scmp.ne.s32.totalorder %s133, %s135
    %p142 = scmp.eq.s32.totalorder %s20, 1
    %p143 = por %p141, %p142
    %p144 = scmp.ne.s32.totalorder %s135, %s136
    %p145 = scmp.eq.s32.totalorder %s20, 0
    %p146 = por %p144, %p145
    %p147 = scmp.ne.s32.totalorder %s135, %s136
    %p148 = scmp.eq.s32.totalorder %s21, 1
    %p149 = por %p147, %p148
    %p151 = scmp.ne.s32.totalorder %s136, %s150
    %p152 = scmp.eq.s32.totalorder %s21, 0
    %p153 = por %p151, %p152
    %s154 = ssub.s32 %s15, %s22
    %p155 = scmp.eq.s32.totalorder %s154, 0
    %s157 = sadd.s32 %s156, 1
    %s158 = scalar_select %p155, %s156, %s157
    %p161 = pneg %p155
    %p162 = scmp.eq.s32.totalorder %s15, 1
    %p163 = por %p161, %p162
    %p164 = scmp.ne.s32.totalorder %s156, %s159
    %p165 = scmp.eq.s32.totalorder %s15, 0
    %p166 = por %p164, %p165
    %p167 = scmp.ne.s32.totalorder %s156, %s159
    %p168 = scmp.eq.s32.totalorder %s20, 1
    %p169 = por %p167, %p168
    %p170 = scmp.ne.s32.totalorder %s159, %s160
    %p171 = scmp.eq.s32.totalorder %s20, 0
    %p172 = por %p170, %p171
    %p173 = scmp.ne.s32.totalorder %s159, %s160
    %p174 = scmp.eq.s32.totalorder %s21, 1
    %p175 = por %p173, %p174
    %p177 = scmp.ne.s32.totalorder %s160, %s176
    %p178 = scmp.eq.s32.totalorder %s21, 0
    %p179 = por %p177, %p178
    %s180 = ssub.s32 %s15, %s22
    %p181 = scmp.eq.s32.totalorder %s180, 0
    %s183 = sadd.s32 %s182, 1
    %s184 = scalar_select %p181, %s182, %s183
    %p187 = pneg %p181
    %p188 = scmp.eq.s32.totalorder %s15, 1
    %p189 = por %p187, %p188
    %p190 = scmp.ne.s32.totalorder %s182, %s185
    %p191 = scmp.eq.s32.totalorder %s15, 0
    %p192 = por %p190, %p191
    %p193 = scmp.ne.s32.totalorder %s182, %s185
    %p194 = scmp.eq.s32.totalorder %s20, 1
    %p195 = por %p193, %p194
    %p196 = scmp.ne.s32.totalorder %s185, %s186
    %p197 = scmp.eq.s32.totalorder %s20, 0
    %p198 = por %p196, %p197
    %p199 = scmp.ne.s32.totalorder %s185, %s186
    %p200 = scmp.eq.s32.totalorder %s21, 1
    %p201 = por %p199, %p200
    %p203 = scmp.ne.s32.totalorder %s186, %s202
    %p204 = scmp.eq.s32.totalorder %s21, 0
    %p205 = por %p203, %p204
    %s206 = ssub.s32 %s15, %s22
    %p207 = scmp.eq.s32.totalorder %s206, 0
    %s209 = sadd.s32 %s208, 1
    %s210 = scalar_select %p207, %s208, %s209
    %p213 = pneg %p207
    %p214 = scmp.eq.s32.totalorder %s15, 1
    %p215 = por %p213, %p214
    %p216 = scmp.ne.s32.totalorder %s208, %s211
    %p217 = scmp.eq.s32.totalorder %s15, 0
    %p218 = por %p216, %p217
    %p219 = scmp.ne.s32.totalorder %s208, %s211
    %p220 = scmp.eq.s32.totalorder %s20, 1
    %p221 = por %p219, %p220
    %p222 = scmp.ne.s32.totalorder %s211, %s212
    %p223 = scmp.eq.s32.totalorder %s20, 0
    %p224 = por %p222, %p223
    %p225 = scmp.ne.s32.totalorder %s211, %s212
    %p226 = scmp.eq.s32.totalorder %s21, 1
    %p227 = por %p225, %p226
    %p229 = scmp.ne.s32.totalorder %s212, %s228
    %p230 = scmp.eq.s32.totalorder %s21, 0
    %p231 = por %p229, %p230
    %p232 = scmp.le.s32.totalorder 1, %s15
    %p233 = scmp.lt.s32.totalorder %s15, 3
    %p234 = pnand %p232, %p233
    %p235 = pneg %p234
    // Predicated region
    $region9: #{bottleneck_transformer_forward.5} parent=5 // pred_check
      _
    $region10: #{bottleneck_transformer_forward.5} parent=5 // pred_check_branch
      %237 = sbr.rel (%p234) target = $region12
    $region11: #{bottleneck_transformer_forward.5} parent=5 // pred_region
      %s238 = ssub.s32 %s15, 1
      // Predicated region
      $region13: #{bottleneck_transformer_forward.5} parent=11 // pred_check
        %p239 = pneg %p62
      $region14: #{bottleneck_transformer_forward.5} parent=11 // pred_check_branch
        %241 = sbr.rel (%p239) target = $region16
      $region15: #{bottleneck_transformer_forward.5} parent=11 // pred_region
        _
      $region16: #{bottleneck_transformer_forward.5} parent=11 // pred_fallthru
        _
      // Predicated region
      $region17: #{bottleneck_transformer_forward.5} parent=11 // pred_check
        %p242 = pneg %p83
      $region18: #{bottleneck_transformer_forward.5} parent=11 // pred_check_branch
        %244 = sbr.rel (%p242) target = $region20
      $region19: #{bottleneck_transformer_forward.5} parent=11 // pred_region
        _
      $region20: #{bottleneck_transformer_forward.5} parent=11 // pred_fallthru
        _
      // Predicated region
      $region21: #{bottleneck_transformer_forward.5} parent=11 // pred_check
        %p245 = pneg %p104
      $region22: #{bottleneck_transformer_forward.5} parent=11 // pred_check_branch
        %247 = sbr.rel (%p245) target = $region24
      $region23: #{bottleneck_transformer_forward.5} parent=11 // pred_region
        _
      $region24: #{bottleneck_transformer_forward.5} parent=11 // pred_fallthru
        _
      // Predicated region
      $region25: #{bottleneck_transformer_forward.5} parent=11 // pred_check
        %p248 = pneg %p125
      $region26: #{bottleneck_transformer_forward.5} parent=11 // pred_check_branch
        %250 = sbr.rel (%p248) target = $region28
      $region27: #{bottleneck_transformer_forward.5} parent=11 // pred_region
        _
      $region28: #{bottleneck_transformer_forward.5} parent=11 // pred_fallthru
        _
      // Predicated region
      $region29: #{bottleneck_transformer_forward.5} parent=11 // pred_check
        %p251 = pneg %p146
      $region30: #{bottleneck_transformer_forward.5} parent=11 // pred_check_branch
        %253 = sbr.rel (%p251) target = $region32
      $region31: #{bottleneck_transformer_forward.5} parent=11 // pred_region
        _
      $region32: #{bottleneck_transformer_forward.5} parent=11 // pred_fallthru
        _
    $region12: #{bottleneck_transformer_forward.5} parent=5 // pred_fallthru
      _
    %p254 = scmp.lt.s32.totalorder %s15, 2
    // Predicated region
    $region33: #{bottleneck_transformer_forward.5} parent=5 // pred_check
      %p255 = pneg %p254
    $region34: #{bottleneck_transformer_forward.5} parent=5 // pred_check_branch
      %257 = sbr.rel (%p255) target = $region36
    $region35: #{bottleneck_transformer_forward.5} parent=5 // pred_region
      // Predicated region
      $region37: #{bottleneck_transformer_forward.5} parent=35 // pred_check
        %p258 = pneg %p35
      $region38: #{bottleneck_transformer_forward.5} parent=35 // pred_check_branch
        %260 = sbr.rel (%p258) target = $region40
      $region39: #{bottleneck_transformer_forward.5} parent=35 // pred_region
        %s261 = smul.u32 32, %s15
        %p262 = scmp.lt.s32.totalorder %s261, 63
        %s263 = scalar_select %p262, %s261, 63
        %s264 = smul.addr %s263, 4
        %s265 = scalar_lea.vmem %s0, %s264
        %s266 = smul.u32 32, %s15
      $region40: #{bottleneck_transformer_forward.5} parent=35 // pred_fallthru
        _
    $region36: #{bottleneck_transformer_forward.5} parent=5 // pred_fallthru
      _
    %p267 = scmp.le.s32.totalorder 1, %s15
    %p268 = scmp.lt.s32.totalorder %s15, 3
    %p269 = pnand %p267, %p268
    %p270 = pneg %p269
    // Predicated region
    $region41: #{bottleneck_transformer_forward.5} parent=5 // pred_check
      _
    $region42: #{bottleneck_transformer_forward.5} parent=5 // pred_check_branch
      %272 = sbr.rel (%p269) target = $region44
    $region43: #{bottleneck_transformer_forward.5} parent=5 // pred_region
      %s273 = ssub.s32 %s15, 1
      %s274 = smul.u32 32, %s20
      %p275 = scmp.lt.s32.totalorder %s274, 63
      %s276 = scalar_select %p275, %s274, 63
      %s277 = smul.addr %s276, 4
      %s278 = scalar_lea.vmem %s0, %s277
      %p279 = pneg %p41
      %p280 = pneg %p38
      %p281 = pneg %p62
      %p282 = pneg %p59
      %p283 = pneg %p83
      %p284 = pneg %p80
      %p285 = pneg %p104
      %p286 = pneg %p101
      %p287 = pneg %p125
      %p288 = pneg %p122
      %p289 = pneg %p146
      %p290 = pneg %p143
      %p291 = pneg %p172
      %p292 = pneg %p169
      %s293 = smul.u32 32, %s20
      %p294 = scmp.lt.s32.totalorder %s293, 63
      %s295 = scalar_select %p294, %s293, 63
      %s296 = smul.addr %s295, 4
      %s297 = scalar_lea.vmem %s6, %s296
      %p298 = pneg %p198
      %p299 = pneg %p195
      %p300 = scmp.lt.s32.totalorder %s20, 1
      %s301 = scalar_select %p300, %s20, 1
      %s302 = scalar_lea.vmem %s7, %s301
      %p303 = pneg %p224
      %p304 = pneg %p221
      %p305 = scmp.lt.s32.totalorder %s20, 1
      %s306 = scalar_select %p305, %s20, 1
      %s307 = scalar_lea.vmem %s8, %s306
      %s308 = smul.u32 32, %s20
      %p309 = scmp.lt.s32.totalorder %s308, 63
      %s310 = scalar_select %p309, %s308, 63
      %s311 = smul.addr %s310, 4
      %s312 = scalar_lea.vmem %s0, %s311
      %s313 = smul.u32 32, %s20
      %s314 = smul.u32 32, %s20
      %p315 = scmp.lt.s32.totalorder %s314, 63
      %s316 = scalar_select %p315, %s314, 63
      %s317 = smul.addr %s316, 4
      %s318 = scalar_lea.vmem %s6, %s317
      %s319 = smul.u32 32, %s20
      %p320 = scmp.lt.s32.totalorder %s20, 1
      %s321 = scalar_select %p320, %s20, 1
      %s322 = scalar_lea.vmem %s7, %s321
      %p323 = scmp.lt.s32.totalorder %s20, 1
      %s324 = scalar_select %p323, %s20, 1
      %s325 = scalar_lea.vmem %s8, %s324
      %v327 = vld [vmem:[%s312] sm:$0xf]
      %v328 = vld [vmem:[%s312 + $0x4] sm:$0xf]
      %v329 = vld [vmem:[%s312 + $0x8] sm:$0xf]
      %v330 = vld [vmem:[%s312 + $0xc] sm:$0xf]
      %v331 = vld [vmem:[%s312 + $0x10] sm:$0xf]
      %v332 = vld [vmem:[%s312 + $0x14] sm:$0xf]
      %v333 = vld [vmem:[%s312 + $0x18] sm:$0xf]
      %v334 = vld [vmem:[%s312 + $0x1c] sm:$0xf]
      %v335 = vld [vmem:[%s312 + $0x20] sm:$0xf]
      %v336 = vld [vmem:[%s312 + $0x24] sm:$0xf]
      %v337 = vld [vmem:[%s312 + $0x28] sm:$0xf]
      %v338 = vld [vmem:[%s312 + $0x2c] sm:$0xf]
      %v339 = vld [vmem:[%s312 + $0x30] sm:$0xf]
      %v340 = vld [vmem:[%s312 + $0x34] sm:$0xf]
      %v341 = vld [vmem:[%s312 + $0x38] sm:$0xf]
      %v342 = vld [vmem:[%s312 + $0x3c] sm:$0xf]
      %v343 = vld [vmem:[%s312 + $0x40] sm:$0xf]
      %v344 = vld [vmem:[%s312 + $0x44] sm:$0xf]
      %v345 = vld [vmem:[%s312 + $0x48] sm:$0xf]
      %v346 = vld [vmem:[%s312 + $0x4c] sm:$0xf]
      %v347 = vld [vmem:[%s312 + $0x50] sm:$0xf]
      %v348 = vld [vmem:[%s312 + $0x54] sm:$0xf]
      %v349 = vld [vmem:[%s312 + $0x58] sm:$0xf]
      %v350 = vld [vmem:[%s312 + $0x5c] sm:$0xf]
      %v351 = vld [vmem:[%s312 + $0x60] sm:$0xf]
      %v352 = vld [vmem:[%s312 + $0x64] sm:$0xf]
      %v353 = vld [vmem:[%s312 + $0x68] sm:$0xf]
      %v354 = vld [vmem:[%s312 + $0x6c] sm:$0xf]
      %v355 = vld [vmem:[%s312 + $0x70] sm:$0xf]
      %v356 = vld [vmem:[%s312 + $0x74] sm:$0xf]
      %v357 = vld [vmem:[%s312 + $0x78] sm:$0xf]
      %v358 = vld [vmem:[%s312 + $0x7c] sm:$0xf]
      %v359 = vunpack.c.l.bf16 %v327
      %v360 = vunpack.c.l.bf16 %v328
      %v361 = vunpack.c.l.bf16 %v329
      %v362 = vunpack.c.l.bf16 %v330
      %v363 = vunpack.c.l.bf16 %v331
      %v364 = vunpack.c.l.bf16 %v332
      %v365 = vunpack.c.l.bf16 %v333
      %v366 = vunpack.c.l.bf16 %v334
      %v367 = vunpack.c.l.bf16 %v335
      %v368 = vunpack.c.l.bf16 %v336
      %v369 = vunpack.c.l.bf16 %v337
      %v370 = vunpack.c.l.bf16 %v338
      %v371 = vunpack.c.l.bf16 %v339
      %v372 = vunpack.c.l.bf16 %v340
      %v373 = vunpack.c.l.bf16 %v341
      %v374 = vunpack.c.l.bf16 %v342
      %v375 = vunpack.c.l.bf16 %v343
      %v376 = vunpack.c.l.bf16 %v344
      %v377 = vunpack.c.l.bf16 %v345
      %v378 = vunpack.c.l.bf16 %v346
      %v379 = vunpack.c.l.bf16 %v347
      %v380 = vunpack.c.l.bf16 %v348
      %v381 = vunpack.c.l.bf16 %v349
      %v382 = vunpack.c.l.bf16 %v350
      %v383 = vunpack.c.l.bf16 %v351
      %v384 = vunpack.c.l.bf16 %v352
      %v385 = vunpack.c.l.bf16 %v353
      %v386 = vunpack.c.l.bf16 %v354
      %v387 = vunpack.c.l.bf16 %v355
      %v388 = vunpack.c.l.bf16 %v356
      %v389 = vunpack.c.l.bf16 %v357
      %v390 = vunpack.c.l.bf16 %v358
      %v391 = vld [vmem:[%s1] sm:$0x1]
      %v393 = vperm.slane %v391, 0
      %v395 = vmul.f32 %v359, %v393
      %v396 = vmul.f32 %v360, %v393
      %v397 = vmul.f32 %v361, %v393
      %v398 = vmul.f32 %v362, %v393
      %v399 = vmul.f32 %v363, %v393
      %v400 = vmul.f32 %v364, %v393
      %v401 = vmul.f32 %v365, %v393
      %v402 = vmul.f32 %v366, %v393
      %v403 = vmul.f32 %v367, %v393
      %v404 = vmul.f32 %v368, %v393
      %v405 = vmul.f32 %v369, %v393
      %v406 = vmul.f32 %v370, %v393
      %v407 = vmul.f32 %v371, %v393
      %v408 = vmul.f32 %v372, %v393
      %v409 = vmul.f32 %v373, %v393
      %v410 = vmul.f32 %v374, %v393
      %v411 = vmul.f32 %v375, %v393
      %v412 = vmul.f32 %v376, %v393
      %v413 = vmul.f32 %v377, %v393
      %v414 = vmul.f32 %v378, %v393
      %v415 = vmul.f32 %v379, %v393
      %v416 = vmul.f32 %v380, %v393
      %v417 = vmul.f32 %v381, %v393
      %v418 = vmul.f32 %v382, %v393
      %v419 = vmul.f32 %v383, %v393
      %v420 = vmul.f32 %v384, %v393
      %v421 = vmul.f32 %v385, %v393
      %v422 = vmul.f32 %v386, %v393
      %v423 = vmul.f32 %v387, %v393
      %v424 = vmul.f32 %v388, %v393
      %v425 = vmul.f32 %v389, %v393
      %v426 = vmul.f32 %v390, %v393
      %v427 = vld [vmem:[%s2] sm:$0x1]
      %v429 = vperm.slane %v427, 0
      %v431 = vadd.f32 %v395, %v429
      %v432 = vadd.f32 %v396, %v429
      %v433 = vadd.f32 %v397, %v429
      %v434 = vadd.f32 %v398, %v429
      %v435 = vadd.f32 %v399, %v429
      %v436 = vadd.f32 %v400, %v429
      %v437 = vadd.f32 %v401, %v429
      %v438 = vadd.f32 %v402, %v429
      %v439 = vadd.f32 %v403, %v429
      %v440 = vadd.f32 %v404, %v429
      %v441 = vadd.f32 %v405, %v429
      %v442 = vadd.f32 %v406, %v429
      %v443 = vadd.f32 %v407, %v429
      %v444 = vadd.f32 %v408, %v429
      %v445 = vadd.f32 %v409, %v429
      %v446 = vadd.f32 %v410, %v429
      %v447 = vadd.f32 %v411, %v429
      %v448 = vadd.f32 %v412, %v429
      %v449 = vadd.f32 %v413, %v429
      %v450 = vadd.f32 %v414, %v429
      %v451 = vadd.f32 %v415, %v429
      %v452 = vadd.f32 %v416, %v429
      %v453 = vadd.f32 %v417, %v429
      %v454 = vadd.f32 %v418, %v429
      %v455 = vadd.f32 %v419, %v429
      %v456 = vadd.f32 %v420, %v429
      %v457 = vadd.f32 %v421, %v429
      %v458 = vadd.f32 %v422, %v429
      %v459 = vadd.f32 %v423, %v429
      %v460 = vadd.f32 %v424, %v429
      %v461 = vadd.f32 %v425, %v429
      %v462 = vadd.f32 %v426, %v429
      %v463 = vmax.f32 %v431, 0.0
      %v464 = vmax.f32 %v432, 0.0
      %v465 = vmax.f32 %v433, 0.0
      %v466 = vmax.f32 %v434, 0.0
      %v467 = vmax.f32 %v435, 0.0
      %v468 = vmax.f32 %v436, 0.0
      %v469 = vmax.f32 %v437, 0.0
      %v470 = vmax.f32 %v438, 0.0
      %v471 = vmax.f32 %v439, 0.0
      %v472 = vmax.f32 %v440, 0.0
      %v473 = vmax.f32 %v441, 0.0
      %v474 = vmax.f32 %v442, 0.0
      %v475 = vmax.f32 %v443, 0.0
      %v476 = vmax.f32 %v444, 0.0
      %v477 = vmax.f32 %v445, 0.0
      %v478 = vmax.f32 %v446, 0.0
      %v479 = vmax.f32 %v447, 0.0
      %v480 = vmax.f32 %v448, 0.0
      %v481 = vmax.f32 %v449, 0.0
      %v482 = vmax.f32 %v450, 0.0
      %v483 = vmax.f32 %v451, 0.0
      %v484 = vmax.f32 %v452, 0.0
      %v485 = vmax.f32 %v453, 0.0
      %v486 = vmax.f32 %v454, 0.0
      %v487 = vmax.f32 %v455, 0.0
      %v488 = vmax.f32 %v456, 0.0
      %v489 = vmax.f32 %v457, 0.0
      %v490 = vmax.f32 %v458, 0.0
      %v491 = vmax.f32 %v459, 0.0
      %v492 = vmax.f32 %v460, 0.0
      %v493 = vmax.f32 %v461, 0.0
      %v494 = vmax.f32 %v462, 0.0
      %v495 = vpack.c.bf16 %v464, %v463
      %v496 = vpack.c.bf16 %v466, %v465
      %v497 = vpack.c.bf16 %v468, %v467
      %v498 = vpack.c.bf16 %v470, %v469
      %v499 = vpack.c.bf16 %v472, %v471
      %v500 = vpack.c.bf16 %v474, %v473
      %v501 = vpack.c.bf16 %v476, %v475
      %v502 = vpack.c.bf16 %v478, %v477
      %v503 = vpack.c.bf16 %v480, %v479
      %v504 = vpack.c.bf16 %v482, %v481
      %v505 = vpack.c.bf16 %v484, %v483
      %v506 = vpack.c.bf16 %v486, %v485
      %v507 = vpack.c.bf16 %v488, %v487
      %v508 = vpack.c.bf16 %v490, %v489
      %v509 = vpack.c.bf16 %v492, %v491
      %v510 = vpack.c.bf16 %v494, %v493
      %v511 = vld [vmem:[%s3] sm:$0xf]
      %v512 = vld [vmem:[%s3 + $0x4] sm:$0xf]
      %v513 = vld [vmem:[%s3 + $0x8] sm:$0xf]
      %v514 = vld [vmem:[%s3 + $0xc] sm:$0xf]
      %v515 = vld [vmem:[%s4] sm:$0x1]
      %v517 = vperm.slane %v515, 0
      %v523 = vunpack.c.l.b16 %v511
      %v524 = vunpack.c.l.b16 %v512
      %v525 = vunpack.c.l.b16 %v513
      %v526 = vunpack.c.l.b16 %v514
      %v527 = vpack.c.b16 %v524, %v523
      %v528 = vpack.c.b16 %v526, %v525
      %vm531 = vcmask 261120
      %v533 = vsel %vm531, %v495, 0
      %v536 = vsel %vm531, %v496, 0
      %v539 = vsel %vm531, %v497, 0
      %v542 = vsel %vm531, %v498, 0
      %v545 = vsel %vm531, %v499, 0
      %v548 = vsel %vm531, %v500, 0
      %v551 = vsel %vm531, %v501, 0
      %v554 = vsel %vm531, %v502, 0
      %v557 = vsel %vm531, %v503, 0
      %v560 = vsel %vm531, %v504, 0
      %v563 = vsel %vm531, %v505, 0
      %v566 = vsel %vm531, %v506, 0
      %v569 = vsel %vm531, %v507, 0
      %v572 = vsel %vm531, %v508, 0
      %v575 = vsel %vm531, %v509, 0
      %v578 = vsel %vm531, %v510, 0
      %580 = vmatpush.bf16.msra.mxu0 0
      %581 = vmatpush.bf16.msra.mxu0 0
      %582 = vmatpush.bf16.msra.mxu0 0
      %583 = vmatpush.bf16.msra.mxu0 0
      %584 = vmatpush.bf16.msra.mxu0 0
      %585 = vmatpush.bf16.msra.mxu0 0
      %586 = vmatpush.bf16.msra.mxu0 %v528
      %587 = vmatpush.bf16.msra.mxu0 %v527
      %588 = vmatmul.bf16.gmra.mxu0 %v533
      %v589 = vpop.f32.mrf.mxu0
      %v590 = vadd.f32 %v517, %v589
      %v591 = vpop.f32.mrf.mxu0
      %v592 = vadd.f32 %v517, %v591
      %593 = vmatmul.bf16.gmra.mxu0 %v536
      %v594 = vpop.f32.mrf.mxu0
      %v595 = vadd.f32 %v517, %v594
      %v596 = vpop.f32.mrf.mxu0
      %v597 = vadd.f32 %v517, %v596
      %598 = vmatmul.bf16.gmra.mxu0 %v539
      %v599 = vpop.f32.mrf.mxu0
      %v600 = vadd.f32 %v517, %v599
      %v601 = vpop.f32.mrf.mxu0
      %v602 = vadd.f32 %v517, %v601
      %603 = vmatmul.bf16.gmra.mxu0 %v542
      %v604 = vpop.f32.mrf.mxu0
      %v605 = vadd.f32 %v517, %v604
      %v606 = vpop.f32.mrf.mxu0
      %v607 = vadd.f32 %v517, %v606
      %608 = vmatmul.bf16.gmra.mxu0 %v545
      %v609 = vpop.f32.mrf.mxu0
      %v610 = vadd.f32 %v517, %v609
      %v611 = vpop.f32.mrf.mxu0
      %v612 = vadd.f32 %v517, %v611
      %613 = vmatmul.bf16.gmra.mxu0 %v548
      %v614 = vpop.f32.mrf.mxu0
      %v615 = vadd.f32 %v517, %v614
      %v616 = vpop.f32.mrf.mxu0
      %v617 = vadd.f32 %v517, %v616
      %618 = vmatmul.bf16.gmra.mxu0 %v551
      %v619 = vpop.f32.mrf.mxu0
      %v620 = vadd.f32 %v517, %v619
      %v621 = vpop.f32.mrf.mxu0
      %v622 = vadd.f32 %v517, %v621
      %623 = vmatmul.bf16.gmra.mxu0 %v554
      %v624 = vpop.f32.mrf.mxu0
      %v625 = vadd.f32 %v517, %v624
      %v626 = vpop.f32.mrf.mxu0
      %v627 = vadd.f32 %v517, %v626
      %628 = vmatmul.bf16.gmra.mxu0 %v557
      %v629 = vpop.f32.mrf.mxu0
      %v630 = vadd.f32 %v517, %v629
      %v631 = vpop.f32.mrf.mxu0
      %v632 = vadd.f32 %v517, %v631
      %633 = vmatmul.bf16.gmra.mxu0 %v560
      %v634 = vpop.f32.mrf.mxu0
      %v635 = vadd.f32 %v517, %v634
      %v636 = vpop.f32.mrf.mxu0
      %v637 = vadd.f32 %v517, %v636
      %638 = vmatmul.bf16.gmra.mxu0 %v563
      %v639 = vpop.f32.mrf.mxu0
      %v640 = vadd.f32 %v517, %v639
      %v641 = vpop.f32.mrf.mxu0
      %v642 = vadd.f32 %v517, %v641
      %643 = vmatmul.bf16.gmra.mxu0 %v566
      %v644 = vpop.f32.mrf.mxu0
      %v645 = vadd.f32 %v517, %v644
      %v646 = vpop.f32.mrf.mxu0
      %v647 = vadd.f32 %v517, %v646
      %648 = vmatmul.bf16.gmra.mxu0 %v569
      %v649 = vpop.f32.mrf.mxu0
      %v650 = vadd.f32 %v517, %v649
      %v651 = vpop.f32.mrf.mxu0
      %v652 = vadd.f32 %v517, %v651
      %653 = vmatmul.bf16.gmra.mxu0 %v572
      %v654 = vpop.f32.mrf.mxu0
      %v655 = vadd.f32 %v517, %v654
      %v656 = vpop.f32.mrf.mxu0
      %v657 = vadd.f32 %v517, %v656
      %658 = vmatmul.bf16.gmra.mxu0 %v575
      %v659 = vpop.f32.mrf.mxu0
      %v660 = vadd.f32 %v517, %v659
      %v661 = vpop.f32.mrf.mxu0
      %v662 = vadd.f32 %v517, %v661
      %663 = vmatmul.bf16.gmra.mxu0 %v578
      %v664 = vpop.f32.mrf.mxu0
      %v665 = vadd.f32 %v517, %v664
      %v666 = vpop.f32.mrf.mxu0
      %v667 = vadd.f32 %v517, %v666
      %668 = vdwg.mxu0
      %v669 = vpack.c.bf16 %v590, %v590
      %v670 = vpack.c.bf16 %v592, %v592
      %v671 = vpack.c.bf16 %v595, %v595
      %v672 = vpack.c.bf16 %v597, %v597
      %v673 = vpack.c.bf16 %v600, %v600
      %v674 = vpack.c.bf16 %v602, %v602
      %v675 = vpack.c.bf16 %v605, %v605
      %v676 = vpack.c.bf16 %v607, %v607
      %v677 = vpack.c.bf16 %v610, %v610
      %v678 = vpack.c.bf16 %v612, %v612
      %v679 = vpack.c.bf16 %v615, %v615
      %v680 = vpack.c.bf16 %v617, %v617
      %v681 = vpack.c.bf16 %v620, %v620
      %v682 = vpack.c.bf16 %v622, %v622
      %v683 = vpack.c.bf16 %v625, %v625
      %v684 = vpack.c.bf16 %v627, %v627
      %v685 = vpack.c.bf16 %v630, %v630
      %v686 = vpack.c.bf16 %v632, %v632
      %v687 = vpack.c.bf16 %v635, %v635
      %v688 = vpack.c.bf16 %v637, %v637
      %v689 = vpack.c.bf16 %v640, %v640
      %v690 = vpack.c.bf16 %v642, %v642
      %v691 = vpack.c.bf16 %v645, %v645
      %v692 = vpack.c.bf16 %v647, %v647
      %v693 = vpack.c.bf16 %v650, %v650
      %v694 = vpack.c.bf16 %v652, %v652
      %v695 = vpack.c.bf16 %v655, %v655
      %v696 = vpack.c.bf16 %v657, %v657
      %v697 = vpack.c.bf16 %v660, %v660
      %v698 = vpack.c.bf16 %v662, %v662
      %v699 = vpack.c.bf16 %v665, %v665
      %v700 = vpack.c.bf16 %v667, %v667
      %733 = vrot.lane.b32.xlu0 %v590, 64
      %v734 = vpop.permute.xlu0 %733
      %735 = vrot.lane.b32.xlu0 %v592, 64
      %v736 = vpop.permute.xlu0 %735
      %737 = vrot.lane.b32.xlu0 %v595, 64
      %v738 = vpop.permute.xlu0 %737
      %739 = vrot.lane.b32.xlu0 %v597, 64
      %v740 = vpop.permute.xlu0 %739
      %741 = vrot.lane.b32.xlu0 %v600, 64
      %v742 = vpop.permute.xlu0 %741
      %743 = vrot.lane.b32.xlu0 %v602, 64
      %v744 = vpop.permute.xlu0 %743
      %745 = vrot.lane.b32.xlu0 %v605, 64
      %v746 = vpop.permute.xlu0 %745
      %747 = vrot.lane.b32.xlu0 %v607, 64
      %v748 = vpop.permute.xlu0 %747
      %749 = vrot.lane.b32.xlu0 %v610, 64
      %v750 = vpop.permute.xlu0 %749
      %751 = vrot.lane.b32.xlu0 %v612, 64
      %v752 = vpop.permute.xlu0 %751
      %753 = vrot.lane.b32.xlu0 %v615, 64
      %v754 = vpop.permute.xlu0 %753
      %755 = vrot.lane.b32.xlu0 %v617, 64
      %v756 = vpop.permute.xlu0 %755
      %757 = vrot.lane.b32.xlu0 %v620, 64
      %v758 = vpop.permute.xlu0 %757
      %759 = vrot.lane.b32.xlu0 %v622, 64
      %v760 = vpop.permute.xlu0 %759
      %761 = vrot.lane.b32.xlu0 %v625, 64
      %v762 = vpop.permute.xlu0 %761
      %763 = vrot.lane.b32.xlu0 %v627, 64
      %v764 = vpop.permute.xlu0 %763
      %765 = vrot.lane.b32.xlu0 %v630, 64
      %v766 = vpop.permute.xlu0 %765
      %767 = vrot.lane.b32.xlu0 %v632, 64
      %v768 = vpop.permute.xlu0 %767
      %769 = vrot.lane.b32.xlu0 %v635, 64
      %v770 = vpop.permute.xlu0 %769
      %771 = vrot.lane.b32.xlu0 %v637, 64
      %v772 = vpop.permute.xlu0 %771
      %773 = vrot.lane.b32.xlu0 %v640, 64
      %v774 = vpop.permute.xlu0 %773
      %775 = vrot.lane.b32.xlu0 %v642, 64
      %v776 = vpop.permute.xlu0 %775
      %777 = vrot.lane.b32.xlu0 %v645, 64
      %v778 = vpop.permute.xlu0 %777
      %779 = vrot.lane.b32.xlu0 %v647, 64
      %v780 = vpop.permute.xlu0 %779
      %781 = vrot.lane.b32.xlu0 %v650, 64
      %v782 = vpop.permute.xlu0 %781
      %783 = vrot.lane.b32.xlu0 %v652, 64
      %v784 = vpop.permute.xlu0 %783
      %785 = vrot.lane.b32.xlu0 %v655, 64
      %v786 = vpop.permute.xlu0 %785
      %787 = vrot.lane.b32.xlu0 %v657, 64
      %v788 = vpop.permute.xlu0 %787
      %789 = vrot.lane.b32.xlu0 %v660, 64
      %v790 = vpop.permute.xlu0 %789
      %791 = vrot.lane.b32.xlu0 %v662, 64
      %v792 = vpop.permute.xlu0 %791
      %793 = vrot.lane.b32.xlu0 %v665, 64
      %v794 = vpop.permute.xlu0 %793
      %795 = vrot.lane.b32.xlu0 %v667, 64
      %v796 = vpop.permute.xlu0 %795
      %829 = vxpose.xlu0.b32.start [1/16] %v734, 128
      %830 = vxpose.xlu0.b32.cont [2/16] %v736, 128
      %831 = vxpose.xlu0.b32.cont [3/16] %v738, 128
      %832 = vxpose.xlu0.b32.cont [4/16] %v740, 128
      %833 = vxpose.xlu0.b32.cont [5/16] %v742, 128
      %834 = vxpose.xlu0.b32.cont [6/16] %v744, 128
      %835 = vxpose.xlu0.b32.cont [7/16] %v746, 128
      %836 = vxpose.xlu0.b32.cont [8/16] %v748, 128
      %837 = vxpose.xlu0.b32.cont [9/16] %v750, 128
      %838 = vxpose.xlu0.b32.cont [10/16] %v752, 128
      %839 = vxpose.xlu0.b32.cont [11/16] %v754, 128
      %840 = vxpose.xlu0.b32.cont [12/16] %v756, 128
      %841 = vxpose.xlu0.b32.cont [13/16] %v758, 128
      %842 = vxpose.xlu0.b32.cont [14/16] %v760, 128
      %843 = vxpose.xlu0.b32.cont [15/16] %v762, 128
      %844 = vxpose.xlu0.b32.end [16/16] %v764, 128
      %v845 = vpop.trf.xlu0
      %v846 = vpop.trf.xlu0
      %v847 = vpop.trf.xlu0
      %v848 = vpop.trf.xlu0
      %v849 = vpop.trf.xlu0
      %v850 = vpop.trf.xlu0
      %v851 = vpop.trf.xlu0
      %v852 = vpop.trf.xlu0
      %v853 = vpop.trf.xlu0
      %v854 = vpop.trf.xlu0
      %v855 = vpop.trf.xlu0
      %v856 = vpop.trf.xlu0
      %v857 = vpop.trf.xlu0
      %v858 = vpop.trf.xlu0
      %v859 = vpop.trf.xlu0
      %v860 = vpop.trf.xlu0
      %861 = vxpose.xlu0.b32.start [1/16] %v766, 128
      %862 = vxpose.xlu0.b32.cont [2/16] %v768, 128
      %863 = vxpose.xlu0.b32.cont [3/16] %v770, 128
      %864 = vxpose.xlu0.b32.cont [4/16] %v772, 128
      %865 = vxpose.xlu0.b32.cont [5/16] %v774, 128
      %866 = vxpose.xlu0.b32.cont [6/16] %v776, 128
      %867 = vxpose.xlu0.b32.cont [7/16] %v778, 128
      %868 = vxpose.xlu0.b32.cont [8/16] %v780, 128
      %869 = vxpose.xlu0.b32.cont [9/16] %v782, 128
      %870 = vxpose.xlu0.b32.cont [10/16] %v784, 128
      %871 = vxpose.xlu0.b32.cont [11/16] %v786, 128
      %872 = vxpose.xlu0.b32.cont [12/16] %v788, 128
      %873 = vxpose.xlu0.b32.cont [13/16] %v790, 128
      %874 = vxpose.xlu0.b32.cont [14/16] %v792, 128
      %875 = vxpose.xlu0.b32.cont [15/16] %v794, 128
      %876 = vxpose.xlu0.b32.end [16/16] %v796, 128
      %v877 = vpop.trf.xlu0
      %v878 = vpop.trf.xlu0
      %v879 = vpop.trf.xlu0
      %v880 = vpop.trf.xlu0
      %v881 = vpop.trf.xlu0
      %v882 = vpop.trf.xlu0
      %v883 = vpop.trf.xlu0
      %v884 = vpop.trf.xlu0
      %v885 = vpop.trf.xlu0
      %v886 = vpop.trf.xlu0
      %v887 = vpop.trf.xlu0
      %v888 = vpop.trf.xlu0
      %v889 = vpop.trf.xlu0
      %v890 = vpop.trf.xlu0
      %v891 = vpop.trf.xlu0
      %v892 = vpop.trf.xlu0
      %v893 = vpack.c.bf16 %v877, %v845
      %v894 = vpack.c.bf16 %v878, %v846
      %v895 = vpack.c.bf16 %v879, %v847
      %v896 = vpack.c.bf16 %v880, %v848
      %v897 = vld [vmem:[%s5] sm:$0xf]
      %v898 = vld [vmem:[%s5 + $0x4] sm:$0xf]
      %v899 = vld [vmem:[%s5 + $0x8] sm:$0xf]
      %v900 = vld [vmem:[%s5 + $0xc] sm:$0xf]
      %v901 = vld [vmem:[%s5 + $0x10] sm:$0xf]
      %v902 = vld [vmem:[%s5 + $0x14] sm:$0xf]
      %v903 = vld [vmem:[%s5 + $0x18] sm:$0xf]
      %v904 = vld [vmem:[%s5 + $0x1c] sm:$0xf]
      %v905 = vld [vmem:[%s5 + $0x20] sm:$0xf]
      %v906 = vld [vmem:[%s5 + $0x24] sm:$0xf]
      %v907 = vld [vmem:[%s5 + $0x28] sm:$0xf]
      %v908 = vld [vmem:[%s5 + $0x2c] sm:$0xf]
      %v909 = vld [vmem:[%s5 + $0x30] sm:$0xf]
      %v910 = vld [vmem:[%s5 + $0x34] sm:$0xf]
      %v911 = vld [vmem:[%s5 + $0x38] sm:$0xf]
      %v912 = vld [vmem:[%s5 + $0x3c] sm:$0xf]
      %v913 = vld [vmem:[%s5 + $0x40] sm:$0xf]
      %v914 = vld [vmem:[%s5 + $0x44] sm:$0xf]
      %v915 = vld [vmem:[%s5 + $0x48] sm:$0xf]
      %v916 = vld [vmem:[%s5 + $0x4c] sm:$0xf]
      %v917 = vld [vmem:[%s5 + $0x50] sm:$0xf]
      %v918 = vld [vmem:[%s5 + $0x54] sm:$0xf]
      %v919 = vld [vmem:[%s5 + $0x58] sm:$0xf]
      %v920 = vld [vmem:[%s5 + $0x5c] sm:$0xf]
      %v921 = vld [vmem:[%s5 + $0x60] sm:$0xf]
      %v922 = vld [vmem:[%s5 + $0x64] sm:$0xf]
      %v923 = vld [vmem:[%s5 + $0x68] sm:$0xf]
      %v924 = vld [vmem:[%s5 + $0x6c] sm:$0xf]
      %v925 = vld [vmem:[%s5 + $0x70] sm:$0xf]
      %v926 = vld [vmem:[%s5 + $0x74] sm:$0xf]
      %v927 = vld [vmem:[%s5 + $0x78] sm:$0xf]
      %v928 = vld [vmem:[%s5 + $0x7c] sm:$0xf]
      %v961 = vunpack.c.l.b16 %v669
      %v962 = vunpack.c.l.b16 %v670
      %v963 = vunpack.c.l.b16 %v671
      %v964 = vunpack.c.l.b16 %v672
      %v965 = vunpack.c.l.b16 %v673
      %v966 = vunpack.c.l.b16 %v674
      %v967 = vunpack.c.l.b16 %v675
      %v968 = vunpack.c.l.b16 %v676
      %v969 = vunpack.c.l.b16 %v677
      %v970 = vunpack.c.l.b16 %v678
      %v971 = vunpack.c.l.b16 %v679
      %v972 = vunpack.c.l.b16 %v680
      %v973 = vunpack.c.l.b16 %v681
      %v974 = vunpack.c.l.b16 %v682
      %v975 = vunpack.c.l.b16 %v683
      %v976 = vunpack.c.l.b16 %v684
      %v977 = vunpack.c.l.b16 %v685
      %v978 = vunpack.c.l.b16 %v686
      %v979 = vunpack.c.l.b16 %v687
      %v980 = vunpack.c.l.b16 %v688
      %v981 = vunpack.c.l.b16 %v689
      %v982 = vunpack.c.l.b16 %v690
      %v983 = vunpack.c.l.b16 %v691
      %v984 = vunpack.c.l.b16 %v692
      %v985 = vunpack.c.l.b16 %v693
      %v986 = vunpack.c.l.b16 %v694
      %v987 = vunpack.c.l.b16 %v695
      %v988 = vunpack.c.l.b16 %v696
      %v989 = vunpack.c.l.b16 %v697
      %v990 = vunpack.c.l.b16 %v698
      %v991 = vunpack.c.l.b16 %v699
      %v992 = vunpack.c.l.b16 %v700
      %v993 = vpack.c.b16 %v962, %v961
      %v994 = vpack.c.b16 %v964, %v963
      %v995 = vpack.c.b16 %v966, %v965
      %v996 = vpack.c.b16 %v968, %v967
      %v997 = vpack.c.b16 %v970, %v969
      %v998 = vpack.c.b16 %v972, %v971
      %v999 = vpack.c.b16 %v974, %v973
      %v1000 = vpack.c.b16 %v976, %v975
      %v1001 = vpack.c.b16 %v978, %v977
      %v1002 = vpack.c.b16 %v980, %v979
      %v1003 = vpack.c.b16 %v982, %v981
      %v1004 = vpack.c.b16 %v984, %v983
      %v1005 = vpack.c.b16 %v986, %v985
      %v1006 = vpack.c.b16 %v988, %v987
      %v1007 = vpack.c.b16 %v990, %v989
      %v1008 = vpack.c.b16 %v992, %v991
      %v1041 = vunpack.c.l.b16 %v897
      %v1042 = vunpack.c.l.b16 %v898
      %v1043 = vunpack.c.l.b16 %v899
      %v1044 = vunpack.c.l.b16 %v900
      %v1045 = vunpack.c.l.b16 %v901
      %v1046 = vunpack.c.l.b16 %v902
      %v1047 = vunpack.c.l.b16 %v903
      %v1048 = vunpack.c.l.b16 %v904
      %v1049 = vunpack.c.l.b16 %v905
      %v1050 = vunpack.c.l.b16 %v906
      %v1051 = vunpack.c.l.b16 %v907
      %v1052 = vunpack.c.l.b16 %v908
      %v1053 = vunpack.c.l.b16 %v909
      %v1054 = vunpack.c.l.b16 %v910
      %v1055 = vunpack.c.l.b16 %v911
      %v1056 = vunpack.c.l.b16 %v912
      %v1057 = vunpack.c.l.b16 %v913
      %v1058 = vunpack.c.l.b16 %v914
      %v1059 = vunpack.c.l.b16 %v915
      %v1060 = vunpack.c.l.b16 %v916
      %v1061 = vunpack.c.l.b16 %v917
      %v1062 = vunpack.c.l.b16 %v918
      %v1063 = vunpack.c.l.b16 %v919
      %v1064 = vunpack.c.l.b16 %v920
      %v1065 = vunpack.c.l.b16 %v921
      %v1066 = vunpack.c.l.b16 %v922
      %v1067 = vunpack.c.l.b16 %v923
      %v1068 = vunpack.c.l.b16 %v924
      %v1069 = vunpack.c.l.b16 %v925
      %v1070 = vunpack.c.l.b16 %v926
      %v1071 = vunpack.c.l.b16 %v927
      %v1072 = vunpack.c.l.b16 %v928
      %v1073 = vpack.c.b16 %v1042, %v1041
      %v1074 = vpack.c.b16 %v1044, %v1043
      %v1075 = vpack.c.b16 %v1046, %v1045
      %v1076 = vpack.c.b16 %v1048, %v1047
      %v1077 = vpack.c.b16 %v1050, %v1049
      %v1078 = vpack.c.b16 %v1052, %v1051
      %v1079 = vpack.c.b16 %v1054, %v1053
      %v1080 = vpack.c.b16 %v1056, %v1055
      %v1081 = vpack.c.b16 %v1058, %v1057
      %v1082 = vpack.c.b16 %v1060, %v1059
      %v1083 = vpack.c.b16 %v1062, %v1061
      %v1084 = vpack.c.b16 %v1064, %v1063
      %v1085 = vpack.c.b16 %v1066, %v1065
      %v1086 = vpack.c.b16 %v1068, %v1067
      %v1087 = vpack.c.b16 %v1070, %v1069
      %v1088 = vpack.c.b16 %v1072, %v1071
      %1089 = vrot.lane.b32.xlu0 %v1073, 8
      %v1090 = vpop.permute.xlu0 %1089
      %1091 = vrot.lane.b32.xlu0 %v1074, 8
      %v1092 = vpop.permute.xlu0 %1091
      %1093 = vrot.lane.b32.xlu0 %v1075, 8
      %v1094 = vpop.permute.xlu0 %1093
      %1095 = vrot.lane.b32.xlu0 %v1076, 8
      %v1096 = vpop.permute.xlu0 %1095
      %1097 = vrot.lane.b32.xlu0 %v1077, 8
      %v1098 = vpop.permute.xlu0 %1097
      %1099 = vrot.lane.b32.xlu0 %v1078, 8
      %v1100 = vpop.permute.xlu0 %1099
      %1101 = vrot.lane.b32.xlu0 %v1079, 8
      %v1102 = vpop.permute.xlu0 %1101
      %1103 = vrot.lane.b32.xlu0 %v1080, 8
      %v1104 = vpop.permute.xlu0 %1103
      %1105 = vrot.lane.b32.xlu0 %v1081, 8
      %v1106 = vpop.permute.xlu0 %1105
      %1107 = vrot.lane.b32.xlu0 %v1082, 8
      %v1108 = vpop.permute.xlu0 %1107
      %1109 = vrot.lane.b32.xlu0 %v1083, 8
      %v1110 = vpop.permute.xlu0 %1109
      %1111 = vrot.lane.b32.xlu0 %v1084, 8
      %v1112 = vpop.permute.xlu0 %1111
      %1113 = vrot.lane.b32.xlu0 %v1085, 8
      %v1114 = vpop.permute.xlu0 %1113
      %1115 = vrot.lane.b32.xlu0 %v1086, 8
      %v1116 = vpop.permute.xlu0 %1115
      %1117 = vrot.lane.b32.xlu0 %v1087, 8
      %v1118 = vpop.permute.xlu0 %1117
      %1119 = vrot.lane.b32.xlu0 %v1088, 8
      %v1120 = vpop.permute.xlu0 %1119
      %vm1121 = vcmask 64512
      %v1124 = vsel %vm1121, %v993, %v1090
      %v1127 = vsel %vm1121, %v994, %v1092
      %v1130 = vsel %vm1121, %v995, %v1094
      %v1133 = vsel %vm1121, %v996, %v1096
      %v1136 = vsel %vm1121, %v997, %v1098
      %v1139 = vsel %vm1121, %v998, %v1100
      %v1142 = vsel %vm1121, %v999, %v1102
      %v1145 = vsel %vm1121, %v1000, %v1104
      %v1148 = vsel %vm1121, %v1001, %v1106
      %v1151 = vsel %vm1121, %v1002, %v1108
      %v1154 = vsel %vm1121, %v1003, %v1110
      %v1157 = vsel %vm1121, %v1004, %v1112
      %v1160 = vsel %vm1121, %v1005, %v1114
      %v1163 = vsel %vm1121, %v1006, %v1116
      %v1166 = vsel %vm1121, %v1007, %v1118
      %v1169 = vsel %vm1121, %v1008, %v1120
      %1170 = vrot.lane.b32.xlu0 %v993, 96
      %v1171 = vpop.permute.xlu0 %1170
      %1172 = vrot.lane.b32.xlu0 %v994, 96
      %v1173 = vpop.permute.xlu0 %1172
      %1174 = vrot.lane.b32.xlu0 %v995, 96
      %v1175 = vpop.permute.xlu0 %1174
      %1176 = vrot.lane.b32.xlu0 %v996, 96
      %v1177 = vpop.permute.xlu0 %1176
      %1178 = vrot.lane.b32.xlu0 %v997, 96
      %v1179 = vpop.permute.xlu0 %1178
      %1180 = vrot.lane.b32.xlu0 %v998, 96
      %v1181 = vpop.permute.xlu0 %1180
      %1182 = vrot.lane.b32.xlu0 %v999, 96
      %v1183 = vpop.permute.xlu0 %1182
      %1184 = vrot.lane.b32.xlu0 %v1000, 96
      %v1185 = vpop.permute.xlu0 %1184
      %1186 = vrot.lane.b32.xlu0 %v1001, 96
      %v1187 = vpop.permute.xlu0 %1186
      %1188 = vrot.lane.b32.xlu0 %v1002, 96
      %v1189 = vpop.permute.xlu0 %1188
      %1190 = vrot.lane.b32.xlu0 %v1003, 96
      %v1191 = vpop.permute.xlu0 %1190
      %1192 = vrot.lane.b32.xlu0 %v1004, 96
      %v1193 = vpop.permute.xlu0 %1192
      %1194 = vrot.lane.b32.xlu0 %v1005, 96
      %v1195 = vpop.permute.xlu0 %1194
      %1196 = vrot.lane.b32.xlu0 %v1006, 96
      %v1197 = vpop.permute.xlu0 %1196
      %1198 = vrot.lane.b32.xlu0 %v1007, 96
      %v1199 = vpop.permute.xlu0 %1198
      %1200 = vrot.lane.b32.xlu0 %v1008, 96
      %v1201 = vpop.permute.xlu0 %1200
      %1202 = vrot.lane.b32.xlu0 %v993, 8
      %v1203 = vpop.permute.xlu0 %1202
      %1204 = vrot.lane.b32.xlu0 %v994, 8
      %v1205 = vpop.permute.xlu0 %1204
      %1206 = vrot.lane.b32.xlu0 %v995, 8
      %v1207 = vpop.permute.xlu0 %1206
      %1208 = vrot.lane.b32.xlu0 %v996, 8
      %v1209 = vpop.permute.xlu0 %1208
      %1210 = vrot.lane.b32.xlu0 %v997, 8
      %v1211 = vpop.permute.xlu0 %1210
      %1212 = vrot.lane.b32.xlu0 %v998, 8
      %v1213 = vpop.permute.xlu0 %1212
      %1214 = vrot.lane.b32.xlu0 %v999, 8
      %v1215 = vpop.permute.xlu0 %1214
      %1216 = vrot.lane.b32.xlu0 %v1000, 8
      %v1217 = vpop.permute.xlu0 %1216
      %1218 = vrot.lane.b32.xlu0 %v1001, 8
      %v1219 = vpop.permute.xlu0 %1218
      %1220 = vrot.lane.b32.xlu0 %v1002, 8
      %v1221 = vpop.permute.xlu0 %1220
      %1222 = vrot.lane.b32.xlu0 %v1003, 8
      %v1223 = vpop.permute.xlu0 %1222
      %1224 = vrot.lane.b32.xlu0 %v1004, 8
      %v1225 = vpop.permute.xlu0 %1224
      %1226 = vrot.lane.b32.xlu0 %v1005, 8
      %v1227 = vpop.permute.xlu0 %1226
      %1228 = vrot.lane.b32.xlu0 %v1006, 8
      %v1229 = vpop.permute.xlu0 %1228
      %1230 = vrot.lane.b32.xlu0 %v1007, 8
      %v1231 = vpop.permute.xlu0 %1230
      %1232 = vrot.lane.b32.xlu0 %v1008, 8
      %v1233 = vpop.permute.xlu0 %1232
      %v1236 = vsel %vm1121, %v1171, %v1203
      %v1239 = vsel %vm1121, %v1173, %v1205
      %v1242 = vsel %vm1121, %v1175, %v1207
      %v1245 = vsel %vm1121, %v1177, %v1209
      %v1248 = vsel %vm1121, %v1179, %v1211
      %v1251 = vsel %vm1121, %v1181, %v1213
      %v1254 = vsel %vm1121, %v1183, %v1215
      %v1257 = vsel %vm1121, %v1185, %v1217
      %v1260 = vsel %vm1121, %v1187, %v1219
      %v1263 = vsel %vm1121, %v1189, %v1221
      %v1266 = vsel %vm1121, %v1191, %v1223
      %v1269 = vsel %vm1121, %v1193, %v1225
      %v1272 = vsel %vm1121, %v1195, %v1227
      %v1275 = vsel %vm1121, %v1197, %v1229
      %v1278 = vsel %vm1121, %v1199, %v1231
      %v1281 = vsel %vm1121, %v1201, %v1233
      %vm1282 = vcmask 130048
      %v1283 = vsel %vm1282, %v1124, 0
      %v1285 = vsel %vm1282, %v1127, 0
      %v1287 = vsel %vm1282, %v1130, 0
      %v1289 = vsel %vm1282, %v1133, 0
      %v1291 = vsel %vm1282, %v1136, 0
      %v1293 = vsel %vm1282, %v1139, 0
      %v1295 = vsel %vm1282, %v1142, 0
      %v1297 = vsel %vm1282, %v1145, 0
      %v1299 = vsel %vm1282, %v1148, 0
      %v1301 = vsel %vm1282, %v1151, 0
      %v1303 = vsel %vm1282, %v1154, 0
      %v1305 = vsel %vm1282, %v1157, 0
      %v1307 = vsel %vm1282, %v1160, 0
      %v1309 = vsel %vm1282, %v1163, 0
      %v1311 = vsel %vm1282, %v1166, 0
      %v1313 = vsel %vm1282, %v1169, 0
      %v1315 = vsel %vm1282, %v1236, 0
      %v1317 = vsel %vm1282, %v1239, 0
      %v1319 = vsel %vm1282, %v1242, 0
      %v1321 = vsel %vm1282, %v1245, 0
      %v1323 = vsel %vm1282, %v1248, 0
      %v1325 = vsel %vm1282, %v1251, 0
      %v1327 = vsel %vm1282, %v1254, 0
      %v1329 = vsel %vm1282, %v1257, 0
      %v1331 = vsel %vm1282, %v1260, 0
      %v1333 = vsel %vm1282, %v1263, 0
      %v1335 = vsel %vm1282, %v1266, 0
      %v1337 = vsel %vm1282, %v1269, 0
      %v1339 = vsel %vm1282, %v1272, 0
      %v1341 = vsel %vm1282, %v1275, 0
      %v1343 = vsel %vm1282, %v1278, 0
      %v1345 = vsel %vm1282, %v1281, 0
      %1347 = vmatpush.bf16.xpose.msra.mxu0 %v1329
      %1348 = vmatpush.bf16.xpose.msra.mxu0 %v1327
      %1349 = vmatpush.bf16.xpose.msra.mxu0 %v1325
      %1350 = vmatpush.bf16.xpose.msra.mxu0 %v1323
      %1351 = vmatpush.bf16.xpose.msra.mxu0 %v1321
      %1352 = vmatpush.bf16.xpose.msra.mxu0 %v1319
      %1353 = vmatpush.bf16.xpose.msra.mxu0 %v1317
      %1354 = vmatpush.bf16.xpose.msra.mxu0 %v1315
      %1355 = vmatmul.bf16.gmra.mxu0 %v1283
      %v1356 = vpop.f32.mrf.mxu0
      %v1357 = vadd.f32 0.0, %v1356
      %v1358 = vpop.f32.mrf.mxu0
      %v1359 = vadd.f32 0.0, %v1358
      %1360 = vmatmul.bf16.gmra.mxu0 %v1285
      %v1361 = vpop.f32.mrf.mxu0
      %v1362 = vadd.f32 0.0, %v1361
      %v1363 = vpop.f32.mrf.mxu0
      %v1364 = vadd.f32 0.0, %v1363
      %1365 = vmatmul.bf16.gmra.mxu0 %v1287
      %v1366 = vpop.f32.mrf.mxu0
      %v1367 = vadd.f32 0.0, %v1366
      %v1368 = vpop.f32.mrf.mxu0
      %v1369 = vadd.f32 0.0, %v1368
      %1370 = vmatmul.bf16.gmra.mxu0 %v1289
      %v1371 = vpop.f32.mrf.mxu0
      %v1372 = vadd.f32 0.0, %v1371
      %v1373 = vpop.f32.mrf.mxu0
      %v1374 = vadd.f32 0.0, %v1373
      %1375 = vmatmul.bf16.gmra.mxu0 %v1291
      %v1376 = vpop.f32.mrf.mxu0
      %v1377 = vadd.f32 0.0, %v1376
      %v1378 = vpop.f32.mrf.mxu0
      %v1379 = vadd.f32 0.0, %v1378
      %1380 = vmatmul.bf16.gmra.mxu0 %v1293
      %v1381 = vpop.f32.mrf.mxu0
      %v1382 = vadd.f32 0.0, %v1381
      %v1383 = vpop.f32.mrf.mxu0
      %v1384 = vadd.f32 0.0, %v1383
      %1385 = vmatmul.bf16.gmra.mxu0 %v1295
      %v1386 = vpop.f32.mrf.mxu0
      %v1387 = vadd.f32 0.0, %v1386
      %v1388 = vpop.f32.mrf.mxu0
      %v1389 = vadd.f32 0.0, %v1388
      %1390 = vmatmul.bf16.gmra.mxu0 %v1297
      %v1391 = vpop.f32.mrf.mxu0
      %v1392 = vadd.f32 0.0, %v1391
      %v1393 = vpop.f32.mrf.mxu0
      %v1394 = vadd.f32 0.0, %v1393
      %1395 = vmatmul.bf16.gmra.mxu0 %v1299
      %v1396 = vpop.f32.mrf.mxu0
      %v1397 = vadd.f32 0.0, %v1396
      %v1398 = vpop.f32.mrf.mxu0
      %v1399 = vadd.f32 0.0, %v1398
      %1400 = vmatmul.bf16.gmra.mxu0 %v1301
      %v1401 = vpop.f32.mrf.mxu0
      %v1402 = vadd.f32 0.0, %v1401
      %v1403 = vpop.f32.mrf.mxu0
      %v1404 = vadd.f32 0.0, %v1403
      %1405 = vmatmul.bf16.gmra.mxu0 %v1303
      %v1406 = vpop.f32.mrf.mxu0
      %v1407 = vadd.f32 0.0, %v1406
      %v1408 = vpop.f32.mrf.mxu0
      %v1409 = vadd.f32 0.0, %v1408
      %1410 = vmatmul.bf16.gmra.mxu0 %v1305
      %v1411 = vpop.f32.mrf.mxu0
      %v1412 = vadd.f32 0.0, %v1411
      %v1413 = vpop.f32.mrf.mxu0
      %v1414 = vadd.f32 0.0, %v1413
      %1415 = vmatmul.bf16.gmra.mxu0 %v1307
      %v1416 = vpop.f32.mrf.mxu0
      %v1417 = vadd.f32 0.0, %v1416
      %v1418 = vpop.f32.mrf.mxu0
      %v1419 = vadd.f32 0.0, %v1418
      %1420 = vmatmul.bf16.gmra.mxu0 %v1309
      %v1421 = vpop.f32.mrf.mxu0
      %v1422 = vadd.f32 0.0, %v1421
      %v1423 = vpop.f32.mrf.mxu0
      %v1424 = vadd.f32 0.0, %v1423
      %1425 = vmatmul.bf16.gmra.mxu0 %v1311
      %v1426 = vpop.f32.mrf.mxu0
      %v1427 = vadd.f32 0.0, %v1426
      %v1428 = vpop.f32.mrf.mxu0
      %v1429 = vadd.f32 0.0, %v1428
      %1430 = vmatmul.bf16.gmra.mxu0 %v1313
      %v1431 = vpop.f32.mrf.mxu0
      %v1432 = vadd.f32 0.0, %v1431
      %v1433 = vpop.f32.mrf.mxu0
      %v1434 = vadd.f32 0.0, %v1433
      %1435 = vdwg.mxu0
      %1436 = vmatpush.bf16.xpose.msra.mxu0 %v1345
      %1437 = vmatpush.bf16.xpose.msra.mxu0 %v1343
      %1438 = vmatpush.bf16.xpose.msra.mxu0 %v1341
      %1439 = vmatpush.bf16.xpose.msra.mxu0 %v1339
      %1440 = vmatpush.bf16.xpose.msra.mxu0 %v1337
      %1441 = vmatpush.bf16.xpose.msra.mxu0 %v1335
      %1442 = vmatpush.bf16.xpose.msra.mxu0 %v1333
      %1443 = vmatpush.bf16.xpose.msra.mxu0 %v1331
      %1444 = vmatmul.bf16.gmra.mxu0 %v1283
      %v1445 = vpop.f32.mrf.mxu0
      %v1446 = vadd.f32 0.0, %v1445
      %v1447 = vpop.f32.mrf.mxu0
      %v1448 = vadd.f32 0.0, %v1447
      %1449 = vmatmul.bf16.gmra.mxu0 %v1285
      %v1450 = vpop.f32.mrf.mxu0
      %v1451 = vadd.f32 0.0, %v1450
      %v1452 = vpop.f32.mrf.mxu0
      %v1453 = vadd.f32 0.0, %v1452
      %1454 = vmatmul.bf16.gmra.mxu0 %v1287
      %v1455 = vpop.f32.mrf.mxu0
      %v1456 = vadd.f32 0.0, %v1455
      %v1457 = vpop.f32.mrf.mxu0
      %v1458 = vadd.f32 0.0, %v1457
      %1459 = vmatmul.bf16.gmra.mxu0 %v1289
      %v1460 = vpop.f32.mrf.mxu0
      %v1461 = vadd.f32 0.0, %v1460
      %v1462 = vpop.f32.mrf.mxu0
      %v1463 = vadd.f32 0.0, %v1462
      %1464 = vmatmul.bf16.gmra.mxu0 %v1291
      %v1465 = vpop.f32.mrf.mxu0
      %v1466 = vadd.f32 0.0, %v1465
      %v1467 = vpop.f32.mrf.mxu0
      %v1468 = vadd.f32 0.0, %v1467
      %1469 = vmatmul.bf16.gmra.mxu0 %v1293
      %v1470 = vpop.f32.mrf.mxu0
      %v1471 = vadd.f32 0.0, %v1470
      %v1472 = vpop.f32.mrf.mxu0
      %v1473 = vadd.f32 0.0, %v1472
      %1474 = vmatmul.bf16.gmra.mxu0 %v1295
      %v1475 = vpop.f32.mrf.mxu0
      %v1476 = vadd.f32 0.0, %v1475
      %v1477 = vpop.f32.mrf.mxu0
      %v1478 = vadd.f32 0.0, %v1477
      %1479 = vmatmul.bf16.gmra.mxu0 %v1297
      %v1480 = vpop.f32.mrf.mxu0
      %v1481 = vadd.f32 0.0, %v1480
      %v1482 = vpop.f32.mrf.mxu0
      %v1483 = vadd.f32 0.0, %v1482
      %1484 = vmatmul.bf16.gmra.mxu0 %v1299
      %v1485 = vpop.f32.mrf.mxu0
      %v1486 = vadd.f32 0.0, %v1485
      %v1487 = vpop.f32.mrf.mxu0
      %v1488 = vadd.f32 0.0, %v1487
      %1489 = vmatmul.bf16.gmra.mxu0 %v1301
      %v1490 = vpop.f32.mrf.mxu0
      %v1491 = vadd.f32 0.0, %v1490
      %v1492 = vpop.f32.mrf.mxu0
      %v1493 = vadd.f32 0.0, %v1492
      %1494 = vmatmul.bf16.gmra.mxu0 %v1303
      %v1495 = vpop.f32.mrf.mxu0
      %v1496 = vadd.f32 0.0, %v1495
      %v1497 = vpop.f32.mrf.mxu0
      %v1498 = vadd.f32 0.0, %v1497
      %1499 = vmatmul.bf16.gmra.mxu0 %v1305
      %v1500 = vpop.f32.mrf.mxu0
      %v1501 = vadd.f32 0.0, %v1500
      %v1502 = vpop.f32.mrf.mxu0
      %v1503 = vadd.f32 0.0, %v1502
      %1504 = vmatmul.bf16.gmra.mxu0 %v1307
      %v1505 = vpop.f32.mrf.mxu0
      %v1506 = vadd.f32 0.0, %v1505
      %v1507 = vpop.f32.mrf.mxu0
      %v1508 = vadd.f32 0.0, %v1507
      %1509 = vmatmul.bf16.gmra.mxu0 %v1309
      %v1510 = vpop.f32.mrf.mxu0
      %v1511 = vadd.f32 0.0, %v1510
      %v1512 = vpop.f32.mrf.mxu0
      %v1513 = vadd.f32 0.0, %v1512
      %1514 = vmatmul.bf16.gmra.mxu0 %v1311
      %v1515 = vpop.f32.mrf.mxu0
      %v1516 = vadd.f32 0.0, %v1515
      %v1517 = vpop.f32.mrf.mxu0
      %v1518 = vadd.f32 0.0, %v1517
      %1519 = vmatmul.bf16.gmra.mxu0 %v1313
      %v1520 = vpop.f32.mrf.mxu0
      %v1521 = vadd.f32 0.0, %v1520
      %v1522 = vpop.f32.mrf.mxu0
      %v1523 = vadd.f32 0.0, %v1522
      %1524 = vdwg.mxu0
      %v1525 = vmax.f32 %v1357, %v1446
      %1526 = vmax.xlane.f32.xlu0 %v1525
      %v1527 = vpop.xlane.xlu0 %1526
      %v1528 = vmax.f32 %v1359, %v1448
      %1529 = vmax.xlane.f32.xlu0 %v1528
      %v1530 = vpop.xlane.xlu0 %1529
      %v1531 = vmax.f32 %v1362, %v1451
      %1532 = vmax.xlane.f32.xlu0 %v1531
      %v1533 = vpop.xlane.xlu0 %1532
      %v1534 = vmax.f32 %v1364, %v1453
      %1535 = vmax.xlane.f32.xlu0 %v1534
      %v1536 = vpop.xlane.xlu0 %1535
      %v1537 = vmax.f32 %v1367, %v1456
      %1538 = vmax.xlane.f32.xlu0 %v1537
      %v1539 = vpop.xlane.xlu0 %1538
      %v1540 = vmax.f32 %v1369, %v1458
      %1541 = vmax.xlane.f32.xlu0 %v1540
      %v1542 = vpop.xlane.xlu0 %1541
      %v1543 = vmax.f32 %v1372, %v1461
      %1544 = vmax.xlane.f32.xlu0 %v1543
      %v1545 = vpop.xlane.xlu0 %1544
      %v1546 = vmax.f32 %v1374, %v1463
      %1547 = vmax.xlane.f32.xlu0 %v1546
      %v1548 = vpop.xlane.xlu0 %1547
      %v1549 = vmax.f32 %v1377, %v1466
      %1550 = vmax.xlane.f32.xlu0 %v1549
      %v1551 = vpop.xlane.xlu0 %1550
      %v1552 = vmax.f32 %v1379, %v1468
      %1553 = vmax.xlane.f32.xlu0 %v1552
      %v1554 = vpop.xlane.xlu0 %1553
      %v1555 = vmax.f32 %v1382, %v1471
      %1556 = vmax.xlane.f32.xlu0 %v1555
      %v1557 = vpop.xlane.xlu0 %1556
      %v1558 = vmax.f32 %v1384, %v1473
      %1559 = vmax.xlane.f32.xlu0 %v1558
      %v1560 = vpop.xlane.xlu0 %1559
      %v1561 = vmax.f32 %v1387, %v1476
      %1562 = vmax.xlane.f32.xlu0 %v1561
      %v1563 = vpop.xlane.xlu0 %1562
      %v1564 = vmax.f32 %v1389, %v1478
      %1565 = vmax.xlane.f32.xlu0 %v1564
      %v1566 = vpop.xlane.xlu0 %1565
      %v1567 = vmax.f32 %v1392, %v1481
      %1568 = vmax.xlane.f32.xlu0 %v1567
      %v1569 = vpop.xlane.xlu0 %1568
      %v1570 = vmax.f32 %v1394, %v1483
      %1571 = vmax.xlane.f32.xlu0 %v1570
      %v1572 = vpop.xlane.xlu0 %1571
      %v1573 = vmax.f32 %v1397, %v1486
      %1574 = vmax.xlane.f32.xlu0 %v1573
      %v1575 = vpop.xlane.xlu0 %1574
      %v1576 = vmax.f32 %v1399, %v1488
      %1577 = vmax.xlane.f32.xlu0 %v1576
      %v1578 = vpop.xlane.xlu0 %1577
      %v1579 = vmax.f32 %v1402, %v1491
      %1580 = vmax.xlane.f32.xlu0 %v1579
      %v1581 = vpop.xlane.xlu0 %1580
      %v1582 = vmax.f32 %v1404, %v1493
      %1583 = vmax.xlane.f32.xlu0 %v1582
      %v1584 = vpop.xlane.xlu0 %1583
      %v1585 = vmax.f32 %v1407, %v1496
      %1586 = vmax.xlane.f32.xlu0 %v1585
      %v1587 = vpop.xlane.xlu0 %1586
      %v1588 = vmax.f32 %v1409, %v1498
      %1589 = vmax.xlane.f32.xlu0 %v1588
      %v1590 = vpop.xlane.xlu0 %1589
      %v1591 = vmax.f32 %v1412, %v1501
      %1592 = vmax.xlane.f32.xlu0 %v1591
      %v1593 = vpop.xlane.xlu0 %1592
      %v1594 = vmax.f32 %v1414, %v1503
      %1595 = vmax.xlane.f32.xlu0 %v1594
      %v1596 = vpop.xlane.xlu0 %1595
      %v1597 = vmax.f32 %v1417, %v1506
      %1598 = vmax.xlane.f32.xlu0 %v1597
      %v1599 = vpop.xlane.xlu0 %1598
      %v1600 = vmax.f32 %v1419, %v1508
      %1601 = vmax.xlane.f32.xlu0 %v1600
      %v1602 = vpop.xlane.xlu0 %1601
      %v1603 = vmax.f32 %v1422, %v1511
      %1604 = vmax.xlane.f32.xlu0 %v1603
      %v1605 = vpop.xlane.xlu0 %1604
      %v1606 = vmax.f32 %v1424, %v1513
      %1607 = vmax.xlane.f32.xlu0 %v1606
      %v1608 = vpop.xlane.xlu0 %1607
      %v1609 = vmax.f32 %v1427, %v1516
      %1610 = vmax.xlane.f32.xlu0 %v1609
      %v1611 = vpop.xlane.xlu0 %1610
      %v1612 = vmax.f32 %v1429, %v1518
      %1613 = vmax.xlane.f32.xlu0 %v1612
      %v1614 = vpop.xlane.xlu0 %1613
      %v1615 = vmax.f32 %v1432, %v1521
      %1616 = vmax.xlane.f32.xlu0 %v1615
      %v1617 = vpop.xlane.xlu0 %1616
      %v1618 = vmax.f32 %v1434, %v1523
      %1619 = vmax.xlane.f32.xlu0 %v1618
      %v1620 = vpop.xlane.xlu0 %1619
      %v1621 = vsub.f32 %v1357, %v1527
      %v1622 = vsub.f32 %v1446, %v1527
      %v1623 = vsub.f32 %v1359, %v1530
      %v1624 = vsub.f32 %v1448, %v1530
      %v1625 = vsub.f32 %v1362, %v1533
      %v1626 = vsub.f32 %v1451, %v1533
      %v1627 = vsub.f32 %v1364, %v1536
      %v1628 = vsub.f32 %v1453, %v1536
      %v1629 = vsub.f32 %v1367, %v1539
      %v1630 = vsub.f32 %v1456, %v1539
      %v1631 = vsub.f32 %v1369, %v1542
      %v1632 = vsub.f32 %v1458, %v1542
      %v1633 = vsub.f32 %v1372, %v1545
      %v1634 = vsub.f32 %v1461, %v1545
      %v1635 = vsub.f32 %v1374, %v1548
      %v1636 = vsub.f32 %v1463, %v1548
      %v1637 = vsub.f32 %v1377, %v1551
      %v1638 = vsub.f32 %v1466, %v1551
      %v1639 = vsub.f32 %v1379, %v1554
      %v1640 = vsub.f32 %v1468, %v1554
      %v1641 = vsub.f32 %v1382, %v1557
      %v1642 = vsub.f32 %v1471, %v1557
      %v1643 = vsub.f32 %v1384, %v1560
      %v1644 = vsub.f32 %v1473, %v1560
      %v1645 = vsub.f32 %v1387, %v1563
      %v1646 = vsub.f32 %v1476, %v1563
      %v1647 = vsub.f32 %v1389, %v1566
      %v1648 = vsub.f32 %v1478, %v1566
      %v1649 = vsub.f32 %v1392, %v1569
      %v1650 = vsub.f32 %v1481, %v1569
      %v1651 = vsub.f32 %v1394, %v1572
      %v1652 = vsub.f32 %v1483, %v1572
      %v1653 = vsub.f32 %v1397, %v1575
      %v1654 = vsub.f32 %v1486, %v1575
      %v1655 = vsub.f32 %v1399, %v1578
      %v1656 = vsub.f32 %v1488, %v1578
      %v1657 = vsub.f32 %v1402, %v1581
      %v1658 = vsub.f32 %v1491, %v1581
      %v1659 = vsub.f32 %v1404, %v1584
      %v1660 = vsub.f32 %v1493, %v1584
      %v1661 = vsub.f32 %v1407, %v1587
      %v1662 = vsub.f32 %v1496, %v1587
      %v1663 = vsub.f32 %v1409, %v1590
      %v1664 = vsub.f32 %v1498, %v1590
      %v1665 = vsub.f32 %v1412, %v1593
      %v1666 = vsub.f32 %v1501, %v1593
      %v1667 = vsub.f32 %v1414, %v1596
      %v1668 = vsub.f32 %v1503, %v1596
      %v1669 = vsub.f32 %v1417, %v1599
      %v1670 = vsub.f32 %v1506, %v1599
      %v1671 = vsub.f32 %v1419, %v1602
      %v1672 = vsub.f32 %v1508, %v1602
      %v1673 = vsub.f32 %v1422, %v1605
      %v1674 = vsub.f32 %v1511, %v1605
      %v1675 = vsub.f32 %v1424, %v1608
      %v1676 = vsub.f32 %v1513, %v1608
      %v1677 = vsub.f32 %v1427, %v1611
      %v1678 = vsub.f32 %v1516, %v1611
      %v1679 = vsub.f32 %v1429, %v1614
      %v1680 = vsub.f32 %v1518, %v1614
      %v1681 = vsub.f32 %v1432, %v1617
      %v1682 = vsub.f32 %v1521, %v1617
      %v1683 = vsub.f32 %v1434, %v1620
      %v1684 = vsub.f32 %v1523, %v1620
      %v1685 = vmul.f32 %v1621, 1.442695
      %v1686 = vpow.pop %v1685
      %v1687 = vmul.f32 %v1622, 1.442695
      %v1688 = vpow.pop %v1687
      %v1689 = vmul.f32 %v1623, 1.442695
      %v1690 = vpow.pop %v1689
      %v1691 = vmul.f32 %v1624, 1.442695
      %v1692 = vpow.pop %v1691
      %v1693 = vmul.f32 %v1625, 1.442695
      %v1694 = vpow.pop %v1693
      %v1695 = vmul.f32 %v1626, 1.442695
      %v1696 = vpow.pop %v1695
      %v1697 = vmul.f32 %v1627, 1.442695
      %v1698 = vpow.pop %v1697
      %v1699 = vmul.f32 %v1628, 1.442695
      %v1700 = vpow.pop %v1699
      %v1701 = vmul.f32 %v1629, 1.442695
      %v1702 = vpow.pop %v1701
      %v1703 = vmul.f32 %v1630, 1.442695
      %v1704 = vpow.pop %v1703
      %v1705 = vmul.f32 %v1631, 1.442695
      %v1706 = vpow.pop %v1705
      %v1707 = vmul.f32 %v1632, 1.442695
      %v1708 = vpow.pop %v1707
      %v1709 = vmul.f32 %v1633, 1.442695
      %v1710 = vpow.pop %v1709
      %v1711 = vmul.f32 %v1634, 1.442695
      %v1712 = vpow.pop %v1711
      %v1713 = vmul.f32 %v1635, 1.442695
      %v1714 = vpow.pop %v1713
      %v1715 = vmul.f32 %v1636, 1.442695
      %v1716 = vpow.pop %v1715
      %v1717 = vmul.f32 %v1637, 1.442695
      %v1718 = vpow.pop %v1717
      %v1719 = vmul.f32 %v1638, 1.442695
      %v1720 = vpow.pop %v1719
      %v1721 = vmul.f32 %v1639, 1.442695
      %v1722 = vpow.pop %v1721
      %v1723 = vmul.f32 %v1640, 1.442695
      %v1724 = vpow.pop %v1723
      %v1725 = vmul.f32 %v1641, 1.442695
      %v1726 = vpow.pop %v1725
      %v1727 = vmul.f32 %v1642, 1.442695
      %v1728 = vpow.pop %v1727
      %v1729 = vmul.f32 %v1643, 1.442695
      %v1730 = vpow.pop %v1729
      %v1731 = vmul.f32 %v1644, 1.442695
      %v1732 = vpow.pop %v1731
      %v1733 = vmul.f32 %v1645, 1.442695
      %v1734 = vpow.pop %v1733
      %v1735 = vmul.f32 %v1646, 1.442695
      %v1736 = vpow.pop %v1735
      %v1737 = vmul.f32 %v1647, 1.442695
      %v1738 = vpow.pop %v1737
      %v1739 = vmul.f32 %v1648, 1.442695
      %v1740 = vpow.pop %v1739
      %v1741 = vmul.f32 %v1649, 1.442695
      %v1742 = vpow.pop %v1741
      %v1743 = vmul.f32 %v1650, 1.442695
      %v1744 = vpow.pop %v1743
      %v1745 = vmul.f32 %v1651, 1.442695
      %v1746 = vpow.pop %v1745
      %v1747 = vmul.f32 %v1652, 1.442695
      %v1748 = vpow.pop %v1747
      %v1749 = vmul.f32 %v1653, 1.442695
      %v1750 = vpow.pop %v1749
      %v1751 = vmul.f32 %v1654, 1.442695
      %v1752 = vpow.pop %v1751
      %v1753 = vmul.f32 %v1655, 1.442695
      %v1754 = vpow.pop %v1753
      %v1755 = vmul.f32 %v1656, 1.442695
      %v1756 = vpow.pop %v1755
      %v1757 = vmul.f32 %v1657, 1.442695
      %v1758 = vpow.pop %v1757
      %v1759 = vmul.f32 %v1658, 1.442695
      %v1760 = vpow.pop %v1759
      %v1761 = vmul.f32 %v1659, 1.442695
      %v1762 = vpow.pop %v1761
      %v1763 = vmul.f32 %v1660, 1.442695
      %v1764 = vpow.pop %v1763
      %v1765 = vmul.f32 %v1661, 1.442695
      %v1766 = vpow.pop %v1765
      %v1767 = vmul.f32 %v1662, 1.442695
      %v1768 = vpow.pop %v1767
      %v1769 = vmul.f32 %v1663, 1.442695
      %v1770 = vpow.pop %v1769
      %v1771 = vmul.f32 %v1664, 1.442695
      %v1772 = vpow.pop %v1771
      %v1773 = vmul.f32 %v1665, 1.442695
      %v1774 = vpow.pop %v1773
      %v1775 = vmul.f32 %v1666, 1.442695
      %v1776 = vpow.pop %v1775
      %v1777 = vmul.f32 %v1667, 1.442695
      %v1778 = vpow.pop %v1777
      %v1779 = vmul.f32 %v1668, 1.442695
      %v1780 = vpow.pop %v1779
      %v1781 = vmul.f32 %v1669, 1.442695
      %v1782 = vpow.pop %v1781
      %v1783 = vmul.f32 %v1670, 1.442695
      %v1784 = vpow.pop %v1783
      %v1785 = vmul.f32 %v1671, 1.442695
      %v1786 = vpow.pop %v1785
      %v1787 = vmul.f32 %v1672, 1.442695
      %v1788 = vpow.pop %v1787
      %v1789 = vmul.f32 %v1673, 1.442695
      %v1790 = vpow.pop %v1789
      %v1791 = vmul.f32 %v1674, 1.442695
      %v1792 = vpow.pop %v1791
      %v1793 = vmul.f32 %v1675, 1.442695
      %v1794 = vpow.pop %v1793
      %v1795 = vmul.f32 %v1676, 1.442695
      %v1796 = vpow.pop %v1795
      %v1797 = vmul.f32 %v1677, 1.442695
      %v1798 = vpow.pop %v1797
      %v1799 = vmul.f32 %v1678, 1.442695
      %v1800 = vpow.pop %v1799
      %v1801 = vmul.f32 %v1679, 1.442695
      %v1802 = vpow.pop %v1801
      %v1803 = vmul.f32 %v1680, 1.442695
      %v1804 = vpow.pop %v1803
      %v1805 = vmul.f32 %v1681, 1.442695
      %v1806 = vpow.pop %v1805
      %v1807 = vmul.f32 %v1682, 1.442695
      %v1808 = vpow.pop %v1807
      %v1809 = vmul.f32 %v1683, 1.442695
      %v1810 = vpow.pop %v1809
      %v1811 = vmul.f32 %v1684, 1.442695
      %v1812 = vpow.pop %v1811
      %v1813 = vadd.f32 %v1686, %v1688
      %1814 = vadd.xlane.f32.xlu0 %v1813
      %v1815 = vpop.xlane.xlu0 %1814
      %v1816 = vadd.f32 %v1690, %v1692
      %1817 = vadd.xlane.f32.xlu0 %v1816
      %v1818 = vpop.xlane.xlu0 %1817
      %v1819 = vadd.f32 %v1694, %v1696
      %1820 = vadd.xlane.f32.xlu0 %v1819
      %v1821 = vpop.xlane.xlu0 %1820
      %v1822 = vadd.f32 %v1698, %v1700
      %1823 = vadd.xlane.f32.xlu0 %v1822
      %v1824 = vpop.xlane.xlu0 %1823
      %v1825 = vadd.f32 %v1702, %v1704
      %1826 = vadd.xlane.f32.xlu0 %v1825
      %v1827 = vpop.xlane.xlu0 %1826
      %v1828 = vadd.f32 %v1706, %v1708
      %1829 = vadd.xlane.f32.xlu0 %v1828
      %v1830 = vpop.xlane.xlu0 %1829
      %v1831 = vadd.f32 %v1710, %v1712
      %1832 = vadd.xlane.f32.xlu0 %v1831
      %v1833 = vpop.xlane.xlu0 %1832
      %v1834 = vadd.f32 %v1714, %v1716
      %1835 = vadd.xlane.f32.xlu0 %v1834
      %v1836 = vpop.xlane.xlu0 %1835
      %v1837 = vadd.f32 %v1718, %v1720
      %1838 = vadd.xlane.f32.xlu0 %v1837
      %v1839 = vpop.xlane.xlu0 %1838
      %v1840 = vadd.f32 %v1722, %v1724
      %1841 = vadd.xlane.f32.xlu0 %v1840
      %v1842 = vpop.xlane.xlu0 %1841
      %v1843 = vadd.f32 %v1726, %v1728
      %1844 = vadd.xlane.f32.xlu0 %v1843
      %v1845 = vpop.xlane.xlu0 %1844
      %v1846 = vadd.f32 %v1730, %v1732
      %1847 = vadd.xlane.f32.xlu0 %v1846
      %v1848 = vpop.xlane.xlu0 %1847
      %v1849 = vadd.f32 %v1734, %v1736
      %1850 = vadd.xlane.f32.xlu0 %v1849
      %v1851 = vpop.xlane.xlu0 %1850
      %v1852 = vadd.f32 %v1738, %v1740
      %1853 = vadd.xlane.f32.xlu0 %v1852
      %v1854 = vpop.xlane.xlu0 %1853
      %v1855 = vadd.f32 %v1742, %v1744
      %1856 = vadd.xlane.f32.xlu0 %v1855
      %v1857 = vpop.xlane.xlu0 %1856
      %v1858 = vadd.f32 %v1746, %v1748
      %1859 = vadd.xlane.f32.xlu0 %v1858
      %v1860 = vpop.xlane.xlu0 %1859
      %v1861 = vadd.f32 %v1750, %v1752
      %1862 = vadd.xlane.f32.xlu0 %v1861
      %v1863 = vpop.xlane.xlu0 %1862
      %v1864 = vadd.f32 %v1754, %v1756
      %1865 = vadd.xlane.f32.xlu0 %v1864
      %v1866 = vpop.xlane.xlu0 %1865
      %v1867 = vadd.f32 %v1758, %v1760
      %1868 = vadd.xlane.f32.xlu0 %v1867
      %v1869 = vpop.xlane.xlu0 %1868
      %v1870 = vadd.f32 %v1762, %v1764
      %1871 = vadd.xlane.f32.xlu0 %v1870
      %v1872 = vpop.xlane.xlu0 %1871
      %v1873 = vadd.f32 %v1766, %v1768
      %1874 = vadd.xlane.f32.xlu0 %v1873
      %v1875 = vpop.xlane.xlu0 %1874
      %v1876 = vadd.f32 %v1770, %v1772
      %1877 = vadd.xlane.f32.xlu0 %v1876
      %v1878 = vpop.xlane.xlu0 %1877
      %v1879 = vadd.f32 %v1774, %v1776
      %1880 = vadd.xlane.f32.xlu0 %v1879
      %v1881 = vpop.xlane.xlu0 %1880
      %v1882 = vadd.f32 %v1778, %v1780
      %1883 = vadd.xlane.f32.xlu0 %v1882
      %v1884 = vpop.xlane.xlu0 %1883
      %v1885 = vadd.f32 %v1782, %v1784
      %1886 = vadd.xlane.f32.xlu0 %v1885
      %v1887 = vpop.xlane.xlu0 %1886
      %v1888 = vadd.f32 %v1786, %v1788
      %1889 = vadd.xlane.f32.xlu0 %v1888
      %v1890 = vpop.xlane.xlu0 %1889
      %v1891 = vadd.f32 %v1790, %v1792
      %1892 = vadd.xlane.f32.xlu0 %v1891
      %v1893 = vpop.xlane.xlu0 %1892
      %v1894 = vadd.f32 %v1794, %v1796
      %1895 = vadd.xlane.f32.xlu0 %v1894
      %v1896 = vpop.xlane.xlu0 %1895
      %v1897 = vadd.f32 %v1798, %v1800
      %1898 = vadd.xlane.f32.xlu0 %v1897
      %v1899 = vpop.xlane.xlu0 %1898
      %v1900 = vadd.f32 %v1802, %v1804
      %1901 = vadd.xlane.f32.xlu0 %v1900
      %v1902 = vpop.xlane.xlu0 %1901
      %v1903 = vadd.f32 %v1806, %v1808
      %1904 = vadd.xlane.f32.xlu0 %v1903
      %v1905 = vpop.xlane.xlu0 %1904
      %v1906 = vadd.f32 %v1810, %v1812
      %1907 = vadd.xlane.f32.xlu0 %v1906
      %v1908 = vpop.xlane.xlu0 %1907
      %v1909 = vrcp.pop %v1815
      %v1910 = vrcp.pop %v1818
      %v1911 = vrcp.pop %v1821
      %v1912 = vrcp.pop %v1824
      %v1913 = vrcp.pop %v1827
      %v1914 = vrcp.pop %v1830
      %v1915 = vrcp.pop %v1833
      %v1916 = vrcp.pop %v1836
      %v1917 = vrcp.pop %v1839
      %v1918 = vrcp.pop %v1842
      %v1919 = vrcp.pop %v1845
      %v1920 = vrcp.pop %v1848
      %v1921 = vrcp.pop %v1851
      %v1922 = vrcp.pop %v1854
      %v1923 = vrcp.pop %v1857
      %v1924 = vrcp.pop %v1860
      %v1925 = vrcp.pop %v1863
      %v1926 = vrcp.pop %v1866
      %v1927 = vrcp.pop %v1869
      %v1928 = vrcp.pop %v1872
      %v1929 = vrcp.pop %v1875
      %v1930 = vrcp.pop %v1878
      %v1931 = vrcp.pop %v1881
      %v1932 = vrcp.pop %v1884
      %v1933 = vrcp.pop %v1887
      %v1934 = vrcp.pop %v1890
      %v1935 = vrcp.pop %v1893
      %v1936 = vrcp.pop %v1896
      %v1937 = vrcp.pop %v1899
      %v1938 = vrcp.pop %v1902
      %v1939 = vrcp.pop %v1905
      %v1940 = vrcp.pop %v1908
      %v1941 = vmul.f32 %v1686, %v1909
      %v1942 = vmul.f32 %v1688, %v1909
      %v1943 = vmul.f32 %v1690, %v1910
      %v1944 = vmul.f32 %v1692, %v1910
      %v1945 = vmul.f32 %v1694, %v1911
      %v1946 = vmul.f32 %v1696, %v1911
      %v1947 = vmul.f32 %v1698, %v1912
      %v1948 = vmul.f32 %v1700, %v1912
      %v1949 = vmul.f32 %v1702, %v1913
      %v1950 = vmul.f32 %v1704, %v1913
      %v1951 = vmul.f32 %v1706, %v1914
      %v1952 = vmul.f32 %v1708, %v1914
      %v1953 = vmul.f32 %v1710, %v1915
      %v1954 = vmul.f32 %v1712, %v1915
      %v1955 = vmul.f32 %v1714, %v1916
      %v1956 = vmul.f32 %v1716, %v1916
      %v1957 = vmul.f32 %v1718, %v1917
      %v1958 = vmul.f32 %v1720, %v1917
      %v1959 = vmul.f32 %v1722, %v1918
      %v1960 = vmul.f32 %v1724, %v1918
      %v1961 = vmul.f32 %v1726, %v1919
      %v1962 = vmul.f32 %v1728, %v1919
      %v1963 = vmul.f32 %v1730, %v1920
      %v1964 = vmul.f32 %v1732, %v1920
      %v1965 = vmul.f32 %v1734, %v1921
      %v1966 = vmul.f32 %v1736, %v1921
      %v1967 = vmul.f32 %v1738, %v1922
      %v1968 = vmul.f32 %v1740, %v1922
      %v1969 = vmul.f32 %v1742, %v1923
      %v1970 = vmul.f32 %v1744, %v1923
      %v1971 = vmul.f32 %v1746, %v1924
      %v1972 = vmul.f32 %v1748, %v1924
      %v1973 = vmul.f32 %v1750, %v1925
      %v1974 = vmul.f32 %v1752, %v1925
      %v1975 = vmul.f32 %v1754, %v1926
      %v1976 = vmul.f32 %v1756, %v1926
      %v1977 = vmul.f32 %v1758, %v1927
      %v1978 = vmul.f32 %v1760, %v1927
      %v1979 = vmul.f32 %v1762, %v1928
      %v1980 = vmul.f32 %v1764, %v1928
      %v1981 = vmul.f32 %v1766, %v1929
      %v1982 = vmul.f32 %v1768, %v1929
      %v1983 = vmul.f32 %v1770, %v1930
      %v1984 = vmul.f32 %v1772, %v1930
      %v1985 = vmul.f32 %v1774, %v1931
      %v1986 = vmul.f32 %v1776, %v1931
      %v1987 = vmul.f32 %v1778, %v1932
      %v1988 = vmul.f32 %v1780, %v1932
      %v1989 = vmul.f32 %v1782, %v1933
      %v1990 = vmul.f32 %v1784, %v1933
      %v1991 = vmul.f32 %v1786, %v1934
      %v1992 = vmul.f32 %v1788, %v1934
      %v1993 = vmul.f32 %v1790, %v1935
      %v1994 = vmul.f32 %v1792, %v1935
      %v1995 = vmul.f32 %v1794, %v1936
      %v1996 = vmul.f32 %v1796, %v1936
      %v1997 = vmul.f32 %v1798, %v1937
      %v1998 = vmul.f32 %v1800, %v1937
      %v1999 = vmul.f32 %v1802, %v1938
      %v2000 = vmul.f32 %v1804, %v1938
      %v2001 = vmul.f32 %v1806, %v1939
      %v2002 = vmul.f32 %v1808, %v1939
      %v2003 = vmul.f32 %v1810, %v1940
      %v2004 = vmul.f32 %v1812, %v1940
      %v2005 = vpack.c.bf16 %v1943, %v1941
      %v2006 = vpack.c.bf16 %v1944, %v1942
      %v2007 = vpack.c.bf16 %v1947, %v1945
      %v2008 = vpack.c.bf16 %v1948, %v1946
      %v2009 = vpack.c.bf16 %v1951, %v1949
      %v2010 = vpack.c.bf16 %v1952, %v1950
      %v2011 = vpack.c.bf16 %v1955, %v1953
      %v2012 = vpack.c.bf16 %v1956, %v1954
      %v2013 = vpack.c.bf16 %v1959, %v1957
      %v2014 = vpack.c.bf16 %v1960, %v1958
      %v2015 = vpack.c.bf16 %v1963, %v1961
      %v2016 = vpack.c.bf16 %v1964, %v1962
      %v2017 = vpack.c.bf16 %v1967, %v1965
      %v2018 = vpack.c.bf16 %v1968, %v1966
      %v2019 = vpack.c.bf16 %v1971, %v1969
      %v2020 = vpack.c.bf16 %v1972, %v1970
      %v2021 = vpack.c.bf16 %v1975, %v1973
      %v2022 = vpack.c.bf16 %v1976, %v1974
      %v2023 = vpack.c.bf16 %v1979, %v1977
      %v2024 = vpack.c.bf16 %v1980, %v1978
      %v2025 = vpack.c.bf16 %v1983, %v1981
      %v2026 = vpack.c.bf16 %v1984, %v1982
      %v2027 = vpack.c.bf16 %v1987, %v1985
      %v2028 = vpack.c.bf16 %v1988, %v1986
      %v2029 = vpack.c.bf16 %v1991, %v1989
      %v2030 = vpack.c.bf16 %v1992, %v1990
      %v2031 = vpack.c.bf16 %v1995, %v1993
      %v2032 = vpack.c.bf16 %v1996, %v1994
      %v2033 = vpack.c.bf16 %v1999, %v1997
      %v2034 = vpack.c.bf16 %v2000, %v1998
      %v2035 = vpack.c.bf16 %v2003, %v2001
      %v2036 = vpack.c.bf16 %v2004, %v2002
      %v2038 = vunpack.c.l.b16 %v893
      %v2039 = vunpack.c.h.b16 %v893
      %v2040 = vpack.c.b16 %v2038, %v2038
      %v2041 = vpack.c.b16 %v2039, %v2039
      %2044 = vmatpush.bf16.xpose.msra.mxu0 %v2019
      %2045 = vmatpush.bf16.xpose.msra.mxu0 %v2017
      %2046 = vmatpush.bf16.xpose.msra.mxu0 %v2015
      %2047 = vmatpush.bf16.xpose.msra.mxu0 %v2013
      %2048 = vmatpush.bf16.xpose.msra.mxu0 %v2011
      %2049 = vmatpush.bf16.xpose.msra.mxu0 %v2009
      %2050 = vmatpush.bf16.xpose.msra.mxu0 %v2007
      %2051 = vmatpush.bf16.xpose.msra.mxu0 %v2005
      %2052 = vmatmul.bf16.gmra.mxu0 %v2040
      %v2053 = vpop.f32.mrf.mxu0
      %v2054 = vadd.f32 0.0, %v2053
      %v2055 = vpop.f32.mrf.mxu0
      %2056 = vdwg.mxu0
      %2057 = vmatpush.bf16.xpose.msra.mxu0 %v2020
      %2058 = vmatpush.bf16.xpose.msra.mxu0 %v2018
      %2059 = vmatpush.bf16.xpose.msra.mxu0 %v2016
      %2060 = vmatpush.bf16.xpose.msra.mxu0 %v2014
      %2061 = vmatpush.bf16.xpose.msra.mxu0 %v2012
      %2062 = vmatpush.bf16.xpose.msra.mxu0 %v2010
      %2063 = vmatpush.bf16.xpose.msra.mxu0 %v2008
      %2064 = vmatpush.bf16.xpose.msra.mxu0 %v2006
      %2065 = vmatmul.bf16.gmra.mxu0 %v2041
      %v2066 = vpop.f32.mrf.mxu0
      %v2067 = vadd.f32 %v2054, %v2066
      %v2068 = vpop.f32.mrf.mxu0
      %2069 = vdwg.mxu0
      %2070 = vmatpush.bf16.xpose.msra.mxu0 %v2035
      %2071 = vmatpush.bf16.xpose.msra.mxu0 %v2033
      %2072 = vmatpush.bf16.xpose.msra.mxu0 %v2031
      %2073 = vmatpush.bf16.xpose.msra.mxu0 %v2029
      %2074 = vmatpush.bf16.xpose.msra.mxu0 %v2027
      %2075 = vmatpush.bf16.xpose.msra.mxu0 %v2025
      %2076 = vmatpush.bf16.xpose.msra.mxu0 %v2023
      %2077 = vmatpush.bf16.xpose.msra.mxu0 %v2021
      %2078 = vmatmul.bf16.gmra.mxu0 %v2040
      %v2079 = vpop.f32.mrf.mxu0
      %v2080 = vadd.f32 0.0, %v2079
      %v2081 = vpop.f32.mrf.mxu0
      %2082 = vdwg.mxu0
      %2083 = vmatpush.bf16.xpose.msra.mxu0 %v2036
      %2084 = vmatpush.bf16.xpose.msra.mxu0 %v2034
      %2085 = vmatpush.bf16.xpose.msra.mxu0 %v2032
      %2086 = vmatpush.bf16.xpose.msra.mxu0 %v2030
      %2087 = vmatpush.bf16.xpose.msra.mxu0 %v2028
      %2088 = vmatpush.bf16.xpose.msra.mxu0 %v2026
      %2089 = vmatpush.bf16.xpose.msra.mxu0 %v2024
      %2090 = vmatpush.bf16.xpose.msra.mxu0 %v2022
      %2091 = vmatmul.bf16.gmra.mxu0 %v2041
      %v2092 = vpop.f32.mrf.mxu0
      %v2093 = vadd.f32 %v2080, %v2092
      %v2094 = vpop.f32.mrf.mxu0
      %2095 = vdwg.mxu0
      %2096 = vrot.lane.b32.xlu0 %v993, 120
      %v2097 = vpop.permute.xlu0 %2096
      %2098 = vrot.lane.b32.xlu0 %v994, 120
      %v2099 = vpop.permute.xlu0 %2098
      %2100 = vrot.lane.b32.xlu0 %v995, 120
      %v2101 = vpop.permute.xlu0 %2100
      %2102 = vrot.lane.b32.xlu0 %v996, 120
      %v2103 = vpop.permute.xlu0 %2102
      %2104 = vrot.lane.b32.xlu0 %v997, 120
      %v2105 = vpop.permute.xlu0 %2104
      %2106 = vrot.lane.b32.xlu0 %v998, 120
      %v2107 = vpop.permute.xlu0 %2106
      %2108 = vrot.lane.b32.xlu0 %v999, 120
      %v2109 = vpop.permute.xlu0 %2108
      %2110 = vrot.lane.b32.xlu0 %v1000, 120
      %v2111 = vpop.permute.xlu0 %2110
      %2112 = vrot.lane.b32.xlu0 %v1001, 120
      %v2113 = vpop.permute.xlu0 %2112
      %2114 = vrot.lane.b32.xlu0 %v1002, 120
      %v2115 = vpop.permute.xlu0 %2114
      %2116 = vrot.lane.b32.xlu0 %v1003, 120
      %v2117 = vpop.permute.xlu0 %2116
      %2118 = vrot.lane.b32.xlu0 %v1004, 120
      %v2119 = vpop.permute.xlu0 %2118
      %2120 = vrot.lane.b32.xlu0 %v1005, 120
      %v2121 = vpop.permute.xlu0 %2120
      %2122 = vrot.lane.b32.xlu0 %v1006, 120
      %v2123 = vpop.permute.xlu0 %2122
      %2124 = vrot.lane.b32.xlu0 %v1007, 120
      %v2125 = vpop.permute.xlu0 %2124
      %2126 = vrot.lane.b32.xlu0 %v1008, 120
      %v2127 = vpop.permute.xlu0 %2126
      %v2130 = vsel %vm1121, %v2097, %v1073
      %v2133 = vsel %vm1121, %v2099, %v1074
      %v2136 = vsel %vm1121, %v2101, %v1075
      %v2139 = vsel %vm1121, %v2103, %v1076
      %v2142 = vsel %vm1121, %v2105, %v1077
      %v2145 = vsel %vm1121, %v2107, %v1078
      %v2148 = vsel %vm1121, %v2109, %v1079
      %v2151 = vsel %vm1121, %v2111, %v1080
      %v2154 = vsel %vm1121, %v2113, %v1081
      %v2157 = vsel %vm1121, %v2115, %v1082
      %v2160 = vsel %vm1121, %v2117, %v1083
      %v2163 = vsel %vm1121, %v2119, %v1084
      %v2166 = vsel %vm1121, %v2121, %v1085
      %v2169 = vsel %vm1121, %v2123, %v1086
      %v2172 = vsel %vm1121, %v2125, %v1087
      %v2175 = vsel %vm1121, %v2127, %v1088
      %2176 = vrot.lane.b32.xlu0 %v993, 88
      %v2177 = vpop.permute.xlu0 %2176
      %2178 = vrot.lane.b32.xlu0 %v994, 88
      %v2179 = vpop.permute.xlu0 %2178
      %2180 = vrot.lane.b32.xlu0 %v995, 88
      %v2181 = vpop.permute.xlu0 %2180
      %2182 = vrot.lane.b32.xlu0 %v996, 88
      %v2183 = vpop.permute.xlu0 %2182
      %2184 = vrot.lane.b32.xlu0 %v997, 88
      %v2185 = vpop.permute.xlu0 %2184
      %2186 = vrot.lane.b32.xlu0 %v998, 88
      %v2187 = vpop.permute.xlu0 %2186
      %2188 = vrot.lane.b32.xlu0 %v999, 88
      %v2189 = vpop.permute.xlu0 %2188
      %2190 = vrot.lane.b32.xlu0 %v1000, 88
      %v2191 = vpop.permute.xlu0 %2190
      %2192 = vrot.lane.b32.xlu0 %v1001, 88
      %v2193 = vpop.permute.xlu0 %2192
      %2194 = vrot.lane.b32.xlu0 %v1002, 88
      %v2195 = vpop.permute.xlu0 %2194
      %2196 = vrot.lane.b32.xlu0 %v1003, 88
      %v2197 = vpop.permute.xlu0 %2196
      %2198 = vrot.lane.b32.xlu0 %v1004, 88
      %v2199 = vpop.permute.xlu0 %2198
      %2200 = vrot.lane.b32.xlu0 %v1005, 88
      %v2201 = vpop.permute.xlu0 %2200
      %2202 = vrot.lane.b32.xlu0 %v1006, 88
      %v2203 = vpop.permute.xlu0 %2202
      %2204 = vrot.lane.b32.xlu0 %v1007, 88
      %v2205 = vpop.permute.xlu0 %2204
      %2206 = vrot.lane.b32.xlu0 %v1008, 88
      %v2207 = vpop.permute.xlu0 %2206
      %v2209 = vsel %vm1121, %v2177, %v993
      %v2211 = vsel %vm1121, %v2179, %v994
      %v2213 = vsel %vm1121, %v2181, %v995
      %v2215 = vsel %vm1121, %v2183, %v996
      %v2217 = vsel %vm1121, %v2185, %v997
      %v2219 = vsel %vm1121, %v2187, %v998
      %v2221 = vsel %vm1121, %v2189, %v999
      %v2223 = vsel %vm1121, %v2191, %v1000
      %v2225 = vsel %vm1121, %v2193, %v1001
      %v2227 = vsel %vm1121, %v2195, %v1002
      %v2229 = vsel %vm1121, %v2197, %v1003
      %v2231 = vsel %vm1121, %v2199, %v1004
      %v2233 = vsel %vm1121, %v2201, %v1005
      %v2235 = vsel %vm1121, %v2203, %v1006
      %v2237 = vsel %vm1121, %v2205, %v1007
      %v2239 = vsel %vm1121, %v2207, %v1008
      %v2240 = vsel %vm1282, %v2130, 0
      %v2242 = vsel %vm1282, %v2133, 0
      %v2244 = vsel %vm1282, %v2136, 0
      %v2246 = vsel %vm1282, %v2139, 0
      %v2248 = vsel %vm1282, %v2142, 0
      %v2250 = vsel %vm1282, %v2145, 0
      %v2252 = vsel %vm1282, %v2148, 0
      %v2254 = vsel %vm1282, %v2151, 0
      %v2256 = vsel %vm1282, %v2154, 0
      %v2258 = vsel %vm1282, %v2157, 0
      %v2260 = vsel %vm1282, %v2160, 0
      %v2262 = vsel %vm1282, %v2163, 0
      %v2264 = vsel %vm1282, %v2166, 0
      %v2266 = vsel %vm1282, %v2169, 0
      %v2268 = vsel %vm1282, %v2172, 0
      %v2270 = vsel %vm1282, %v2175, 0
      %v2272 = vsel %vm1282, %v2209, 0
      %v2274 = vsel %vm1282, %v2211, 0
      %v2276 = vsel %vm1282, %v2213, 0
      %v2278 = vsel %vm1282, %v2215, 0
      %v2280 = vsel %vm1282, %v2217, 0
      %v2282 = vsel %vm1282, %v2219, 0
      %v2284 = vsel %vm1282, %v2221, 0
      %v2286 = vsel %vm1282, %v2223, 0
      %v2288 = vsel %vm1282, %v2225, 0
      %v2290 = vsel %vm1282, %v2227, 0
      %v2292 = vsel %vm1282, %v2229, 0
      %v2294 = vsel %vm1282, %v2231, 0
      %v2296 = vsel %vm1282, %v2233, 0
      %v2298 = vsel %vm1282, %v2235, 0
      %v2300 = vsel %vm1282, %v2237, 0
      %v2302 = vsel %vm1282, %v2239, 0
      %2304 = vmatpush.bf16.xpose.msra.mxu0 %v2286
      %2305 = vmatpush.bf16.xpose.msra.mxu0 %v2284
      %2306 = vmatpush.bf16.xpose.msra.mxu0 %v2282
      %2307 = vmatpush.bf16.xpose.msra.mxu0 %v2280
      %2308 = vmatpush.bf16.xpose.msra.mxu0 %v2278
      %2309 = vmatpush.bf16.xpose.msra.mxu0 %v2276
      %2310 = vmatpush.bf16.xpose.msra.mxu0 %v2274
      %2311 = vmatpush.bf16.xpose.msra.mxu0 %v2272
      %2312 = vmatmul.bf16.gmra.mxu0 %v2240
      %v2313 = vpop.f32.mrf.mxu0
      %v2314 = vadd.f32 0.0, %v2313
      %v2315 = vpop.f32.mrf.mxu0
      %v2316 = vadd.f32 0.0, %v2315
      %2317 = vmatmul.bf16.gmra.mxu0 %v2242
      %v2318 = vpop.f32.mrf.mxu0
      %v2319 = vadd.f32 0.0, %v2318
      %v2320 = vpop.f32.mrf.mxu0
      %v2321 = vadd.f32 0.0, %v2320
      %2322 = vmatmul.bf16.gmra.mxu0 %v2244
      %v2323 = vpop.f32.mrf.mxu0
      %v2324 = vadd.f32 0.0, %v2323
      %v2325 = vpop.f32.mrf.mxu0
      %v2326 = vadd.f32 0.0, %v2325
      %2327 = vmatmul.bf16.gmra.mxu0 %v2246
      %v2328 = vpop.f32.mrf.mxu0
      %v2329 = vadd.f32 0.0, %v2328
      %v2330 = vpop.f32.mrf.mxu0
      %v2331 = vadd.f32 0.0, %v2330
      %2332 = vmatmul.bf16.gmra.mxu0 %v2248
      %v2333 = vpop.f32.mrf.mxu0
      %v2334 = vadd.f32 0.0, %v2333
      %v2335 = vpop.f32.mrf.mxu0
      %v2336 = vadd.f32 0.0, %v2335
      %2337 = vmatmul.bf16.gmra.mxu0 %v2250
      %v2338 = vpop.f32.mrf.mxu0
      %v2339 = vadd.f32 0.0, %v2338
      %v2340 = vpop.f32.mrf.mxu0
      %v2341 = vadd.f32 0.0, %v2340
      %2342 = vmatmul.bf16.gmra.mxu0 %v2252
      %v2343 = vpop.f32.mrf.mxu0
      %v2344 = vadd.f32 0.0, %v2343
      %v2345 = vpop.f32.mrf.mxu0
      %v2346 = vadd.f32 0.0, %v2345
      %2347 = vmatmul.bf16.gmra.mxu0 %v2254
      %v2348 = vpop.f32.mrf.mxu0
      %v2349 = vadd.f32 0.0, %v2348
      %v2350 = vpop.f32.mrf.mxu0
      %v2351 = vadd.f32 0.0, %v2350
      %2352 = vmatmul.bf16.gmra.mxu0 %v2256
      %v2353 = vpop.f32.mrf.mxu0
      %v2354 = vadd.f32 0.0, %v2353
      %v2355 = vpop.f32.mrf.mxu0
      %v2356 = vadd.f32 0.0, %v2355
      %2357 = vmatmul.bf16.gmra.mxu0 %v2258
      %v2358 = vpop.f32.mrf.mxu0
      %v2359 = vadd.f32 0.0, %v2358
      %v2360 = vpop.f32.mrf.mxu0
      %v2361 = vadd.f32 0.0, %v2360
      %2362 = vmatmul.bf16.gmra.mxu0 %v2260
      %v2363 = vpop.f32.mrf.mxu0
      %v2364 = vadd.f32 0.0, %v2363
      %v2365 = vpop.f32.mrf.mxu0
      %v2366 = vadd.f32 0.0, %v2365
      %2367 = vmatmul.bf16.gmra.mxu0 %v2262
      %v2368 = vpop.f32.mrf.mxu0
      %v2369 = vadd.f32 0.0, %v2368
      %v2370 = vpop.f32.mrf.mxu0
      %v2371 = vadd.f32 0.0, %v2370
      %2372 = vmatmul.bf16.gmra.mxu0 %v2264
      %v2373 = vpop.f32.mrf.mxu0
      %v2374 = vadd.f32 0.0, %v2373
      %v2375 = vpop.f32.mrf.mxu0
      %v2376 = vadd.f32 0.0, %v2375
      %2377 = vmatmul.bf16.gmra.mxu0 %v2266
      %v2378 = vpop.f32.mrf.mxu0
      %v2379 = vadd.f32 0.0, %v2378
      %v2380 = vpop.f32.mrf.mxu0
      %v2381 = vadd.f32 0.0, %v2380
      %2382 = vmatmul.bf16.gmra.mxu0 %v2268
      %v2383 = vpop.f32.mrf.mxu0
      %v2384 = vadd.f32 0.0, %v2383
      %v2385 = vpop.f32.mrf.mxu0
      %v2386 = vadd.f32 0.0, %v2385
      %2387 = vmatmul.bf16.gmra.mxu0 %v2270
      %v2388 = vpop.f32.mrf.mxu0
      %v2389 = vadd.f32 0.0, %v2388
      %v2390 = vpop.f32.mrf.mxu0
      %v2391 = vadd.f32 0.0, %v2390
      %2392 = vdwg.mxu0
      %2393 = vmatpush.bf16.xpose.msra.mxu0 %v2302
      %2394 = vmatpush.bf16.xpose.msra.mxu0 %v2300
      %2395 = vmatpush.bf16.xpose.msra.mxu0 %v2298
      %2396 = vmatpush.bf16.xpose.msra.mxu0 %v2296
      %2397 = vmatpush.bf16.xpose.msra.mxu0 %v2294
      %2398 = vmatpush.bf16.xpose.msra.mxu0 %v2292
      %2399 = vmatpush.bf16.xpose.msra.mxu0 %v2290
      %2400 = vmatpush.bf16.xpose.msra.mxu0 %v2288
      %2401 = vmatmul.bf16.gmra.mxu0 %v2240
      %v2402 = vpop.f32.mrf.mxu0
      %v2403 = vadd.f32 0.0, %v2402
      %v2404 = vpop.f32.mrf.mxu0
      %v2405 = vadd.f32 0.0, %v2404
      %2406 = vmatmul.bf16.gmra.mxu0 %v2242
      %v2407 = vpop.f32.mrf.mxu0
      %v2408 = vadd.f32 0.0, %v2407
      %v2409 = vpop.f32.mrf.mxu0
      %v2410 = vadd.f32 0.0, %v2409
      %2411 = vmatmul.bf16.gmra.mxu0 %v2244
      %v2412 = vpop.f32.mrf.mxu0
      %v2413 = vadd.f32 0.0, %v2412
      %v2414 = vpop.f32.mrf.mxu0
      %v2415 = vadd.f32 0.0, %v2414
      %2416 = vmatmul.bf16.gmra.mxu0 %v2246
      %v2417 = vpop.f32.mrf.mxu0
      %v2418 = vadd.f32 0.0, %v2417
      %v2419 = vpop.f32.mrf.mxu0
      %v2420 = vadd.f32 0.0, %v2419
      %2421 = vmatmul.bf16.gmra.mxu0 %v2248
      %v2422 = vpop.f32.mrf.mxu0
      %v2423 = vadd.f32 0.0, %v2422
      %v2424 = vpop.f32.mrf.mxu0
      %v2425 = vadd.f32 0.0, %v2424
      %2426 = vmatmul.bf16.gmra.mxu0 %v2250
      %v2427 = vpop.f32.mrf.mxu0
      %v2428 = vadd.f32 0.0, %v2427
      %v2429 = vpop.f32.mrf.mxu0
      %v2430 = vadd.f32 0.0, %v2429
      %2431 = vmatmul.bf16.gmra.mxu0 %v2252
      %v2432 = vpop.f32.mrf.mxu0
      %v2433 = vadd.f32 0.0, %v2432
      %v2434 = vpop.f32.mrf.mxu0
      %v2435 = vadd.f32 0.0, %v2434
      %2436 = vmatmul.bf16.gmra.mxu0 %v2254
      %v2437 = vpop.f32.mrf.mxu0
      %v2438 = vadd.f32 0.0, %v2437
      %v2439 = vpop.f32.mrf.mxu0
      %v2440 = vadd.f32 0.0, %v2439
      %2441 = vmatmul.bf16.gmra.mxu0 %v2256
      %v2442 = vpop.f32.mrf.mxu0
      %v2443 = vadd.f32 0.0, %v2442
      %v2444 = vpop.f32.mrf.mxu0
      %v2445 = vadd.f32 0.0, %v2444
      %2446 = vmatmul.bf16.gmra.mxu0 %v2258
      %v2447 = vpop.f32.mrf.mxu0
      %v2448 = vadd.f32 0.0, %v2447
      %v2449 = vpop.f32.mrf.mxu0
      %v2450 = vadd.f32 0.0, %v2449
      %2451 = vmatmul.bf16.gmra.mxu0 %v2260
      %v2452 = vpop.f32.mrf.mxu0
      %v2453 = vadd.f32 0.0, %v2452
      %v2454 = vpop.f32.mrf.mxu0
      %v2455 = vadd.f32 0.0, %v2454
      %2456 = vmatmul.bf16.gmra.mxu0 %v2262
      %v2457 = vpop.f32.mrf.mxu0
      %v2458 = vadd.f32 0.0, %v2457
      %v2459 = vpop.f32.mrf.mxu0
      %v2460 = vadd.f32 0.0, %v2459
      %2461 = vmatmul.bf16.gmra.mxu0 %v2264
      %v2462 = vpop.f32.mrf.mxu0
      %v2463 = vadd.f32 0.0, %v2462
      %v2464 = vpop.f32.mrf.mxu0
      %v2465 = vadd.f32 0.0, %v2464
      %2466 = vmatmul.bf16.gmra.mxu0 %v2266
      %v2467 = vpop.f32.mrf.mxu0
      %v2468 = vadd.f32 0.0, %v2467
      %v2469 = vpop.f32.mrf.mxu0
      %v2470 = vadd.f32 0.0, %v2469
      %2471 = vmatmul.bf16.gmra.mxu0 %v2268
      %v2472 = vpop.f32.mrf.mxu0
      %v2473 = vadd.f32 0.0, %v2472
      %v2474 = vpop.f32.mrf.mxu0
      %v2475 = vadd.f32 0.0, %v2474
      %2476 = vmatmul.bf16.gmra.mxu0 %v2270
      %v2477 = vpop.f32.mrf.mxu0
      %v2478 = vadd.f32 0.0, %v2477
      %v2479 = vpop.f32.mrf.mxu0
      %v2480 = vadd.f32 0.0, %v2479
      %2481 = vdwg.mxu0
      %v2482 = vmax.f32 %v2314, %v2403
      %2483 = vmax.xlane.f32.xlu0 %v2482
      %v2484 = vpop.xlane.xlu0 %2483
      %v2485 = vmax.f32 %v2316, %v2405
      %2486 = vmax.xlane.f32.xlu0 %v2485
      %v2487 = vpop.xlane.xlu0 %2486
      %v2488 = vmax.f32 %v2319, %v2408
      %2489 = vmax.xlane.f32.xlu0 %v2488
      %v2490 = vpop.xlane.xlu0 %2489
      %v2491 = vmax.f32 %v2321, %v2410
      %2492 = vmax.xlane.f32.xlu0 %v2491
      %v2493 = vpop.xlane.xlu0 %2492
      %v2494 = vmax.f32 %v2324, %v2413
      %2495 = vmax.xlane.f32.xlu0 %v2494
      %v2496 = vpop.xlane.xlu0 %2495
      %v2497 = vmax.f32 %v2326, %v2415
      %2498 = vmax.xlane.f32.xlu0 %v2497
      %v2499 = vpop.xlane.xlu0 %2498
      %v2500 = vmax.f32 %v2329, %v2418
      %2501 = vmax.xlane.f32.xlu0 %v2500
      %v2502 = vpop.xlane.xlu0 %2501
      %v2503 = vmax.f32 %v2331, %v2420
      %2504 = vmax.xlane.f32.xlu0 %v2503
      %v2505 = vpop.xlane.xlu0 %2504
      %v2506 = vmax.f32 %v2334, %v2423
      %2507 = vmax.xlane.f32.xlu0 %v2506
      %v2508 = vpop.xlane.xlu0 %2507
      %v2509 = vmax.f32 %v2336, %v2425
      %2510 = vmax.xlane.f32.xlu0 %v2509
      %v2511 = vpop.xlane.xlu0 %2510
      %v2512 = vmax.f32 %v2339, %v2428
      %2513 = vmax.xlane.f32.xlu0 %v2512
      %v2514 = vpop.xlane.xlu0 %2513
      %v2515 = vmax.f32 %v2341, %v2430
      %2516 = vmax.xlane.f32.xlu0 %v2515
      %v2517 = vpop.xlane.xlu0 %2516
      %v2518 = vmax.f32 %v2344, %v2433
      %2519 = vmax.xlane.f32.xlu0 %v2518
      %v2520 = vpop.xlane.xlu0 %2519
      %v2521 = vmax.f32 %v2346, %v2435
      %2522 = vmax.xlane.f32.xlu0 %v2521
      %v2523 = vpop.xlane.xlu0 %2522
      %v2524 = vmax.f32 %v2349, %v2438
      %2525 = vmax.xlane.f32.xlu0 %v2524
      %v2526 = vpop.xlane.xlu0 %2525
      %v2527 = vmax.f32 %v2351, %v2440
      %2528 = vmax.xlane.f32.xlu0 %v2527
      %v2529 = vpop.xlane.xlu0 %2528
      %v2530 = vmax.f32 %v2354, %v2443
      %2531 = vmax.xlane.f32.xlu0 %v2530
      %v2532 = vpop.xlane.xlu0 %2531
      %v2533 = vmax.f32 %v2356, %v2445
      %2534 = vmax.xlane.f32.xlu0 %v2533
      %v2535 = vpop.xlane.xlu0 %2534
      %v2536 = vmax.f32 %v2359, %v2448
      %2537 = vmax.xlane.f32.xlu0 %v2536
      %v2538 = vpop.xlane.xlu0 %2537
      %v2539 = vmax.f32 %v2361, %v2450
      %2540 = vmax.xlane.f32.xlu0 %v2539
      %v2541 = vpop.xlane.xlu0 %2540
      %v2542 = vmax.f32 %v2364, %v2453
      %2543 = vmax.xlane.f32.xlu0 %v2542
      %v2544 = vpop.xlane.xlu0 %2543
      %v2545 = vmax.f32 %v2366, %v2455
      %2546 = vmax.xlane.f32.xlu0 %v2545
      %v2547 = vpop.xlane.xlu0 %2546
      %v2548 = vmax.f32 %v2369, %v2458
      %2549 = vmax.xlane.f32.xlu0 %v2548
      %v2550 = vpop.xlane.xlu0 %2549
      %v2551 = vmax.f32 %v2371, %v2460
      %2552 = vmax.xlane.f32.xlu0 %v2551
      %v2553 = vpop.xlane.xlu0 %2552
      %v2554 = vmax.f32 %v2374, %v2463
      %2555 = vmax.xlane.f32.xlu0 %v2554
      %v2556 = vpop.xlane.xlu0 %2555
      %v2557 = vmax.f32 %v2376, %v2465
      %2558 = vmax.xlane.f32.xlu0 %v2557
      %v2559 = vpop.xlane.xlu0 %2558
      %v2560 = vmax.f32 %v2379, %v2468
      %2561 = vmax.xlane.f32.xlu0 %v2560
      %v2562 = vpop.xlane.xlu0 %2561
      %v2563 = vmax.f32 %v2381, %v2470
      %2564 = vmax.xlane.f32.xlu0 %v2563
      %v2565 = vpop.xlane.xlu0 %2564
      %v2566 = vmax.f32 %v2384, %v2473
      %2567 = vmax.xlane.f32.xlu0 %v2566
      %v2568 = vpop.xlane.xlu0 %2567
      %v2569 = vmax.f32 %v2386, %v2475
      %2570 = vmax.xlane.f32.xlu0 %v2569
      %v2571 = vpop.xlane.xlu0 %2570
      %v2572 = vmax.f32 %v2389, %v2478
      %2573 = vmax.xlane.f32.xlu0 %v2572
      %v2574 = vpop.xlane.xlu0 %2573
      %v2575 = vmax.f32 %v2391, %v2480
      %2576 = vmax.xlane.f32.xlu0 %v2575
      %v2577 = vpop.xlane.xlu0 %2576
      %v2578 = vsub.f32 %v2314, %v2484
      %v2579 = vsub.f32 %v2403, %v2484
      %v2580 = vsub.f32 %v2316, %v2487
      %v2581 = vsub.f32 %v2405, %v2487
      %v2582 = vsub.f32 %v2319, %v2490
      %v2583 = vsub.f32 %v2408, %v2490
      %v2584 = vsub.f32 %v2321, %v2493
      %v2585 = vsub.f32 %v2410, %v2493
      %v2586 = vsub.f32 %v2324, %v2496
      %v2587 = vsub.f32 %v2413, %v2496
      %v2588 = vsub.f32 %v2326, %v2499
      %v2589 = vsub.f32 %v2415, %v2499
      %v2590 = vsub.f32 %v2329, %v2502
      %v2591 = vsub.f32 %v2418, %v2502
      %v2592 = vsub.f32 %v2331, %v2505
      %v2593 = vsub.f32 %v2420, %v2505
      %v2594 = vsub.f32 %v2334, %v2508
      %v2595 = vsub.f32 %v2423, %v2508
      %v2596 = vsub.f32 %v2336, %v2511
      %v2597 = vsub.f32 %v2425, %v2511
      %v2598 = vsub.f32 %v2339, %v2514
      %v2599 = vsub.f32 %v2428, %v2514
      %v2600 = vsub.f32 %v2341, %v2517
      %v2601 = vsub.f32 %v2430, %v2517
      %v2602 = vsub.f32 %v2344, %v2520
      %v2603 = vsub.f32 %v2433, %v2520
      %v2604 = vsub.f32 %v2346, %v2523
      %v2605 = vsub.f32 %v2435, %v2523
      %v2606 = vsub.f32 %v2349, %v2526
      %v2607 = vsub.f32 %v2438, %v2526
      %v2608 = vsub.f32 %v2351, %v2529
      %v2609 = vsub.f32 %v2440, %v2529
      %v2610 = vsub.f32 %v2354, %v2532
      %v2611 = vsub.f32 %v2443, %v2532
      %v2612 = vsub.f32 %v2356, %v2535
      %v2613 = vsub.f32 %v2445, %v2535
      %v2614 = vsub.f32 %v2359, %v2538
      %v2615 = vsub.f32 %v2448, %v2538
      %v2616 = vsub.f32 %v2361, %v2541
      %v2617 = vsub.f32 %v2450, %v2541
      %v2618 = vsub.f32 %v2364, %v2544
      %v2619 = vsub.f32 %v2453, %v2544
      %v2620 = vsub.f32 %v2366, %v2547
      %v2621 = vsub.f32 %v2455, %v2547
      %v2622 = vsub.f32 %v2369, %v2550
      %v2623 = vsub.f32 %v2458, %v2550
      %v2624 = vsub.f32 %v2371, %v2553
      %v2625 = vsub.f32 %v2460, %v2553
      %v2626 = vsub.f32 %v2374, %v2556
      %v2627 = vsub.f32 %v2463, %v2556
      %v2628 = vsub.f32 %v2376, %v2559
      %v2629 = vsub.f32 %v2465, %v2559
      %v2630 = vsub.f32 %v2379, %v2562
      %v2631 = vsub.f32 %v2468, %v2562
      %v2632 = vsub.f32 %v2381, %v2565
      %v2633 = vsub.f32 %v2470, %v2565
      %v2634 = vsub.f32 %v2384, %v2568
      %v2635 = vsub.f32 %v2473, %v2568
      %v2636 = vsub.f32 %v2386, %v2571
      %v2637 = vsub.f32 %v2475, %v2571
      %v2638 = vsub.f32 %v2389, %v2574
      %v2639 = vsub.f32 %v2478, %v2574
      %v2640 = vsub.f32 %v2391, %v2577
      %v2641 = vsub.f32 %v2480, %v2577
      %v2642 = vmul.f32 %v2578, 1.442695
      %v2643 = vpow.pop %v2642
      %v2644 = vmul.f32 %v2579, 1.442695
      %v2645 = vpow.pop %v2644
      %v2646 = vmul.f32 %v2580, 1.442695
      %v2647 = vpow.pop %v2646
      %v2648 = vmul.f32 %v2581, 1.442695
      %v2649 = vpow.pop %v2648
      %v2650 = vmul.f32 %v2582, 1.442695
      %v2651 = vpow.pop %v2650
      %v2652 = vmul.f32 %v2583, 1.442695
      %v2653 = vpow.pop %v2652
      %v2654 = vmul.f32 %v2584, 1.442695
      %v2655 = vpow.pop %v2654
      %v2656 = vmul.f32 %v2585, 1.442695
      %v2657 = vpow.pop %v2656
      %v2658 = vmul.f32 %v2586, 1.442695
      %v2659 = vpow.pop %v2658
      %v2660 = vmul.f32 %v2587, 1.442695
      %v2661 = vpow.pop %v2660
      %v2662 = vmul.f32 %v2588, 1.442695
      %v2663 = vpow.pop %v2662
      %v2664 = vmul.f32 %v2589, 1.442695
      %v2665 = vpow.pop %v2664
      %v2666 = vmul.f32 %v2590, 1.442695
      %v2667 = vpow.pop %v2666
      %v2668 = vmul.f32 %v2591, 1.442695
      %v2669 = vpow.pop %v2668
      %v2670 = vmul.f32 %v2592, 1.442695
      %v2671 = vpow.pop %v2670
      %v2672 = vmul.f32 %v2593, 1.442695
      %v2673 = vpow.pop %v2672
      %v2674 = vmul.f32 %v2594, 1.442695
      %v2675 = vpow.pop %v2674
      %v2676 = vmul.f32 %v2595, 1.442695
      %v2677 = vpow.pop %v2676
      %v2678 = vmul.f32 %v2596, 1.442695
      %v2679 = vpow.pop %v2678
      %v2680 = vmul.f32 %v2597, 1.442695
      %v2681 = vpow.pop %v2680
      %v2682 = vmul.f32 %v2598, 1.442695
      %v2683 = vpow.pop %v2682
      %v2684 = vmul.f32 %v2599, 1.442695
      %v2685 = vpow.pop %v2684
      %v2686 = vmul.f32 %v2600, 1.442695
      %v2687 = vpow.pop %v2686
      %v2688 = vmul.f32 %v2601, 1.442695
      %v2689 = vpow.pop %v2688
      %v2690 = vmul.f32 %v2602, 1.442695
      %v2691 = vpow.pop %v2690
      %v2692 = vmul.f32 %v2603, 1.442695
      %v2693 = vpow.pop %v2692
      %v2694 = vmul.f32 %v2604, 1.442695
      %v2695 = vpow.pop %v2694
      %v2696 = vmul.f32 %v2605, 1.442695
      %v2697 = vpow.pop %v2696
      %v2698 = vmul.f32 %v2606, 1.442695
      %v2699 = vpow.pop %v2698
      %v2700 = vmul.f32 %v2607, 1.442695
      %v2701 = vpow.pop %v2700
      %v2702 = vmul.f32 %v2608, 1.442695
      %v2703 = vpow.pop %v2702
      %v2704 = vmul.f32 %v2609, 1.442695
      %v2705 = vpow.pop %v2704
      %v2706 = vmul.f32 %v2610, 1.442695
      %v2707 = vpow.pop %v2706
      %v2708 = vmul.f32 %v2611, 1.442695
      %v2709 = vpow.pop %v2708
      %v2710 = vmul.f32 %v2612, 1.442695
      %v2711 = vpow.pop %v2710
      %v2712 = vmul.f32 %v2613, 1.442695
      %v2713 = vpow.pop %v2712
      %v2714 = vmul.f32 %v2614, 1.442695
      %v2715 = vpow.pop %v2714
      %v2716 = vmul.f32 %v2615, 1.442695
      %v2717 = vpow.pop %v2716
      %v2718 = vmul.f32 %v2616, 1.442695
      %v2719 = vpow.pop %v2718
      %v2720 = vmul.f32 %v2617, 1.442695
      %v2721 = vpow.pop %v2720
      %v2722 = vmul.f32 %v2618, 1.442695
      %v2723 = vpow.pop %v2722
      %v2724 = vmul.f32 %v2619, 1.442695
      %v2725 = vpow.pop %v2724
      %v2726 = vmul.f32 %v2620, 1.442695
      %v2727 = vpow.pop %v2726
      %v2728 = vmul.f32 %v2621, 1.442695
      %v2729 = vpow.pop %v2728
      %v2730 = vmul.f32 %v2622, 1.442695
      %v2731 = vpow.pop %v2730
      %v2732 = vmul.f32 %v2623, 1.442695
      %v2733 = vpow.pop %v2732
      %v2734 = vmul.f32 %v2624, 1.442695
      %v2735 = vpow.pop %v2734
      %v2736 = vmul.f32 %v2625, 1.442695
      %v2737 = vpow.pop %v2736
      %v2738 = vmul.f32 %v2626, 1.442695
      %v2739 = vpow.pop %v2738
      %v2740 = vmul.f32 %v2627, 1.442695
      %v2741 = vpow.pop %v2740
      %v2742 = vmul.f32 %v2628, 1.442695
      %v2743 = vpow.pop %v2742
      %v2744 = vmul.f32 %v2629, 1.442695
      %v2745 = vpow.pop %v2744
      %v2746 = vmul.f32 %v2630, 1.442695
      %v2747 = vpow.pop %v2746
      %v2748 = vmul.f32 %v2631, 1.442695
      %v2749 = vpow.pop %v2748
      %v2750 = vmul.f32 %v2632, 1.442695
      %v2751 = vpow.pop %v2750
      %v2752 = vmul.f32 %v2633, 1.442695
      %v2753 = vpow.pop %v2752
      %v2754 = vmul.f32 %v2634, 1.442695
      %v2755 = vpow.pop %v2754
      %v2756 = vmul.f32 %v2635, 1.442695
      %v2757 = vpow.pop %v2756
      %v2758 = vmul.f32 %v2636, 1.442695
      %v2759 = vpow.pop %v2758
      %v2760 = vmul.f32 %v2637, 1.442695
      %v2761 = vpow.pop %v2760
      %v2762 = vmul.f32 %v2638, 1.442695
      %v2763 = vpow.pop %v2762
      %v2764 = vmul.f32 %v2639, 1.442695
      %v2765 = vpow.pop %v2764
      %v2766 = vmul.f32 %v2640, 1.442695
      %v2767 = vpow.pop %v2766
      %v2768 = vmul.f32 %v2641, 1.442695
      %v2769 = vpow.pop %v2768
      %v2770 = vadd.f32 %v2643, %v2645
      %2771 = vadd.xlane.f32.xlu0 %v2770
      %v2772 = vpop.xlane.xlu0 %2771
      %v2773 = vadd.f32 %v2647, %v2649
      %2774 = vadd.xlane.f32.xlu0 %v2773
      %v2775 = vpop.xlane.xlu0 %2774
      %v2776 = vadd.f32 %v2651, %v2653
      %2777 = vadd.xlane.f32.xlu0 %v2776
      %v2778 = vpop.xlane.xlu0 %2777
      %v2779 = vadd.f32 %v2655, %v2657
      %2780 = vadd.xlane.f32.xlu0 %v2779
      %v2781 = vpop.xlane.xlu0 %2780
      %v2782 = vadd.f32 %v2659, %v2661
      %2783 = vadd.xlane.f32.xlu0 %v2782
      %v2784 = vpop.xlane.xlu0 %2783
      %v2785 = vadd.f32 %v2663, %v2665
      %2786 = vadd.xlane.f32.xlu0 %v2785
      %v2787 = vpop.xlane.xlu0 %2786
      %v2788 = vadd.f32 %v2667, %v2669
      %2789 = vadd.xlane.f32.xlu0 %v2788
      %v2790 = vpop.xlane.xlu0 %2789
      %v2791 = vadd.f32 %v2671, %v2673
      %2792 = vadd.xlane.f32.xlu0 %v2791
      %v2793 = vpop.xlane.xlu0 %2792
      %v2794 = vadd.f32 %v2675, %v2677
      %2795 = vadd.xlane.f32.xlu0 %v2794
      %v2796 = vpop.xlane.xlu0 %2795
      %v2797 = vadd.f32 %v2679, %v2681
      %2798 = vadd.xlane.f32.xlu0 %v2797
      %v2799 = vpop.xlane.xlu0 %2798
      %v2800 = vadd.f32 %v2683, %v2685
      %2801 = vadd.xlane.f32.xlu0 %v2800
      %v2802 = vpop.xlane.xlu0 %2801
      %v2803 = vadd.f32 %v2687, %v2689
      %2804 = vadd.xlane.f32.xlu0 %v2803
      %v2805 = vpop.xlane.xlu0 %2804
      %v2806 = vadd.f32 %v2691, %v2693
      %2807 = vadd.xlane.f32.xlu0 %v2806
      %v2808 = vpop.xlane.xlu0 %2807
      %v2809 = vadd.f32 %v2695, %v2697
      %2810 = vadd.xlane.f32.xlu0 %v2809
      %v2811 = vpop.xlane.xlu0 %2810
      %v2812 = vadd.f32 %v2699, %v2701
      %2813 = vadd.xlane.f32.xlu0 %v2812
      %v2814 = vpop.xlane.xlu0 %2813
      %v2815 = vadd.f32 %v2703, %v2705
      %2816 = vadd.xlane.f32.xlu0 %v2815
      %v2817 = vpop.xlane.xlu0 %2816
      %v2818 = vadd.f32 %v2707, %v2709
      %2819 = vadd.xlane.f32.xlu0 %v2818
      %v2820 = vpop.xlane.xlu0 %2819
      %v2821 = vadd.f32 %v2711, %v2713
      %2822 = vadd.xlane.f32.xlu0 %v2821
      %v2823 = vpop.xlane.xlu0 %2822
      %v2824 = vadd.f32 %v2715, %v2717
      %2825 = vadd.xlane.f32.xlu0 %v2824
      %v2826 = vpop.xlane.xlu0 %2825
      %v2827 = vadd.f32 %v2719, %v2721
      %2828 = vadd.xlane.f32.xlu0 %v2827
      %v2829 = vpop.xlane.xlu0 %2828
      %v2830 = vadd.f32 %v2723, %v2725
      %2831 = vadd.xlane.f32.xlu0 %v2830
      %v2832 = vpop.xlane.xlu0 %2831
      %v2833 = vadd.f32 %v2727, %v2729
      %2834 = vadd.xlane.f32.xlu0 %v2833
      %v2835 = vpop.xlane.xlu0 %2834
      %v2836 = vadd.f32 %v2731, %v2733
      %2837 = vadd.xlane.f32.xlu0 %v2836
      %v2838 = vpop.xlane.xlu0 %2837
      %v2839 = vadd.f32 %v2735, %v2737
      %2840 = vadd.xlane.f32.xlu0 %v2839
      %v2841 = vpop.xlane.xlu0 %2840
      %v2842 = vadd.f32 %v2739, %v2741
      %2843 = vadd.xlane.f32.xlu0 %v2842
      %v2844 = vpop.xlane.xlu0 %2843
      %v2845 = vadd.f32 %v2743, %v2745
      %2846 = vadd.xlane.f32.xlu0 %v2845
      %v2847 = vpop.xlane.xlu0 %2846
      %v2848 = vadd.f32 %v2747, %v2749
      %2849 = vadd.xlane.f32.xlu0 %v2848
      %v2850 = vpop.xlane.xlu0 %2849
      %v2851 = vadd.f32 %v2751, %v2753
      %2852 = vadd.xlane.f32.xlu0 %v2851
      %v2853 = vpop.xlane.xlu0 %2852
      %v2854 = vadd.f32 %v2755, %v2757
      %2855 = vadd.xlane.f32.xlu0 %v2854
      %v2856 = vpop.xlane.xlu0 %2855
      %v2857 = vadd.f32 %v2759, %v2761
      %2858 = vadd.xlane.f32.xlu0 %v2857
      %v2859 = vpop.xlane.xlu0 %2858
      %v2860 = vadd.f32 %v2763, %v2765
      %2861 = vadd.xlane.f32.xlu0 %v2860
      %v2862 = vpop.xlane.xlu0 %2861
      %v2863 = vadd.f32 %v2767, %v2769
      %2864 = vadd.xlane.f32.xlu0 %v2863
      %v2865 = vpop.xlane.xlu0 %2864
      %v2866 = vrcp.pop %v2772
      %v2867 = vrcp.pop %v2775
      %v2868 = vrcp.pop %v2778
      %v2869 = vrcp.pop %v2781
      %v2870 = vrcp.pop %v2784
      %v2871 = vrcp.pop %v2787
      %v2872 = vrcp.pop %v2790
      %v2873 = vrcp.pop %v2793
      %v2874 = vrcp.pop %v2796
      %v2875 = vrcp.pop %v2799
      %v2876 = vrcp.pop %v2802
      %v2877 = vrcp.pop %v2805
      %v2878 = vrcp.pop %v2808
      %v2879 = vrcp.pop %v2811
      %v2880 = vrcp.pop %v2814
      %v2881 = vrcp.pop %v2817
      %v2882 = vrcp.pop %v2820
      %v2883 = vrcp.pop %v2823
      %v2884 = vrcp.pop %v2826
      %v2885 = vrcp.pop %v2829
      %v2886 = vrcp.pop %v2832
      %v2887 = vrcp.pop %v2835
      %v2888 = vrcp.pop %v2838
      %v2889 = vrcp.pop %v2841
      %v2890 = vrcp.pop %v2844
      %v2891 = vrcp.pop %v2847
      %v2892 = vrcp.pop %v2850
      %v2893 = vrcp.pop %v2853
      %v2894 = vrcp.pop %v2856
      %v2895 = vrcp.pop %v2859
      %v2896 = vrcp.pop %v2862
      %v2897 = vrcp.pop %v2865
      %v2898 = vmul.f32 %v2643, %v2866
      %v2899 = vmul.f32 %v2645, %v2866
      %v2900 = vmul.f32 %v2647, %v2867
      %v2901 = vmul.f32 %v2649, %v2867
      %v2902 = vmul.f32 %v2651, %v2868
      %v2903 = vmul.f32 %v2653, %v2868
      %v2904 = vmul.f32 %v2655, %v2869
      %v2905 = vmul.f32 %v2657, %v2869
      %v2906 = vmul.f32 %v2659, %v2870
      %v2907 = vmul.f32 %v2661, %v2870
      %v2908 = vmul.f32 %v2663, %v2871
      %v2909 = vmul.f32 %v2665, %v2871
      %v2910 = vmul.f32 %v2667, %v2872
      %v2911 = vmul.f32 %v2669, %v2872
      %v2912 = vmul.f32 %v2671, %v2873
      %v2913 = vmul.f32 %v2673, %v2873
      %v2914 = vmul.f32 %v2675, %v2874
      %v2915 = vmul.f32 %v2677, %v2874
      %v2916 = vmul.f32 %v2679, %v2875
      %v2917 = vmul.f32 %v2681, %v2875
      %v2918 = vmul.f32 %v2683, %v2876
      %v2919 = vmul.f32 %v2685, %v2876
      %v2920 = vmul.f32 %v2687, %v2877
      %v2921 = vmul.f32 %v2689, %v2877
      %v2922 = vmul.f32 %v2691, %v2878
      %v2923 = vmul.f32 %v2693, %v2878
      %v2924 = vmul.f32 %v2695, %v2879
      %v2925 = vmul.f32 %v2697, %v2879
      %v2926 = vmul.f32 %v2699, %v2880
      %v2927 = vmul.f32 %v2701, %v2880
      %v2928 = vmul.f32 %v2703, %v2881
      %v2929 = vmul.f32 %v2705, %v2881
      %v2930 = vmul.f32 %v2707, %v2882
      %v2931 = vmul.f32 %v2709, %v2882
      %v2932 = vmul.f32 %v2711, %v2883
      %v2933 = vmul.f32 %v2713, %v2883
      %v2934 = vmul.f32 %v2715, %v2884
      %v2935 = vmul.f32 %v2717, %v2884
      %v2936 = vmul.f32 %v2719, %v2885
      %v2937 = vmul.f32 %v2721, %v2885
      %v2938 = vmul.f32 %v2723, %v2886
      %v2939 = vmul.f32 %v2725, %v2886
      %v2940 = vmul.f32 %v2727, %v2887
      %v2941 = vmul.f32 %v2729, %v2887
      %v2942 = vmul.f32 %v2731, %v2888
      %v2943 = vmul.f32 %v2733, %v2888
      %v2944 = vmul.f32 %v2735, %v2889
      %v2945 = vmul.f32 %v2737, %v2889
      %v2946 = vmul.f32 %v2739, %v2890
      %v2947 = vmul.f32 %v2741, %v2890
      %v2948 = vmul.f32 %v2743, %v2891
      %v2949 = vmul.f32 %v2745, %v2891
      %v2950 = vmul.f32 %v2747, %v2892
      %v2951 = vmul.f32 %v2749, %v2892
      %v2952 = vmul.f32 %v2751, %v2893
      %v2953 = vmul.f32 %v2753, %v2893
      %v2954 = vmul.f32 %v2755, %v2894
      %v2955 = vmul.f32 %v2757, %v2894
      %v2956 = vmul.f32 %v2759, %v2895
      %v2957 = vmul.f32 %v2761, %v2895
      %v2958 = vmul.f32 %v2763, %v2896
      %v2959 = vmul.f32 %v2765, %v2896
      %v2960 = vmul.f32 %v2767, %v2897
      %v2961 = vmul.f32 %v2769, %v2897
      %v2962 = vpack.c.bf16 %v2900, %v2898
      %v2963 = vpack.c.bf16 %v2901, %v2899
      %v2964 = vpack.c.bf16 %v2904, %v2902
      %v2965 = vpack.c.bf16 %v2905, %v2903
      %v2966 = vpack.c.bf16 %v2908, %v2906
      %v2967 = vpack.c.bf16 %v2909, %v2907
      %v2968 = vpack.c.bf16 %v2912, %v2910
      %v2969 = vpack.c.bf16 %v2913, %v2911
      %v2970 = vpack.c.bf16 %v2916, %v2914
      %v2971 = vpack.c.bf16 %v2917, %v2915
      %v2972 = vpack.c.bf16 %v2920, %v2918
      %v2973 = vpack.c.bf16 %v2921, %v2919
      %v2974 = vpack.c.bf16 %v2924, %v2922
      %v2975 = vpack.c.bf16 %v2925, %v2923
      %v2976 = vpack.c.bf16 %v2928, %v2926
      %v2977 = vpack.c.bf16 %v2929, %v2927
      %v2978 = vpack.c.bf16 %v2932, %v2930
      %v2979 = vpack.c.bf16 %v2933, %v2931
      %v2980 = vpack.c.bf16 %v2936, %v2934
      %v2981 = vpack.c.bf16 %v2937, %v2935
      %v2982 = vpack.c.bf16 %v2940, %v2938
      %v2983 = vpack.c.bf16 %v2941, %v2939
      %v2984 = vpack.c.bf16 %v2944, %v2942
      %v2985 = vpack.c.bf16 %v2945, %v2943
      %v2986 = vpack.c.bf16 %v2948, %v2946
      %v2987 = vpack.c.bf16 %v2949, %v2947
      %v2988 = vpack.c.bf16 %v2952, %v2950
      %v2989 = vpack.c.bf16 %v2953, %v2951
      %v2990 = vpack.c.bf16 %v2956, %v2954
      %v2991 = vpack.c.bf16 %v2957, %v2955
      %v2992 = vpack.c.bf16 %v2960, %v2958
      %v2993 = vpack.c.bf16 %v2961, %v2959
      %v2995 = vunpack.c.l.b16 %v894
      %v2996 = vunpack.c.h.b16 %v894
      %v2997 = vpack.c.b16 %v2995, %v2995
      %v2998 = vpack.c.b16 %v2996, %v2996
      %3001 = vmatpush.bf16.xpose.msra.mxu0 %v2976
      %3002 = vmatpush.bf16.xpose.msra.mxu0 %v2974
      %3003 = vmatpush.bf16.xpose.msra.mxu0 %v2972
      %3004 = vmatpush.bf16.xpose.msra.mxu0 %v2970
      %3005 = vmatpush.bf16.xpose.msra.mxu0 %v2968
      %3006 = vmatpush.bf16.xpose.msra.mxu0 %v2966
      %3007 = vmatpush.bf16.xpose.msra.mxu0 %v2964
      %3008 = vmatpush.bf16.xpose.msra.mxu0 %v2962
      %3009 = vmatmul.bf16.gmra.mxu0 %v2997
      %v3010 = vpop.f32.mrf.mxu0
      %v3011 = vadd.f32 0.0, %v3010
      %v3012 = vpop.f32.mrf.mxu0
      %3013 = vdwg.mxu0
      %3014 = vmatpush.bf16.xpose.msra.mxu0 %v2977
      %3015 = vmatpush.bf16.xpose.msra.mxu0 %v2975
      %3016 = vmatpush.bf16.xpose.msra.mxu0 %v2973
      %3017 = vmatpush.bf16.xpose.msra.mxu0 %v2971
      %3018 = vmatpush.bf16.xpose.msra.mxu0 %v2969
      %3019 = vmatpush.bf16.xpose.msra.mxu0 %v2967
      %3020 = vmatpush.bf16.xpose.msra.mxu0 %v2965
      %3021 = vmatpush.bf16.xpose.msra.mxu0 %v2963
      %3022 = vmatmul.bf16.gmra.mxu0 %v2998
      %v3023 = vpop.f32.mrf.mxu0
      %v3024 = vadd.f32 %v3011, %v3023
      %v3025 = vpop.f32.mrf.mxu0
      %3026 = vdwg.mxu0
      %3027 = vmatpush.bf16.xpose.msra.mxu0 %v2992
      %3028 = vmatpush.bf16.xpose.msra.mxu0 %v2990
      %3029 = vmatpush.bf16.xpose.msra.mxu0 %v2988
      %3030 = vmatpush.bf16.xpose.msra.mxu0 %v2986
      %3031 = vmatpush.bf16.xpose.msra.mxu0 %v2984
      %3032 = vmatpush.bf16.xpose.msra.mxu0 %v2982
      %3033 = vmatpush.bf16.xpose.msra.mxu0 %v2980
      %3034 = vmatpush.bf16.xpose.msra.mxu0 %v2978
      %3035 = vmatmul.bf16.gmra.mxu0 %v2997
      %v3036 = vpop.f32.mrf.mxu0
      %v3037 = vadd.f32 0.0, %v3036
      %v3038 = vpop.f32.mrf.mxu0
      %3039 = vdwg.mxu0
      %3040 = vmatpush.bf16.xpose.msra.mxu0 %v2993
      %3041 = vmatpush.bf16.xpose.msra.mxu0 %v2991
      %3042 = vmatpush.bf16.xpose.msra.mxu0 %v2989
      %3043 = vmatpush.bf16.xpose.msra.mxu0 %v2987
      %3044 = vmatpush.bf16.xpose.msra.mxu0 %v2985
      %3045 = vmatpush.bf16.xpose.msra.mxu0 %v2983
      %3046 = vmatpush.bf16.xpose.msra.mxu0 %v2981
      %3047 = vmatpush.bf16.xpose.msra.mxu0 %v2979
      %3048 = vmatmul.bf16.gmra.mxu0 %v2998
      %v3049 = vpop.f32.mrf.mxu0
      %v3050 = vadd.f32 %v3037, %v3049
      %v3051 = vpop.f32.mrf.mxu0
      %3052 = vdwg.mxu0
      %3053 = vrot.lane.b32.xlu0 %v993, 112
      %v3054 = vpop.permute.xlu0 %3053
      %3055 = vrot.lane.b32.xlu0 %v994, 112
      %v3056 = vpop.permute.xlu0 %3055
      %3057 = vrot.lane.b32.xlu0 %v995, 112
      %v3058 = vpop.permute.xlu0 %3057
      %3059 = vrot.lane.b32.xlu0 %v996, 112
      %v3060 = vpop.permute.xlu0 %3059
      %3061 = vrot.lane.b32.xlu0 %v997, 112
      %v3062 = vpop.permute.xlu0 %3061
      %3063 = vrot.lane.b32.xlu0 %v998, 112
      %v3064 = vpop.permute.xlu0 %3063
      %3065 = vrot.lane.b32.xlu0 %v999, 112
      %v3066 = vpop.permute.xlu0 %3065
      %3067 = vrot.lane.b32.xlu0 %v1000, 112
      %v3068 = vpop.permute.xlu0 %3067
      %3069 = vrot.lane.b32.xlu0 %v1001, 112
      %v3070 = vpop.permute.xlu0 %3069
      %3071 = vrot.lane.b32.xlu0 %v1002, 112
      %v3072 = vpop.permute.xlu0 %3071
      %3073 = vrot.lane.b32.xlu0 %v1003, 112
      %v3074 = vpop.permute.xlu0 %3073
      %3075 = vrot.lane.b32.xlu0 %v1004, 112
      %v3076 = vpop.permute.xlu0 %3075
      %3077 = vrot.lane.b32.xlu0 %v1005, 112
      %v3078 = vpop.permute.xlu0 %3077
      %3079 = vrot.lane.b32.xlu0 %v1006, 112
      %v3080 = vpop.permute.xlu0 %3079
      %3081 = vrot.lane.b32.xlu0 %v1007, 112
      %v3082 = vpop.permute.xlu0 %3081
      %3083 = vrot.lane.b32.xlu0 %v1008, 112
      %v3084 = vpop.permute.xlu0 %3083
      %3085 = vrot.lane.b32.xlu0 %v1073, 120
      %v3086 = vpop.permute.xlu0 %3085
      %3087 = vrot.lane.b32.xlu0 %v1074, 120
      %v3088 = vpop.permute.xlu0 %3087
      %3089 = vrot.lane.b32.xlu0 %v1075, 120
      %v3090 = vpop.permute.xlu0 %3089
      %3091 = vrot.lane.b32.xlu0 %v1076, 120
      %v3092 = vpop.permute.xlu0 %3091
      %3093 = vrot.lane.b32.xlu0 %v1077, 120
      %v3094 = vpop.permute.xlu0 %3093
      %3095 = vrot.lane.b32.xlu0 %v1078, 120
      %v3096 = vpop.permute.xlu0 %3095
      %3097 = vrot.lane.b32.xlu0 %v1079, 120
      %v3098 = vpop.permute.xlu0 %3097
      %3099 = vrot.lane.b32.xlu0 %v1080, 120
      %v3100 = vpop.permute.xlu0 %3099
      %3101 = vrot.lane.b32.xlu0 %v1081, 120
      %v3102 = vpop.permute.xlu0 %3101
      %3103 = vrot.lane.b32.xlu0 %v1082, 120
      %v3104 = vpop.permute.xlu0 %3103
      %3105 = vrot.lane.b32.xlu0 %v1083, 120
      %v3106 = vpop.permute.xlu0 %3105
      %3107 = vrot.lane.b32.xlu0 %v1084, 120
      %v3108 = vpop.permute.xlu0 %3107
      %3109 = vrot.lane.b32.xlu0 %v1085, 120
      %v3110 = vpop.permute.xlu0 %3109
      %3111 = vrot.lane.b32.xlu0 %v1086, 120
      %v3112 = vpop.permute.xlu0 %3111
      %3113 = vrot.lane.b32.xlu0 %v1087, 120
      %v3114 = vpop.permute.xlu0 %3113
      %3115 = vrot.lane.b32.xlu0 %v1088, 120
      %v3116 = vpop.permute.xlu0 %3115
      %v3119 = vsel %vm1121, %v3054, %v3086
      %v3122 = vsel %vm1121, %v3056, %v3088
      %v3125 = vsel %vm1121, %v3058, %v3090
      %v3128 = vsel %vm1121, %v3060, %v3092
      %v3131 = vsel %vm1121, %v3062, %v3094
      %v3134 = vsel %vm1121, %v3064, %v3096
      %v3137 = vsel %vm1121, %v3066, %v3098
      %v3140 = vsel %vm1121, %v3068, %v3100
      %v3143 = vsel %vm1121, %v3070, %v3102
      %v3146 = vsel %vm1121, %v3072, %v3104
      %v3149 = vsel %vm1121, %v3074, %v3106
      %v3152 = vsel %vm1121, %v3076, %v3108
      %v3155 = vsel %vm1121, %v3078, %v3110
      %v3158 = vsel %vm1121, %v3080, %v3112
      %v3161 = vsel %vm1121, %v3082, %v3114
      %v3164 = vsel %vm1121, %v3084, %v3116
      %3165 = vrot.lane.b32.xlu0 %v993, 80
      %v3166 = vpop.permute.xlu0 %3165
      %3167 = vrot.lane.b32.xlu0 %v994, 80
      %v3168 = vpop.permute.xlu0 %3167
      %3169 = vrot.lane.b32.xlu0 %v995, 80
      %v3170 = vpop.permute.xlu0 %3169
      %3171 = vrot.lane.b32.xlu0 %v996, 80
      %v3172 = vpop.permute.xlu0 %3171
      %3173 = vrot.lane.b32.xlu0 %v997, 80
      %v3174 = vpop.permute.xlu0 %3173
      %3175 = vrot.lane.b32.xlu0 %v998, 80
      %v3176 = vpop.permute.xlu0 %3175
      %3177 = vrot.lane.b32.xlu0 %v999, 80
      %v3178 = vpop.permute.xlu0 %3177
      %3179 = vrot.lane.b32.xlu0 %v1000, 80
      %v3180 = vpop.permute.xlu0 %3179
      %3181 = vrot.lane.b32.xlu0 %v1001, 80
      %v3182 = vpop.permute.xlu0 %3181
      %3183 = vrot.lane.b32.xlu0 %v1002, 80
      %v3184 = vpop.permute.xlu0 %3183
      %3185 = vrot.lane.b32.xlu0 %v1003, 80
      %v3186 = vpop.permute.xlu0 %3185
      %3187 = vrot.lane.b32.xlu0 %v1004, 80
      %v3188 = vpop.permute.xlu0 %3187
      %3189 = vrot.lane.b32.xlu0 %v1005, 80
      %v3190 = vpop.permute.xlu0 %3189
      %3191 = vrot.lane.b32.xlu0 %v1006, 80
      %v3192 = vpop.permute.xlu0 %3191
      %3193 = vrot.lane.b32.xlu0 %v1007, 80
      %v3194 = vpop.permute.xlu0 %3193
      %3195 = vrot.lane.b32.xlu0 %v1008, 80
      %v3196 = vpop.permute.xlu0 %3195
      %v3198 = vsel %vm1121, %v3166, %v2097
      %v3200 = vsel %vm1121, %v3168, %v2099
      %v3202 = vsel %vm1121, %v3170, %v2101
      %v3204 = vsel %vm1121, %v3172, %v2103
      %v3206 = vsel %vm1121, %v3174, %v2105
      %v3208 = vsel %vm1121, %v3176, %v2107
      %v3210 = vsel %vm1121, %v3178, %v2109
      %v3212 = vsel %vm1121, %v3180, %v2111
      %v3214 = vsel %vm1121, %v3182, %v2113
      %v3216 = vsel %vm1121, %v3184, %v2115
      %v3218 = vsel %vm1121, %v3186, %v2117
      %v3220 = vsel %vm1121, %v3188, %v2119
      %v3222 = vsel %vm1121, %v3190, %v2121
      %v3224 = vsel %vm1121, %v3192, %v2123
      %v3226 = vsel %vm1121, %v3194, %v2125
      %v3228 = vsel %vm1121, %v3196, %v2127
      %v3229 = vsel %vm1282, %v3119, 0
      %v3231 = vsel %vm1282, %v3122, 0
      %v3233 = vsel %vm1282, %v3125, 0
      %v3235 = vsel %vm1282, %v3128, 0
      %v3237 = vsel %vm1282, %v3131, 0
      %v3239 = vsel %vm1282, %v3134, 0
      %v3241 = vsel %vm1282, %v3137, 0
      %v3243 = vsel %vm1282, %v3140, 0
      %v3245 = vsel %vm1282, %v3143, 0
      %v3247 = vsel %vm1282, %v3146, 0
      %v3249 = vsel %vm1282, %v3149, 0
      %v3251 = vsel %vm1282, %v3152, 0
      %v3253 = vsel %vm1282, %v3155, 0
      %v3255 = vsel %vm1282, %v3158, 0
      %v3257 = vsel %vm1282, %v3161, 0
      %v3259 = vsel %vm1282, %v3164, 0
      %v3261 = vsel %vm1282, %v3198, 0
      %v3263 = vsel %vm1282, %v3200, 0
      %v3265 = vsel %vm1282, %v3202, 0
      %v3267 = vsel %vm1282, %v3204, 0
      %v3269 = vsel %vm1282, %v3206, 0
      %v3271 = vsel %vm1282, %v3208, 0
      %v3273 = vsel %vm1282, %v3210, 0
      %v3275 = vsel %vm1282, %v3212, 0
      %v3277 = vsel %vm1282, %v3214, 0
      %v3279 = vsel %vm1282, %v3216, 0
      %v3281 = vsel %vm1282, %v3218, 0
      %v3283 = vsel %vm1282, %v3220, 0
      %v3285 = vsel %vm1282, %v3222, 0
      %v3287 = vsel %vm1282, %v3224, 0
      %v3289 = vsel %vm1282, %v3226, 0
      %v3291 = vsel %vm1282, %v3228, 0
      %3293 = vmatpush.bf16.xpose.msra.mxu0 %v3275
      %3294 = vmatpush.bf16.xpose.msra.mxu0 %v3273
      %3295 = vmatpush.bf16.xpose.msra.mxu0 %v3271
      %3296 = vmatpush.bf16.xpose.msra.mxu0 %v3269
      %3297 = vmatpush.bf16.xpose.msra.mxu0 %v3267
      %3298 = vmatpush.bf16.xpose.msra.mxu0 %v3265
      %3299 = vmatpush.bf16.xpose.msra.mxu0 %v3263
      %3300 = vmatpush.bf16.xpose.msra.mxu0 %v3261
      %3301 = vmatmul.bf16.gmra.mxu0 %v3229
      %v3302 = vpop.f32.mrf.mxu0
      %v3303 = vadd.f32 0.0, %v3302
      %v3304 = vpop.f32.mrf.mxu0
      %v3305 = vadd.f32 0.0, %v3304
      %3306 = vmatmul.bf16.gmra.mxu0 %v3231
      %v3307 = vpop.f32.mrf.mxu0
      %v3308 = vadd.f32 0.0, %v3307
      %v3309 = vpop.f32.mrf.mxu0
      %v3310 = vadd.f32 0.0, %v3309
      %3311 = vmatmul.bf16.gmra.mxu0 %v3233
      %v3312 = vpop.f32.mrf.mxu0
      %v3313 = vadd.f32 0.0, %v3312
      %v3314 = vpop.f32.mrf.mxu0
      %v3315 = vadd.f32 0.0, %v3314
      %3316 = vmatmul.bf16.gmra.mxu0 %v3235
      %v3317 = vpop.f32.mrf.mxu0
      %v3318 = vadd.f32 0.0, %v3317
      %v3319 = vpop.f32.mrf.mxu0
      %v3320 = vadd.f32 0.0, %v3319
      %3321 = vmatmul.bf16.gmra.mxu0 %v3237
      %v3322 = vpop.f32.mrf.mxu0
      %v3323 = vadd.f32 0.0, %v3322
      %v3324 = vpop.f32.mrf.mxu0
      %v3325 = vadd.f32 0.0, %v3324
      %3326 = vmatmul.bf16.gmra.mxu0 %v3239
      %v3327 = vpop.f32.mrf.mxu0
      %v3328 = vadd.f32 0.0, %v3327
      %v3329 = vpop.f32.mrf.mxu0
      %v3330 = vadd.f32 0.0, %v3329
      %3331 = vmatmul.bf16.gmra.mxu0 %v3241
      %v3332 = vpop.f32.mrf.mxu0
      %v3333 = vadd.f32 0.0, %v3332
      %v3334 = vpop.f32.mrf.mxu0
      %v3335 = vadd.f32 0.0, %v3334
      %3336 = vmatmul.bf16.gmra.mxu0 %v3243
      %v3337 = vpop.f32.mrf.mxu0
      %v3338 = vadd.f32 0.0, %v3337
      %v3339 = vpop.f32.mrf.mxu0
      %v3340 = vadd.f32 0.0, %v3339
      %3341 = vmatmul.bf16.gmra.mxu0 %v3245
      %v3342 = vpop.f32.mrf.mxu0
      %v3343 = vadd.f32 0.0, %v3342
      %v3344 = vpop.f32.mrf.mxu0
      %v3345 = vadd.f32 0.0, %v3344
      %3346 = vmatmul.bf16.gmra.mxu0 %v3247
      %v3347 = vpop.f32.mrf.mxu0
      %v3348 = vadd.f32 0.0, %v3347
      %v3349 = vpop.f32.mrf.mxu0
      %v3350 = vadd.f32 0.0, %v3349
      %3351 = vmatmul.bf16.gmra.mxu0 %v3249
      %v3352 = vpop.f32.mrf.mxu0
      %v3353 = vadd.f32 0.0, %v3352
      %v3354 = vpop.f32.mrf.mxu0
      %v3355 = vadd.f32 0.0, %v3354
      %3356 = vmatmul.bf16.gmra.mxu0 %v3251
      %v3357 = vpop.f32.mrf.mxu0
      %v3358 = vadd.f32 0.0, %v3357
      %v3359 = vpop.f32.mrf.mxu0
      %v3360 = vadd.f32 0.0, %v3359
      %3361 = vmatmul.bf16.gmra.mxu0 %v3253
      %v3362 = vpop.f32.mrf.mxu0
      %v3363 = vadd.f32 0.0, %v3362
      %v3364 = vpop.f32.mrf.mxu0
      %v3365 = vadd.f32 0.0, %v3364
      %3366 = vmatmul.bf16.gmra.mxu0 %v3255
      %v3367 = vpop.f32.mrf.mxu0
      %v3368 = vadd.f32 0.0, %v3367
      %v3369 = vpop.f32.mrf.mxu0
      %v3370 = vadd.f32 0.0, %v3369
      %3371 = vmatmul.bf16.gmra.mxu0 %v3257
      %v3372 = vpop.f32.mrf.mxu0
      %v3373 = vadd.f32 0.0, %v3372
      %v3374 = vpop.f32.mrf.mxu0
      %v3375 = vadd.f32 0.0, %v3374
      %3376 = vmatmul.bf16.gmra.mxu0 %v3259
      %v3377 = vpop.f32.mrf.mxu0
      %v3378 = vadd.f32 0.0, %v3377
      %v3379 = vpop.f32.mrf.mxu0
      %v3380 = vadd.f32 0.0, %v3379
      %3381 = vdwg.mxu0
      %3382 = vmatpush.bf16.xpose.msra.mxu0 %v3291
      %3383 = vmatpush.bf16.xpose.msra.mxu0 %v3289
      %3384 = vmatpush.bf16.xpose.msra.mxu0 %v3287
      %3385 = vmatpush.bf16.xpose.msra.mxu0 %v3285
      %3386 = vmatpush.bf16.xpose.msra.mxu0 %v3283
      %3387 = vmatpush.bf16.xpose.msra.mxu0 %v3281
      %3388 = vmatpush.bf16.xpose.msra.mxu0 %v3279
      %3389 = vmatpush.bf16.xpose.msra.mxu0 %v3277
      %3390 = vmatmul.bf16.gmra.mxu0 %v3229
      %v3391 = vpop.f32.mrf.mxu0
      %v3392 = vadd.f32 0.0, %v3391
      %v3393 = vpop.f32.mrf.mxu0
      %v3394 = vadd.f32 0.0, %v3393
      %3395 = vmatmul.bf16.gmra.mxu0 %v3231
      %v3396 = vpop.f32.mrf.mxu0
      %v3397 = vadd.f32 0.0, %v3396
      %v3398 = vpop.f32.mrf.mxu0
      %v3399 = vadd.f32 0.0, %v3398
      %3400 = vmatmul.bf16.gmra.mxu0 %v3233
      %v3401 = vpop.f32.mrf.mxu0
      %v3402 = vadd.f32 0.0, %v3401
      %v3403 = vpop.f32.mrf.mxu0
      %v3404 = vadd.f32 0.0, %v3403
      %3405 = vmatmul.bf16.gmra.mxu0 %v3235
      %v3406 = vpop.f32.mrf.mxu0
      %v3407 = vadd.f32 0.0, %v3406
      %v3408 = vpop.f32.mrf.mxu0
      %v3409 = vadd.f32 0.0, %v3408
      %3410 = vmatmul.bf16.gmra.mxu0 %v3237
      %v3411 = vpop.f32.mrf.mxu0
      %v3412 = vadd.f32 0.0, %v3411
      %v3413 = vpop.f32.mrf.mxu0
      %v3414 = vadd.f32 0.0, %v3413
      %3415 = vmatmul.bf16.gmra.mxu0 %v3239
      %v3416 = vpop.f32.mrf.mxu0
      %v3417 = vadd.f32 0.0, %v3416
      %v3418 = vpop.f32.mrf.mxu0
      %v3419 = vadd.f32 0.0, %v3418
      %3420 = vmatmul.bf16.gmra.mxu0 %v3241
      %v3421 = vpop.f32.mrf.mxu0
      %v3422 = vadd.f32 0.0, %v3421
      %v3423 = vpop.f32.mrf.mxu0
      %v3424 = vadd.f32 0.0, %v3423
      %3425 = vmatmul.bf16.gmra.mxu0 %v3243
      %v3426 = vpop.f32.mrf.mxu0
      %v3427 = vadd.f32 0.0, %v3426
      %v3428 = vpop.f32.mrf.mxu0
      %v3429 = vadd.f32 0.0, %v3428
      %3430 = vmatmul.bf16.gmra.mxu0 %v3245
      %v3431 = vpop.f32.mrf.mxu0
      %v3432 = vadd.f32 0.0, %v3431
      %v3433 = vpop.f32.mrf.mxu0
      %v3434 = vadd.f32 0.0, %v3433
      %3435 = vmatmul.bf16.gmra.mxu0 %v3247
      %v3436 = vpop.f32.mrf.mxu0
      %v3437 = vadd.f32 0.0, %v3436
      %v3438 = vpop.f32.mrf.mxu0
      %v3439 = vadd.f32 0.0, %v3438
      %3440 = vmatmul.bf16.gmra.mxu0 %v3249
      %v3441 = vpop.f32.mrf.mxu0
      %v3442 = vadd.f32 0.0, %v3441
      %v3443 = vpop.f32.mrf.mxu0
      %v3444 = vadd.f32 0.0, %v3443
      %3445 = vmatmul.bf16.gmra.mxu0 %v3251
      %v3446 = vpop.f32.mrf.mxu0
      %v3447 = vadd.f32 0.0, %v3446
      %v3448 = vpop.f32.mrf.mxu0
      %v3449 = vadd.f32 0.0, %v3448
      %3450 = vmatmul.bf16.gmra.mxu0 %v3253
      %v3451 = vpop.f32.mrf.mxu0
      %v3452 = vadd.f32 0.0, %v3451
      %v3453 = vpop.f32.mrf.mxu0
      %v3454 = vadd.f32 0.0, %v3453
      %3455 = vmatmul.bf16.gmra.mxu0 %v3255
      %v3456 = vpop.f32.mrf.mxu0
      %v3457 = vadd.f32 0.0, %v3456
      %v3458 = vpop.f32.mrf.mxu0
      %v3459 = vadd.f32 0.0, %v3458
      %3460 = vmatmul.bf16.gmra.mxu0 %v3257
      %v3461 = vpop.f32.mrf.mxu0
      %v3462 = vadd.f32 0.0, %v3461
      %v3463 = vpop.f32.mrf.mxu0
      %v3464 = vadd.f32 0.0, %v3463
      %3465 = vmatmul.bf16.gmra.mxu0 %v3259
      %v3466 = vpop.f32.mrf.mxu0
      %v3467 = vadd.f32 0.0, %v3466
      %v3468 = vpop.f32.mrf.mxu0
      %v3469 = vadd.f32 0.0, %v3468
      %3470 = vdwg.mxu0
      %v3471 = vmax.f32 %v3303, %v3392
      %3472 = vmax.xlane.f32.xlu0 %v3471
      %v3473 = vpop.xlane.xlu0 %3472
      %v3474 = vmax.f32 %v3305, %v3394
      %3475 = vmax.xlane.f32.xlu0 %v3474
      %v3476 = vpop.xlane.xlu0 %3475
      %v3477 = vmax.f32 %v3308, %v3397
      %3478 = vmax.xlane.f32.xlu0 %v3477
      %v3479 = vpop.xlane.xlu0 %3478
      %v3480 = vmax.f32 %v3310, %v3399
      %3481 = vmax.xlane.f32.xlu0 %v3480
      %v3482 = vpop.xlane.xlu0 %3481
      %v3483 = vmax.f32 %v3313, %v3402
      %3484 = vmax.xlane.f32.xlu0 %v3483
      %v3485 = vpop.xlane.xlu0 %3484
      %v3486 = vmax.f32 %v3315, %v3404
      %3487 = vmax.xlane.f32.xlu0 %v3486
      %v3488 = vpop.xlane.xlu0 %3487
      %v3489 = vmax.f32 %v3318, %v3407
      %3490 = vmax.xlane.f32.xlu0 %v3489
      %v3491 = vpop.xlane.xlu0 %3490
      %v3492 = vmax.f32 %v3320, %v3409
      %3493 = vmax.xlane.f32.xlu0 %v3492
      %v3494 = vpop.xlane.xlu0 %3493
      %v3495 = vmax.f32 %v3323, %v3412
      %3496 = vmax.xlane.f32.xlu0 %v3495
      %v3497 = vpop.xlane.xlu0 %3496
      %v3498 = vmax.f32 %v3325, %v3414
      %3499 = vmax.xlane.f32.xlu0 %v3498
      %v3500 = vpop.xlane.xlu0 %3499
      %v3501 = vmax.f32 %v3328, %v3417
      %3502 = vmax.xlane.f32.xlu0 %v3501
      %v3503 = vpop.xlane.xlu0 %3502
      %v3504 = vmax.f32 %v3330, %v3419
      %3505 = vmax.xlane.f32.xlu0 %v3504
      %v3506 = vpop.xlane.xlu0 %3505
      %v3507 = vmax.f32 %v3333, %v3422
      %3508 = vmax.xlane.f32.xlu0 %v3507
      %v3509 = vpop.xlane.xlu0 %3508
      %v3510 = vmax.f32 %v3335, %v3424
      %3511 = vmax.xlane.f32.xlu0 %v3510
      %v3512 = vpop.xlane.xlu0 %3511
      %v3513 = vmax.f32 %v3338, %v3427
      %3514 = vmax.xlane.f32.xlu0 %v3513
      %v3515 = vpop.xlane.xlu0 %3514
      %v3516 = vmax.f32 %v3340, %v3429
      %3517 = vmax.xlane.f32.xlu0 %v3516
      %v3518 = vpop.xlane.xlu0 %3517
      %v3519 = vmax.f32 %v3343, %v3432
      %3520 = vmax.xlane.f32.xlu0 %v3519
      %v3521 = vpop.xlane.xlu0 %3520
      %v3522 = vmax.f32 %v3345, %v3434
      %3523 = vmax.xlane.f32.xlu0 %v3522
      %v3524 = vpop.xlane.xlu0 %3523
      %v3525 = vmax.f32 %v3348, %v3437
      %3526 = vmax.xlane.f32.xlu0 %v3525
      %v3527 = vpop.xlane.xlu0 %3526
      %v3528 = vmax.f32 %v3350, %v3439
      %3529 = vmax.xlane.f32.xlu0 %v3528
      %v3530 = vpop.xlane.xlu0 %3529
      %v3531 = vmax.f32 %v3353, %v3442
      %3532 = vmax.xlane.f32.xlu0 %v3531
      %v3533 = vpop.xlane.xlu0 %3532
      %v3534 = vmax.f32 %v3355, %v3444
      %3535 = vmax.xlane.f32.xlu0 %v3534
      %v3536 = vpop.xlane.xlu0 %3535
      %v3537 = vmax.f32 %v3358, %v3447
      %3538 = vmax.xlane.f32.xlu0 %v3537
      %v3539 = vpop.xlane.xlu0 %3538
      %v3540 = vmax.f32 %v3360, %v3449
      %3541 = vmax.xlane.f32.xlu0 %v3540
      %v3542 = vpop.xlane.xlu0 %3541
      %v3543 = vmax.f32 %v3363, %v3452
      %3544 = vmax.xlane.f32.xlu0 %v3543
      %v3545 = vpop.xlane.xlu0 %3544
      %v3546 = vmax.f32 %v3365, %v3454
      %3547 = vmax.xlane.f32.xlu0 %v3546
      %v3548 = vpop.xlane.xlu0 %3547
      %v3549 = vmax.f32 %v3368, %v3457
      %3550 = vmax.xlane.f32.xlu0 %v3549
      %v3551 = vpop.xlane.xlu0 %3550
      %v3552 = vmax.f32 %v3370, %v3459
      %3553 = vmax.xlane.f32.xlu0 %v3552
      %v3554 = vpop.xlane.xlu0 %3553
      %v3555 = vmax.f32 %v3373, %v3462
      %3556 = vmax.xlane.f32.xlu0 %v3555
      %v3557 = vpop.xlane.xlu0 %3556
      %v3558 = vmax.f32 %v3375, %v3464
      %3559 = vmax.xlane.f32.xlu0 %v3558
      %v3560 = vpop.xlane.xlu0 %3559
      %v3561 = vmax.f32 %v3378, %v3467
      %3562 = vmax.xlane.f32.xlu0 %v3561
      %v3563 = vpop.xlane.xlu0 %3562
      %v3564 = vmax.f32 %v3380, %v3469
      %3565 = vmax.xlane.f32.xlu0 %v3564
      %v3566 = vpop.xlane.xlu0 %3565
      %v3567 = vsub.f32 %v3303, %v3473
      %v3568 = vsub.f32 %v3392, %v3473
      %v3569 = vsub.f32 %v3305, %v3476
      %v3570 = vsub.f32 %v3394, %v3476
      %v3571 = vsub.f32 %v3308, %v3479
      %v3572 = vsub.f32 %v3397, %v3479
      %v3573 = vsub.f32 %v3310, %v3482
      %v3574 = vsub.f32 %v3399, %v3482
      %v3575 = vsub.f32 %v3313, %v3485
      %v3576 = vsub.f32 %v3402, %v3485
      %v3577 = vsub.f32 %v3315, %v3488
      %v3578 = vsub.f32 %v3404, %v3488
      %v3579 = vsub.f32 %v3318, %v3491
      %v3580 = vsub.f32 %v3407, %v3491
      %v3581 = vsub.f32 %v3320, %v3494
      %v3582 = vsub.f32 %v3409, %v3494
      %v3583 = vsub.f32 %v3323, %v3497
      %v3584 = vsub.f32 %v3412, %v3497
      %v3585 = vsub.f32 %v3325, %v3500
      %v3586 = vsub.f32 %v3414, %v3500
      %v3587 = vsub.f32 %v3328, %v3503
      %v3588 = vsub.f32 %v3417, %v3503
      %v3589 = vsub.f32 %v3330, %v3506
      %v3590 = vsub.f32 %v3419, %v3506
      %v3591 = vsub.f32 %v3333, %v3509
      %v3592 = vsub.f32 %v3422, %v3509
      %v3593 = vsub.f32 %v3335, %v3512
      %v3594 = vsub.f32 %v3424, %v3512
      %v3595 = vsub.f32 %v3338, %v3515
      %v3596 = vsub.f32 %v3427, %v3515
      %v3597 = vsub.f32 %v3340, %v3518
      %v3598 = vsub.f32 %v3429, %v3518
      %v3599 = vsub.f32 %v3343, %v3521
      %v3600 = vsub.f32 %v3432, %v3521
      %v3601 = vsub.f32 %v3345, %v3524
      %v3602 = vsub.f32 %v3434, %v3524
      %v3603 = vsub.f32 %v3348, %v3527
      %v3604 = vsub.f32 %v3437, %v3527
      %v3605 = vsub.f32 %v3350, %v3530
      %v3606 = vsub.f32 %v3439, %v3530
      %v3607 = vsub.f32 %v3353, %v3533
      %v3608 = vsub.f32 %v3442, %v3533
      %v3609 = vsub.f32 %v3355, %v3536
      %v3610 = vsub.f32 %v3444, %v3536
      %v3611 = vsub.f32 %v3358, %v3539
      %v3612 = vsub.f32 %v3447, %v3539
      %v3613 = vsub.f32 %v3360, %v3542
      %v3614 = vsub.f32 %v3449, %v3542
      %v3615 = vsub.f32 %v3363, %v3545
      %v3616 = vsub.f32 %v3452, %v3545
      %v3617 = vsub.f32 %v3365, %v3548
      %v3618 = vsub.f32 %v3454, %v3548
      %v3619 = vsub.f32 %v3368, %v3551
      %v3620 = vsub.f32 %v3457, %v3551
      %v3621 = vsub.f32 %v3370, %v3554
      %v3622 = vsub.f32 %v3459, %v3554
      %v3623 = vsub.f32 %v3373, %v3557
      %v3624 = vsub.f32 %v3462, %v3557
      %v3625 = vsub.f32 %v3375, %v3560
      %v3626 = vsub.f32 %v3464, %v3560
      %v3627 = vsub.f32 %v3378, %v3563
      %v3628 = vsub.f32 %v3467, %v3563
      %v3629 = vsub.f32 %v3380, %v3566
      %v3630 = vsub.f32 %v3469, %v3566
      %v3631 = vmul.f32 %v3567, 1.442695
      %v3632 = vpow.pop %v3631
      %v3633 = vmul.f32 %v3568, 1.442695
      %v3634 = vpow.pop %v3633
      %v3635 = vmul.f32 %v3569, 1.442695
      %v3636 = vpow.pop %v3635
      %v3637 = vmul.f32 %v3570, 1.442695
      %v3638 = vpow.pop %v3637
      %v3639 = vmul.f32 %v3571, 1.442695
      %v3640 = vpow.pop %v3639
      %v3641 = vmul.f32 %v3572, 1.442695
      %v3642 = vpow.pop %v3641
      %v3643 = vmul.f32 %v3573, 1.442695
      %v3644 = vpow.pop %v3643
      %v3645 = vmul.f32 %v3574, 1.442695
      %v3646 = vpow.pop %v3645
      %v3647 = vmul.f32 %v3575, 1.442695
      %v3648 = vpow.pop %v3647
      %v3649 = vmul.f32 %v3576, 1.442695
      %v3650 = vpow.pop %v3649
      %v3651 = vmul.f32 %v3577, 1.442695
      %v3652 = vpow.pop %v3651
      %v3653 = vmul.f32 %v3578, 1.442695
      %v3654 = vpow.pop %v3653
      %v3655 = vmul.f32 %v3579, 1.442695
      %v3656 = vpow.pop %v3655
      %v3657 = vmul.f32 %v3580, 1.442695
      %v3658 = vpow.pop %v3657
      %v3659 = vmul.f32 %v3581, 1.442695
      %v3660 = vpow.pop %v3659
      %v3661 = vmul.f32 %v3582, 1.442695
      %v3662 = vpow.pop %v3661
      %v3663 = vmul.f32 %v3583, 1.442695
      %v3664 = vpow.pop %v3663
      %v3665 = vmul.f32 %v3584, 1.442695
      %v3666 = vpow.pop %v3665
      %v3667 = vmul.f32 %v3585, 1.442695
      %v3668 = vpow.pop %v3667
      %v3669 = vmul.f32 %v3586, 1.442695
      %v3670 = vpow.pop %v3669
      %v3671 = vmul.f32 %v3587, 1.442695
      %v3672 = vpow.pop %v3671
      %v3673 = vmul.f32 %v3588, 1.442695
      %v3674 = vpow.pop %v3673
      %v3675 = vmul.f32 %v3589, 1.442695
      %v3676 = vpow.pop %v3675
      %v3677 = vmul.f32 %v3590, 1.442695
      %v3678 = vpow.pop %v3677
      %v3679 = vmul.f32 %v3591, 1.442695
      %v3680 = vpow.pop %v3679
      %v3681 = vmul.f32 %v3592, 1.442695
      %v3682 = vpow.pop %v3681
      %v3683 = vmul.f32 %v3593, 1.442695
      %v3684 = vpow.pop %v3683
      %v3685 = vmul.f32 %v3594, 1.442695
      %v3686 = vpow.pop %v3685
      %v3687 = vmul.f32 %v3595, 1.442695
      %v3688 = vpow.pop %v3687
      %v3689 = vmul.f32 %v3596, 1.442695
      %v3690 = vpow.pop %v3689
      %v3691 = vmul.f32 %v3597, 1.442695
      %v3692 = vpow.pop %v3691
      %v3693 = vmul.f32 %v3598, 1.442695
      %v3694 = vpow.pop %v3693
      %v3695 = vmul.f32 %v3599, 1.442695
      %v3696 = vpow.pop %v3695
      %v3697 = vmul.f32 %v3600, 1.442695
      %v3698 = vpow.pop %v3697
      %v3699 = vmul.f32 %v3601, 1.442695
      %v3700 = vpow.pop %v3699
      %v3701 = vmul.f32 %v3602, 1.442695
      %v3702 = vpow.pop %v3701
      %v3703 = vmul.f32 %v3603, 1.442695
      %v3704 = vpow.pop %v3703
      %v3705 = vmul.f32 %v3604, 1.442695
      %v3706 = vpow.pop %v3705
      %v3707 = vmul.f32 %v3605, 1.442695
      %v3708 = vpow.pop %v3707
      %v3709 = vmul.f32 %v3606, 1.442695
      %v3710 = vpow.pop %v3709
      %v3711 = vmul.f32 %v3607, 1.442695
      %v3712 = vpow.pop %v3711
      %v3713 = vmul.f32 %v3608, 1.442695
      %v3714 = vpow.pop %v3713
      %v3715 = vmul.f32 %v3609, 1.442695
      %v3716 = vpow.pop %v3715
      %v3717 = vmul.f32 %v3610, 1.442695
      %v3718 = vpow.pop %v3717
      %v3719 = vmul.f32 %v3611, 1.442695
      %v3720 = vpow.pop %v3719
      %v3721 = vmul.f32 %v3612, 1.442695
      %v3722 = vpow.pop %v3721
      %v3723 = vmul.f32 %v3613, 1.442695
      %v3724 = vpow.pop %v3723
      %v3725 = vmul.f32 %v3614, 1.442695
      %v3726 = vpow.pop %v3725
      %v3727 = vmul.f32 %v3615, 1.442695
      %v3728 = vpow.pop %v3727
      %v3729 = vmul.f32 %v3616, 1.442695
      %v3730 = vpow.pop %v3729
      %v3731 = vmul.f32 %v3617, 1.442695
      %v3732 = vpow.pop %v3731
      %v3733 = vmul.f32 %v3618, 1.442695
      %v3734 = vpow.pop %v3733
      %v3735 = vmul.f32 %v3619, 1.442695
      %v3736 = vpow.pop %v3735
      %v3737 = vmul.f32 %v3620, 1.442695
      %v3738 = vpow.pop %v3737
      %v3739 = vmul.f32 %v3621, 1.442695
      %v3740 = vpow.pop %v3739
      %v3741 = vmul.f32 %v3622, 1.442695
      %v3742 = vpow.pop %v3741
      %v3743 = vmul.f32 %v3623, 1.442695
      %v3744 = vpow.pop %v3743
      %v3745 = vmul.f32 %v3624, 1.442695
      %v3746 = vpow.pop %v3745
      %v3747 = vmul.f32 %v3625, 1.442695
      %v3748 = vpow.pop %v3747
      %v3749 = vmul.f32 %v3626, 1.442695
      %v3750 = vpow.pop %v3749
      %v3751 = vmul.f32 %v3627, 1.442695
      %v3752 = vpow.pop %v3751
      %v3753 = vmul.f32 %v3628, 1.442695
      %v3754 = vpow.pop %v3753
      %v3755 = vmul.f32 %v3629, 1.442695
      %v3756 = vpow.pop %v3755
      %v3757 = vmul.f32 %v3630, 1.442695
      %v3758 = vpow.pop %v3757
      %v3759 = vadd.f32 %v3632, %v3634
      %3760 = vadd.xlane.f32.xlu0 %v3759
      %v3761 = vpop.xlane.xlu0 %3760
      %v3762 = vadd.f32 %v3636, %v3638
      %3763 = vadd.xlane.f32.xlu0 %v3762
      %v3764 = vpop.xlane.xlu0 %3763
      %v3765 = vadd.f32 %v3640, %v3642
      %3766 = vadd.xlane.f32.xlu0 %v3765
      %v3767 = vpop.xlane.xlu0 %3766
      %v3768 = vadd.f32 %v3644, %v3646
      %3769 = vadd.xlane.f32.xlu0 %v3768
      %v3770 = vpop.xlane.xlu0 %3769
      %v3771 = vadd.f32 %v3648, %v3650
      %3772 = vadd.xlane.f32.xlu0 %v3771
      %v3773 = vpop.xlane.xlu0 %3772
      %v3774 = vadd.f32 %v3652, %v3654
      %3775 = vadd.xlane.f32.xlu0 %v3774
      %v3776 = vpop.xlane.xlu0 %3775
      %v3777 = vadd.f32 %v3656, %v3658
      %3778 = vadd.xlane.f32.xlu0 %v3777
      %v3779 = vpop.xlane.xlu0 %3778
      %v3780 = vadd.f32 %v3660, %v3662
      %3781 = vadd.xlane.f32.xlu0 %v3780
      %v3782 = vpop.xlane.xlu0 %3781
      %v3783 = vadd.f32 %v3664, %v3666
      %3784 = vadd.xlane.f32.xlu0 %v3783
      %v3785 = vpop.xlane.xlu0 %3784
      %v3786 = vadd.f32 %v3668, %v3670
      %3787 = vadd.xlane.f32.xlu0 %v3786
      %v3788 = vpop.xlane.xlu0 %3787
      %v3789 = vadd.f32 %v3672, %v3674
      %3790 = vadd.xlane.f32.xlu0 %v3789
      %v3791 = vpop.xlane.xlu0 %3790
      %v3792 = vadd.f32 %v3676, %v3678
      %3793 = vadd.xlane.f32.xlu0 %v3792
      %v3794 = vpop.xlane.xlu0 %3793
      %v3795 = vadd.f32 %v3680, %v3682
      %3796 = vadd.xlane.f32.xlu0 %v3795
      %v3797 = vpop.xlane.xlu0 %3796
      %v3798 = vadd.f32 %v3684, %v3686
      %3799 = vadd.xlane.f32.xlu0 %v3798
      %v3800 = vpop.xlane.xlu0 %3799
      %v3801 = vadd.f32 %v3688, %v3690
      %3802 = vadd.xlane.f32.xlu0 %v3801
      %v3803 = vpop.xlane.xlu0 %3802
      %v3804 = vadd.f32 %v3692, %v3694
      %3805 = vadd.xlane.f32.xlu0 %v3804
      %v3806 = vpop.xlane.xlu0 %3805
      %v3807 = vadd.f32 %v3696, %v3698
      %3808 = vadd.xlane.f32.xlu0 %v3807
      %v3809 = vpop.xlane.xlu0 %3808
      %v3810 = vadd.f32 %v3700, %v3702
      %3811 = vadd.xlane.f32.xlu0 %v3810
      %v3812 = vpop.xlane.xlu0 %3811
      %v3813 = vadd.f32 %v3704, %v3706
      %3814 = vadd.xlane.f32.xlu0 %v3813
      %v3815 = vpop.xlane.xlu0 %3814
      %v3816 = vadd.f32 %v3708, %v3710
      %3817 = vadd.xlane.f32.xlu0 %v3816
      %v3818 = vpop.xlane.xlu0 %3817
      %v3819 = vadd.f32 %v3712, %v3714
      %3820 = vadd.xlane.f32.xlu0 %v3819
      %v3821 = vpop.xlane.xlu0 %3820
      %v3822 = vadd.f32 %v3716, %v3718
      %3823 = vadd.xlane.f32.xlu0 %v3822
      %v3824 = vpop.xlane.xlu0 %3823
      %v3825 = vadd.f32 %v3720, %v3722
      %3826 = vadd.xlane.f32.xlu0 %v3825
      %v3827 = vpop.xlane.xlu0 %3826
      %v3828 = vadd.f32 %v3724, %v3726
      %3829 = vadd.xlane.f32.xlu0 %v3828
      %v3830 = vpop.xlane.xlu0 %3829
      %v3831 = vadd.f32 %v3728, %v3730
      %3832 = vadd.xlane.f32.xlu0 %v3831
      %v3833 = vpop.xlane.xlu0 %3832
      %v3834 = vadd.f32 %v3732, %v3734
      %3835 = vadd.xlane.f32.xlu0 %v3834
      %v3836 = vpop.xlane.xlu0 %3835
      %v3837 = vadd.f32 %v3736, %v3738
      %3838 = vadd.xlane.f32.xlu0 %v3837
      %v3839 = vpop.xlane.xlu0 %3838
      %v3840 = vadd.f32 %v3740, %v3742
      %3841 = vadd.xlane.f32.xlu0 %v3840
      %v3842 = vpop.xlane.xlu0 %3841
      %v3843 = vadd.f32 %v3744, %v3746
      %3844 = vadd.xlane.f32.xlu0 %v3843
      %v3845 = vpop.xlane.xlu0 %3844
      %v3846 = vadd.f32 %v3748, %v3750
      %3847 = vadd.xlane.f32.xlu0 %v3846
      %v3848 = vpop.xlane.xlu0 %3847
      %v3849 = vadd.f32 %v3752, %v3754
      %3850 = vadd.xlane.f32.xlu0 %v3849
      %v3851 = vpop.xlane.xlu0 %3850
      %v3852 = vadd.f32 %v3756, %v3758
      %3853 = vadd.xlane.f32.xlu0 %v3852
      %v3854 = vpop.xlane.xlu0 %3853
      %v3855 = vrcp.pop %v3761
      %v3856 = vrcp.pop %v3764
      %v3857 = vrcp.pop %v3767
      %v3858 = vrcp.pop %v3770
      %v3859 = vrcp.pop %v3773
      %v3860 = vrcp.pop %v3776
      %v3861 = vrcp.pop %v3779
      %v3862 = vrcp.pop %v3782
      %v3863 = vrcp.pop %v3785
      %v3864 = vrcp.pop %v3788
      %v3865 = vrcp.pop %v3791
      %v3866 = vrcp.pop %v3794
      %v3867 = vrcp.pop %v3797
      %v3868 = vrcp.pop %v3800
      %v3869 = vrcp.pop %v3803
      %v3870 = vrcp.pop %v3806
      %v3871 = vrcp.pop %v3809
      %v3872 = vrcp.pop %v3812
      %v3873 = vrcp.pop %v3815
      %v3874 = vrcp.pop %v3818
      %v3875 = vrcp.pop %v3821
      %v3876 = vrcp.pop %v3824
      %v3877 = vrcp.pop %v3827
      %v3878 = vrcp.pop %v3830
      %v3879 = vrcp.pop %v3833
      %v3880 = vrcp.pop %v3836
      %v3881 = vrcp.pop %v3839
      %v3882 = vrcp.pop %v3842
      %v3883 = vrcp.pop %v3845
      %v3884 = vrcp.pop %v3848
      %v3885 = vrcp.pop %v3851
      %v3886 = vrcp.pop %v3854
      %v3887 = vmul.f32 %v3632, %v3855
      %v3888 = vmul.f32 %v3634, %v3855
      %v3889 = vmul.f32 %v3636, %v3856
      %v3890 = vmul.f32 %v3638, %v3856
      %v3891 = vmul.f32 %v3640, %v3857
      %v3892 = vmul.f32 %v3642, %v3857
      %v3893 = vmul.f32 %v3644, %v3858
      %v3894 = vmul.f32 %v3646, %v3858
      %v3895 = vmul.f32 %v3648, %v3859
      %v3896 = vmul.f32 %v3650, %v3859
      %v3897 = vmul.f32 %v3652, %v3860
      %v3898 = vmul.f32 %v3654, %v3860
      %v3899 = vmul.f32 %v3656, %v3861
      %v3900 = vmul.f32 %v3658, %v3861
      %v3901 = vmul.f32 %v3660, %v3862
      %v3902 = vmul.f32 %v3662, %v3862
      %v3903 = vmul.f32 %v3664, %v3863
      %v3904 = vmul.f32 %v3666, %v3863
      %v3905 = vmul.f32 %v3668, %v3864
      %v3906 = vmul.f32 %v3670, %v3864
      %v3907 = vmul.f32 %v3672, %v3865
      %v3908 = vmul.f32 %v3674, %v3865
      %v3909 = vmul.f32 %v3676, %v3866
      %v3910 = vmul.f32 %v3678, %v3866
      %v3911 = vmul.f32 %v3680, %v3867
      %v3912 = vmul.f32 %v3682, %v3867
      %v3913 = vmul.f32 %v3684, %v3868
      %v3914 = vmul.f32 %v3686, %v3868
      %v3915 = vmul.f32 %v3688, %v3869
      %v3916 = vmul.f32 %v3690, %v3869
      %v3917 = vmul.f32 %v3692, %v3870
      %v3918 = vmul.f32 %v3694, %v3870
      %v3919 = vmul.f32 %v3696, %v3871
      %v3920 = vmul.f32 %v3698, %v3871
      %v3921 = vmul.f32 %v3700, %v3872
      %v3922 = vmul.f32 %v3702, %v3872
      %v3923 = vmul.f32 %v3704, %v3873
      %v3924 = vmul.f32 %v3706, %v3873
      %v3925 = vmul.f32 %v3708, %v3874
      %v3926 = vmul.f32 %v3710, %v3874
      %v3927 = vmul.f32 %v3712, %v3875
      %v3928 = vmul.f32 %v3714, %v3875
      %v3929 = vmul.f32 %v3716, %v3876
      %v3930 = vmul.f32 %v3718, %v3876
      %v3931 = vmul.f32 %v3720, %v3877
      %v3932 = vmul.f32 %v3722, %v3877
      %v3933 = vmul.f32 %v3724, %v3878
      %v3934 = vmul.f32 %v3726, %v3878
      %v3935 = vmul.f32 %v3728, %v3879
      %v3936 = vmul.f32 %v3730, %v3879
      %v3937 = vmul.f32 %v3732, %v3880
      %v3938 = vmul.f32 %v3734, %v3880
      %v3939 = vmul.f32 %v3736, %v3881
      %v3940 = vmul.f32 %v3738, %v3881
      %v3941 = vmul.f32 %v3740, %v3882
      %v3942 = vmul.f32 %v3742, %v3882
      %v3943 = vmul.f32 %v3744, %v3883
      %v3944 = vmul.f32 %v3746, %v3883
      %v3945 = vmul.f32 %v3748, %v3884
      %v3946 = vmul.f32 %v3750, %v3884
      %v3947 = vmul.f32 %v3752, %v3885
      %v3948 = vmul.f32 %v3754, %v3885
      %v3949 = vmul.f32 %v3756, %v3886
      %v3950 = vmul.f32 %v3758, %v3886
      %v3951 = vpack.c.bf16 %v3889, %v3887
      %v3952 = vpack.c.bf16 %v3890, %v3888
      %v3953 = vpack.c.bf16 %v3893, %v3891
      %v3954 = vpack.c.bf16 %v3894, %v3892
      %v3955 = vpack.c.bf16 %v3897, %v3895
      %v3956 = vpack.c.bf16 %v3898, %v3896
      %v3957 = vpack.c.bf16 %v3901, %v3899
      %v3958 = vpack.c.bf16 %v3902, %v3900
      %v3959 = vpack.c.bf16 %v3905, %v3903
      %v3960 = vpack.c.bf16 %v3906, %v3904
      %v3961 = vpack.c.bf16 %v3909, %v3907
      %v3962 = vpack.c.bf16 %v3910, %v3908
      %v3963 = vpack.c.bf16 %v3913, %v3911
      %v3964 = vpack.c.bf16 %v3914, %v3912
      %v3965 = vpack.c.bf16 %v3917, %v3915
      %v3966 = vpack.c.bf16 %v3918, %v3916
      %v3967 = vpack.c.bf16 %v3921, %v3919
      %v3968 = vpack.c.bf16 %v3922, %v3920
      %v3969 = vpack.c.bf16 %v3925, %v3923
      %v3970 = vpack.c.bf16 %v3926, %v3924
      %v3971 = vpack.c.bf16 %v3929, %v3927
      %v3972 = vpack.c.bf16 %v3930, %v3928
      %v3973 = vpack.c.bf16 %v3933, %v3931
      %v3974 = vpack.c.bf16 %v3934, %v3932
      %v3975 = vpack.c.bf16 %v3937, %v3935
      %v3976 = vpack.c.bf16 %v3938, %v3936
      %v3977 = vpack.c.bf16 %v3941, %v3939
      %v3978 = vpack.c.bf16 %v3942, %v3940
      %v3979 = vpack.c.bf16 %v3945, %v3943
      %v3980 = vpack.c.bf16 %v3946, %v3944
      %v3981 = vpack.c.bf16 %v3949, %v3947
      %v3982 = vpack.c.bf16 %v3950, %v3948
      %v3984 = vunpack.c.l.b16 %v895
      %v3985 = vunpack.c.h.b16 %v895
      %v3986 = vpack.c.b16 %v3984, %v3984
      %v3987 = vpack.c.b16 %v3985, %v3985
      %3990 = vmatpush.bf16.xpose.msra.mxu0 %v3965
      %3991 = vmatpush.bf16.xpose.msra.mxu0 %v3963
      %3992 = vmatpush.bf16.xpose.msra.mxu0 %v3961
      %3993 = vmatpush.bf16.xpose.msra.mxu0 %v3959
      %3994 = vmatpush.bf16.xpose.msra.mxu0 %v3957
      %3995 = vmatpush.bf16.xpose.msra.mxu0 %v3955
      %3996 = vmatpush.bf16.xpose.msra.mxu0 %v3953
      %3997 = vmatpush.bf16.xpose.msra.mxu0 %v3951
      %3998 = vmatmul.bf16.gmra.mxu0 %v3986
      %v3999 = vpop.f32.mrf.mxu0
      %v4000 = vadd.f32 0.0, %v3999
      %v4001 = vpop.f32.mrf.mxu0
      %4002 = vdwg.mxu0
      %4003 = vmatpush.bf16.xpose.msra.mxu0 %v3966
      %4004 = vmatpush.bf16.xpose.msra.mxu0 %v3964
      %4005 = vmatpush.bf16.xpose.msra.mxu0 %v3962
      %4006 = vmatpush.bf16.xpose.msra.mxu0 %v3960
      %4007 = vmatpush.bf16.xpose.msra.mxu0 %v3958
      %4008 = vmatpush.bf16.xpose.msra.mxu0 %v3956
      %4009 = vmatpush.bf16.xpose.msra.mxu0 %v3954
      %4010 = vmatpush.bf16.xpose.msra.mxu0 %v3952
      %4011 = vmatmul.bf16.gmra.mxu0 %v3987
      %v4012 = vpop.f32.mrf.mxu0
      %v4013 = vadd.f32 %v4000, %v4012
      %v4014 = vpop.f32.mrf.mxu0
      %4015 = vdwg.mxu0
      %4016 = vmatpush.bf16.xpose.msra.mxu0 %v3981
      %4017 = vmatpush.bf16.xpose.msra.mxu0 %v3979
      %4018 = vmatpush.bf16.xpose.msra.mxu0 %v3977
      %4019 = vmatpush.bf16.xpose.msra.mxu0 %v3975
      %4020 = vmatpush.bf16.xpose.msra.mxu0 %v3973
      %4021 = vmatpush.bf16.xpose.msra.mxu0 %v3971
      %4022 = vmatpush.bf16.xpose.msra.mxu0 %v3969
      %4023 = vmatpush.bf16.xpose.msra.mxu0 %v3967
      %4024 = vmatmul.bf16.gmra.mxu0 %v3986
      %v4025 = vpop.f32.mrf.mxu0
      %v4026 = vadd.f32 0.0, %v4025
      %v4027 = vpop.f32.mrf.mxu0
      %4028 = vdwg.mxu0
      %4029 = vmatpush.bf16.xpose.msra.mxu0 %v3982
      %4030 = vmatpush.bf16.xpose.msra.mxu0 %v3980
      %4031 = vmatpush.bf16.xpose.msra.mxu0 %v3978
      %4032 = vmatpush.bf16.xpose.msra.mxu0 %v3976
      %4033 = vmatpush.bf16.xpose.msra.mxu0 %v3974
      %4034 = vmatpush.bf16.xpose.msra.mxu0 %v3972
      %4035 = vmatpush.bf16.xpose.msra.mxu0 %v3970
      %4036 = vmatpush.bf16.xpose.msra.mxu0 %v3968
      %4037 = vmatmul.bf16.gmra.mxu0 %v3987
      %v4038 = vpop.f32.mrf.mxu0
      %v4039 = vadd.f32 %v4026, %v4038
      %v4040 = vpop.f32.mrf.mxu0
      %4041 = vdwg.mxu0
      %4042 = vrot.lane.b32.xlu0 %v993, 104
      %v4043 = vpop.permute.xlu0 %4042
      %4044 = vrot.lane.b32.xlu0 %v994, 104
      %v4045 = vpop.permute.xlu0 %4044
      %4046 = vrot.lane.b32.xlu0 %v995, 104
      %v4047 = vpop.permute.xlu0 %4046
      %4048 = vrot.lane.b32.xlu0 %v996, 104
      %v4049 = vpop.permute.xlu0 %4048
      %4050 = vrot.lane.b32.xlu0 %v997, 104
      %v4051 = vpop.permute.xlu0 %4050
      %4052 = vrot.lane.b32.xlu0 %v998, 104
      %v4053 = vpop.permute.xlu0 %4052
      %4054 = vrot.lane.b32.xlu0 %v999, 104
      %v4055 = vpop.permute.xlu0 %4054
      %4056 = vrot.lane.b32.xlu0 %v1000, 104
      %v4057 = vpop.permute.xlu0 %4056
      %4058 = vrot.lane.b32.xlu0 %v1001, 104
      %v4059 = vpop.permute.xlu0 %4058
      %4060 = vrot.lane.b32.xlu0 %v1002, 104
      %v4061 = vpop.permute.xlu0 %4060
      %4062 = vrot.lane.b32.xlu0 %v1003, 104
      %v4063 = vpop.permute.xlu0 %4062
      %4064 = vrot.lane.b32.xlu0 %v1004, 104
      %v4065 = vpop.permute.xlu0 %4064
      %4066 = vrot.lane.b32.xlu0 %v1005, 104
      %v4067 = vpop.permute.xlu0 %4066
      %4068 = vrot.lane.b32.xlu0 %v1006, 104
      %v4069 = vpop.permute.xlu0 %4068
      %4070 = vrot.lane.b32.xlu0 %v1007, 104
      %v4071 = vpop.permute.xlu0 %4070
      %4072 = vrot.lane.b32.xlu0 %v1008, 104
      %v4073 = vpop.permute.xlu0 %4072
      %4074 = vrot.lane.b32.xlu0 %v1073, 112
      %v4075 = vpop.permute.xlu0 %4074
      %4076 = vrot.lane.b32.xlu0 %v1074, 112
      %v4077 = vpop.permute.xlu0 %4076
      %4078 = vrot.lane.b32.xlu0 %v1075, 112
      %v4079 = vpop.permute.xlu0 %4078
      %4080 = vrot.lane.b32.xlu0 %v1076, 112
      %v4081 = vpop.permute.xlu0 %4080
      %4082 = vrot.lane.b32.xlu0 %v1077, 112
      %v4083 = vpop.permute.xlu0 %4082
      %4084 = vrot.lane.b32.xlu0 %v1078, 112
      %v4085 = vpop.permute.xlu0 %4084
      %4086 = vrot.lane.b32.xlu0 %v1079, 112
      %v4087 = vpop.permute.xlu0 %4086
      %4088 = vrot.lane.b32.xlu0 %v1080, 112
      %v4089 = vpop.permute.xlu0 %4088
      %4090 = vrot.lane.b32.xlu0 %v1081, 112
      %v4091 = vpop.permute.xlu0 %4090
      %4092 = vrot.lane.b32.xlu0 %v1082, 112
      %v4093 = vpop.permute.xlu0 %4092
      %4094 = vrot.lane.b32.xlu0 %v1083, 112
      %v4095 = vpop.permute.xlu0 %4094
      %4096 = vrot.lane.b32.xlu0 %v1084, 112
      %v4097 = vpop.permute.xlu0 %4096
      %4098 = vrot.lane.b32.xlu0 %v1085, 112
      %v4099 = vpop.permute.xlu0 %4098
      %4100 = vrot.lane.b32.xlu0 %v1086, 112
      %v4101 = vpop.permute.xlu0 %4100
      %4102 = vrot.lane.b32.xlu0 %v1087, 112
      %v4103 = vpop.permute.xlu0 %4102
      %4104 = vrot.lane.b32.xlu0 %v1088, 112
      %v4105 = vpop.permute.xlu0 %4104
      %v4108 = vsel %vm1121, %v4043, %v4075
      %v4111 = vsel %vm1121, %v4045, %v4077
      %v4114 = vsel %vm1121, %v4047, %v4079
      %v4117 = vsel %vm1121, %v4049, %v4081
      %v4120 = vsel %vm1121, %v4051, %v4083
      %v4123 = vsel %vm1121, %v4053, %v4085
      %v4126 = vsel %vm1121, %v4055, %v4087
      %v4129 = vsel %vm1121, %v4057, %v4089
      %v4132 = vsel %vm1121, %v4059, %v4091
      %v4135 = vsel %vm1121, %v4061, %v4093
      %v4138 = vsel %vm1121, %v4063, %v4095
      %v4141 = vsel %vm1121, %v4065, %v4097
      %v4144 = vsel %vm1121, %v4067, %v4099
      %v4147 = vsel %vm1121, %v4069, %v4101
      %v4150 = vsel %vm1121, %v4071, %v4103
      %v4153 = vsel %vm1121, %v4073, %v4105
      %4154 = vrot.lane.b32.xlu0 %v993, 72
      %v4155 = vpop.permute.xlu0 %4154
      %4156 = vrot.lane.b32.xlu0 %v994, 72
      %v4157 = vpop.permute.xlu0 %4156
      %4158 = vrot.lane.b32.xlu0 %v995, 72
      %v4159 = vpop.permute.xlu0 %4158
      %4160 = vrot.lane.b32.xlu0 %v996, 72
      %v4161 = vpop.permute.xlu0 %4160
      %4162 = vrot.lane.b32.xlu0 %v997, 72
      %v4163 = vpop.permute.xlu0 %4162
      %4164 = vrot.lane.b32.xlu0 %v998, 72
      %v4165 = vpop.permute.xlu0 %4164
      %4166 = vrot.lane.b32.xlu0 %v999, 72
      %v4167 = vpop.permute.xlu0 %4166
      %4168 = vrot.lane.b32.xlu0 %v1000, 72
      %v4169 = vpop.permute.xlu0 %4168
      %4170 = vrot.lane.b32.xlu0 %v1001, 72
      %v4171 = vpop.permute.xlu0 %4170
      %4172 = vrot.lane.b32.xlu0 %v1002, 72
      %v4173 = vpop.permute.xlu0 %4172
      %4174 = vrot.lane.b32.xlu0 %v1003, 72
      %v4175 = vpop.permute.xlu0 %4174
      %4176 = vrot.lane.b32.xlu0 %v1004, 72
      %v4177 = vpop.permute.xlu0 %4176
      %4178 = vrot.lane.b32.xlu0 %v1005, 72
      %v4179 = vpop.permute.xlu0 %4178
      %4180 = vrot.lane.b32.xlu0 %v1006, 72
      %v4181 = vpop.permute.xlu0 %4180
      %4182 = vrot.lane.b32.xlu0 %v1007, 72
      %v4183 = vpop.permute.xlu0 %4182
      %4184 = vrot.lane.b32.xlu0 %v1008, 72
      %v4185 = vpop.permute.xlu0 %4184
      %v4187 = vsel %vm1121, %v4155, %v3054
      %v4189 = vsel %vm1121, %v4157, %v3056
      %v4191 = vsel %vm1121, %v4159, %v3058
      %v4193 = vsel %vm1121, %v4161, %v3060
      %v4195 = vsel %vm1121, %v4163, %v3062
      %v4197 = vsel %vm1121, %v4165, %v3064
      %v4199 = vsel %vm1121, %v4167, %v3066
      %v4201 = vsel %vm1121, %v4169, %v3068
      %v4203 = vsel %vm1121, %v4171, %v3070
      %v4205 = vsel %vm1121, %v4173, %v3072
      %v4207 = vsel %vm1121, %v4175, %v3074
      %v4209 = vsel %vm1121, %v4177, %v3076
      %v4211 = vsel %vm1121, %v4179, %v3078
      %v4213 = vsel %vm1121, %v4181, %v3080
      %v4215 = vsel %vm1121, %v4183, %v3082
      %v4217 = vsel %vm1121, %v4185, %v3084
      %v4218 = vsel %vm1282, %v4108, 0
      %v4220 = vsel %vm1282, %v4111, 0
      %v4222 = vsel %vm1282, %v4114, 0
      %v4224 = vsel %vm1282, %v4117, 0
      %v4226 = vsel %vm1282, %v4120, 0
      %v4228 = vsel %vm1282, %v4123, 0
      %v4230 = vsel %vm1282, %v4126, 0
      %v4232 = vsel %vm1282, %v4129, 0
      %v4234 = vsel %vm1282, %v4132, 0
      %v4236 = vsel %vm1282, %v4135, 0
      %v4238 = vsel %vm1282, %v4138, 0
      %v4240 = vsel %vm1282, %v4141, 0
      %v4242 = vsel %vm1282, %v4144, 0
      %v4244 = vsel %vm1282, %v4147, 0
      %v4246 = vsel %vm1282, %v4150, 0
      %v4248 = vsel %vm1282, %v4153, 0
      %v4250 = vsel %vm1282, %v4187, 0
      %v4252 = vsel %vm1282, %v4189, 0
      %v4254 = vsel %vm1282, %v4191, 0
      %v4256 = vsel %vm1282, %v4193, 0
      %v4258 = vsel %vm1282, %v4195, 0
      %v4260 = vsel %vm1282, %v4197, 0
      %v4262 = vsel %vm1282, %v4199, 0
      %v4264 = vsel %vm1282, %v4201, 0
      %v4266 = vsel %vm1282, %v4203, 0
      %v4268 = vsel %vm1282, %v4205, 0
      %v4270 = vsel %vm1282, %v4207, 0
      %v4272 = vsel %vm1282, %v4209, 0
      %v4274 = vsel %vm1282, %v4211, 0
      %v4276 = vsel %vm1282, %v4213, 0
      %v4278 = vsel %vm1282, %v4215, 0
      %v4280 = vsel %vm1282, %v4217, 0
      %4282 = vmatpush.bf16.xpose.msra.mxu0 %v4264
      %4283 = vmatpush.bf16.xpose.msra.mxu0 %v4262
      %4284 = vmatpush.bf16.xpose.msra.mxu0 %v4260
      %4285 = vmatpush.bf16.xpose.msra.mxu0 %v4258
      %4286 = vmatpush.bf16.xpose.msra.mxu0 %v4256
      %4287 = vmatpush.bf16.xpose.msra.mxu0 %v4254
      %4288 = vmatpush.bf16.xpose.msra.mxu0 %v4252
      %4289 = vmatpush.bf16.xpose.msra.mxu0 %v4250
      %4290 = vmatmul.bf16.gmra.mxu0 %v4218
      %v4291 = vpop.f32.mrf.mxu0
      %v4292 = vadd.f32 0.0, %v4291
      %v4293 = vpop.f32.mrf.mxu0
      %v4294 = vadd.f32 0.0, %v4293
      %4295 = vmatmul.bf16.gmra.mxu0 %v4220
      %v4296 = vpop.f32.mrf.mxu0
      %v4297 = vadd.f32 0.0, %v4296
      %v4298 = vpop.f32.mrf.mxu0
      %v4299 = vadd.f32 0.0, %v4298
      %4300 = vmatmul.bf16.gmra.mxu0 %v4222
      %v4301 = vpop.f32.mrf.mxu0
      %v4302 = vadd.f32 0.0, %v4301
      %v4303 = vpop.f32.mrf.mxu0
      %v4304 = vadd.f32 0.0, %v4303
      %4305 = vmatmul.bf16.gmra.mxu0 %v4224
      %v4306 = vpop.f32.mrf.mxu0
      %v4307 = vadd.f32 0.0, %v4306
      %v4308 = vpop.f32.mrf.mxu0
      %v4309 = vadd.f32 0.0, %v4308
      %4310 = vmatmul.bf16.gmra.mxu0 %v4226
      %v4311 = vpop.f32.mrf.mxu0
      %v4312 = vadd.f32 0.0, %v4311
      %v4313 = vpop.f32.mrf.mxu0
      %v4314 = vadd.f32 0.0, %v4313
      %4315 = vmatmul.bf16.gmra.mxu0 %v4228
      %v4316 = vpop.f32.mrf.mxu0
      %v4317 = vadd.f32 0.0, %v4316
      %v4318 = vpop.f32.mrf.mxu0
      %v4319 = vadd.f32 0.0, %v4318
      %4320 = vmatmul.bf16.gmra.mxu0 %v4230
      %v4321 = vpop.f32.mrf.mxu0
      %v4322 = vadd.f32 0.0, %v4321
      %v4323 = vpop.f32.mrf.mxu0
      %v4324 = vadd.f32 0.0, %v4323
      %4325 = vmatmul.bf16.gmra.mxu0 %v4232
      %v4326 = vpop.f32.mrf.mxu0
      %v4327 = vadd.f32 0.0, %v4326
      %v4328 = vpop.f32.mrf.mxu0
      %v4329 = vadd.f32 0.0, %v4328
      %4330 = vmatmul.bf16.gmra.mxu0 %v4234
      %v4331 = vpop.f32.mrf.mxu0
      %v4332 = vadd.f32 0.0, %v4331
      %v4333 = vpop.f32.mrf.mxu0
      %v4334 = vadd.f32 0.0, %v4333
      %4335 = vmatmul.bf16.gmra.mxu0 %v4236
      %v4336 = vpop.f32.mrf.mxu0
      %v4337 = vadd.f32 0.0, %v4336
      %v4338 = vpop.f32.mrf.mxu0
      %v4339 = vadd.f32 0.0, %v4338
      %4340 = vmatmul.bf16.gmra.mxu0 %v4238
      %v4341 = vpop.f32.mrf.mxu0
      %v4342 = vadd.f32 0.0, %v4341
      %v4343 = vpop.f32.mrf.mxu0
      %v4344 = vadd.f32 0.0, %v4343
      %4345 = vmatmul.bf16.gmra.mxu0 %v4240
      %v4346 = vpop.f32.mrf.mxu0
      %v4347 = vadd.f32 0.0, %v4346
      %v4348 = vpop.f32.mrf.mxu0
      %v4349 = vadd.f32 0.0, %v4348
      %4350 = vmatmul.bf16.gmra.mxu0 %v4242
      %v4351 = vpop.f32.mrf.mxu0
      %v4352 = vadd.f32 0.0, %v4351
      %v4353 = vpop.f32.mrf.mxu0
      %v4354 = vadd.f32 0.0, %v4353
      %4355 = vmatmul.bf16.gmra.mxu0 %v4244
      %v4356 = vpop.f32.mrf.mxu0
      %v4357 = vadd.f32 0.0, %v4356
      %v4358 = vpop.f32.mrf.mxu0
      %v4359 = vadd.f32 0.0, %v4358
      %4360 = vmatmul.bf16.gmra.mxu0 %v4246
      %v4361 = vpop.f32.mrf.mxu0
      %v4362 = vadd.f32 0.0, %v4361
      %v4363 = vpop.f32.mrf.mxu0
      %v4364 = vadd.f32 0.0, %v4363
      %4365 = vmatmul.bf16.gmra.mxu0 %v4248
      %v4366 = vpop.f32.mrf.mxu0
      %v4367 = vadd.f32 0.0, %v4366
      %v4368 = vpop.f32.mrf.mxu0
      %v4369 = vadd.f32 0.0, %v4368
      %4370 = vdwg.mxu0
      %4371 = vmatpush.bf16.xpose.msra.mxu0 %v4280
      %4372 = vmatpush.bf16.xpose.msra.mxu0 %v4278
      %4373 = vmatpush.bf16.xpose.msra.mxu0 %v4276
      %4374 = vmatpush.bf16.xpose.msra.mxu0 %v4274
      %4375 = vmatpush.bf16.xpose.msra.mxu0 %v4272
      %4376 = vmatpush.bf16.xpose.msra.mxu0 %v4270
      %4377 = vmatpush.bf16.xpose.msra.mxu0 %v4268
      %4378 = vmatpush.bf16.xpose.msra.mxu0 %v4266
      %4379 = vmatmul.bf16.gmra.mxu0 %v4218
      %v4380 = vpop.f32.mrf.mxu0
      %v4381 = vadd.f32 0.0, %v4380
      %v4382 = vpop.f32.mrf.mxu0
      %v4383 = vadd.f32 0.0, %v4382
      %4384 = vmatmul.bf16.gmra.mxu0 %v4220
      %v4385 = vpop.f32.mrf.mxu0
      %v4386 = vadd.f32 0.0, %v4385
      %v4387 = vpop.f32.mrf.mxu0
      %v4388 = vadd.f32 0.0, %v4387
      %4389 = vmatmul.bf16.gmra.mxu0 %v4222
      %v4390 = vpop.f32.mrf.mxu0
      %v4391 = vadd.f32 0.0, %v4390
      %v4392 = vpop.f32.mrf.mxu0
      %v4393 = vadd.f32 0.0, %v4392
      %4394 = vmatmul.bf16.gmra.mxu0 %v4224
      %v4395 = vpop.f32.mrf.mxu0
      %v4396 = vadd.f32 0.0, %v4395
      %v4397 = vpop.f32.mrf.mxu0
      %v4398 = vadd.f32 0.0, %v4397
      %4399 = vmatmul.bf16.gmra.mxu0 %v4226
      %v4400 = vpop.f32.mrf.mxu0
      %v4401 = vadd.f32 0.0, %v4400
      %v4402 = vpop.f32.mrf.mxu0
      %v4403 = vadd.f32 0.0, %v4402
      %4404 = vmatmul.bf16.gmra.mxu0 %v4228
      %v4405 = vpop.f32.mrf.mxu0
      %v4406 = vadd.f32 0.0, %v4405
      %v4407 = vpop.f32.mrf.mxu0
      %v4408 = vadd.f32 0.0, %v4407
      %4409 = vmatmul.bf16.gmra.mxu0 %v4230
      %v4410 = vpop.f32.mrf.mxu0
      %v4411 = vadd.f32 0.0, %v4410
      %v4412 = vpop.f32.mrf.mxu0
      %v4413 = vadd.f32 0.0, %v4412
      %4414 = vmatmul.bf16.gmra.mxu0 %v4232
      %v4415 = vpop.f32.mrf.mxu0
      %v4416 = vadd.f32 0.0, %v4415
      %v4417 = vpop.f32.mrf.mxu0
      %v4418 = vadd.f32 0.0, %v4417
      %4419 = vmatmul.bf16.gmra.mxu0 %v4234
      %v4420 = vpop.f32.mrf.mxu0
      %v4421 = vadd.f32 0.0, %v4420
      %v4422 = vpop.f32.mrf.mxu0
      %v4423 = vadd.f32 0.0, %v4422
      %4424 = vmatmul.bf16.gmra.mxu0 %v4236
      %v4425 = vpop.f32.mrf.mxu0
      %v4426 = vadd.f32 0.0, %v4425
      %v4427 = vpop.f32.mrf.mxu0
      %v4428 = vadd.f32 0.0, %v4427
      %4429 = vmatmul.bf16.gmra.mxu0 %v4238
      %v4430 = vpop.f32.mrf.mxu0
      %v4431 = vadd.f32 0.0, %v4430
      %v4432 = vpop.f32.mrf.mxu0
      %v4433 = vadd.f32 0.0, %v4432
      %4434 = vmatmul.bf16.gmra.mxu0 %v4240
      %v4435 = vpop.f32.mrf.mxu0
      %v4436 = vadd.f32 0.0, %v4435
      %v4437 = vpop.f32.mrf.mxu0
      %v4438 = vadd.f32 0.0, %v4437
      %4439 = vmatmul.bf16.gmra.mxu0 %v4242
      %v4440 = vpop.f32.mrf.mxu0
      %v4441 = vadd.f32 0.0, %v4440
      %v4442 = vpop.f32.mrf.mxu0
      %v4443 = vadd.f32 0.0, %v4442
      %4444 = vmatmul.bf16.gmra.mxu0 %v4244
      %v4445 = vpop.f32.mrf.mxu0
      %v4446 = vadd.f32 0.0, %v4445
      %v4447 = vpop.f32.mrf.mxu0
      %v4448 = vadd.f32 0.0, %v4447
      %4449 = vmatmul.bf16.gmra.mxu0 %v4246
      %v4450 = vpop.f32.mrf.mxu0
      %v4451 = vadd.f32 0.0, %v4450
      %v4452 = vpop.f32.mrf.mxu0
      %v4453 = vadd.f32 0.0, %v4452
      %4454 = vmatmul.bf16.gmra.mxu0 %v4248
      %v4455 = vpop.f32.mrf.mxu0
      %v4456 = vadd.f32 0.0, %v4455
      %v4457 = vpop.f32.mrf.mxu0
      %v4458 = vadd.f32 0.0, %v4457
      %4459 = vdwg.mxu0
      %v4460 = vmax.f32 %v4292, %v4381
      %4461 = vmax.xlane.f32.xlu0 %v4460
      %v4462 = vpop.xlane.xlu0 %4461
      %v4463 = vmax.f32 %v4294, %v4383
      %4464 = vmax.xlane.f32.xlu0 %v4463
      %v4465 = vpop.xlane.xlu0 %4464
      %v4466 = vmax.f32 %v4297, %v4386
      %4467 = vmax.xlane.f32.xlu0 %v4466
      %v4468 = vpop.xlane.xlu0 %4467
      %v4469 = vmax.f32 %v4299, %v4388
      %4470 = vmax.xlane.f32.xlu0 %v4469
      %v4471 = vpop.xlane.xlu0 %4470
      %v4472 = vmax.f32 %v4302, %v4391
      %4473 = vmax.xlane.f32.xlu0 %v4472
      %v4474 = vpop.xlane.xlu0 %4473
      %v4475 = vmax.f32 %v4304, %v4393
      %4476 = vmax.xlane.f32.xlu0 %v4475
      %v4477 = vpop.xlane.xlu0 %4476
      %v4478 = vmax.f32 %v4307, %v4396
      %4479 = vmax.xlane.f32.xlu0 %v4478
      %v4480 = vpop.xlane.xlu0 %4479
      %v4481 = vmax.f32 %v4309, %v4398
      %4482 = vmax.xlane.f32.xlu0 %v4481
      %v4483 = vpop.xlane.xlu0 %4482
      %v4484 = vmax.f32 %v4312, %v4401
      %4485 = vmax.xlane.f32.xlu0 %v4484
      %v4486 = vpop.xlane.xlu0 %4485
      %v4487 = vmax.f32 %v4314, %v4403
      %4488 = vmax.xlane.f32.xlu0 %v4487
      %v4489 = vpop.xlane.xlu0 %4488
      %v4490 = vmax.f32 %v4317, %v4406
      %4491 = vmax.xlane.f32.xlu0 %v4490
      %v4492 = vpop.xlane.xlu0 %4491
      %v4493 = vmax.f32 %v4319, %v4408
      %4494 = vmax.xlane.f32.xlu0 %v4493
      %v4495 = vpop.xlane.xlu0 %4494
      %v4496 = vmax.f32 %v4322, %v4411
      %4497 = vmax.xlane.f32.xlu0 %v4496
      %v4498 = vpop.xlane.xlu0 %4497
      %v4499 = vmax.f32 %v4324, %v4413
      %4500 = vmax.xlane.f32.xlu0 %v4499
      %v4501 = vpop.xlane.xlu0 %4500
      %v4502 = vmax.f32 %v4327, %v4416
      %4503 = vmax.xlane.f32.xlu0 %v4502
      %v4504 = vpop.xlane.xlu0 %4503
      %v4505 = vmax.f32 %v4329, %v4418
      %4506 = vmax.xlane.f32.xlu0 %v4505
      %v4507 = vpop.xlane.xlu0 %4506
      %v4508 = vmax.f32 %v4332, %v4421
      %4509 = vmax.xlane.f32.xlu0 %v4508
      %v4510 = vpop.xlane.xlu0 %4509
      %v4511 = vmax.f32 %v4334, %v4423
      %4512 = vmax.xlane.f32.xlu0 %v4511
      %v4513 = vpop.xlane.xlu0 %4512
      %v4514 = vmax.f32 %v4337, %v4426
      %4515 = vmax.xlane.f32.xlu0 %v4514
      %v4516 = vpop.xlane.xlu0 %4515
      %v4517 = vmax.f32 %v4339, %v4428
      %4518 = vmax.xlane.f32.xlu0 %v4517
      %v4519 = vpop.xlane.xlu0 %4518
      %v4520 = vmax.f32 %v4342, %v4431
      %4521 = vmax.xlane.f32.xlu0 %v4520
      %v4522 = vpop.xlane.xlu0 %4521
      %v4523 = vmax.f32 %v4344, %v4433
      %4524 = vmax.xlane.f32.xlu0 %v4523
      %v4525 = vpop.xlane.xlu0 %4524
      %v4526 = vmax.f32 %v4347, %v4436
      %4527 = vmax.xlane.f32.xlu0 %v4526
      %v4528 = vpop.xlane.xlu0 %4527
      %v4529 = vmax.f32 %v4349, %v4438
      %4530 = vmax.xlane.f32.xlu0 %v4529
      %v4531 = vpop.xlane.xlu0 %4530
      %v4532 = vmax.f32 %v4352, %v4441
      %4533 = vmax.xlane.f32.xlu0 %v4532
      %v4534 = vpop.xlane.xlu0 %4533
      %v4535 = vmax.f32 %v4354, %v4443
      %4536 = vmax.xlane.f32.xlu0 %v4535
      %v4537 = vpop.xlane.xlu0 %4536
      %v4538 = vmax.f32 %v4357, %v4446
      %4539 = vmax.xlane.f32.xlu0 %v4538
      %v4540 = vpop.xlane.xlu0 %4539
      %v4541 = vmax.f32 %v4359, %v4448
      %4542 = vmax.xlane.f32.xlu0 %v4541
      %v4543 = vpop.xlane.xlu0 %4542
      %v4544 = vmax.f32 %v4362, %v4451
      %4545 = vmax.xlane.f32.xlu0 %v4544
      %v4546 = vpop.xlane.xlu0 %4545
      %v4547 = vmax.f32 %v4364, %v4453
      %4548 = vmax.xlane.f32.xlu0 %v4547
      %v4549 = vpop.xlane.xlu0 %4548
      %v4550 = vmax.f32 %v4367, %v4456
      %4551 = vmax.xlane.f32.xlu0 %v4550
      %v4552 = vpop.xlane.xlu0 %4551
      %v4553 = vmax.f32 %v4369, %v4458
      %4554 = vmax.xlane.f32.xlu0 %v4553
      %v4555 = vpop.xlane.xlu0 %4554
      %v4556 = vsub.f32 %v4292, %v4462
      %v4557 = vsub.f32 %v4381, %v4462
      %v4558 = vsub.f32 %v4294, %v4465
      %v4559 = vsub.f32 %v4383, %v4465
      %v4560 = vsub.f32 %v4297, %v4468
      %v4561 = vsub.f32 %v4386, %v4468
      %v4562 = vsub.f32 %v4299, %v4471
      %v4563 = vsub.f32 %v4388, %v4471
      %v4564 = vsub.f32 %v4302, %v4474
      %v4565 = vsub.f32 %v4391, %v4474
      %v4566 = vsub.f32 %v4304, %v4477
      %v4567 = vsub.f32 %v4393, %v4477
      %v4568 = vsub.f32 %v4307, %v4480
      %v4569 = vsub.f32 %v4396, %v4480
      %v4570 = vsub.f32 %v4309, %v4483
      %v4571 = vsub.f32 %v4398, %v4483
      %v4572 = vsub.f32 %v4312, %v4486
      %v4573 = vsub.f32 %v4401, %v4486
      %v4574 = vsub.f32 %v4314, %v4489
      %v4575 = vsub.f32 %v4403, %v4489
      %v4576 = vsub.f32 %v4317, %v4492
      %v4577 = vsub.f32 %v4406, %v4492
      %v4578 = vsub.f32 %v4319, %v4495
      %v4579 = vsub.f32 %v4408, %v4495
      %v4580 = vsub.f32 %v4322, %v4498
      %v4581 = vsub.f32 %v4411, %v4498
      %v4582 = vsub.f32 %v4324, %v4501
      %v4583 = vsub.f32 %v4413, %v4501
      %v4584 = vsub.f32 %v4327, %v4504
      %v4585 = vsub.f32 %v4416, %v4504
      %v4586 = vsub.f32 %v4329, %v4507
      %v4587 = vsub.f32 %v4418, %v4507
      %v4588 = vsub.f32 %v4332, %v4510
      %v4589 = vsub.f32 %v4421, %v4510
      %v4590 = vsub.f32 %v4334, %v4513
      %v4591 = vsub.f32 %v4423, %v4513
      %v4592 = vsub.f32 %v4337, %v4516
      %v4593 = vsub.f32 %v4426, %v4516
      %v4594 = vsub.f32 %v4339, %v4519
      %v4595 = vsub.f32 %v4428, %v4519
      %v4596 = vsub.f32 %v4342, %v4522
      %v4597 = vsub.f32 %v4431, %v4522
      %v4598 = vsub.f32 %v4344, %v4525
      %v4599 = vsub.f32 %v4433, %v4525
      %v4600 = vsub.f32 %v4347, %v4528
      %v4601 = vsub.f32 %v4436, %v4528
      %v4602 = vsub.f32 %v4349, %v4531
      %v4603 = vsub.f32 %v4438, %v4531
      %v4604 = vsub.f32 %v4352, %v4534
      %v4605 = vsub.f32 %v4441, %v4534
      %v4606 = vsub.f32 %v4354, %v4537
      %v4607 = vsub.f32 %v4443, %v4537
      %v4608 = vsub.f32 %v4357, %v4540
      %v4609 = vsub.f32 %v4446, %v4540
      %v4610 = vsub.f32 %v4359, %v4543
      %v4611 = vsub.f32 %v4448, %v4543
      %v4612 = vsub.f32 %v4362, %v4546
      %v4613 = vsub.f32 %v4451, %v4546
      %v4614 = vsub.f32 %v4364, %v4549
      %v4615 = vsub.f32 %v4453, %v4549
      %v4616 = vsub.f32 %v4367, %v4552
      %v4617 = vsub.f32 %v4456, %v4552
      %v4618 = vsub.f32 %v4369, %v4555
      %v4619 = vsub.f32 %v4458, %v4555
      %v4620 = vmul.f32 %v4556, 1.442695
      %v4621 = vpow.pop %v4620
      %v4622 = vmul.f32 %v4557, 1.442695
      %v4623 = vpow.pop %v4622
      %v4624 = vmul.f32 %v4558, 1.442695
      %v4625 = vpow.pop %v4624
      %v4626 = vmul.f32 %v4559, 1.442695
      %v4627 = vpow.pop %v4626
      %v4628 = vmul.f32 %v4560, 1.442695
      %v4629 = vpow.pop %v4628
      %v4630 = vmul.f32 %v4561, 1.442695
      %v4631 = vpow.pop %v4630
      %v4632 = vmul.f32 %v4562, 1.442695
      %v4633 = vpow.pop %v4632
      %v4634 = vmul.f32 %v4563, 1.442695
      %v4635 = vpow.pop %v4634
      %v4636 = vmul.f32 %v4564, 1.442695
      %v4637 = vpow.pop %v4636
      %v4638 = vmul.f32 %v4565, 1.442695
      %v4639 = vpow.pop %v4638
      %v4640 = vmul.f32 %v4566, 1.442695
      %v4641 = vpow.pop %v4640
      %v4642 = vmul.f32 %v4567, 1.442695
      %v4643 = vpow.pop %v4642
      %v4644 = vmul.f32 %v4568, 1.442695
      %v4645 = vpow.pop %v4644
      %v4646 = vmul.f32 %v4569, 1.442695
      %v4647 = vpow.pop %v4646
      %v4648 = vmul.f32 %v4570, 1.442695
      %v4649 = vpow.pop %v4648
      %v4650 = vmul.f32 %v4571, 1.442695
      %v4651 = vpow.pop %v4650
      %v4652 = vmul.f32 %v4572, 1.442695
      %v4653 = vpow.pop %v4652
      %v4654 = vmul.f32 %v4573, 1.442695
      %v4655 = vpow.pop %v4654
      %v4656 = vmul.f32 %v4574, 1.442695
      %v4657 = vpow.pop %v4656
      %v4658 = vmul.f32 %v4575, 1.442695
      %v4659 = vpow.pop %v4658
      %v4660 = vmul.f32 %v4576, 1.442695
      %v4661 = vpow.pop %v4660
      %v4662 = vmul.f32 %v4577, 1.442695
      %v4663 = vpow.pop %v4662
      %v4664 = vmul.f32 %v4578, 1.442695
      %v4665 = vpow.pop %v4664
      %v4666 = vmul.f32 %v4579, 1.442695
      %v4667 = vpow.pop %v4666
      %v4668 = vmul.f32 %v4580, 1.442695
      %v4669 = vpow.pop %v4668
      %v4670 = vmul.f32 %v4581, 1.442695
      %v4671 = vpow.pop %v4670
      %v4672 = vmul.f32 %v4582, 1.442695
      %v4673 = vpow.pop %v4672
      %v4674 = vmul.f32 %v4583, 1.442695
      %v4675 = vpow.pop %v4674
      %v4676 = vmul.f32 %v4584, 1.442695
      %v4677 = vpow.pop %v4676
      %v4678 = vmul.f32 %v4585, 1.442695
      %v4679 = vpow.pop %v4678
      %v4680 = vmul.f32 %v4586, 1.442695
      %v4681 = vpow.pop %v4680
      %v4682 = vmul.f32 %v4587, 1.442695
      %v4683 = vpow.pop %v4682
      %v4684 = vmul.f32 %v4588, 1.442695
      %v4685 = vpow.pop %v4684
      %v4686 = vmul.f32 %v4589, 1.442695
      %v4687 = vpow.pop %v4686
      %v4688 = vmul.f32 %v4590, 1.442695
      %v4689 = vpow.pop %v4688
      %v4690 = vmul.f32 %v4591, 1.442695
      %v4691 = vpow.pop %v4690
      %v4692 = vmul.f32 %v4592, 1.442695
      %v4693 = vpow.pop %v4692
      %v4694 = vmul.f32 %v4593, 1.442695
      %v4695 = vpow.pop %v4694
      %v4696 = vmul.f32 %v4594, 1.442695
      %v4697 = vpow.pop %v4696
      %v4698 = vmul.f32 %v4595, 1.442695
      %v4699 = vpow.pop %v4698
      %v4700 = vmul.f32 %v4596, 1.442695
      %v4701 = vpow.pop %v4700
      %v4702 = vmul.f32 %v4597, 1.442695
      %v4703 = vpow.pop %v4702
      %v4704 = vmul.f32 %v4598, 1.442695
      %v4705 = vpow.pop %v4704
      %v4706 = vmul.f32 %v4599, 1.442695
      %v4707 = vpow.pop %v4706
      %v4708 = vmul.f32 %v4600, 1.442695
      %v4709 = vpow.pop %v4708
      %v4710 = vmul.f32 %v4601, 1.442695
      %v4711 = vpow.pop %v4710
      %v4712 = vmul.f32 %v4602, 1.442695
      %v4713 = vpow.pop %v4712
      %v4714 = vmul.f32 %v4603, 1.442695
      %v4715 = vpow.pop %v4714
      %v4716 = vmul.f32 %v4604, 1.442695
      %v4717 = vpow.pop %v4716
      %v4718 = vmul.f32 %v4605, 1.442695
      %v4719 = vpow.pop %v4718
      %v4720 = vmul.f32 %v4606, 1.442695
      %v4721 = vpow.pop %v4720
      %v4722 = vmul.f32 %v4607, 1.442695
      %v4723 = vpow.pop %v4722
      %v4724 = vmul.f32 %v4608, 1.442695
      %v4725 = vpow.pop %v4724
      %v4726 = vmul.f32 %v4609, 1.442695
      %v4727 = vpow.pop %v4726
      %v4728 = vmul.f32 %v4610, 1.442695
      %v4729 = vpow.pop %v4728
      %v4730 = vmul.f32 %v4611, 1.442695
      %v4731 = vpow.pop %v4730
      %v4732 = vmul.f32 %v4612, 1.442695
      %v4733 = vpow.pop %v4732
      %v4734 = vmul.f32 %v4613, 1.442695
      %v4735 = vpow.pop %v4734
      %v4736 = vmul.f32 %v4614, 1.442695
      %v4737 = vpow.pop %v4736
      %v4738 = vmul.f32 %v4615, 1.442695
      %v4739 = vpow.pop %v4738
      %v4740 = vmul.f32 %v4616, 1.442695
      %v4741 = vpow.pop %v4740
      %v4742 = vmul.f32 %v4617, 1.442695
      %v4743 = vpow.pop %v4742
      %v4744 = vmul.f32 %v4618, 1.442695
      %v4745 = vpow.pop %v4744
      %v4746 = vmul.f32 %v4619, 1.442695
      %v4747 = vpow.pop %v4746
      %v4748 = vadd.f32 %v4621, %v4623
      %4749 = vadd.xlane.f32.xlu0 %v4748
      %v4750 = vpop.xlane.xlu0 %4749
      %v4751 = vadd.f32 %v4625, %v4627
      %4752 = vadd.xlane.f32.xlu0 %v4751
      %v4753 = vpop.xlane.xlu0 %4752
      %v4754 = vadd.f32 %v4629, %v4631
      %4755 = vadd.xlane.f32.xlu0 %v4754
      %v4756 = vpop.xlane.xlu0 %4755
      %v4757 = vadd.f32 %v4633, %v4635
      %4758 = vadd.xlane.f32.xlu0 %v4757
      %v4759 = vpop.xlane.xlu0 %4758
      %v4760 = vadd.f32 %v4637, %v4639
      %4761 = vadd.xlane.f32.xlu0 %v4760
      %v4762 = vpop.xlane.xlu0 %4761
      %v4763 = vadd.f32 %v4641, %v4643
      %4764 = vadd.xlane.f32.xlu0 %v4763
      %v4765 = vpop.xlane.xlu0 %4764
      %v4766 = vadd.f32 %v4645, %v4647
      %4767 = vadd.xlane.f32.xlu0 %v4766
      %v4768 = vpop.xlane.xlu0 %4767
      %v4769 = vadd.f32 %v4649, %v4651
      %4770 = vadd.xlane.f32.xlu0 %v4769
      %v4771 = vpop.xlane.xlu0 %4770
      %v4772 = vadd.f32 %v4653, %v4655
      %4773 = vadd.xlane.f32.xlu0 %v4772
      %v4774 = vpop.xlane.xlu0 %4773
      %v4775 = vadd.f32 %v4657, %v4659
      %4776 = vadd.xlane.f32.xlu0 %v4775
      %v4777 = vpop.xlane.xlu0 %4776
      %v4778 = vadd.f32 %v4661, %v4663
      %4779 = vadd.xlane.f32.xlu0 %v4778
      %v4780 = vpop.xlane.xlu0 %4779
      %v4781 = vadd.f32 %v4665, %v4667
      %4782 = vadd.xlane.f32.xlu0 %v4781
      %v4783 = vpop.xlane.xlu0 %4782
      %v4784 = vadd.f32 %v4669, %v4671
      %4785 = vadd.xlane.f32.xlu0 %v4784
      %v4786 = vpop.xlane.xlu0 %4785
      %v4787 = vadd.f32 %v4673, %v4675
      %4788 = vadd.xlane.f32.xlu0 %v4787
      %v4789 = vpop.xlane.xlu0 %4788
      %v4790 = vadd.f32 %v4677, %v4679
      %4791 = vadd.xlane.f32.xlu0 %v4790
      %v4792 = vpop.xlane.xlu0 %4791
      %v4793 = vadd.f32 %v4681, %v4683
      %4794 = vadd.xlane.f32.xlu0 %v4793
      %v4795 = vpop.xlane.xlu0 %4794
      %v4796 = vadd.f32 %v4685, %v4687
      %4797 = vadd.xlane.f32.xlu0 %v4796
      %v4798 = vpop.xlane.xlu0 %4797
      %v4799 = vadd.f32 %v4689, %v4691
      %4800 = vadd.xlane.f32.xlu0 %v4799
      %v4801 = vpop.xlane.xlu0 %4800
      %v4802 = vadd.f32 %v4693, %v4695
      %4803 = vadd.xlane.f32.xlu0 %v4802
      %v4804 = vpop.xlane.xlu0 %4803
      %v4805 = vadd.f32 %v4697, %v4699
      %4806 = vadd.xlane.f32.xlu0 %v4805
      %v4807 = vpop.xlane.xlu0 %4806
      %v4808 = vadd.f32 %v4701, %v4703
      %4809 = vadd.xlane.f32.xlu0 %v4808
      %v4810 = vpop.xlane.xlu0 %4809
      %v4811 = vadd.f32 %v4705, %v4707
      %4812 = vadd.xlane.f32.xlu0 %v4811
      %v4813 = vpop.xlane.xlu0 %4812
      %v4814 = vadd.f32 %v4709, %v4711
      %4815 = vadd.xlane.f32.xlu0 %v4814
      %v4816 = vpop.xlane.xlu0 %4815
      %v4817 = vadd.f32 %v4713, %v4715
      %4818 = vadd.xlane.f32.xlu0 %v4817
      %v4819 = vpop.xlane.xlu0 %4818
      %v4820 = vadd.f32 %v4717, %v4719
      %4821 = vadd.xlane.f32.xlu0 %v4820
      %v4822 = vpop.xlane.xlu0 %4821
      %v4823 = vadd.f32 %v4721, %v4723
      %4824 = vadd.xlane.f32.xlu0 %v4823
      %v4825 = vpop.xlane.xlu0 %4824
      %v4826 = vadd.f32 %v4725, %v4727
      %4827 = vadd.xlane.f32.xlu0 %v4826
      %v4828 = vpop.xlane.xlu0 %4827
      %v4829 = vadd.f32 %v4729, %v4731
      %4830 = vadd.xlane.f32.xlu0 %v4829
      %v4831 = vpop.xlane.xlu0 %4830
      %v4832 = vadd.f32 %v4733, %v4735
      %4833 = vadd.xlane.f32.xlu0 %v4832
      %v4834 = vpop.xlane.xlu0 %4833
      %v4835 = vadd.f32 %v4737, %v4739
      %4836 = vadd.xlane.f32.xlu0 %v4835
      %v4837 = vpop.xlane.xlu0 %4836
      %v4838 = vadd.f32 %v4741, %v4743
      %4839 = vadd.xlane.f32.xlu0 %v4838
      %v4840 = vpop.xlane.xlu0 %4839
      %v4841 = vadd.f32 %v4745, %v4747
      %4842 = vadd.xlane.f32.xlu0 %v4841
      %v4843 = vpop.xlane.xlu0 %4842
      %v4844 = vrcp.pop %v4750
      %v4845 = vrcp.pop %v4753
      %v4846 = vrcp.pop %v4756
      %v4847 = vrcp.pop %v4759
      %v4848 = vrcp.pop %v4762
      %v4849 = vrcp.pop %v4765
      %v4850 = vrcp.pop %v4768
      %v4851 = vrcp.pop %v4771
      %v4852 = vrcp.pop %v4774
      %v4853 = vrcp.pop %v4777
      %v4854 = vrcp.pop %v4780
      %v4855 = vrcp.pop %v4783
      %v4856 = vrcp.pop %v4786
      %v4857 = vrcp.pop %v4789
      %v4858 = vrcp.pop %v4792
      %v4859 = vrcp.pop %v4795
      %v4860 = vrcp.pop %v4798
      %v4861 = vrcp.pop %v4801
      %v4862 = vrcp.pop %v4804
      %v4863 = vrcp.pop %v4807
      %v4864 = vrcp.pop %v4810
      %v4865 = vrcp.pop %v4813
      %v4866 = vrcp.pop %v4816
      %v4867 = vrcp.pop %v4819
      %v4868 = vrcp.pop %v4822
      %v4869 = vrcp.pop %v4825
      %v4870 = vrcp.pop %v4828
      %v4871 = vrcp.pop %v4831
      %v4872 = vrcp.pop %v4834
      %v4873 = vrcp.pop %v4837
      %v4874 = vrcp.pop %v4840
      %v4875 = vrcp.pop %v4843
      %v4876 = vmul.f32 %v4621, %v4844
      %v4877 = vmul.f32 %v4623, %v4844
      %v4878 = vmul.f32 %v4625, %v4845
      %v4879 = vmul.f32 %v4627, %v4845
      %v4880 = vmul.f32 %v4629, %v4846
      %v4881 = vmul.f32 %v4631, %v4846
      %v4882 = vmul.f32 %v4633, %v4847
      %v4883 = vmul.f32 %v4635, %v4847
      %v4884 = vmul.f32 %v4637, %v4848
      %v4885 = vmul.f32 %v4639, %v4848
      %v4886 = vmul.f32 %v4641, %v4849
      %v4887 = vmul.f32 %v4643, %v4849
      %v4888 = vmul.f32 %v4645, %v4850
      %v4889 = vmul.f32 %v4647, %v4850
      %v4890 = vmul.f32 %v4649, %v4851
      %v4891 = vmul.f32 %v4651, %v4851
      %v4892 = vmul.f32 %v4653, %v4852
      %v4893 = vmul.f32 %v4655, %v4852
      %v4894 = vmul.f32 %v4657, %v4853
      %v4895 = vmul.f32 %v4659, %v4853
      %v4896 = vmul.f32 %v4661, %v4854
      %v4897 = vmul.f32 %v4663, %v4854
      %v4898 = vmul.f32 %v4665, %v4855
      %v4899 = vmul.f32 %v4667, %v4855
      %v4900 = vmul.f32 %v4669, %v4856
      %v4901 = vmul.f32 %v4671, %v4856
      %v4902 = vmul.f32 %v4673, %v4857
      %v4903 = vmul.f32 %v4675, %v4857
      %v4904 = vmul.f32 %v4677, %v4858
      %v4905 = vmul.f32 %v4679, %v4858
      %v4906 = vmul.f32 %v4681, %v4859
      %v4907 = vmul.f32 %v4683, %v4859
      %v4908 = vmul.f32 %v4685, %v4860
      %v4909 = vmul.f32 %v4687, %v4860
      %v4910 = vmul.f32 %v4689, %v4861
      %v4911 = vmul.f32 %v4691, %v4861
      %v4912 = vmul.f32 %v4693, %v4862
      %v4913 = vmul.f32 %v4695, %v4862
      %v4914 = vmul.f32 %v4697, %v4863
      %v4915 = vmul.f32 %v4699, %v4863
      %v4916 = vmul.f32 %v4701, %v4864
      %v4917 = vmul.f32 %v4703, %v4864
      %v4918 = vmul.f32 %v4705, %v4865
      %v4919 = vmul.f32 %v4707, %v4865
      %v4920 = vmul.f32 %v4709, %v4866
      %v4921 = vmul.f32 %v4711, %v4866
      %v4922 = vmul.f32 %v4713, %v4867
      %v4923 = vmul.f32 %v4715, %v4867
      %v4924 = vmul.f32 %v4717, %v4868
      %v4925 = vmul.f32 %v4719, %v4868
      %v4926 = vmul.f32 %v4721, %v4869
      %v4927 = vmul.f32 %v4723, %v4869
      %v4928 = vmul.f32 %v4725, %v4870
      %v4929 = vmul.f32 %v4727, %v4870
      %v4930 = vmul.f32 %v4729, %v4871
      %v4931 = vmul.f32 %v4731, %v4871
      %v4932 = vmul.f32 %v4733, %v4872
      %v4933 = vmul.f32 %v4735, %v4872
      %v4934 = vmul.f32 %v4737, %v4873
      %v4935 = vmul.f32 %v4739, %v4873
      %v4936 = vmul.f32 %v4741, %v4874
      %v4937 = vmul.f32 %v4743, %v4874
      %v4938 = vmul.f32 %v4745, %v4875
      %v4939 = vmul.f32 %v4747, %v4875
      %v4940 = vpack.c.bf16 %v4878, %v4876
      %v4941 = vpack.c.bf16 %v4879, %v4877
      %v4942 = vpack.c.bf16 %v4882, %v4880
      %v4943 = vpack.c.bf16 %v4883, %v4881
      %v4944 = vpack.c.bf16 %v4886, %v4884
      %v4945 = vpack.c.bf16 %v4887, %v4885
      %v4946 = vpack.c.bf16 %v4890, %v4888
      %v4947 = vpack.c.bf16 %v4891, %v4889
      %v4948 = vpack.c.bf16 %v4894, %v4892
      %v4949 = vpack.c.bf16 %v4895, %v4893
      %v4950 = vpack.c.bf16 %v4898, %v4896
      %v4951 = vpack.c.bf16 %v4899, %v4897
      %v4952 = vpack.c.bf16 %v4902, %v4900
      %v4953 = vpack.c.bf16 %v4903, %v4901
      %v4954 = vpack.c.bf16 %v4906, %v4904
      %v4955 = vpack.c.bf16 %v4907, %v4905
      %v4956 = vpack.c.bf16 %v4910, %v4908
      %v4957 = vpack.c.bf16 %v4911, %v4909
      %v4958 = vpack.c.bf16 %v4914, %v4912
      %v4959 = vpack.c.bf16 %v4915, %v4913
      %v4960 = vpack.c.bf16 %v4918, %v4916
      %v4961 = vpack.c.bf16 %v4919, %v4917
      %v4962 = vpack.c.bf16 %v4922, %v4920
      %v4963 = vpack.c.bf16 %v4923, %v4921
      %v4964 = vpack.c.bf16 %v4926, %v4924
      %v4965 = vpack.c.bf16 %v4927, %v4925
      %v4966 = vpack.c.bf16 %v4930, %v4928
      %v4967 = vpack.c.bf16 %v4931, %v4929
      %v4968 = vpack.c.bf16 %v4934, %v4932
      %v4969 = vpack.c.bf16 %v4935, %v4933
      %v4970 = vpack.c.bf16 %v4938, %v4936
      %v4971 = vpack.c.bf16 %v4939, %v4937
      %v4973 = vunpack.c.l.b16 %v896
      %v4974 = vunpack.c.h.b16 %v896
      %v4975 = vpack.c.b16 %v4973, %v4973
      %v4976 = vpack.c.b16 %v4974, %v4974
      %4979 = vmatpush.bf16.xpose.msra.mxu0 %v4954
      %4980 = vmatpush.bf16.xpose.msra.mxu0 %v4952
      %4981 = vmatpush.bf16.xpose.msra.mxu0 %v4950
      %4982 = vmatpush.bf16.xpose.msra.mxu0 %v4948
      %4983 = vmatpush.bf16.xpose.msra.mxu0 %v4946
      %4984 = vmatpush.bf16.xpose.msra.mxu0 %v4944
      %4985 = vmatpush.bf16.xpose.msra.mxu0 %v4942
      %4986 = vmatpush.bf16.xpose.msra.mxu0 %v4940
      %4987 = vmatmul.bf16.gmra.mxu0 %v4975
      %v4988 = vpop.f32.mrf.mxu0
      %v4989 = vadd.f32 0.0, %v4988
      %v4990 = vpop.f32.mrf.mxu0
      %4991 = vdwg.mxu0
      %4992 = vmatpush.bf16.xpose.msra.mxu0 %v4955
      %4993 = vmatpush.bf16.xpose.msra.mxu0 %v4953
      %4994 = vmatpush.bf16.xpose.msra.mxu0 %v4951
      %4995 = vmatpush.bf16.xpose.msra.mxu0 %v4949
      %4996 = vmatpush.bf16.xpose.msra.mxu0 %v4947
      %4997 = vmatpush.bf16.xpose.msra.mxu0 %v4945
      %4998 = vmatpush.bf16.xpose.msra.mxu0 %v4943
      %4999 = vmatpush.bf16.xpose.msra.mxu0 %v4941
      %5000 = vmatmul.bf16.gmra.mxu0 %v4976
      %v5001 = vpop.f32.mrf.mxu0
      %v5002 = vadd.f32 %v4989, %v5001
      %v5003 = vpop.f32.mrf.mxu0
      %5004 = vdwg.mxu0
      %5005 = vmatpush.bf16.xpose.msra.mxu0 %v4970
      %5006 = vmatpush.bf16.xpose.msra.mxu0 %v4968
      %5007 = vmatpush.bf16.xpose.msra.mxu0 %v4966
      %5008 = vmatpush.bf16.xpose.msra.mxu0 %v4964
      %5009 = vmatpush.bf16.xpose.msra.mxu0 %v4962
      %5010 = vmatpush.bf16.xpose.msra.mxu0 %v4960
      %5011 = vmatpush.bf16.xpose.msra.mxu0 %v4958
      %5012 = vmatpush.bf16.xpose.msra.mxu0 %v4956
      %5013 = vmatmul.bf16.gmra.mxu0 %v4975
      %v5014 = vpop.f32.mrf.mxu0
      %v5015 = vadd.f32 0.0, %v5014
      %v5016 = vpop.f32.mrf.mxu0
      %5017 = vdwg.mxu0
      %5018 = vmatpush.bf16.xpose.msra.mxu0 %v4971
      %5019 = vmatpush.bf16.xpose.msra.mxu0 %v4969
      %5020 = vmatpush.bf16.xpose.msra.mxu0 %v4967
      %5021 = vmatpush.bf16.xpose.msra.mxu0 %v4965
      %5022 = vmatpush.bf16.xpose.msra.mxu0 %v4963
      %5023 = vmatpush.bf16.xpose.msra.mxu0 %v4961
      %5024 = vmatpush.bf16.xpose.msra.mxu0 %v4959
      %5025 = vmatpush.bf16.xpose.msra.mxu0 %v4957
      %5026 = vmatmul.bf16.gmra.mxu0 %v4976
      %v5027 = vpop.f32.mrf.mxu0
      %v5028 = vadd.f32 %v5015, %v5027
      %v5029 = vpop.f32.mrf.mxu0
      %5030 = vdwg.mxu0
      %5031 = vxpose.xlu0.b32.start [1/16] %v2067, 128
      %5032 = vxpose.xlu0.b32.cont [2/16] %v3024, 128
      %5033 = vxpose.xlu0.b32.cont [3/16] %v4013, 128
      %5034 = vxpose.xlu0.b32.cont [4/16] %v5002, 128
      %5035 = vxpose.xlu0.b32.cont [5/16] 0.0, 128
      %5036 = vxpose.xlu0.b32.cont [6/16] 0.0, 128
      %5037 = vxpose.xlu0.b32.cont [7/16] 0.0, 128
      %5038 = vxpose.xlu0.b32.cont [8/16] 0.0, 128
      %5039 = vxpose.xlu0.b32.cont [9/16] 0.0, 128
      %5040 = vxpose.xlu0.b32.cont [10/16] 0.0, 128
      %5041 = vxpose.xlu0.b32.cont [11/16] 0.0, 128
      %5042 = vxpose.xlu0.b32.cont [12/16] 0.0, 128
      %5043 = vxpose.xlu0.b32.cont [13/16] 0.0, 128
      %5044 = vxpose.xlu0.b32.cont [14/16] 0.0, 128
      %5045 = vxpose.xlu0.b32.cont [15/16] 0.0, 128
      %5046 = vxpose.xlu0.b32.end [16/16] 0.0, 128
      %v5047 = vpop.trf.xlu0
      %v5048 = vpop.trf.xlu0
      %v5049 = vpop.trf.xlu0
      %v5050 = vpop.trf.xlu0
      %v5051 = vpop.trf.xlu0
      %v5052 = vpop.trf.xlu0
      %v5053 = vpop.trf.xlu0
      %v5054 = vpop.trf.xlu0
      %v5055 = vpop.trf.xlu0
      %v5056 = vpop.trf.xlu0
      %v5057 = vpop.trf.xlu0
      %v5058 = vpop.trf.xlu0
      %v5059 = vpop.trf.xlu0
      %v5060 = vpop.trf.xlu0
      %v5061 = vpop.trf.xlu0
      %v5062 = vpop.trf.xlu0
      %5063 = vxpose.xlu0.b32.start [1/16] %v2093, 128
      %5064 = vxpose.xlu0.b32.cont [2/16] %v3050, 128
      %5065 = vxpose.xlu0.b32.cont [3/16] %v4039, 128
      %5066 = vxpose.xlu0.b32.cont [4/16] %v5028, 128
      %5067 = vxpose.xlu0.b32.cont [5/16] 0.0, 128
      %5068 = vxpose.xlu0.b32.cont [6/16] 0.0, 128
      %5069 = vxpose.xlu0.b32.cont [7/16] 0.0, 128
      %5070 = vxpose.xlu0.b32.cont [8/16] 0.0, 128
      %5071 = vxpose.xlu0.b32.cont [9/16] 0.0, 128
      %5072 = vxpose.xlu0.b32.cont [10/16] 0.0, 128
      %5073 = vxpose.xlu0.b32.cont [11/16] 0.0, 128
      %5074 = vxpose.xlu0.b32.cont [12/16] 0.0, 128
      %5075 = vxpose.xlu0.b32.cont [13/16] 0.0, 128
      %5076 = vxpose.xlu0.b32.cont [14/16] 0.0, 128
      %5077 = vxpose.xlu0.b32.cont [15/16] 0.0, 128
      %5078 = vxpose.xlu0.b32.end [16/16] 0.0, 128
      %v5079 = vpop.trf.xlu0
      %v5080 = vpop.trf.xlu0
      %v5081 = vpop.trf.xlu0
      %v5082 = vpop.trf.xlu0
      %v5083 = vpop.trf.xlu0
      %v5084 = vpop.trf.xlu0
      %v5085 = vpop.trf.xlu0
      %v5086 = vpop.trf.xlu0
      %v5087 = vpop.trf.xlu0
      %v5088 = vpop.trf.xlu0
      %v5089 = vpop.trf.xlu0
      %v5090 = vpop.trf.xlu0
      %v5091 = vpop.trf.xlu0
      %v5092 = vpop.trf.xlu0
      %v5093 = vpop.trf.xlu0
      %v5094 = vpop.trf.xlu0
      %v5095 = vpack.c.bf16 %v5047, %v5047
      %v5096 = vpack.c.bf16 %v5048, %v5048
      %v5097 = vpack.c.bf16 %v5049, %v5049
      %v5098 = vpack.c.bf16 %v5050, %v5050
      %v5099 = vpack.c.bf16 %v5051, %v5051
      %v5100 = vpack.c.bf16 %v5052, %v5052
      %v5101 = vpack.c.bf16 %v5053, %v5053
      %v5102 = vpack.c.bf16 %v5054, %v5054
      %v5103 = vpack.c.bf16 %v5055, %v5055
      %v5104 = vpack.c.bf16 %v5056, %v5056
      %v5105 = vpack.c.bf16 %v5057, %v5057
      %v5106 = vpack.c.bf16 %v5058, %v5058
      %v5107 = vpack.c.bf16 %v5059, %v5059
      %v5108 = vpack.c.bf16 %v5060, %v5060
      %v5109 = vpack.c.bf16 %v5061, %v5061
      %v5110 = vpack.c.bf16 %v5062, %v5062
      %v5111 = vpack.c.bf16 %v5079, %v5079
      %v5112 = vpack.c.bf16 %v5080, %v5080
      %v5113 = vpack.c.bf16 %v5081, %v5081
      %v5114 = vpack.c.bf16 %v5082, %v5082
      %v5115 = vpack.c.bf16 %v5083, %v5083
      %v5116 = vpack.c.bf16 %v5084, %v5084
      %v5117 = vpack.c.bf16 %v5085, %v5085
      %v5118 = vpack.c.bf16 %v5086, %v5086
      %v5119 = vpack.c.bf16 %v5087, %v5087
      %v5120 = vpack.c.bf16 %v5088, %v5088
      %v5121 = vpack.c.bf16 %v5089, %v5089
      %v5122 = vpack.c.bf16 %v5090, %v5090
      %v5123 = vpack.c.bf16 %v5091, %v5091
      %v5124 = vpack.c.bf16 %v5092, %v5092
      %v5125 = vpack.c.bf16 %v5093, %v5093
      %v5126 = vpack.c.bf16 %v5094, %v5094
      %vm5127 = vcmask 257024
      %5128 = vst.msk [vmem:[%s318] sm:$0xf] %vm5127, %v5095
      %5129 = vst.msk [vmem:[%s318 + $0x4] sm:$0xf] %vm5127, %v5096
      %5130 = vst.msk [vmem:[%s318 + $0x8] sm:$0xf] %vm5127, %v5097
      %5131 = vst.msk [vmem:[%s318 + $0xc] sm:$0xf] %vm5127, %v5098
      %5132 = vst.msk [vmem:[%s318 + $0x10] sm:$0xf] %vm5127, %v5099
      %5133 = vst.msk [vmem:[%s318 + $0x14] sm:$0xf] %vm5127, %v5100
      %5134 = vst.msk [vmem:[%s318 + $0x18] sm:$0xf] %vm5127, %v5101
      %5135 = vst.msk [vmem:[%s318 + $0x1c] sm:$0xf] %vm5127, %v5102
      %5136 = vst.msk [vmem:[%s318 + $0x20] sm:$0xf] %vm5127, %v5103
      %5137 = vst.msk [vmem:[%s318 + $0x24] sm:$0xf] %vm5127, %v5104
      %5138 = vst.msk [vmem:[%s318 + $0x28] sm:$0xf] %vm5127, %v5105
      %5139 = vst.msk [vmem:[%s318 + $0x2c] sm:$0xf] %vm5127, %v5106
      %5140 = vst.msk [vmem:[%s318 + $0x30] sm:$0xf] %vm5127, %v5107
      %5141 = vst.msk [vmem:[%s318 + $0x34] sm:$0xf] %vm5127, %v5108
      %5142 = vst.msk [vmem:[%s318 + $0x38] sm:$0xf] %vm5127, %v5109
      %5143 = vst.msk [vmem:[%s318 + $0x3c] sm:$0xf] %vm5127, %v5110
      %5144 = vst.msk [vmem:[%s318 + $0x40] sm:$0xf] %vm5127, %v5111
      %5145 = vst.msk [vmem:[%s318 + $0x44] sm:$0xf] %vm5127, %v5112
      %5146 = vst.msk [vmem:[%s318 + $0x48] sm:$0xf] %vm5127, %v5113
      %5147 = vst.msk [vmem:[%s318 + $0x4c] sm:$0xf] %vm5127, %v5114
      %5148 = vst.msk [vmem:[%s318 + $0x50] sm:$0xf] %vm5127, %v5115
      %5149 = vst.msk [vmem:[%s318 + $0x54] sm:$0xf] %vm5127, %v5116
      %5150 = vst.msk [vmem:[%s318 + $0x58] sm:$0xf] %vm5127, %v5117
      %5151 = vst.msk [vmem:[%s318 + $0x5c] sm:$0xf] %vm5127, %v5118
      %5152 = vst.msk [vmem:[%s318 + $0x60] sm:$0xf] %vm5127, %v5119
      %5153 = vst.msk [vmem:[%s318 + $0x64] sm:$0xf] %vm5127, %v5120
      %5154 = vst.msk [vmem:[%s318 + $0x68] sm:$0xf] %vm5127, %v5121
      %5155 = vst.msk [vmem:[%s318 + $0x6c] sm:$0xf] %vm5127, %v5122
      %5156 = vst.msk [vmem:[%s318 + $0x70] sm:$0xf] %vm5127, %v5123
      %5157 = vst.msk [vmem:[%s318 + $0x74] sm:$0xf] %vm5127, %v5124
      %5158 = vst.msk [vmem:[%s318 + $0x78] sm:$0xf] %vm5127, %v5125
      %5159 = vst.msk [vmem:[%s318 + $0x7c] sm:$0xf] %vm5127, %v5126
      %v5160 = vsel %vm531, %v5047, 0.0
      %v5161 = vsel %vm531, %v5048, 0.0
      %v5162 = vadd.f32 %v5160, %v5161
      %v5163 = vsel %vm531, %v5049, 0.0
      %v5164 = vadd.f32 %v5162, %v5163
      %v5165 = vsel %vm531, %v5050, 0.0
      %v5166 = vadd.f32 %v5164, %v5165
      %v5167 = vsel %vm531, %v5051, 0.0
      %v5168 = vadd.f32 %v5166, %v5167
      %v5169 = vsel %vm531, %v5052, 0.0
      %v5170 = vadd.f32 %v5168, %v5169
      %v5171 = vsel %vm531, %v5053, 0.0
      %v5172 = vadd.f32 %v5170, %v5171
      %v5173 = vsel %vm531, %v5054, 0.0
      %v5174 = vadd.f32 %v5172, %v5173
      %v5175 = vsel %vm531, %v5055, 0.0
      %v5176 = vadd.f32 %v5174, %v5175
      %v5177 = vsel %vm531, %v5056, 0.0
      %v5178 = vadd.f32 %v5176, %v5177
      %v5179 = vsel %vm531, %v5057, 0.0
      %v5180 = vadd.f32 %v5178, %v5179
      %v5181 = vsel %vm531, %v5058, 0.0
      %v5182 = vadd.f32 %v5180, %v5181
      %v5183 = vsel %vm531, %v5059, 0.0
      %v5184 = vadd.f32 %v5182, %v5183
      %v5185 = vsel %vm531, %v5060, 0.0
      %v5186 = vadd.f32 %v5184, %v5185
      %v5187 = vsel %vm531, %v5061, 0.0
      %v5188 = vadd.f32 %v5186, %v5187
      %v5189 = vsel %vm531, %v5062, 0.0
      %v5190 = vadd.f32 %v5188, %v5189
      %v5191 = vsel %vm531, %v5079, 0.0
      %v5192 = vadd.f32 %v5190, %v5191
      %v5193 = vsel %vm531, %v5080, 0.0
      %v5194 = vadd.f32 %v5192, %v5193
      %v5195 = vsel %vm531, %v5081, 0.0
      %v5196 = vadd.f32 %v5194, %v5195
      %v5197 = vsel %vm531, %v5082, 0.0
      %v5198 = vadd.f32 %v5196, %v5197
      %v5199 = vsel %vm531, %v5083, 0.0
      %v5200 = vadd.f32 %v5198, %v5199
      %v5201 = vsel %vm531, %v5084, 0.0
      %v5202 = vadd.f32 %v5200, %v5201
      %v5203 = vsel %vm531, %v5085, 0.0
      %v5204 = vadd.f32 %v5202, %v5203
      %v5205 = vsel %vm531, %v5086, 0.0
      %v5206 = vadd.f32 %v5204, %v5205
      %v5207 = vsel %vm531, %v5087, 0.0
      %v5208 = vadd.f32 %v5206, %v5207
      %v5209 = vsel %vm531, %v5088, 0.0
      %v5210 = vadd.f32 %v5208, %v5209
      %v5211 = vsel %vm531, %v5089, 0.0
      %v5212 = vadd.f32 %v5210, %v5211
      %v5213 = vsel %vm531, %v5090, 0.0
      %v5214 = vadd.f32 %v5212, %v5213
      %v5215 = vsel %vm531, %v5091, 0.0
      %v5216 = vadd.f32 %v5214, %v5215
      %v5217 = vsel %vm531, %v5092, 0.0
      %v5218 = vadd.f32 %v5216, %v5217
      %v5219 = vsel %vm531, %v5093, 0.0
      %v5220 = vadd.f32 %v5218, %v5219
      %v5221 = vsel %vm531, %v5094, 0.0
      %v5222 = vadd.f32 %v5220, %v5221
      %v5223 = vrot.slane %v5222, 4
      %v5224 = vadd.f32 %v5222, %v5223
      %v5225 = vrot.slane %v5224, 2
      %v5226 = vadd.f32 %v5224, %v5225
      %v5227 = vrot.slane %v5226, 1
      %v5228 = vadd.f32 %v5226, %v5227
      %vm5229 = vcmask 253952
      %5230 = vst.msk [vmem:[%s322] sm:$0x1] %vm5229, %v5228
      %v5231 = vmul.f32 %v5047, %v5047
      %v5232 = vmul.f32 %v5048, %v5048
      %v5233 = vmul.f32 %v5049, %v5049
      %v5234 = vmul.f32 %v5050, %v5050
      %v5235 = vmul.f32 %v5051, %v5051
      %v5236 = vmul.f32 %v5052, %v5052
      %v5237 = vmul.f32 %v5053, %v5053
      %v5238 = vmul.f32 %v5054, %v5054
      %v5239 = vmul.f32 %v5055, %v5055
      %v5240 = vmul.f32 %v5056, %v5056
      %v5241 = vmul.f32 %v5057, %v5057
      %v5242 = vmul.f32 %v5058, %v5058
      %v5243 = vmul.f32 %v5059, %v5059
      %v5244 = vmul.f32 %v5060, %v5060
      %v5245 = vmul.f32 %v5061, %v5061
      %v5246 = vmul.f32 %v5062, %v5062
      %v5247 = vmul.f32 %v5079, %v5079
      %v5248 = vmul.f32 %v5080, %v5080
      %v5249 = vmul.f32 %v5081, %v5081
      %v5250 = vmul.f32 %v5082, %v5082
      %v5251 = vmul.f32 %v5083, %v5083
      %v5252 = vmul.f32 %v5084, %v5084
      %v5253 = vmul.f32 %v5085, %v5085
      %v5254 = vmul.f32 %v5086, %v5086
      %v5255 = vmul.f32 %v5087, %v5087
      %v5256 = vmul.f32 %v5088, %v5088
      %v5257 = vmul.f32 %v5089, %v5089
      %v5258 = vmul.f32 %v5090, %v5090
      %v5259 = vmul.f32 %v5091, %v5091
      %v5260 = vmul.f32 %v5092, %v5092
      %v5261 = vmul.f32 %v5093, %v5093
      %v5262 = vmul.f32 %v5094, %v5094
      %v5263 = vsel %vm531, %v5231, 0.0
      %v5264 = vsel %vm531, %v5232, 0.0
      %v5265 = vadd.f32 %v5263, %v5264
      %v5266 = vsel %vm531, %v5233, 0.0
      %v5267 = vadd.f32 %v5265, %v5266
      %v5268 = vsel %vm531, %v5234, 0.0
      %v5269 = vadd.f32 %v5267, %v5268
      %v5270 = vsel %vm531, %v5235, 0.0
      %v5271 = vadd.f32 %v5269, %v5270
      %v5272 = vsel %vm531, %v5236, 0.0
      %v5273 = vadd.f32 %v5271, %v5272
      %v5274 = vsel %vm531, %v5237, 0.0
      %v5275 = vadd.f32 %v5273, %v5274
      %v5276 = vsel %vm531, %v5238, 0.0
      %v5277 = vadd.f32 %v5275, %v5276
      %v5278 = vsel %vm531, %v5239, 0.0
      %v5279 = vadd.f32 %v5277, %v5278
      %v5280 = vsel %vm531, %v5240, 0.0
      %v5281 = vadd.f32 %v5279, %v5280
      %v5282 = vsel %vm531, %v5241, 0.0
      %v5283 = vadd.f32 %v5281, %v5282
      %v5284 = vsel %vm531, %v5242, 0.0
      %v5285 = vadd.f32 %v5283, %v5284
      %v5286 = vsel %vm531, %v5243, 0.0
      %v5287 = vadd.f32 %v5285, %v5286
      %v5288 = vsel %vm531, %v5244, 0.0
      %v5289 = vadd.f32 %v5287, %v5288
      %v5290 = vsel %vm531, %v5245, 0.0
      %v5291 = vadd.f32 %v5289, %v5290
      %v5292 = vsel %vm531, %v5246, 0.0
      %v5293 = vadd.f32 %v5291, %v5292
      %v5294 = vsel %vm531, %v5247, 0.0
      %v5295 = vadd.f32 %v5293, %v5294
      %v5296 = vsel %vm531, %v5248, 0.0
      %v5297 = vadd.f32 %v5295, %v5296
      %v5298 = vsel %vm531, %v5249, 0.0
      %v5299 = vadd.f32 %v5297, %v5298
      %v5300 = vsel %vm531, %v5250, 0.0
      %v5301 = vadd.f32 %v5299, %v5300
      %v5302 = vsel %vm531, %v5251, 0.0
      %v5303 = vadd.f32 %v5301, %v5302
      %v5304 = vsel %vm531, %v5252, 0.0
      %v5305 = vadd.f32 %v5303, %v5304
      %v5306 = vsel %vm531, %v5253, 0.0
      %v5307 = vadd.f32 %v5305, %v5306
      %v5308 = vsel %vm531, %v5254, 0.0
      %v5309 = vadd.f32 %v5307, %v5308
      %v5310 = vsel %vm531, %v5255, 0.0
      %v5311 = vadd.f32 %v5309, %v5310
      %v5312 = vsel %vm531, %v5256, 0.0
      %v5313 = vadd.f32 %v5311, %v5312
      %v5314 = vsel %vm531, %v5257, 0.0
      %v5315 = vadd.f32 %v5313, %v5314
      %v5316 = vsel %vm531, %v5258, 0.0
      %v5317 = vadd.f32 %v5315, %v5316
      %v5318 = vsel %vm531, %v5259, 0.0
      %v5319 = vadd.f32 %v5317, %v5318
      %v5320 = vsel %vm531, %v5260, 0.0
      %v5321 = vadd.f32 %v5319, %v5320
      %v5322 = vsel %vm531, %v5261, 0.0
      %v5323 = vadd.f32 %v5321, %v5322
      %v5324 = vsel %vm531, %v5262, 0.0
      %v5325 = vadd.f32 %v5323, %v5324
      %v5326 = vrot.slane %v5325, 4
      %v5327 = vadd.f32 %v5325, %v5326
      %v5328 = vrot.slane %v5327, 2
      %v5329 = vadd.f32 %v5327, %v5328
      %v5330 = vrot.slane %v5329, 1
      %v5331 = vadd.f32 %v5329, %v5330
      %5332 = vst.msk [vmem:[%s325] sm:$0x1] %vm5229, %v5331
      %s5333 = smul.u32 32, %s20
      %p5334 = scmp.lt.s32.totalorder %s5333, 63
      %s5335 = scalar_select %p5334, %s5333, 63
      %s5336 = smul.addr %s5335, 4
      %s5337 = scalar_lea.vmem %s6, %s5336
      %p5338 = scmp.lt.s32.totalorder %s20, 1
      %s5339 = scalar_select %p5338, %s20, 1
      %s5340 = scalar_lea.vmem %s7, %s5339
      %p5341 = scmp.lt.s32.totalorder %s20, 1
      %s5342 = scalar_select %p5341, %s20, 1
      %s5343 = scalar_lea.vmem %s8, %s5342
      // Predicated region
      $region45: #{bottleneck_transformer_forward.5} parent=43 // pred_check
        %p5344 = pneg %p169
      $region46: #{bottleneck_transformer_forward.5} parent=43 // pred_check_branch
        %5346 = sbr.rel (%p5344) target = $region48
      $region47: #{bottleneck_transformer_forward.5} parent=43 // pred_region
        %s5347 = smul.u32 32, %s20
      $region48: #{bottleneck_transformer_forward.5} parent=43 // pred_fallthru
        _
      // Predicated region
      $region49: #{bottleneck_transformer_forward.5} parent=43 // pred_check
        %p5348 = pneg %p195
      $region50: #{bottleneck_transformer_forward.5} parent=43 // pred_check_branch
        %5350 = sbr.rel (%p5348) target = $region52
      $region51: #{bottleneck_transformer_forward.5} parent=43 // pred_region
        _
      $region52: #{bottleneck_transformer_forward.5} parent=43 // pred_fallthru
        _
      // Predicated region
      $region53: #{bottleneck_transformer_forward.5} parent=43 // pred_check
        %p5351 = pneg %p221
      $region54: #{bottleneck_transformer_forward.5} parent=43 // pred_check_branch
        %5353 = sbr.rel (%p5351) target = $region56
      $region55: #{bottleneck_transformer_forward.5} parent=43 // pred_region
        _
      $region56: #{bottleneck_transformer_forward.5} parent=43 // pred_fallthru
        _
    $region44: #{bottleneck_transformer_forward.5} parent=5 // pred_fallthru
      _
    %p5354 = scmp.le.s32.totalorder 2, %s15
    // Predicated region
    $region57: #{bottleneck_transformer_forward.5} parent=5 // pred_check
      %p5355 = pneg %p5354
    $region58: #{bottleneck_transformer_forward.5} parent=5 // pred_check_branch
      %5357 = sbr.rel (%p5355) target = $region60
    $region59: #{bottleneck_transformer_forward.5} parent=5 // pred_region
      %s5358 = ssub.s32 %s15, 2
      // Predicated region
      $region61: #{bottleneck_transformer_forward.5} parent=59 // pred_check
        %p5359 = pneg %p175
      $region62: #{bottleneck_transformer_forward.5} parent=59 // pred_check_branch
        %5361 = sbr.rel (%p5359) target = $region64
      $region63: #{bottleneck_transformer_forward.5} parent=59 // pred_region
        %s5362 = smul.u32 32, %s21
        %p5363 = scmp.lt.s32.totalorder %s5362, 63
        %s5364 = scalar_select %p5363, %s5362, 63
        %s5365 = smul.addr %s5364, 4
        %s5366 = scalar_lea.vmem %s6, %s5365
      $region64: #{bottleneck_transformer_forward.5} parent=59 // pred_fallthru
        _
      // Predicated region
      $region65: #{bottleneck_transformer_forward.5} parent=59 // pred_check
        %p5367 = pneg %p201
      $region66: #{bottleneck_transformer_forward.5} parent=59 // pred_check_branch
        %5369 = sbr.rel (%p5367) target = $region68
      $region67: #{bottleneck_transformer_forward.5} parent=59 // pred_region
        %p5370 = scmp.lt.s32.totalorder %s21, 1
        %s5371 = scalar_select %p5370, %s21, 1
        %s5372 = scalar_lea.vmem %s7, %s5371
      $region68: #{bottleneck_transformer_forward.5} parent=59 // pred_fallthru
        _
      // Predicated region
      $region69: #{bottleneck_transformer_forward.5} parent=59 // pred_check
        %p5373 = pneg %p227
      $region70: #{bottleneck_transformer_forward.5} parent=59 // pred_check_branch
        %5375 = sbr.rel (%p5373) target = $region72
      $region71: #{bottleneck_transformer_forward.5} parent=59 // pred_region
        %p5376 = scmp.lt.s32.totalorder %s21, 1
        %s5377 = scalar_select %p5376, %s21, 1
        %s5378 = scalar_lea.vmem %s8, %s5377
      $region72: #{bottleneck_transformer_forward.5} parent=59 // pred_fallthru
        _
    $region60: #{bottleneck_transformer_forward.5} parent=5 // pred_fallthru
      _
  $region6: #{bottleneck_transformer_forward.5} parent=0 // loop_footer
    %s19 = sadd.s32 1, %s15
  $region7: #{bottleneck_transformer_forward.5} parent=0 // loop_footer_branch
    %14 = sbr.rel target = $region3
  $region8: #{bottleneck_transformer_forward.5} parent=0 // loop_exit
    _

</llo_original>
